<compile_context>
chip_gen: v7x
topology: tpu7x:2x2x1
jax: 0.10.0
libtpu: 0.0.40
codegen_flags: <defaults>
</compile_context>

<pallas_src>
import functools

import jax
import jax.numpy as jnp
from jax.experimental import pallas as pl
from jax.experimental.pallas import tpu as pltpu


# ----------------------------- kernel ---------------------------------------


def _layernorm(x, g, b, eps=1e-5):
    # f32 on purpose (v5e VPU/EUP have no bf16).
    mu = jnp.mean(x, axis=-1, keepdims=True)
    var = jnp.mean((x - mu) ** 2, axis=-1, keepdims=True)
    return (x - mu) * jax.lax.rsqrt(var + eps) * g + b


def _block_kernel(
    q_ref, kv_ref,
    g1q_ref, b1q_ref, g1kv_ref, b1kv_ref,
    wq_ref, bq_ref, wk_ref, bk_ref, wv_ref, bv_ref, wo_ref, bo_ref,
    g2_ref, b2_ref,
    w1_ref, bm1_ref, w2_ref, bm2_ref,
    o_ref,
    *, bb, lq, lkv, d, gelu_approximate,
):
    """One CrossAttentionTransformerBlock for a tile of `bb` batch elements.

    q_ref block: (bb, lq, d) f32, kv_ref block: (bb, lkv, d) f32.
    Weight matrices are pre-cast to bf16; biases / LN params stay f32.
    The 1/sqrt(d) softmax scale is pre-folded into wq/bq by the wrapper.
    """
    f32 = jnp.float32
    bf16 = jnp.bfloat16

    # Flatten (bb, L, d) -> (bb*L, d): layout preserving (L % 8 == 0, d == 128),
    # so every matmul below presents M = bb*L rows to the MXU.
    x_q = q_ref[...].reshape(bb * lq, d)      # residual carrier, f32
    x_kv = kv_ref[...].reshape(bb * lkv, d)

    # pre-norms (separate params for query / kv branches); cast to bf16 ONCE
    # (kvn is reused for both the k and v projections).
    qn = _layernorm(x_q, g1q_ref[...], b1q_ref[...]).astype(bf16)
    kvn = _layernorm(x_kv, g1kv_ref[...], b1kv_ref[...]).astype(bf16)

    def proj(a_bf16, w_ref, b_ref):
        # bf16 MXU operands, f32 accumulation, f32 bias add.
        return jnp.dot(a_bf16, w_ref[...], preferred_element_type=f32) + b_ref[...]

    q = proj(qn, wq_ref, bq_ref).reshape(bb, lq, d)     # already scaled by 1/sqrt(d)
    k = proj(kvn, wk_ref, bk_ref).reshape(bb, lkv, d)
    v = proj(kvn, wv_ref, bv_ref).reshape(bb, lkv, d)

    # single-head cross attention, batched over the bb tile.
    # Contract D on both operands -> no explicit k transpose materialized.
    logits = jnp.einsum("bqd,bkd->bqk", q.astype(bf16), k.astype(bf16),
                        preferred_element_type=f32)      # (bb, lq, lkv)

    logits = logits - jnp.max(logits, axis=-1, keepdims=True)
    p = jnp.exp(logits)
    denom = jnp.sum(p, axis=-1, keepdims=True)
    probs = p * pl.reciprocal(denom, approx=True)         # divide -> EUP slot

    ctx = jnp.einsum("bqk,bkd->bqd", probs.astype(bf16), v.astype(bf16),
                     preferred_element_type=f32).reshape(bb * lq, d)
    attn_out = jnp.dot(ctx.astype(bf16), wo_ref[...],
                       preferred_element_type=f32) + bo_ref[...]
    x = x_q + attn_out                                    # residual 1 (f32)

    # MLP branch
    xn = _layernorm(x, g2_ref[...], b2_ref[...]).astype(bf16)
    h = jnp.dot(xn, w1_ref[...], preferred_element_type=f32) + bm1_ref[...]
    if gelu_approximate:
        # tanh GELU -> EUP slot, frees VALU bundles (useful on v5e).
        h = jax.nn.gelu(h, approximate=True)
    else:
        # exact (erf) GELU, f32, matching torch.nn.GELU() default.
        h = 0.5 * h * (1.0 + jax.lax.erf(h * (2.0 ** -0.5)))
    h = jnp.dot(h.astype(bf16), w2_ref[...],
                preferred_element_type=f32) + bm2_ref[...]

    o_ref[...] = (x + h).reshape(bb, lq, d)               # residual 2


# ----------------------------- wrapper ---------------------------------------

_PARAM_ORDER = (
    "g1q", "b1q", "g1kv", "b1kv",
    "wq", "bq", "wk", "bk", "wv", "bv", "wo", "bo",
    "g2", "b2",
    "w1", "bm1", "w2", "bm2",
)


def _choose_batch_tile(B, Lq, target_rows=128):
    """Smallest batch tile Bb (divisor of B) with Bb*Lq >= target_rows while
    keeping >= 2 grid steps (so v7x can shard across its 2 TCs)."""
    divs = [d for d in range(1, B + 1) if B % d == 0]
    good = [d for d in divs if d * Lq >= target_rows and B // d >= 2]
    if good:
        return min(good)
    good = [d for d in divs if B // d >= 2]
    if good:
        return max(good)
    return B


def _vmem_limit_bytes():
    """Per-generation scoped-VMEM budget with headroom (v7x: 64 MiB physical)."""
    try:
        cap = int(pltpu.get_tpu_info().vmem_capacity_bytes)
        return max(32 * 1024 * 1024, min(int(cap * 0.75), 96 * 1024 * 1024))
    except Exception:  # interpret mode / older runtime: conservative default
        return 32 * 1024 * 1024


def _weight_spec(shape, ndim, single_buffer):
    """Grid-invariant block: constant index map; single-buffered if supported."""
    idx = lambda b, nd=ndim: (0,) * nd
    if single_buffer:
        try:
            return pl.BlockSpec(shape, idx, pipeline_mode=pl.Buffered(1))
        except Exception:  # pipeline_mode not available on this jax build
            return pl.BlockSpec(shape, idx)
    return pl.BlockSpec(shape, idx)


def cross_attention_block(query, key_value, params, *, batch_tile=None,
                          single_buffer_weights=True, gelu_approximate=False):
    """query: (B, Lq, D) f32, key_value: (B, Lkv, D) f32 -> (B, Lq, D) f32."""
    B, Lq, D = query.shape
    _, Lkv, _ = key_value.shape
    H = params["w1"].shape[-1]
    scale = 1.0 / (D ** 0.5)

    Bb = _choose_batch_tile(B, Lq) if batch_tile is None else batch_tile
    assert B % Bb == 0, "batch tile must divide batch"
    nb = B // Bb

    # Pre-fold the 1/sqrt(D) softmax scale into the q projection (free).
    kparams = dict(params)
    kparams["wq"] = (params["wq"].astype(jnp.float32) * scale).astype(params["wq"].dtype)
    kparams["bq"] = (params["bq"].astype(jnp.float32) * scale).astype(params["bq"].dtype)

    in_specs = [
        pl.BlockSpec((Bb, Lq, D), lambda b: (b, 0, 0)),
        pl.BlockSpec((Bb, Lkv, D), lambda b: (b, 0, 0)),
    ]
    args = [query, key_value]
    for name in _PARAM_ORDER:
        p = kparams[name]
        in_specs.append(_weight_spec(p.shape, p.ndim, single_buffer_weights))
        args.append(p)

    # Advisory cost estimate so XLA can schedule surrounding ops/collectives.
    flops = (2 * B * Lq * D * D * 2          # q / out projections
             + 2 * B * Lkv * D * D * 2       # k / v projections
             + 2 * B * Lq * Lkv * D * 2      # qk^T + pv
             + 2 * B * Lq * D * H * 2)       # MLP w1 + w2
    transcendentals = B * Lq * (Lkv + H)     # softmax exp + GELU erf/tanh
    bytes_accessed = (2 * query.size + key_value.size) * 4 + sum(
        int(kparams[n].size) * kparams[n].dtype.itemsize for n in _PARAM_ORDER)

    kernel = functools.partial(_block_kernel, bb=Bb, lq=Lq, lkv=Lkv, d=D,
                               gelu_approximate=gelu_approximate)

    return pl.pallas_call(
        kernel,
        out_shape=jax.ShapeDtypeStruct((B, Lq, D), jnp.float32),
        grid=(nb,),
        in_specs=in_specs,
        out_specs=pl.BlockSpec((Bb, Lq, D), lambda b: (b, 0, 0)),
        compiler_params=pltpu.CompilerParams(
            # batch tiles are independent -> megacore-shardable on v7x
            dimension_semantics=("parallel",),
            vmem_limit_bytes=_vmem_limit_bytes(),
        ),
        cost_estimate=pl.CostEstimate(flops=flops,
                                      transcendentals=transcendentals,
                                      bytes_accessed=bytes_accessed),
    )(*args)


# ----------------------------- params / reference ----------------------------


def init_params(key, *, embed_dim, mlp_ratio=4.0):
    D = embed_dim
    H = int(embed_dim * mlp_ratio)
    keys = iter(jax.random.split(key, 12))

    def linear(din, dout):
        kw, kb = jax.random.split(next(keys))
        w = 0.02 * jax.random.normal(kw, (din, dout), jnp.float32)
        b = 0.02 * jax.random.normal(kb, (1, dout), jnp.float32)
        # weights cast to bf16 once (MXU operand dtype); biases stay f32.
        return w.astype(jnp.bfloat16), b

    p = {
        "g1q": jnp.ones((1, D), jnp.float32), "b1q": jnp.zeros((1, D), jnp.float32),
        "g1kv": jnp.ones((1, D), jnp.float32), "b1kv": jnp.zeros((1, D), jnp.float32),
        "g2": jnp.ones((1, D), jnp.float32), "b2": jnp.zeros((1, D), jnp.float32),
    }
    p["wq"], p["bq"] = linear(D, D)
    p["wk"], p["bk"] = linear(D, D)
    p["wv"], p["bv"] = linear(D, D)
    p["wo"], p["bo"] = linear(D, D)
    p["w1"], p["bm1"] = linear(D, H)
    p["w2"], p["bm2"] = linear(H, D)
    return p


def reference_block(query, key_value, params):
    """Pure-JAX f32 reference of CrossAttentionTransformerBlock.forward."""
    f32 = lambda t: t.astype(jnp.float32)

    def ln(x, g, b, eps=1e-5):
        mu = jnp.mean(x, axis=-1, keepdims=True)
        var = jnp.mean((x - mu) ** 2, axis=-1, keepdims=True)
        return (x - mu) / jnp.sqrt(var + eps) * g + b

    D = query.shape[-1]
    qn = ln(query, params["g1q"], params["b1q"])
    kvn = ln(key_value, params["g1kv"], params["b1kv"])
    q = qn @ f32(params["wq"]) + params["bq"]
    k = kvn @ f32(params["wk"]) + params["bk"]
    v = kvn @ f32(params["wv"]) + params["bv"]
    attn = jnp.einsum("bqd,bkd->bqk", q, k) / (D ** 0.5)
    attn = jax.nn.softmax(attn, axis=-1)
    out = jnp.einsum("bqk,bkd->bqd", attn, v) @ f32(params["wo"]) + params["bo"]
    x = query + out
    xn = ln(x, params["g2"], params["b2"])
    h = xn @ f32(params["w1"]) + params["bm1"]
    h = 0.5 * h * (1.0 + jax.lax.erf(h * (2.0 ** -0.5)))
    h = h @ f32(params["w2"]) + params["bm2"]
    return x + h


# ----------------------------- main ------------------------------------------

if __name__ == "__main__":
    # TPU-friendly shapes: D = 128 (one lane width), seq lengths multiples of 8,
    # B = 16 so the batch tile Bb = 8 gives M = Bb*Lq = 128 rows per matmul and
    # a 2-step grid (shardable across v7x's two TensorCores).
    B, Lq, Lkv, D = 16, 16, 32, 128
    mlp_ratio = 4.0

    key = jax.random.PRNGKey(0)
    kp, kq, kkv = jax.random.split(key, 3)
    params = init_params(kp, embed_dim=D, mlp_ratio=mlp_ratio)
    query = jax.random.normal(kq, (B, Lq, D), jnp.float32)
    key_value = jax.random.normal(kkv, (B, Lkv, D), jnp.float32)

    def run(single_buffer):
        fwd = jax.jit(functools.partial(cross_attention_block,
                                        single_buffer_weights=single_buffer))
        out = fwd(query, key_value, params)
        jax.block_until_ready(out)
        return out

    try:
        out = run(True)
    except Exception:
        # Fallback if this jax build rejects Buffered(1) single-buffering.
        out = run(False)

    assert out.shape == (B, Lq, D) and out.dtype == jnp.float32
    assert bool(jnp.all(jnp.isfinite(out)))

    # loose tolerance: kernel uses bf16 MXU operands + approx reciprocal
    ref = reference_block(query, key_value, params)
    max_err = float(jnp.max(jnp.abs(out - ref)))
    assert max_err < 5e-2, f"max abs err vs f32 reference: {max_err}"

    print("KERNEL_OK")
</pallas_src>

<mosaic_0001>
module attributes {stable_mosaic.version = 11 : i64} {
  func.func @_block_kernel(%arg0: i32, %arg1: memref<8x16x128xf32, #tpu.memory_space<vmem>>, %arg2: memref<8x32x128xf32, #tpu.memory_space<vmem>>, %arg3: memref<1x128xf32, #tpu.memory_space<vmem>>, %arg4: memref<1x128xf32, #tpu.memory_space<vmem>>, %arg5: memref<1x128xf32, #tpu.memory_space<vmem>>, %arg6: memref<1x128xf32, #tpu.memory_space<vmem>>, %arg7: memref<128x128xbf16, #tpu.memory_space<vmem>>, %arg8: memref<1x128xf32, #tpu.memory_space<vmem>>, %arg9: memref<128x128xbf16, #tpu.memory_space<vmem>>, %arg10: memref<1x128xf32, #tpu.memory_space<vmem>>, %arg11: memref<128x128xbf16, #tpu.memory_space<vmem>>, %arg12: memref<1x128xf32, #tpu.memory_space<vmem>>, %arg13: memref<128x128xbf16, #tpu.memory_space<vmem>>, %arg14: memref<1x128xf32, #tpu.memory_space<vmem>>, %arg15: memref<1x128xf32, #tpu.memory_space<vmem>>, %arg16: memref<1x128xf32, #tpu.memory_space<vmem>>, %arg17: memref<128x512xbf16, #tpu.memory_space<vmem>>, %arg18: memref<1x512xf32, #tpu.memory_space<vmem>>, %arg19: memref<512x128xbf16, #tpu.memory_space<vmem>>, %arg20: memref<1x128xf32, #tpu.memory_space<vmem>>, %arg21: memref<8x16x128xf32, #tpu.memory_space<vmem>>) attributes {dimension_semantics = [#tpu.dimension_semantics<parallel>], iteration_bounds = array<i64: 2>, scalar_prefetch = 0 : i64, scratch_operands = 0 : i64, tpu.core_type = #tpu.core_type<tc>, window_params = [{transform_indices = @transform_0, window_bounds = array<i64: 8, 16, 128>}, {transform_indices = @transform_1, window_bounds = array<i64: 8, 32, 128>}, {pipeline_mode = #tpu.pipeline_mode<synchronous>, transform_indices = @transform_2, window_bounds = array<i64: 1, 128>}, {pipeline_mode = #tpu.pipeline_mode<synchronous>, transform_indices = @transform_3, window_bounds = array<i64: 1, 128>}, {pipeline_mode = #tpu.pipeline_mode<synchronous>, transform_indices = @transform_4, window_bounds = array<i64: 1, 128>}, {pipeline_mode = #tpu.pipeline_mode<synchronous>, transform_indices = @transform_5, window_bounds = array<i64: 1, 128>}, {pipeline_mode = #tpu.pipeline_mode<synchronous>, transform_indices = @transform_6, window_bounds = array<i64: 128, 128>}, {pipeline_mode = #tpu.pipeline_mode<synchronous>, transform_indices = @transform_7, window_bounds = array<i64: 1, 128>}, {pipeline_mode = #tpu.pipeline_mode<synchronous>, transform_indices = @transform_8, window_bounds = array<i64: 128, 128>}, {pipeline_mode = #tpu.pipeline_mode<synchronous>, transform_indices = @transform_9, window_bounds = array<i64: 1, 128>}, {pipeline_mode = #tpu.pipeline_mode<synchronous>, transform_indices = @transform_10, window_bounds = array<i64: 128, 128>}, {pipeline_mode = #tpu.pipeline_mode<synchronous>, transform_indices = @transform_11, window_bounds = array<i64: 1, 128>}, {pipeline_mode = #tpu.pipeline_mode<synchronous>, transform_indices = @transform_12, window_bounds = array<i64: 128, 128>}, {pipeline_mode = #tpu.pipeline_mode<synchronous>, transform_indices = @transform_13, window_bounds = array<i64: 1, 128>}, {pipeline_mode = #tpu.pipeline_mode<synchronous>, transform_indices = @transform_14, window_bounds = array<i64: 1, 128>}, {pipeline_mode = #tpu.pipeline_mode<synchronous>, transform_indices = @transform_15, window_bounds = array<i64: 1, 128>}, {pipeline_mode = #tpu.pipeline_mode<synchronous>, transform_indices = @transform_16, window_bounds = array<i64: 128, 512>}, {pipeline_mode = #tpu.pipeline_mode<synchronous>, transform_indices = @transform_17, window_bounds = array<i64: 1, 512>}, {pipeline_mode = #tpu.pipeline_mode<synchronous>, transform_indices = @transform_18, window_bounds = array<i64: 512, 128>}, {pipeline_mode = #tpu.pipeline_mode<synchronous>, transform_indices = @transform_19, window_bounds = array<i64: 1, 128>}, {transform_indices = @transform_20, window_bounds = array<i64: 8, 16, 128>}]} {
    %c0 = arith.constant 0 : index
    %c0_0 = arith.constant 0 : index
    %c0_1 = arith.constant 0 : index
    %0 = vector.load %arg1[%c0, %c0_0, %c0_1] : memref<8x16x128xf32, #tpu.memory_space<vmem>>, vector<8x16x128xf32>
    %1 = vector.shape_cast %0 : vector<8x16x128xf32> to vector<128x128xf32>
    %c0_2 = arith.constant 0 : index
    %c0_3 = arith.constant 0 : index
    %c0_4 = arith.constant 0 : index
    %2 = vector.load %arg2[%c0_2, %c0_3, %c0_4] : memref<8x32x128xf32, #tpu.memory_space<vmem>>, vector<8x32x128xf32>
    %3 = vector.shape_cast %2 : vector<8x32x128xf32> to vector<256x128xf32>
    %c0_5 = arith.constant 0 : index
    %c0_6 = arith.constant 0 : index
    %4 = vector.load %arg3[%c0_5, %c0_6] : memref<1x128xf32, #tpu.memory_space<vmem>>, vector<1x128xf32>
    %c0_7 = arith.constant 0 : index
    %c0_8 = arith.constant 0 : index
    %5 = vector.load %arg4[%c0_7, %c0_8] : memref<1x128xf32, #tpu.memory_space<vmem>>, vector<1x128xf32>
    %cst = arith.constant dense<0.000000e+00> : vector<128xf32>
    %6 = vector.multi_reduction <add>, %1, %cst [1] : vector<128x128xf32> to vector<128xf32>
    %7 = vector.shape_cast %6 : vector<128xf32> to vector<128x1xf32>
    %cst_9 = arith.constant 1.280000e+02 : f32
    %8 = vector.broadcast %cst_9 : f32 to vector<128x1xf32>
    %9 = arith.divf %7, %8 : vector<128x1xf32>
    %10 = vector.broadcast %9 : vector<128x1xf32> to vector<128x128xf32>
    %11 = arith.subf %1, %10 : vector<128x128xf32>
    %12 = arith.mulf %11, %11 : vector<128x128xf32>
    %cst_10 = arith.constant dense<0.000000e+00> : vector<128xf32>
    %13 = vector.multi_reduction <add>, %12, %cst_10 [1] : vector<128x128xf32> to vector<128xf32>
    %14 = vector.shape_cast %13 : vector<128xf32> to vector<128x1xf32>
    %cst_11 = arith.constant 1.280000e+02 : f32
    %15 = vector.broadcast %cst_11 : f32 to vector<128x1xf32>
    %16 = arith.divf %14, %15 : vector<128x1xf32>
    %17 = vector.broadcast %9 : vector<128x1xf32> to vector<128x128xf32>
    %18 = arith.subf %1, %17 : vector<128x128xf32>
    %cst_12 = arith.constant 9.99999974E-6 : f32
    %19 = vector.broadcast %cst_12 : f32 to vector<128x1xf32>
    %20 = arith.addf %16, %19 : vector<128x1xf32>
    %21 = math.rsqrt %20 : vector<128x1xf32>
    %22 = vector.broadcast %21 : vector<128x1xf32> to vector<128x128xf32>
    %23 = arith.mulf %18, %22 : vector<128x128xf32>
    %24 = vector.broadcast %4 : vector<1x128xf32> to vector<128x128xf32>
    %25 = arith.mulf %23, %24 : vector<128x128xf32>
    %26 = vector.broadcast %5 : vector<1x128xf32> to vector<128x128xf32>
    %27 = arith.addf %25, %26 : vector<128x128xf32>
    %28 = arith.truncf %27 : vector<128x128xf32> to vector<128x128xbf16>
    %c0_13 = arith.constant 0 : index
    %c0_14 = arith.constant 0 : index
    %29 = vector.load %arg5[%c0_13, %c0_14] : memref<1x128xf32, #tpu.memory_space<vmem>>, vector<1x128xf32>
    %c0_15 = arith.constant 0 : index
    %c0_16 = arith.constant 0 : index
    %30 = vector.load %arg6[%c0_15, %c0_16] : memref<1x128xf32, #tpu.memory_space<vmem>>, vector<1x128xf32>
    %cst_17 = arith.constant dense<0.000000e+00> : vector<256xf32>
    %31 = vector.multi_reduction <add>, %3, %cst_17 [1] : vector<256x128xf32> to vector<256xf32>
    %32 = vector.shape_cast %31 : vector<256xf32> to vector<256x1xf32>
    %cst_18 = arith.constant 1.280000e+02 : f32
    %33 = vector.broadcast %cst_18 : f32 to vector<256x1xf32>
    %34 = arith.divf %32, %33 : vector<256x1xf32>
    %35 = vector.broadcast %34 : vector<256x1xf32> to vector<256x128xf32>
    %36 = arith.subf %3, %35 : vector<256x128xf32>
    %37 = arith.mulf %36, %36 : vector<256x128xf32>
    %cst_19 = arith.constant dense<0.000000e+00> : vector<256xf32>
    %38 = vector.multi_reduction <add>, %37, %cst_19 [1] : vector<256x128xf32> to vector<256xf32>
    %39 = vector.shape_cast %38 : vector<256xf32> to vector<256x1xf32>
    %cst_20 = arith.constant 1.280000e+02 : f32
    %40 = vector.broadcast %cst_20 : f32 to vector<256x1xf32>
    %41 = arith.divf %39, %40 : vector<256x1xf32>
    %42 = vector.broadcast %34 : vector<256x1xf32> to vector<256x128xf32>
    %43 = arith.subf %3, %42 : vector<256x128xf32>
    %cst_21 = arith.constant 9.99999974E-6 : f32
    %44 = vector.broadcast %cst_21 : f32 to vector<256x1xf32>
    %45 = arith.addf %41, %44 : vector<256x1xf32>
    %46 = math.rsqrt %45 : vector<256x1xf32>
    %47 = vector.broadcast %46 : vector<256x1xf32> to vector<256x128xf32>
    %48 = arith.mulf %43, %47 : vector<256x128xf32>
    %49 = vector.broadcast %29 : vector<1x128xf32> to vector<256x128xf32>
    %50 = arith.mulf %48, %49 : vector<256x128xf32>
    %51 = vector.broadcast %30 : vector<1x128xf32> to vector<256x128xf32>
    %52 = arith.addf %50, %51 : vector<256x128xf32>
    %53 = arith.truncf %52 : vector<256x128xf32> to vector<256x128xbf16>
    %c0_22 = arith.constant 0 : index
    %c0_23 = arith.constant 0 : index
    %54 = vector.load %arg7[%c0_22, %c0_23] : memref<128x128xbf16, #tpu.memory_space<vmem>>, vector<128x128xbf16>
    %cst_24 = arith.constant dense<0.000000e+00> : vector<128x128xf32>
    %55 = tpu.matmul %28, %54, %cst_24 {dimension_numbers = #tpu.dot_dimension_numbers<[1], [0], [0], [1], [0, 0, 1, 1], [], []>} : vector<128x128xbf16>, vector<128x128xbf16>, vector<128x128xf32> -> vector<128x128xf32>
    %c0_25 = arith.constant 0 : index
    %c0_26 = arith.constant 0 : index
    %56 = vector.load %arg8[%c0_25, %c0_26] : memref<1x128xf32, #tpu.memory_space<vmem>>, vector<1x128xf32>
    %57 = vector.broadcast %56 : vector<1x128xf32> to vector<128x128xf32>
    %58 = arith.addf %55, %57 : vector<128x128xf32>
    %59 = vector.shape_cast %58 : vector<128x128xf32> to vector<8x16x128xf32>
    %c0_27 = arith.constant 0 : index
    %c0_28 = arith.constant 0 : index
    %60 = vector.load %arg9[%c0_27, %c0_28] : memref<128x128xbf16, #tpu.memory_space<vmem>>, vector<128x128xbf16>
    %cst_29 = arith.constant dense<0.000000e+00> : vector<256x128xf32>
    %61 = tpu.matmul %53, %60, %cst_29 {dimension_numbers = #tpu.dot_dimension_numbers<[1], [0], [0], [1], [0, 0, 1, 1], [], []>} : vector<256x128xbf16>, vector<128x128xbf16>, vector<256x128xf32> -> vector<256x128xf32>
    %c0_30 = arith.constant 0 : index
    %c0_31 = arith.constant 0 : index
    %62 = vector.load %arg10[%c0_30, %c0_31] : memref<1x128xf32, #tpu.memory_space<vmem>>, vector<1x128xf32>
    %63 = vector.broadcast %62 : vector<1x128xf32> to vector<256x128xf32>
    %64 = arith.addf %61, %63 : vector<256x128xf32>
    %65 = vector.shape_cast %64 : vector<256x128xf32> to vector<8x32x128xf32>
    %c0_32 = arith.constant 0 : index
    %c0_33 = arith.constant 0 : index
    %66 = vector.load %arg11[%c0_32, %c0_33] : memref<128x128xbf16, #tpu.memory_space<vmem>>, vector<128x128xbf16>
    %cst_34 = arith.constant dense<0.000000e+00> : vector<256x128xf32>
    %67 = tpu.matmul %53, %66, %cst_34 {dimension_numbers = #tpu.dot_dimension_numbers<[1], [0], [0], [1], [0, 0, 1, 1], [], []>} : vector<256x128xbf16>, vector<128x128xbf16>, vector<256x128xf32> -> vector<256x128xf32>
    %c0_35 = arith.constant 0 : index
    %c0_36 = arith.constant 0 : index
    %68 = vector.load %arg12[%c0_35, %c0_36] : memref<1x128xf32, #tpu.memory_space<vmem>>, vector<1x128xf32>
    %69 = vector.broadcast %68 : vector<1x128xf32> to vector<256x128xf32>
    %70 = arith.addf %67, %69 : vector<256x128xf32>
    %71 = vector.shape_cast %70 : vector<256x128xf32> to vector<8x32x128xf32>
    %72 = arith.truncf %59 : vector<8x16x128xf32> to vector<8x16x128xbf16>
    %73 = arith.truncf %65 : vector<8x32x128xf32> to vector<8x32x128xbf16>
    "tpu.trace_start"() <{level = 10 : i32, message = "bqd,bkd->bqk"}> : () -> ()
    %cst_37 = arith.constant dense<0.000000e+00> : vector<8x16x32xf32>
    %74 = tpu.matmul %72, %73, %cst_37 {dimension_numbers = #tpu.dot_dimension_numbers<[2], [2], [1], [1], [0, 0, 0, 1, 1, 1], [0], [0]>} : vector<8x16x128xbf16>, vector<8x32x128xbf16>, vector<8x16x32xf32> -> vector<8x16x32xf32>
    "tpu.trace_stop"() : () -> ()
    %cst_38 = arith.constant dense<0xFF800000> : vector<8x16xf32>
    %75 = vector.multi_reduction <maximumf>, %74, %cst_38 [2] : vector<8x16x32xf32> to vector<8x16xf32>
    %76 = vector.shape_cast %75 : vector<8x16xf32> to vector<8x16x1xf32>
    %77 = vector.broadcast %76 : vector<8x16x1xf32> to vector<8x16x32xf32>
    %78 = arith.subf %74, %77 : vector<8x16x32xf32>
    %79 = math.exp %78 : vector<8x16x32xf32>
    %cst_39 = arith.constant dense<0.000000e+00> : vector<8x16xf32>
    %80 = vector.multi_reduction <add>, %79, %cst_39 [2] : vector<8x16x32xf32> to vector<8x16xf32>
    %81 = vector.shape_cast %80 : vector<8x16xf32> to vector<8x16x1xf32>
    %82 = tpu.reciprocal %81 {approx = true} : vector<8x16x1xf32> -> vector<8x16x1xf32>
    %83 = vector.broadcast %82 : vector<8x16x1xf32> to vector<8x16x32xf32>
    %84 = arith.mulf %79, %83 : vector<8x16x32xf32>
    %85 = arith.truncf %84 : vector<8x16x32xf32> to vector<8x16x32xbf16>
    %86 = arith.truncf %71 : vector<8x32x128xf32> to vector<8x32x128xbf16>
    "tpu.trace_start"() <{level = 10 : i32, message = "bqk,bkd->bqd"}> : () -> ()
    %cst_40 = arith.constant dense<0.000000e+00> : vector<8x16x128xf32>
    %87 = tpu.matmul %85, %86, %cst_40 {dimension_numbers = #tpu.dot_dimension_numbers<[2], [1], [1], [2], [0, 0, 0, 1, 1, 2], [0], [0]>} : vector<8x16x32xbf16>, vector<8x32x128xbf16>, vector<8x16x128xf32> -> vector<8x16x128xf32>
    "tpu.trace_stop"() : () -> ()
    %88 = vector.shape_cast %87 : vector<8x16x128xf32> to vector<128x128xf32>
    %89 = arith.truncf %88 : vector<128x128xf32> to vector<128x128xbf16>
    %c0_41 = arith.constant 0 : index
    %c0_42 = arith.constant 0 : index
    %90 = vector.load %arg13[%c0_41, %c0_42] : memref<128x128xbf16, #tpu.memory_space<vmem>>, vector<128x128xbf16>
    %cst_43 = arith.constant dense<0.000000e+00> : vector<128x128xf32>
    %91 = tpu.matmul %89, %90, %cst_43 {dimension_numbers = #tpu.dot_dimension_numbers<[1], [0], [0], [1], [0, 0, 1, 1], [], []>} : vector<128x128xbf16>, vector<128x128xbf16>, vector<128x128xf32> -> vector<128x128xf32>
    %c0_44 = arith.constant 0 : index
    %c0_45 = arith.constant 0 : index
    %92 = vector.load %arg14[%c0_44, %c0_45] : memref<1x128xf32, #tpu.memory_space<vmem>>, vector<1x128xf32>
    %93 = vector.broadcast %92 : vector<1x128xf32> to vector<128x128xf32>
    %94 = arith.addf %91, %93 : vector<128x128xf32>
    %95 = arith.addf %1, %94 : vector<128x128xf32>
    %c0_46 = arith.constant 0 : index
    %c0_47 = arith.constant 0 : index
    %96 = vector.load %arg15[%c0_46, %c0_47] : memref<1x128xf32, #tpu.memory_space<vmem>>, vector<1x128xf32>
    %c0_48 = arith.constant 0 : index
    %c0_49 = arith.constant 0 : index
    %97 = vector.load %arg16[%c0_48, %c0_49] : memref<1x128xf32, #tpu.memory_space<vmem>>, vector<1x128xf32>
    %cst_50 = arith.constant dense<0.000000e+00> : vector<128xf32>
    %98 = vector.multi_reduction <add>, %95, %cst_50 [1] : vector<128x128xf32> to vector<128xf32>
    %99 = vector.shape_cast %98 : vector<128xf32> to vector<128x1xf32>
    %cst_51 = arith.constant 1.280000e+02 : f32
    %100 = vector.broadcast %cst_51 : f32 to vector<128x1xf32>
    %101 = arith.divf %99, %100 : vector<128x1xf32>
    %102 = vector.broadcast %101 : vector<128x1xf32> to vector<128x128xf32>
    %103 = arith.subf %95, %102 : vector<128x128xf32>
    %104 = arith.mulf %103, %103 : vector<128x128xf32>
    %cst_52 = arith.constant dense<0.000000e+00> : vector<128xf32>
    %105 = vector.multi_reduction <add>, %104, %cst_52 [1] : vector<128x128xf32> to vector<128xf32>
    %106 = vector.shape_cast %105 : vector<128xf32> to vector<128x1xf32>
    %cst_53 = arith.constant 1.280000e+02 : f32
    %107 = vector.broadcast %cst_53 : f32 to vector<128x1xf32>
    %108 = arith.divf %106, %107 : vector<128x1xf32>
    %109 = vector.broadcast %101 : vector<128x1xf32> to vector<128x128xf32>
    %110 = arith.subf %95, %109 : vector<128x128xf32>
    %cst_54 = arith.constant 9.99999974E-6 : f32
    %111 = vector.broadcast %cst_54 : f32 to vector<128x1xf32>
    %112 = arith.addf %108, %111 : vector<128x1xf32>
    %113 = math.rsqrt %112 : vector<128x1xf32>
    %114 = vector.broadcast %113 : vector<128x1xf32> to vector<128x128xf32>
    %115 = arith.mulf %110, %114 : vector<128x128xf32>
    %116 = vector.broadcast %96 : vector<1x128xf32> to vector<128x128xf32>
    %117 = arith.mulf %115, %116 : vector<128x128xf32>
    %118 = vector.broadcast %97 : vector<1x128xf32> to vector<128x128xf32>
    %119 = arith.addf %117, %118 : vector<128x128xf32>
    %120 = arith.truncf %119 : vector<128x128xf32> to vector<128x128xbf16>
    %c0_55 = arith.constant 0 : index
    %c0_56 = arith.constant 0 : index
    %121 = vector.load %arg17[%c0_55, %c0_56] : memref<128x512xbf16, #tpu.memory_space<vmem>>, vector<128x512xbf16>
    %cst_57 = arith.constant dense<0.000000e+00> : vector<128x512xf32>
    %122 = tpu.matmul %120, %121, %cst_57 {dimension_numbers = #tpu.dot_dimension_numbers<[1], [0], [0], [1], [0, 0, 1, 1], [], []>} : vector<128x128xbf16>, vector<128x512xbf16>, vector<128x512xf32> -> vector<128x512xf32>
    %c0_58 = arith.constant 0 : index
    %c0_59 = arith.constant 0 : index
    %123 = vector.load %arg18[%c0_58, %c0_59] : memref<1x512xf32, #tpu.memory_space<vmem>>, vector<1x512xf32>
    %124 = vector.broadcast %123 : vector<1x512xf32> to vector<128x512xf32>
    %125 = arith.addf %122, %124 : vector<128x512xf32>
    %cst_60 = arith.constant 5.000000e-01 : f32
    %126 = vector.broadcast %cst_60 : f32 to vector<128x512xf32>
    %127 = arith.mulf %126, %125 : vector<128x512xf32>
    %cst_61 = arith.constant 0.707106769 : f32
    %128 = vector.broadcast %cst_61 : f32 to vector<128x512xf32>
    %129 = arith.mulf %125, %128 : vector<128x512xf32>
    %130 = math.erf %129 : vector<128x512xf32>
    %cst_62 = arith.constant 1.000000e+00 : f32
    %131 = vector.broadcast %cst_62 : f32 to vector<128x512xf32>
    %132 = arith.addf %131, %130 : vector<128x512xf32>
    %133 = arith.mulf %127, %132 : vector<128x512xf32>
    %134 = arith.truncf %133 : vector<128x512xf32> to vector<128x512xbf16>
    %c0_63 = arith.constant 0 : index
    %c0_64 = arith.constant 0 : index
    %135 = vector.load %arg19[%c0_63, %c0_64] : memref<512x128xbf16, #tpu.memory_space<vmem>>, vector<512x128xbf16>
    %cst_65 = arith.constant dense<0.000000e+00> : vector<128x128xf32>
    %136 = tpu.matmul %134, %135, %cst_65 {dimension_numbers = #tpu.dot_dimension_numbers<[1], [0], [0], [1], [0, 0, 1, 1], [], []>} : vector<128x512xbf16>, vector<512x128xbf16>, vector<128x128xf32> -> vector<128x128xf32>
    %c0_66 = arith.constant 0 : index
    %c0_67 = arith.constant 0 : index
    %137 = vector.load %arg20[%c0_66, %c0_67] : memref<1x128xf32, #tpu.memory_space<vmem>>, vector<1x128xf32>
    %138 = vector.broadcast %137 : vector<1x128xf32> to vector<128x128xf32>
    %139 = arith.addf %136, %138 : vector<128x128xf32>
    %140 = arith.addf %95, %139 : vector<128x128xf32>
    %141 = vector.shape_cast %140 : vector<128x128xf32> to vector<8x16x128xf32>
    %c0_68 = arith.constant 0 : index
    %c0_69 = arith.constant 0 : index
    %c0_70 = arith.constant 0 : index
    %142 = vector.load %arg21[%c0_68, %c0_69, %c0_70] : memref<8x16x128xf32, #tpu.memory_space<vmem>>, vector<8x16x128xf32>
    tpu.vector_store %arg21[%c0_68, %c0_69, %c0_70], %141 {strides = array<i32>} : memref<8x16x128xf32, #tpu.memory_space<vmem>>, vector<8x16x128xf32>,
    return
  }
  func.func @transform_0(%arg0: i32) -> (i32, i32, i32) {
    %c0_i32 = arith.constant 0 : i32
    %c0_i32_0 = arith.constant 0 : i32
    %c0_i32_1 = arith.constant 0 : i32
    return %arg0, %c0_i32, %c0_i32_0 : i32, i32, i32
  }
  func.func @transform_1(%arg0: i32) -> (i32, i32, i32) {
    %c0_i32 = arith.constant 0 : i32
    %c0_i32_0 = arith.constant 0 : i32
    %c0_i32_1 = arith.constant 0 : i32
    return %arg0, %c0_i32, %c0_i32_0 : i32, i32, i32
  }
  func.func @transform_2(%arg0: i32) -> (i32, i32) {
    %c0_i32 = arith.constant 0 : i32
    %c0_i32_0 = arith.constant 0 : i32
    %c0_i32_1 = arith.constant 0 : i32
    return %c0_i32, %c0_i32_0 : i32, i32
  }
  func.func @transform_3(%arg0: i32) -> (i32, i32) {
    %c0_i32 = arith.constant 0 : i32
    %c0_i32_0 = arith.constant 0 : i32
    %c0_i32_1 = arith.constant 0 : i32
    return %c0_i32, %c0_i32_0 : i32, i32
  }
  func.func @transform_4(%arg0: i32) -> (i32, i32) {
    %c0_i32 = arith.constant 0 : i32
    %c0_i32_0 = arith.constant 0 : i32
    %c0_i32_1 = arith.constant 0 : i32
    return %c0_i32, %c0_i32_0 : i32, i32
  }
  func.func @transform_5(%arg0: i32) -> (i32, i32) {
    %c0_i32 = arith.constant 0 : i32
    %c0_i32_0 = arith.constant 0 : i32
    %c0_i32_1 = arith.constant 0 : i32
    return %c0_i32, %c0_i32_0 : i32, i32
  }
  func.func @transform_6(%arg0: i32) -> (i32, i32) {
    %c0_i32 = arith.constant 0 : i32
    %c0_i32_0 = arith.constant 0 : i32
    %c0_i32_1 = arith.constant 0 : i32
    return %c0_i32, %c0_i32_0 : i32, i32
  }
  func.func @transform_7(%arg0: i32) -> (i32, i32) {
    %c0_i32 = arith.constant 0 : i32
    %c0_i32_0 = arith.constant 0 : i32
    %c0_i32_1 = arith.constant 0 : i32
    return %c0_i32, %c0_i32_0 : i32, i32
  }
  func.func @transform_8(%arg0: i32) -> (i32, i32) {
    %c0_i32 = arith.constant 0 : i32
    %c0_i32_0 = arith.constant 0 : i32
    %c0_i32_1 = arith.constant 0 : i32
    return %c0_i32, %c0_i32_0 : i32, i32
  }
  func.func @transform_9(%arg0: i32) -> (i32, i32) {
    %c0_i32 = arith.constant 0 : i32
    %c0_i32_0 = arith.constant 0 : i32
    %c0_i32_1 = arith.constant 0 : i32
    return %c0_i32, %c0_i32_0 : i32, i32
  }
  func.func @transform_10(%arg0: i32) -> (i32, i32) {
    %c0_i32 = arith.constant 0 : i32
    %c0_i32_0 = arith.constant 0 : i32
    %c0_i32_1 = arith.constant 0 : i32
    return %c0_i32, %c0_i32_0 : i32, i32
  }
  func.func @transform_11(%arg0: i32) -> (i32, i32) {
    %c0_i32 = arith.constant 0 : i32
    %c0_i32_0 = arith.constant 0 : i32
    %c0_i32_1 = arith.constant 0 : i32
    return %c0_i32, %c0_i32_0 : i32, i32
  }
  func.func @transform_12(%arg0: i32) -> (i32, i32) {
    %c0_i32 = arith.constant 0 : i32
    %c0_i32_0 = arith.constant 0 : i32
    %c0_i32_1 = arith.constant 0 : i32
    return %c0_i32, %c0_i32_0 : i32, i32
  }
  func.func @transform_13(%arg0: i32) -> (i32, i32) {
    %c0_i32 = arith.constant 0 : i32
    %c0_i32_0 = arith.constant 0 : i32
    %c0_i32_1 = arith.constant 0 : i32
    return %c0_i32, %c0_i32_0 : i32, i32
  }
  func.func @transform_14(%arg0: i32) -> (i32, i32) {
    %c0_i32 = arith.constant 0 : i32
    %c0_i32_0 = arith.constant 0 : i32
    %c0_i32_1 = arith.constant 0 : i32
    return %c0_i32, %c0_i32_0 : i32, i32
  }
  func.func @transform_15(%arg0: i32) -> (i32, i32) {
    %c0_i32 = arith.constant 0 : i32
    %c0_i32_0 = arith.constant 0 : i32
    %c0_i32_1 = arith.constant 0 : i32
    return %c0_i32, %c0_i32_0 : i32, i32
  }
  func.func @transform_16(%arg0: i32) -> (i32, i32) {
    %c0_i32 = arith.constant 0 : i32
    %c0_i32_0 = arith.constant 0 : i32
    %c0_i32_1 = arith.constant 0 : i32
    return %c0_i32, %c0_i32_0 : i32, i32
  }
  func.func @transform_17(%arg0: i32) -> (i32, i32) {
    %c0_i32 = arith.constant 0 : i32
    %c0_i32_0 = arith.constant 0 : i32
    %c0_i32_1 = arith.constant 0 : i32
    return %c0_i32, %c0_i32_0 : i32, i32
  }
  func.func @transform_18(%arg0: i32) -> (i32, i32) {
    %c0_i32 = arith.constant 0 : i32
    %c0_i32_0 = arith.constant 0 : i32
    %c0_i32_1 = arith.constant 0 : i32
    return %c0_i32, %c0_i32_0 : i32, i32
  }
  func.func @transform_19(%arg0: i32) -> (i32, i32) {
    %c0_i32 = arith.constant 0 : i32
    %c0_i32_0 = arith.constant 0 : i32
    %c0_i32_1 = arith.constant 0 : i32
    return %c0_i32, %c0_i32_0 : i32, i32
  }
  func.func @transform_20(%arg0: i32) -> (i32, i32, i32) {
    %c0_i32 = arith.constant 0 : i32
    %c0_i32_0 = arith.constant 0 : i32
    %c0_i32_1 = arith.constant 0 : i32
    return %arg0, %c0_i32, %c0_i32_0 : i32, i32, i32
  }
}

module attributes {stable_mosaic.version = 11 : i64} {
  func.func @_block_kernel(%arg0: i32, %arg1: memref<8x16x128xf32, #tpu.memory_space<vmem>>, %arg2: memref<8x32x128xf32, #tpu.memory_space<vmem>>, %arg3: memref<1x128xf32, #tpu.memory_space<vmem>>, %arg4: memref<1x128xf32, #tpu.memory_space<vmem>>, %arg5: memref<1x128xf32, #tpu.memory_space<vmem>>, %arg6: memref<1x128xf32, #tpu.memory_space<vmem>>, %arg7: memref<128x128xbf16, #tpu.memory_space<vmem>>, %arg8: memref<1x128xf32, #tpu.memory_space<vmem>>, %arg9: memref<128x128xbf16, #tpu.memory_space<vmem>>, %arg10: memref<1x128xf32, #tpu.memory_space<vmem>>, %arg11: memref<128x128xbf16, #tpu.memory_space<vmem>>, %arg12: memref<1x128xf32, #tpu.memory_space<vmem>>, %arg13: memref<128x128xbf16, #tpu.memory_space<vmem>>, %arg14: memref<1x128xf32, #tpu.memory_space<vmem>>, %arg15: memref<1x128xf32, #tpu.memory_space<vmem>>, %arg16: memref<1x128xf32, #tpu.memory_space<vmem>>, %arg17: memref<128x512xbf16, #tpu.memory_space<vmem>>, %arg18: memref<1x512xf32, #tpu.memory_space<vmem>>, %arg19: memref<512x128xbf16, #tpu.memory_space<vmem>>, %arg20: memref<1x128xf32, #tpu.memory_space<vmem>>, %arg21: memref<8x16x128xf32, #tpu.memory_space<vmem>>) attributes {dimension_semantics = [#tpu.dimension_semantics<parallel>], iteration_bounds = array<i64: 2>, scalar_prefetch = 0 : i64, scratch_operands = 0 : i64, tpu.core_type = #tpu.core_type<tc>, window_params = [{transform_indices = @transform_0, window_bounds = array<i64: 8, 16, 128>}, {transform_indices = @transform_1, window_bounds = array<i64: 8, 32, 128>}, {pipeline_mode = #tpu.pipeline_mode<synchronous>, transform_indices = @transform_2, window_bounds = array<i64: 1, 128>}, {pipeline_mode = #tpu.pipeline_mode<synchronous>, transform_indices = @transform_3, window_bounds = array<i64: 1, 128>}, {pipeline_mode = #tpu.pipeline_mode<synchronous>, transform_indices = @transform_4, window_bounds = array<i64: 1, 128>}, {pipeline_mode = #tpu.pipeline_mode<synchronous>, transform_indices = @transform_5, window_bounds = array<i64: 1, 128>}, {pipeline_mode = #tpu.pipeline_mode<synchronous>, transform_indices = @transform_6, window_bounds = array<i64: 128, 128>}, {pipeline_mode = #tpu.pipeline_mode<synchronous>, transform_indices = @transform_7, window_bounds = array<i64: 1, 128>}, {pipeline_mode = #tpu.pipeline_mode<synchronous>, transform_indices = @transform_8, window_bounds = array<i64: 128, 128>}, {pipeline_mode = #tpu.pipeline_mode<synchronous>, transform_indices = @transform_9, window_bounds = array<i64: 1, 128>}, {pipeline_mode = #tpu.pipeline_mode<synchronous>, transform_indices = @transform_10, window_bounds = array<i64: 128, 128>}, {pipeline_mode = #tpu.pipeline_mode<synchronous>, transform_indices = @transform_11, window_bounds = array<i64: 1, 128>}, {pipeline_mode = #tpu.pipeline_mode<synchronous>, transform_indices = @transform_12, window_bounds = array<i64: 128, 128>}, {pipeline_mode = #tpu.pipeline_mode<synchronous>, transform_indices = @transform_13, window_bounds = array<i64: 1, 128>}, {pipeline_mode = #tpu.pipeline_mode<synchronous>, transform_indices = @transform_14, window_bounds = array<i64: 1, 128>}, {pipeline_mode = #tpu.pipeline_mode<synchronous>, transform_indices = @transform_15, window_bounds = array<i64: 1, 128>}, {pipeline_mode = #tpu.pipeline_mode<synchronous>, transform_indices = @transform_16, window_bounds = array<i64: 128, 512>}, {pipeline_mode = #tpu.pipeline_mode<synchronous>, transform_indices = @transform_17, window_bounds = array<i64: 1, 512>}, {pipeline_mode = #tpu.pipeline_mode<synchronous>, transform_indices = @transform_18, window_bounds = array<i64: 512, 128>}, {pipeline_mode = #tpu.pipeline_mode<synchronous>, transform_indices = @transform_19, window_bounds = array<i64: 1, 128>}, {transform_indices = @transform_20, window_bounds = array<i64: 8, 16, 128>}]} {
    %c0 = arith.constant 0 : index
    %c0_0 = arith.constant 0 : index
    %c0_1 = arith.constant 0 : index
    %0 = vector.load %arg1[%c0, %c0_0, %c0_1] : memref<8x16x128xf32, #tpu.memory_space<vmem>>, vector<8x16x128xf32>
    %1 = vector.shape_cast %0 : vector<8x16x128xf32> to vector<128x128xf32>
    %c0_2 = arith.constant 0 : index
    %c0_3 = arith.constant 0 : index
    %c0_4 = arith.constant 0 : index
    %2 = vector.load %arg2[%c0_2, %c0_3, %c0_4] : memref<8x32x128xf32, #tpu.memory_space<vmem>>, vector<8x32x128xf32>
    %3 = vector.shape_cast %2 : vector<8x32x128xf32> to vector<256x128xf32>
    %c0_5 = arith.constant 0 : index
    %c0_6 = arith.constant 0 : index
    %4 = vector.load %arg3[%c0_5, %c0_6] : memref<1x128xf32, #tpu.memory_space<vmem>>, vector<1x128xf32>
    %c0_7 = arith.constant 0 : index
    %c0_8 = arith.constant 0 : index
    %5 = vector.load %arg4[%c0_7, %c0_8] : memref<1x128xf32, #tpu.memory_space<vmem>>, vector<1x128xf32>
    %cst = arith.constant dense<0.000000e+00> : vector<128xf32>
    %6 = vector.multi_reduction <add>, %1, %cst [1] : vector<128x128xf32> to vector<128xf32>
    %7 = vector.shape_cast %6 : vector<128xf32> to vector<128x1xf32>
    %cst_9 = arith.constant 1.280000e+02 : f32
    %8 = vector.broadcast %cst_9 : f32 to vector<128x1xf32>
    %9 = arith.divf %7, %8 : vector<128x1xf32>
    %10 = vector.broadcast %9 : vector<128x1xf32> to vector<128x128xf32>
    %11 = arith.subf %1, %10 : vector<128x128xf32>
    %12 = arith.mulf %11, %11 : vector<128x128xf32>
    %cst_10 = arith.constant dense<0.000000e+00> : vector<128xf32>
    %13 = vector.multi_reduction <add>, %12, %cst_10 [1] : vector<128x128xf32> to vector<128xf32>
    %14 = vector.shape_cast %13 : vector<128xf32> to vector<128x1xf32>
    %cst_11 = arith.constant 1.280000e+02 : f32
    %15 = vector.broadcast %cst_11 : f32 to vector<128x1xf32>
    %16 = arith.divf %14, %15 : vector<128x1xf32>
    %17 = vector.broadcast %9 : vector<128x1xf32> to vector<128x128xf32>
    %18 = arith.subf %1, %17 : vector<128x128xf32>
    %cst_12 = arith.constant 9.99999974E-6 : f32
    %19 = vector.broadcast %cst_12 : f32 to vector<128x1xf32>
    %20 = arith.addf %16, %19 : vector<128x1xf32>
    %21 = math.rsqrt %20 : vector<128x1xf32>
    %22 = vector.broadcast %21 : vector<128x1xf32> to vector<128x128xf32>
    %23 = arith.mulf %18, %22 : vector<128x128xf32>
    %24 = vector.broadcast %4 : vector<1x128xf32> to vector<128x128xf32>
    %25 = arith.mulf %23, %24 : vector<128x128xf32>
    %26 = vector.broadcast %5 : vector<1x128xf32> to vector<128x128xf32>
    %27 = arith.addf %25, %26 : vector<128x128xf32>
    %28 = arith.truncf %27 : vector<128x128xf32> to vector<128x128xbf16>
    %c0_13 = arith.constant 0 : index
    %c0_14 = arith.constant 0 : index
    %29 = vector.load %arg5[%c0_13, %c0_14] : memref<1x128xf32, #tpu.memory_space<vmem>>, vector<1x128xf32>
    %c0_15 = arith.constant 0 : index
    %c0_16 = arith.constant 0 : index
    %30 = vector.load %arg6[%c0_15, %c0_16] : memref<1x128xf32, #tpu.memory_space<vmem>>, vector<1x128xf32>
    %cst_17 = arith.constant dense<0.000000e+00> : vector<256xf32>
    %31 = vector.multi_reduction <add>, %3, %cst_17 [1] : vector<256x128xf32> to vector<256xf32>
    %32 = vector.shape_cast %31 : vector<256xf32> to vector<256x1xf32>
    %cst_18 = arith.constant 1.280000e+02 : f32
    %33 = vector.broadcast %cst_18 : f32 to vector<256x1xf32>
    %34 = arith.divf %32, %33 : vector<256x1xf32>
    %35 = vector.broadcast %34 : vector<256x1xf32> to vector<256x128xf32>
    %36 = arith.subf %3, %35 : vector<256x128xf32>
    %37 = arith.mulf %36, %36 : vector<256x128xf32>
    %cst_19 = arith.constant dense<0.000000e+00> : vector<256xf32>
    %38 = vector.multi_reduction <add>, %37, %cst_19 [1] : vector<256x128xf32> to vector<256xf32>
    %39 = vector.shape_cast %38 : vector<256xf32> to vector<256x1xf32>
    %cst_20 = arith.constant 1.280000e+02 : f32
    %40 = vector.broadcast %cst_20 : f32 to vector<256x1xf32>
    %41 = arith.divf %39, %40 : vector<256x1xf32>
    %42 = vector.broadcast %34 : vector<256x1xf32> to vector<256x128xf32>
    %43 = arith.subf %3, %42 : vector<256x128xf32>
    %cst_21 = arith.constant 9.99999974E-6 : f32
    %44 = vector.broadcast %cst_21 : f32 to vector<256x1xf32>
    %45 = arith.addf %41, %44 : vector<256x1xf32>
    %46 = math.rsqrt %45 : vector<256x1xf32>
    %47 = vector.broadcast %46 : vector<256x1xf32> to vector<256x128xf32>
    %48 = arith.mulf %43, %47 : vector<256x128xf32>
    %49 = vector.broadcast %29 : vector<1x128xf32> to vector<256x128xf32>
    %50 = arith.mulf %48, %49 : vector<256x128xf32>
    %51 = vector.broadcast %30 : vector<1x128xf32> to vector<256x128xf32>
    %52 = arith.addf %50, %51 : vector<256x128xf32>
    %53 = arith.truncf %52 : vector<256x128xf32> to vector<256x128xbf16>
    %c0_22 = arith.constant 0 : index
    %c0_23 = arith.constant 0 : index
    %54 = vector.load %arg7[%c0_22, %c0_23] : memref<128x128xbf16, #tpu.memory_space<vmem>>, vector<128x128xbf16>
    %cst_24 = arith.constant dense<0.000000e+00> : vector<128x128xf32>
    %55 = tpu.matmul %28, %54, %cst_24 {dimension_numbers = #tpu.dot_dimension_numbers<[1], [0], [0], [1], [0, 0, 1, 1], [], []>} : vector<128x128xbf16>, vector<128x128xbf16>, vector<128x128xf32> -> vector<128x128xf32>
    %c0_25 = arith.constant 0 : index
    %c0_26 = arith.constant 0 : index
    %56 = vector.load %arg8[%c0_25, %c0_26] : memref<1x128xf32, #tpu.memory_space<vmem>>, vector<1x128xf32>
    %57 = vector.broadcast %56 : vector<1x128xf32> to vector<128x128xf32>
    %58 = arith.addf %55, %57 : vector<128x128xf32>
    %59 = vector.shape_cast %58 : vector<128x128xf32> to vector<8x16x128xf32>
    %c0_27 = arith.constant 0 : index
    %c0_28 = arith.constant 0 : index
    %60 = vector.load %arg9[%c0_27, %c0_28] : memref<128x128xbf16, #tpu.memory_space<vmem>>, vector<128x128xbf16>
    %cst_29 = arith.constant dense<0.000000e+00> : vector<256x128xf32>
    %61 = tpu.matmul %53, %60, %cst_29 {dimension_numbers = #tpu.dot_dimension_numbers<[1], [0], [0], [1], [0, 0, 1, 1], [], []>} : vector<256x128xbf16>, vector<128x128xbf16>, vector<256x128xf32> -> vector<256x128xf32>
    %c0_30 = arith.constant 0 : index
    %c0_31 = arith.constant 0 : index
    %62 = vector.load %arg10[%c0_30, %c0_31] : memref<1x128xf32, #tpu.memory_space<vmem>>, vector<1x128xf32>
    %63 = vector.broadcast %62 : vector<1x128xf32> to vector<256x128xf32>
    %64 = arith.addf %61, %63 : vector<256x128xf32>
    %65 = vector.shape_cast %64 : vector<256x128xf32> to vector<8x32x128xf32>
    %c0_32 = arith.constant 0 : index
    %c0_33 = arith.constant 0 : index
    %66 = vector.load %arg11[%c0_32, %c0_33] : memref<128x128xbf16, #tpu.memory_space<vmem>>, vector<128x128xbf16>
    %cst_34 = arith.constant dense<0.000000e+00> : vector<256x128xf32>
    %67 = tpu.matmul %53, %66, %cst_34 {dimension_numbers = #tpu.dot_dimension_numbers<[1], [0], [0], [1], [0, 0, 1, 1], [], []>} : vector<256x128xbf16>, vector<128x128xbf16>, vector<256x128xf32> -> vector<256x128xf32>
    %c0_35 = arith.constant 0 : index
    %c0_36 = arith.constant 0 : index
    %68 = vector.load %arg12[%c0_35, %c0_36] : memref<1x128xf32, #tpu.memory_space<vmem>>, vector<1x128xf32>
    %69 = vector.broadcast %68 : vector<1x128xf32> to vector<256x128xf32>
    %70 = arith.addf %67, %69 : vector<256x128xf32>
    %71 = vector.shape_cast %70 : vector<256x128xf32> to vector<8x32x128xf32>
    %72 = arith.truncf %59 : vector<8x16x128xf32> to vector<8x16x128xbf16>
    %73 = arith.truncf %65 : vector<8x32x128xf32> to vector<8x32x128xbf16>
    "tpu.trace_start"() <{level = 10 : i32, message = "bqd,bkd->bqk"}> : () -> ()
    %cst_37 = arith.constant dense<0.000000e+00> : vector<8x16x32xf32>
    %74 = tpu.matmul %72, %73, %cst_37 {dimension_numbers = #tpu.dot_dimension_numbers<[2], [2], [1], [1], [0, 0, 0, 1, 1, 1], [0], [0]>} : vector<8x16x128xbf16>, vector<8x32x128xbf16>, vector<8x16x32xf32> -> vector<8x16x32xf32>
    "tpu.trace_stop"() : () -> ()
    %cst_38 = arith.constant dense<0xFF800000> : vector<8x16xf32>
    %75 = vector.multi_reduction <maximumf>, %74, %cst_38 [2] : vector<8x16x32xf32> to vector<8x16xf32>
    %76 = vector.shape_cast %75 : vector<8x16xf32> to vector<8x16x1xf32>
    %77 = vector.broadcast %76 : vector<8x16x1xf32> to vector<8x16x32xf32>
    %78 = arith.subf %74, %77 : vector<8x16x32xf32>
    %79 = math.exp %78 : vector<8x16x32xf32>
    %cst_39 = arith.constant dense<0.000000e+00> : vector<8x16xf32>
    %80 = vector.multi_reduction <add>, %79, %cst_39 [2] : vector<8x16x32xf32> to vector<8x16xf32>
    %81 = vector.shape_cast %80 : vector<8x16xf32> to vector<8x16x1xf32>
    %82 = tpu.reciprocal %81 {approx = true} : vector<8x16x1xf32> -> vector<8x16x1xf32>
    %83 = vector.broadcast %82 : vector<8x16x1xf32> to vector<8x16x32xf32>
    %84 = arith.mulf %79, %83 : vector<8x16x32xf32>
    %85 = arith.truncf %84 : vector<8x16x32xf32> to vector<8x16x32xbf16>
    %86 = arith.truncf %71 : vector<8x32x128xf32> to vector<8x32x128xbf16>
    "tpu.trace_start"() <{level = 10 : i32, message = "bqk,bkd->bqd"}> : () -> ()
    %cst_40 = arith.constant dense<0.000000e+00> : vector<8x16x128xf32>
    %87 = tpu.matmul %85, %86, %cst_40 {dimension_numbers = #tpu.dot_dimension_numbers<[2], [1], [1], [2], [0, 0, 0, 1, 1, 2], [0], [0]>} : vector<8x16x32xbf16>, vector<8x32x128xbf16>, vector<8x16x128xf32> -> vector<8x16x128xf32>
    "tpu.trace_stop"() : () -> ()
    %88 = vector.shape_cast %87 : vector<8x16x128xf32> to vector<128x128xf32>
    %89 = arith.truncf %88 : vector<128x128xf32> to vector<128x128xbf16>
    %c0_41 = arith.constant 0 : index
    %c0_42 = arith.constant 0 : index
    %90 = vector.load %arg13[%c0_41, %c0_42] : memref<128x128xbf16, #tpu.memory_space<vmem>>, vector<128x128xbf16>
    %cst_43 = arith.constant dense<0.000000e+00> : vector<128x128xf32>
    %91 = tpu.matmul %89, %90, %cst_43 {dimension_numbers = #tpu.dot_dimension_numbers<[1], [0], [0], [1], [0, 0, 1, 1], [], []>} : vector<128x128xbf16>, vector<128x128xbf16>, vector<128x128xf32> -> vector<128x128xf32>
    %c0_44 = arith.constant 0 : index
    %c0_45 = arith.constant 0 : index
    %92 = vector.load %arg14[%c0_44, %c0_45] : memref<1x128xf32, #tpu.memory_space<vmem>>, vector<1x128xf32>
    %93 = vector.broadcast %92 : vector<1x128xf32> to vector<128x128xf32>
    %94 = arith.addf %91, %93 : vector<128x128xf32>
    %95 = arith.addf %1, %94 : vector<128x128xf32>
    %c0_46 = arith.constant 0 : index
    %c0_47 = arith.constant 0 : index
    %96 = vector.load %arg15[%c0_46, %c0_47] : memref<1x128xf32, #tpu.memory_space<vmem>>, vector<1x128xf32>
    %c0_48 = arith.constant 0 : index
    %c0_49 = arith.constant 0 : index
    %97 = vector.load %arg16[%c0_48, %c0_49] : memref<1x128xf32, #tpu.memory_space<vmem>>, vector<1x128xf32>
    %cst_50 = arith.constant dense<0.000000e+00> : vector<128xf32>
    %98 = vector.multi_reduction <add>, %95, %cst_50 [1] : vector<128x128xf32> to vector<128xf32>
    %99 = vector.shape_cast %98 : vector<128xf32> to vector<128x1xf32>
    %cst_51 = arith.constant 1.280000e+02 : f32
    %100 = vector.broadcast %cst_51 : f32 to vector<128x1xf32>
    %101 = arith.divf %99, %100 : vector<128x1xf32>
    %102 = vector.broadcast %101 : vector<128x1xf32> to vector<128x128xf32>
    %103 = arith.subf %95, %102 : vector<128x128xf32>
    %104 = arith.mulf %103, %103 : vector<128x128xf32>
    %cst_52 = arith.constant dense<0.000000e+00> : vector<128xf32>
    %105 = vector.multi_reduction <add>, %104, %cst_52 [1] : vector<128x128xf32> to vector<128xf32>
    %106 = vector.shape_cast %105 : vector<128xf32> to vector<128x1xf32>
    %cst_53 = arith.constant 1.280000e+02 : f32
    %107 = vector.broadcast %cst_53 : f32 to vector<128x1xf32>
    %108 = arith.divf %106, %107 : vector<128x1xf32>
    %109 = vector.broadcast %101 : vector<128x1xf32> to vector<128x128xf32>
    %110 = arith.subf %95, %109 : vector<128x128xf32>
    %cst_54 = arith.constant 9.99999974E-6 : f32
    %111 = vector.broadcast %cst_54 : f32 to vector<128x1xf32>
    %112 = arith.addf %108, %111 : vector<128x1xf32>
    %113 = math.rsqrt %112 : vector<128x1xf32>
    %114 = vector.broadcast %113 : vector<128x1xf32> to vector<128x128xf32>
    %115 = arith.mulf %110, %114 : vector<128x128xf32>
    %116 = vector.broadcast %96 : vector<1x128xf32> to vector<128x128xf32>
    %117 = arith.mulf %115, %116 : vector<128x128xf32>
    %118 = vector.broadcast %97 : vector<1x128xf32> to vector<128x128xf32>
    %119 = arith.addf %117, %118 : vector<128x128xf32>
    %120 = arith.truncf %119 : vector<128x128xf32> to vector<128x128xbf16>
    %c0_55 = arith.constant 0 : index
    %c0_56 = arith.constant 0 : index
    %121 = vector.load %arg17[%c0_55, %c0_56] : memref<128x512xbf16, #tpu.memory_space<vmem>>, vector<128x512xbf16>
    %cst_57 = arith.constant dense<0.000000e+00> : vector<128x512xf32>
    %122 = tpu.matmul %120, %121, %cst_57 {dimension_numbers = #tpu.dot_dimension_numbers<[1], [0], [0], [1], [0, 0, 1, 1], [], []>} : vector<128x128xbf16>, vector<128x512xbf16>, vector<128x512xf32> -> vector<128x512xf32>
    %c0_58 = arith.constant 0 : index
    %c0_59 = arith.constant 0 : index
    %123 = vector.load %arg18[%c0_58, %c0_59] : memref<1x512xf32, #tpu.memory_space<vmem>>, vector<1x512xf32>
    %124 = vector.broadcast %123 : vector<1x512xf32> to vector<128x512xf32>
    %125 = arith.addf %122, %124 : vector<128x512xf32>
    %cst_60 = arith.constant 5.000000e-01 : f32
    %126 = vector.broadcast %cst_60 : f32 to vector<128x512xf32>
    %127 = arith.mulf %126, %125 : vector<128x512xf32>
    %cst_61 = arith.constant 0.707106769 : f32
    %128 = vector.broadcast %cst_61 : f32 to vector<128x512xf32>
    %129 = arith.mulf %125, %128 : vector<128x512xf32>
    %130 = math.erf %129 : vector<128x512xf32>
    %cst_62 = arith.constant 1.000000e+00 : f32
    %131 = vector.broadcast %cst_62 : f32 to vector<128x512xf32>
    %132 = arith.addf %131, %130 : vector<128x512xf32>
    %133 = arith.mulf %127, %132 : vector<128x512xf32>
    %134 = arith.truncf %133 : vector<128x512xf32> to vector<128x512xbf16>
    %c0_63 = arith.constant 0 : index
    %c0_64 = arith.constant 0 : index
    %135 = vector.load %arg19[%c0_63, %c0_64] : memref<512x128xbf16, #tpu.memory_space<vmem>>, vector<512x128xbf16>
    %cst_65 = arith.constant dense<0.000000e+00> : vector<128x128xf32>
    %136 = tpu.matmul %134, %135, %cst_65 {dimension_numbers = #tpu.dot_dimension_numbers<[1], [0], [0], [1], [0, 0, 1, 1], [], []>} : vector<128x512xbf16>, vector<512x128xbf16>, vector<128x128xf32> -> vector<128x128xf32>
    %c0_66 = arith.constant 0 : index
    %c0_67 = arith.constant 0 : index
    %137 = vector.load %arg20[%c0_66, %c0_67] : memref<1x128xf32, #tpu.memory_space<vmem>>, vector<1x128xf32>
    %138 = vector.broadcast %137 : vector<1x128xf32> to vector<128x128xf32>
    %139 = arith.addf %136, %138 : vector<128x128xf32>
    %140 = arith.addf %95, %139 : vector<128x128xf32>
    %141 = vector.shape_cast %140 : vector<128x128xf32> to vector<8x16x128xf32>
    %c0_68 = arith.constant 0 : index
    %c0_69 = arith.constant 0 : index
    %c0_70 = arith.constant 0 : index
    %142 = vector.load %arg21[%c0_68, %c0_69, %c0_70] : memref<8x16x128xf32, #tpu.memory_space<vmem>>, vector<8x16x128xf32>
    tpu.vector_store %arg21[%c0_68, %c0_69, %c0_70], %141 {strides = array<i32>} : memref<8x16x128xf32, #tpu.memory_space<vmem>>, vector<8x16x128xf32>,
    return
  }
  func.func @transform_0(%arg0: i32) -> (i32, i32, i32) {
    %c0_i32 = arith.constant 0 : i32
    %c0_i32_0 = arith.constant 0 : i32
    %c0_i32_1 = arith.constant 0 : i32
    return %arg0, %c0_i32, %c0_i32_0 : i32, i32, i32
  }
  func.func @transform_1(%arg0: i32) -> (i32, i32, i32) {
    %c0_i32 = arith.constant 0 : i32
    %c0_i32_0 = arith.constant 0 : i32
    %c0_i32_1 = arith.constant 0 : i32
    return %arg0, %c0_i32, %c0_i32_0 : i32, i32, i32
  }
  func.func @transform_2(%arg0: i32) -> (i32, i32) {
    %c0_i32 = arith.constant 0 : i32
    %c0_i32_0 = arith.constant 0 : i32
    %c0_i32_1 = arith.constant 0 : i32
    return %c0_i32, %c0_i32_0 : i32, i32
  }
  func.func @transform_3(%arg0: i32) -> (i32, i32) {
    %c0_i32 = arith.constant 0 : i32
    %c0_i32_0 = arith.constant 0 : i32
    %c0_i32_1 = arith.constant 0 : i32
    return %c0_i32, %c0_i32_0 : i32, i32
  }
  func.func @transform_4(%arg0: i32) -> (i32, i32) {
    %c0_i32 = arith.constant 0 : i32
    %c0_i32_0 = arith.constant 0 : i32
    %c0_i32_1 = arith.constant 0 : i32
    return %c0_i32, %c0_i32_0 : i32, i32
  }
  func.func @transform_5(%arg0: i32) -> (i32, i32) {
    %c0_i32 = arith.constant 0 : i32
    %c0_i32_0 = arith.constant 0 : i32
    %c0_i32_1 = arith.constant 0 : i32
    return %c0_i32, %c0_i32_0 : i32, i32
  }
  func.func @transform_6(%arg0: i32) -> (i32, i32) {
    %c0_i32 = arith.constant 0 : i32
    %c0_i32_0 = arith.constant 0 : i32
    %c0_i32_1 = arith.constant 0 : i32
    return %c0_i32, %c0_i32_0 : i32, i32
  }
  func.func @transform_7(%arg0: i32) -> (i32, i32) {
    %c0_i32 = arith.constant 0 : i32
    %c0_i32_0 = arith.constant 0 : i32
    %c0_i32_1 = arith.constant 0 : i32
    return %c0_i32, %c0_i32_0 : i32, i32
  }
  func.func @transform_8(%arg0: i32) -> (i32, i32) {
    %c0_i32 = arith.constant 0 : i32
    %c0_i32_0 = arith.constant 0 : i32
    %c0_i32_1 = arith.constant 0 : i32
    return %c0_i32, %c0_i32_0 : i32, i32
  }
  func.func @transform_9(%arg0: i32) -> (i32, i32) {
    %c0_i32 = arith.constant 0 : i32
    %c0_i32_0 = arith.constant 0 : i32
    %c0_i32_1 = arith.constant 0 : i32
    return %c0_i32, %c0_i32_0 : i32, i32
  }
  func.func @transform_10(%arg0: i32) -> (i32, i32) {
    %c0_i32 = arith.constant 0 : i32
    %c0_i32_0 = arith.constant 0 : i32
    %c0_i32_1 = arith.constant 0 : i32
    return %c0_i32, %c0_i32_0 : i32, i32
  }
  func.func @transform_11(%arg0: i32) -> (i32, i32) {
    %c0_i32 = arith.constant 0 : i32
    %c0_i32_0 = arith.constant 0 : i32
    %c0_i32_1 = arith.constant 0 : i32
    return %c0_i32, %c0_i32_0 : i32, i32
  }
  func.func @transform_12(%arg0: i32) -> (i32, i32) {
    %c0_i32 = arith.constant 0 : i32
    %c0_i32_0 = arith.constant 0 : i32
    %c0_i32_1 = arith.constant 0 : i32
    return %c0_i32, %c0_i32_0 : i32, i32
  }
  func.func @transform_13(%arg0: i32) -> (i32, i32) {
    %c0_i32 = arith.constant 0 : i32
    %c0_i32_0 = arith.constant 0 : i32
    %c0_i32_1 = arith.constant 0 : i32
    return %c0_i32, %c0_i32_0 : i32, i32
  }
  func.func @transform_14(%arg0: i32) -> (i32, i32) {
    %c0_i32 = arith.constant 0 : i32
    %c0_i32_0 = arith.constant 0 : i32
    %c0_i32_1 = arith.constant 0 : i32
    return %c0_i32, %c0_i32_0 : i32, i32
  }
  func.func @transform_15(%arg0: i32) -> (i32, i32) {
    %c0_i32 = arith.constant 0 : i32
    %c0_i32_0 = arith.constant 0 : i32
    %c0_i32_1 = arith.constant 0 : i32
    return %c0_i32, %c0_i32_0 : i32, i32
  }
  func.func @transform_16(%arg0: i32) -> (i32, i32) {
    %c0_i32 = arith.constant 0 : i32
    %c0_i32_0 = arith.constant 0 : i32
    %c0_i32_1 = arith.constant 0 : i32
    return %c0_i32, %c0_i32_0 : i32, i32
  }
  func.func @transform_17(%arg0: i32) -> (i32, i32) {
    %c0_i32 = arith.constant 0 : i32
    %c0_i32_0 = arith.constant 0 : i32
    %c0_i32_1 = arith.constant 0 : i32
    return %c0_i32, %c0_i32_0 : i32, i32
  }
  func.func @transform_18(%arg0: i32) -> (i32, i32) {
    %c0_i32 = arith.constant 0 : i32
    %c0_i32_0 = arith.constant 0 : i32
    %c0_i32_1 = arith.constant 0 : i32
    return %c0_i32, %c0_i32_0 : i32, i32
  }
  func.func @transform_19(%arg0: i32) -> (i32, i32) {
    %c0_i32 = arith.constant 0 : i32
    %c0_i32_0 = arith.constant 0 : i32
    %c0_i32_1 = arith.constant 0 : i32
    return %c0_i32, %c0_i32_0 : i32, i32
  }
  func.func @transform_20(%arg0: i32) -> (i32, i32, i32) {
    %c0_i32 = arith.constant 0 : i32
    %c0_i32_0 = arith.constant 0 : i32
    %c0_i32_1 = arith.constant 0 : i32
    return %arg0, %c0_i32, %c0_i32_0 : i32, i32, i32
  }
}

</mosaic_0001>

<llo_original>
// kernel: cross_attention_block.1
$region0: #{cross_attention_block.1}
  #allocation0 [shape = 'u32[]', space=smem, size = 0x4, offset = 0x4, fixed_abs, tag = 'smem constant byte address 0x4 - core index']
  #allocation1 [shape = 'u32[144,128]{1,0:T(1,128)}', space=vmem, size = 0x12000, scoped, tag = 'internal scratch']
  %s0 = inlined_call_operand.hbm [shape: f32[16,16,128], index: 0, kind: input, shape index: {}]
  %s1 = inlined_call_operand.hbm [shape: f32[16,32,128], index: 1, kind: input, shape index: {}]
  %s2 = inlined_call_operand.hbm [shape: f32[1,128], index: 2, kind: input, shape index: {}]
  %s3 = inlined_call_operand.hbm [shape: f32[1,128], index: 3, kind: input, shape index: {}]
  %s4 = inlined_call_operand.hbm [shape: f32[1,128], index: 4, kind: input, shape index: {}]
  %s5 = inlined_call_operand.hbm [shape: f32[1,128], index: 5, kind: input, shape index: {}]
  %s6 = inlined_call_operand.vmem [shape: bf16[128,128], index: 6, kind: input, shape index: {}]
  %s7 = inlined_call_operand.vmem [shape: f32[1,128], index: 7, kind: input, shape index: {}]
  %s8 = inlined_call_operand.vmem [shape: bf16[128,128], index: 8, kind: input, shape index: {}]
  %s9 = inlined_call_operand.hbm [shape: f32[1,128], index: 9, kind: input, shape index: {}]
  %s10 = inlined_call_operand.vmem [shape: bf16[128,128], index: 10, kind: input, shape index: {}]
  %s11 = inlined_call_operand.hbm [shape: f32[1,128], index: 11, kind: input, shape index: {}]
  %s12 = inlined_call_operand.vmem [shape: bf16[128,128], index: 12, kind: input, shape index: {}]
  %s13 = inlined_call_operand.hbm [shape: f32[1,128], index: 13, kind: input, shape index: {}]
  %s14 = inlined_call_operand.hbm [shape: f32[1,128], index: 14, kind: input, shape index: {}]
  %s15 = inlined_call_operand.hbm [shape: f32[1,128], index: 15, kind: input, shape index: {}]
  %s16 = inlined_call_operand.hbm [shape: bf16[128,512], index: 16, kind: input, shape index: {}]
  %s17 = inlined_call_operand.hbm [shape: f32[1,512], index: 17, kind: input, shape index: {}]
  %s18 = inlined_call_operand.hbm [shape: bf16[512,128], index: 18, kind: input, shape index: {}]
  %s19 = inlined_call_operand.hbm [shape: f32[1,128], index: 19, kind: input, shape index: {}]
  %s20 = inlined_call_operand.hbm [shape: f32[16,16,128], index: 20, kind: output, shape index: {}]
  %s21 = sld [smem:[#allocation0]]
  $region173: #{cross_attention_block.1} parent=0
    _
  %s23 = ssub.s32 1, %s21
  %s24 = scalar_select 0, %s23, %s21
  $region1: #{cross_attention_block.1} parent=0
    #allocation2 [shape = 'u8[131072]{0}', space=vmem, size = 0x20000, scoped, tag = 'input window, operand 0']
    #allocation3 [shape = 's32[2]{0}', space=sflag, size = 0x8, scoped, tag = 'scoped memory for cross_attention_block.1']
    #allocation4 [shape = 's32[2]{0}', space=sflag, size = 0x8, scoped, tag = 'scoped memory for cross_attention_block.1']
    #allocation5 [shape = 'u8[262144]{0}', space=vmem, size = 0x40000, scoped, tag = 'input window, operand 1']
    #allocation6 [shape = 's32[2]{0}', space=sflag, size = 0x8, scoped, tag = 'scoped memory for cross_attention_block.1']
    #allocation7 [shape = 'u8[512]{0}', space=vmem, size = 0x400, scoped, tag = 'input window, operand 2, single buffered']
    #allocation8 [shape = 'u8[512]{0}', space=vmem, size = 0x400, scoped, tag = 'input window, operand 3, single buffered']
    #allocation9 [shape = 's32[1]{0}', space=sflag, size = 0x4, scoped, tag = 'scoped memory for cross_attention_block.1']
    #allocation10 [shape = 'u8[512]{0}', space=vmem, size = 0x400, scoped, tag = 'input window, operand 4, single buffered']
    #allocation11 [shape = 'u8[512]{0}', space=vmem, size = 0x400, scoped, tag = 'input window, operand 5, single buffered']
    #allocation12 [shape = 's32[1]{0}', space=sflag, size = 0x4, scoped, tag = 'scoped memory for cross_attention_block.1']
    #allocation13 [shape = 'u8[512]{0}', space=vmem, size = 0x400, scoped, tag = 'input window, operand 9, single buffered']
    #allocation14 [shape = 'u8[512]{0}', space=vmem, size = 0x400, scoped, tag = 'input window, operand 11, single buffered']
    #allocation15 [shape = 's32[1]{0}', space=sflag, size = 0x4, scoped, tag = 'scoped memory for cross_attention_block.1']
    #allocation16 [shape = 'u8[512]{0}', space=vmem, size = 0x400, scoped, tag = 'input window, operand 13, single buffered']
    #allocation17 [shape = 'u8[512]{0}', space=vmem, size = 0x400, scoped, tag = 'input window, operand 14, single buffered']
    #allocation18 [shape = 's32[1]{0}', space=sflag, size = 0x4, scoped, tag = 'scoped memory for cross_attention_block.1']
    #allocation19 [shape = 'u8[512]{0}', space=vmem, size = 0x400, scoped, tag = 'input window, operand 15, single buffered']
    #allocation20 [shape = 'u8[131072]{0}', space=vmem, size = 0x20000, scoped, tag = 'input window, operand 16, single buffered']
    #allocation21 [shape = 's32[1]{0}', space=sflag, size = 0x4, scoped, tag = 'scoped memory for cross_attention_block.1']
    #allocation22 [shape = 'u8[2048]{0}', space=vmem, size = 0x800, scoped, tag = 'input window, operand 17, single buffered']
    #allocation23 [shape = 'u8[131072]{0}', space=vmem, size = 0x20000, scoped, tag = 'input window, operand 18, single buffered']
    #allocation24 [shape = 's32[1]{0}', space=sflag, size = 0x4, scoped, tag = 'scoped memory for cross_attention_block.1']
    #allocation25 [shape = 'u8[512]{0}', space=vmem, size = 0x400, scoped, tag = 'input window, operand 19, single buffered']
    #allocation26 [shape = 'u8[131072]{0}', space=vmem, size = 0x20000, scoped, tag = 'output window, operand 0']
    %25 = vsyncpa [#allocation3], 0
    %s26 = scalar_lea.sflag [#allocation3], 1
    %27 = vsyncpa %s26, 0
    %28 = vsyncpa [#allocation6], 0
    %s29 = scalar_lea.sflag [#allocation6], 1
    %30 = vsyncpa %s29, 0
    %31 = vsyncpa [#allocation9], 0
    %32 = vsyncpa [#allocation12], 0
    %33 = vsyncpa [#allocation15], 0
    %34 = vsyncpa [#allocation18], 0
    %35 = vsyncpa [#allocation21], 0
    %36 = vsyncpa [#allocation24], 0
    %37 = vsyncpa [#allocation4], 0
    %s38 = scalar_lea.sflag [#allocation4], 1
    %39 = vsyncpa %s38, 0
    loop: start=0, step=1, limit=4
    $region2: #{cross_attention_block.1} parent=1 // loop_pre_header
      _
    $region3: #{cross_attention_block.1} parent=1 // loop_header
      %s41 = sphi 0, %s45
      %p42 = scmp.ge.s32.totalorder %s41, 4
      %s51 = sphi 0, %s53
      %s54 = sphi 0, %s51
      %s55 = sphi 0, %s54
      %s71 = sphi 0, %s55
      %s77 = sphi 0, %s79
      %s80 = sphi 0, %s77
      %s81 = sphi 0, %s80
      %s97 = sphi 0, %s81
      %s101 = sphi 0, %s101
      %s103 = sphi 0, %s101
      %s104 = sphi 0, %s103
      %s118 = sphi 0, %s104
      %s122 = sphi 0, %s122
      %s124 = sphi 0, %s122
      %s125 = sphi 0, %s124
      %s139 = sphi 0, %s125
      %s143 = sphi 0, %s143
      %s145 = sphi 0, %s143
      %s146 = sphi 0, %s145
      %s160 = sphi 0, %s146
      %s164 = sphi 0, %s164
      %s166 = sphi 0, %s164
      %s167 = sphi 0, %s166
      %s181 = sphi 0, %s167
      %s185 = sphi 0, %s185
      %s187 = sphi 0, %s185
      %s188 = sphi 0, %s187
      %s202 = sphi 0, %s188
      %s206 = sphi 0, %s206
      %s208 = sphi 0, %s206
      %s209 = sphi 0, %s208
      %s223 = sphi 0, %s209
      %s227 = sphi 0, %s227
      %s229 = sphi 0, %s227
      %s230 = sphi 0, %s229
      %s244 = sphi 0, %s230
      %s248 = sphi 0, %s248
      %s250 = sphi 0, %s248
      %s251 = sphi 0, %s250
      %s265 = sphi 0, %s251
      %s269 = sphi 0, %s269
      %s271 = sphi 0, %s269
      %s272 = sphi 0, %s271
      %s286 = sphi 0, %s272
      %s290 = sphi 0, %s290
      %s292 = sphi 0, %s290
      %s293 = sphi 0, %s292
      %s307 = sphi 0, %s293
      %s311 = sphi 0, %s311
      %s313 = sphi 0, %s311
      %s314 = sphi 0, %s313
      %s328 = sphi 0, %s314
      %s332 = sphi 0, %s332
      %s334 = sphi 0, %s332
      %s335 = sphi 0, %s334
      %s349 = sphi 0, %s335
      %s353 = sphi 0, %s353
      %s355 = sphi 0, %s353
      %s356 = sphi 0, %s355
      %s370 = sphi 0, %s356
      %s374 = sphi 0, %s374
      %s376 = sphi 0, %s374
      %s377 = sphi 0, %s376
      %s391 = sphi 0, %s377
      %s395 = sphi 0, %s395
      %s397 = sphi 0, %s395
      %s398 = sphi 0, %s397
      %s412 = sphi 0, %s398
      %s416 = sphi 0, %s416
      %s418 = sphi 0, %s416
      %s419 = sphi 0, %s418
      %s433 = sphi 0, %s419
      %s437 = sphi 0, %s437
      %s439 = sphi 0, %s437
      %s440 = sphi 0, %s439
      %s454 = sphi 0, %s440
      %s458 = sphi 0, %s458
      %s460 = sphi 0, %s458
      %s461 = sphi 0, %s460
      %s475 = sphi 0, %s461
      %s481 = sphi 0, %s483
      %s484 = sphi 0, %s481
      %s485 = sphi 0, %s484
      %s501 = sphi 0, %s485
    $region4: #{cross_attention_block.1} parent=1 // loop_header_branch
      %44 = sbr.rel (%p42) target = $region8
    $region5: #{cross_attention_block.1} parent=1 // loop_body
      %s46 = ssub.s32 %s41, 1
      %s47 = ssub.s32 %s41, 2
      %s48 = sadd.s32 %s41, 1
      %s49 = ssub.s32 %s41, %s48
      %p50 = scmp.eq.s32.totalorder %s49, 0
      %s52 = sadd.s32 %s51, 1
      %s53 = scalar_select %p50, %s51, %s52
      %p56 = pneg %p50
      %p57 = scmp.eq.s32.totalorder %s41, 1
      %p58 = por %p56, %p57
      %p59 = scmp.ne.s32.totalorder %s51, %s54
      %p60 = scmp.eq.s32.totalorder %s41, 0
      %p61 = por %p59, %p60
      %p62 = scmp.ne.s32.totalorder %s51, %s54
      %p63 = scmp.eq.s32.totalorder %s46, 1
      %p64 = por %p62, %p63
      %p65 = scmp.ne.s32.totalorder %s54, %s55
      %p66 = scmp.eq.s32.totalorder %s46, 0
      %p67 = por %p65, %p66
      %p68 = scmp.ne.s32.totalorder %s54, %s55
      %p69 = scmp.eq.s32.totalorder %s47, 1
      %p70 = por %p68, %p69
      %p72 = scmp.ne.s32.totalorder %s55, %s71
      %p73 = scmp.eq.s32.totalorder %s47, 0
      %p74 = por %p72, %p73
      %s75 = ssub.s32 %s41, %s48
      %p76 = scmp.eq.s32.totalorder %s75, 0
      %s78 = sadd.s32 %s77, 1
      %s79 = scalar_select %p76, %s77, %s78
      %p82 = pneg %p76
      %p83 = scmp.eq.s32.totalorder %s41, 1
      %p84 = por %p82, %p83
      %p85 = scmp.ne.s32.totalorder %s77, %s80
      %p86 = scmp.eq.s32.totalorder %s41, 0
      %p87 = por %p85, %p86
      %p88 = scmp.ne.s32.totalorder %s77, %s80
      %p89 = scmp.eq.s32.totalorder %s46, 1
      %p90 = por %p88, %p89
      %p91 = scmp.ne.s32.totalorder %s80, %s81
      %p92 = scmp.eq.s32.totalorder %s46, 0
      %p93 = por %p91, %p92
      %p94 = scmp.ne.s32.totalorder %s80, %s81
      %p95 = scmp.eq.s32.totalorder %s47, 1
      %p96 = por %p94, %p95
      %p98 = scmp.ne.s32.totalorder %s81, %s97
      %p99 = scmp.eq.s32.totalorder %s47, 0
      %p100 = por %p98, %p99
      %s102 = sadd.s32 %s101, 1
      %p105 = scmp.eq.s32.totalorder %s41, 1
      %p106 = scmp.ne.s32.totalorder %s101, %s103
      %p107 = scmp.eq.s32.totalorder %s41, 0
      %p108 = por %p106, %p107
      %p109 = scmp.ne.s32.totalorder %s101, %s103
      %p110 = scmp.eq.s32.totalorder %s46, 1
      %p111 = por %p109, %p110
      %p112 = scmp.ne.s32.totalorder %s103, %s104
      %p113 = scmp.eq.s32.totalorder %s46, 0
      %p114 = por %p112, %p113
      %p115 = scmp.ne.s32.totalorder %s103, %s104
      %p116 = scmp.eq.s32.totalorder %s47, 1
      %p117 = por %p115, %p116
      %p119 = scmp.ne.s32.totalorder %s104, %s118
      %p120 = scmp.eq.s32.totalorder %s47, 0
      %p121 = por %p119, %p120
      %s123 = sadd.s32 %s122, 1
      %p126 = scmp.eq.s32.totalorder %s41, 1
      %p127 = scmp.ne.s32.totalorder %s122, %s124
      %p128 = scmp.eq.s32.totalorder %s41, 0
      %p129 = por %p127, %p128
      %p130 = scmp.ne.s32.totalorder %s122, %s124
      %p131 = scmp.eq.s32.totalorder %s46, 1
      %p132 = por %p130, %p131
      %p133 = scmp.ne.s32.totalorder %s124, %s125
      %p134 = scmp.eq.s32.totalorder %s46, 0
      %p135 = por %p133, %p134
      %p136 = scmp.ne.s32.totalorder %s124, %s125
      %p137 = scmp.eq.s32.totalorder %s47, 1
      %p138 = por %p136, %p137
      %p140 = scmp.ne.s32.totalorder %s125, %s139
      %p141 = scmp.eq.s32.totalorder %s47, 0
      %p142 = por %p140, %p141
      %s144 = sadd.s32 %s143, 1
      %p147 = scmp.eq.s32.totalorder %s41, 1
      %p148 = scmp.ne.s32.totalorder %s143, %s145
      %p149 = scmp.eq.s32.totalorder %s41, 0
      %p150 = por %p148, %p149
      %p151 = scmp.ne.s32.totalorder %s143, %s145
      %p152 = scmp.eq.s32.totalorder %s46, 1
      %p153 = por %p151, %p152
      %p154 = scmp.ne.s32.totalorder %s145, %s146
      %p155 = scmp.eq.s32.totalorder %s46, 0
      %p156 = por %p154, %p155
      %p157 = scmp.ne.s32.totalorder %s145, %s146
      %p158 = scmp.eq.s32.totalorder %s47, 1
      %p159 = por %p157, %p158
      %p161 = scmp.ne.s32.totalorder %s146, %s160
      %p162 = scmp.eq.s32.totalorder %s47, 0
      %p163 = por %p161, %p162
      %s165 = sadd.s32 %s164, 1
      %p168 = scmp.eq.s32.totalorder %s41, 1
      %p169 = scmp.ne.s32.totalorder %s164, %s166
      %p170 = scmp.eq.s32.totalorder %s41, 0
      %p171 = por %p169, %p170
      %p172 = scmp.ne.s32.totalorder %s164, %s166
      %p173 = scmp.eq.s32.totalorder %s46, 1
      %p174 = por %p172, %p173
      %p175 = scmp.ne.s32.totalorder %s166, %s167
      %p176 = scmp.eq.s32.totalorder %s46, 0
      %p177 = por %p175, %p176
      %p178 = scmp.ne.s32.totalorder %s166, %s167
      %p179 = scmp.eq.s32.totalorder %s47, 1
      %p180 = por %p178, %p179
      %p182 = scmp.ne.s32.totalorder %s167, %s181
      %p183 = scmp.eq.s32.totalorder %s47, 0
      %p184 = por %p182, %p183
      %s186 = sadd.s32 %s185, 1
      %p189 = scmp.eq.s32.totalorder %s41, 1
      %p190 = scmp.ne.s32.totalorder %s185, %s187
      %p191 = scmp.eq.s32.totalorder %s41, 0
      %p192 = por %p190, %p191
      %p193 = scmp.ne.s32.totalorder %s185, %s187
      %p194 = scmp.eq.s32.totalorder %s46, 1
      %p195 = por %p193, %p194
      %p196 = scmp.ne.s32.totalorder %s187, %s188
      %p197 = scmp.eq.s32.totalorder %s46, 0
      %p198 = por %p196, %p197
      %p199 = scmp.ne.s32.totalorder %s187, %s188
      %p200 = scmp.eq.s32.totalorder %s47, 1
      %p201 = por %p199, %p200
      %p203 = scmp.ne.s32.totalorder %s188, %s202
      %p204 = scmp.eq.s32.totalorder %s47, 0
      %p205 = por %p203, %p204
      %s207 = sadd.s32 %s206, 1
      %p210 = scmp.eq.s32.totalorder %s41, 1
      %p211 = scmp.ne.s32.totalorder %s206, %s208
      %p212 = scmp.eq.s32.totalorder %s41, 0
      %p213 = por %p211, %p212
      %p214 = scmp.ne.s32.totalorder %s206, %s208
      %p215 = scmp.eq.s32.totalorder %s46, 1
      %p216 = por %p214, %p215
      %p217 = scmp.ne.s32.totalorder %s208, %s209
      %p218 = scmp.eq.s32.totalorder %s46, 0
      %p219 = por %p217, %p218
      %p220 = scmp.ne.s32.totalorder %s208, %s209
      %p221 = scmp.eq.s32.totalorder %s47, 1
      %p222 = por %p220, %p221
      %p224 = scmp.ne.s32.totalorder %s209, %s223
      %p225 = scmp.eq.s32.totalorder %s47, 0
      %p226 = por %p224, %p225
      %s228 = sadd.s32 %s227, 1
      %p231 = scmp.eq.s32.totalorder %s41, 1
      %p232 = scmp.ne.s32.totalorder %s227, %s229
      %p233 = scmp.eq.s32.totalorder %s41, 0
      %p234 = por %p232, %p233
      %p235 = scmp.ne.s32.totalorder %s227, %s229
      %p236 = scmp.eq.s32.totalorder %s46, 1
      %p237 = por %p235, %p236
      %p238 = scmp.ne.s32.totalorder %s229, %s230
      %p239 = scmp.eq.s32.totalorder %s46, 0
      %p240 = por %p238, %p239
      %p241 = scmp.ne.s32.totalorder %s229, %s230
      %p242 = scmp.eq.s32.totalorder %s47, 1
      %p243 = por %p241, %p242
      %p245 = scmp.ne.s32.totalorder %s230, %s244
      %p246 = scmp.eq.s32.totalorder %s47, 0
      %p247 = por %p245, %p246
      %s249 = sadd.s32 %s248, 1
      %p252 = scmp.eq.s32.totalorder %s41, 1
      %p253 = scmp.ne.s32.totalorder %s248, %s250
      %p254 = scmp.eq.s32.totalorder %s41, 0
      %p255 = por %p253, %p254
      %p256 = scmp.ne.s32.totalorder %s248, %s250
      %p257 = scmp.eq.s32.totalorder %s46, 1
      %p258 = por %p256, %p257
      %p259 = scmp.ne.s32.totalorder %s250, %s251
      %p260 = scmp.eq.s32.totalorder %s46, 0
      %p261 = por %p259, %p260
      %p262 = scmp.ne.s32.totalorder %s250, %s251
      %p263 = scmp.eq.s32.totalorder %s47, 1
      %p264 = por %p262, %p263
      %p266 = scmp.ne.s32.totalorder %s251, %s265
      %p267 = scmp.eq.s32.totalorder %s47, 0
      %p268 = por %p266, %p267
      %s270 = sadd.s32 %s269, 1
      %p273 = scmp.eq.s32.totalorder %s41, 1
      %p274 = scmp.ne.s32.totalorder %s269, %s271
      %p275 = scmp.eq.s32.totalorder %s41, 0
      %p276 = por %p274, %p275
      %p277 = scmp.ne.s32.totalorder %s269, %s271
      %p278 = scmp.eq.s32.totalorder %s46, 1
      %p279 = por %p277, %p278
      %p280 = scmp.ne.s32.totalorder %s271, %s272
      %p281 = scmp.eq.s32.totalorder %s46, 0
      %p282 = por %p280, %p281
      %p283 = scmp.ne.s32.totalorder %s271, %s272
      %p284 = scmp.eq.s32.totalorder %s47, 1
      %p285 = por %p283, %p284
      %p287 = scmp.ne.s32.totalorder %s272, %s286
      %p288 = scmp.eq.s32.totalorder %s47, 0
      %p289 = por %p287, %p288
      %s291 = sadd.s32 %s290, 1
      %p294 = scmp.eq.s32.totalorder %s41, 1
      %p295 = scmp.ne.s32.totalorder %s290, %s292
      %p296 = scmp.eq.s32.totalorder %s41, 0
      %p297 = por %p295, %p296
      %p298 = scmp.ne.s32.totalorder %s290, %s292
      %p299 = scmp.eq.s32.totalorder %s46, 1
      %p300 = por %p298, %p299
      %p301 = scmp.ne.s32.totalorder %s292, %s293
      %p302 = scmp.eq.s32.totalorder %s46, 0
      %p303 = por %p301, %p302
      %p304 = scmp.ne.s32.totalorder %s292, %s293
      %p305 = scmp.eq.s32.totalorder %s47, 1
      %p306 = por %p304, %p305
      %p308 = scmp.ne.s32.totalorder %s293, %s307
      %p309 = scmp.eq.s32.totalorder %s47, 0
      %p310 = por %p308, %p309
      %s312 = sadd.s32 %s311, 1
      %p315 = scmp.eq.s32.totalorder %s41, 1
      %p316 = scmp.ne.s32.totalorder %s311, %s313
      %p317 = scmp.eq.s32.totalorder %s41, 0
      %p318 = por %p316, %p317
      %p319 = scmp.ne.s32.totalorder %s311, %s313
      %p320 = scmp.eq.s32.totalorder %s46, 1
      %p321 = por %p319, %p320
      %p322 = scmp.ne.s32.totalorder %s313, %s314
      %p323 = scmp.eq.s32.totalorder %s46, 0
      %p324 = por %p322, %p323
      %p325 = scmp.ne.s32.totalorder %s313, %s314
      %p326 = scmp.eq.s32.totalorder %s47, 1
      %p327 = por %p325, %p326
      %p329 = scmp.ne.s32.totalorder %s314, %s328
      %p330 = scmp.eq.s32.totalorder %s47, 0
      %p331 = por %p329, %p330
      %s333 = sadd.s32 %s332, 1
      %p336 = scmp.eq.s32.totalorder %s41, 1
      %p337 = scmp.ne.s32.totalorder %s332, %s334
      %p338 = scmp.eq.s32.totalorder %s41, 0
      %p339 = por %p337, %p338
      %p340 = scmp.ne.s32.totalorder %s332, %s334
      %p341 = scmp.eq.s32.totalorder %s46, 1
      %p342 = por %p340, %p341
      %p343 = scmp.ne.s32.totalorder %s334, %s335
      %p344 = scmp.eq.s32.totalorder %s46, 0
      %p345 = por %p343, %p344
      %p346 = scmp.ne.s32.totalorder %s334, %s335
      %p347 = scmp.eq.s32.totalorder %s47, 1
      %p348 = por %p346, %p347
      %p350 = scmp.ne.s32.totalorder %s335, %s349
      %p351 = scmp.eq.s32.totalorder %s47, 0
      %p352 = por %p350, %p351
      %s354 = sadd.s32 %s353, 1
      %p357 = scmp.eq.s32.totalorder %s41, 1
      %p358 = scmp.ne.s32.totalorder %s353, %s355
      %p359 = scmp.eq.s32.totalorder %s41, 0
      %p360 = por %p358, %p359
      %p361 = scmp.ne.s32.totalorder %s353, %s355
      %p362 = scmp.eq.s32.totalorder %s46, 1
      %p363 = por %p361, %p362
      %p364 = scmp.ne.s32.totalorder %s355, %s356
      %p365 = scmp.eq.s32.totalorder %s46, 0
      %p366 = por %p364, %p365
      %p367 = scmp.ne.s32.totalorder %s355, %s356
      %p368 = scmp.eq.s32.totalorder %s47, 1
      %p369 = por %p367, %p368
      %p371 = scmp.ne.s32.totalorder %s356, %s370
      %p372 = scmp.eq.s32.totalorder %s47, 0
      %p373 = por %p371, %p372
      %s375 = sadd.s32 %s374, 1
      %p378 = scmp.eq.s32.totalorder %s41, 1
      %p379 = scmp.ne.s32.totalorder %s374, %s376
      %p380 = scmp.eq.s32.totalorder %s41, 0
      %p381 = por %p379, %p380
      %p382 = scmp.ne.s32.totalorder %s374, %s376
      %p383 = scmp.eq.s32.totalorder %s46, 1
      %p384 = por %p382, %p383
      %p385 = scmp.ne.s32.totalorder %s376, %s377
      %p386 = scmp.eq.s32.totalorder %s46, 0
      %p387 = por %p385, %p386
      %p388 = scmp.ne.s32.totalorder %s376, %s377
      %p389 = scmp.eq.s32.totalorder %s47, 1
      %p390 = por %p388, %p389
      %p392 = scmp.ne.s32.totalorder %s377, %s391
      %p393 = scmp.eq.s32.totalorder %s47, 0
      %p394 = por %p392, %p393
      %s396 = sadd.s32 %s395, 1
      %p399 = scmp.eq.s32.totalorder %s41, 1
      %p400 = scmp.ne.s32.totalorder %s395, %s397
      %p401 = scmp.eq.s32.totalorder %s41, 0
      %p402 = por %p400, %p401
      %p403 = scmp.ne.s32.totalorder %s395, %s397
      %p404 = scmp.eq.s32.totalorder %s46, 1
      %p405 = por %p403, %p404
      %p406 = scmp.ne.s32.totalorder %s397, %s398
      %p407 = scmp.eq.s32.totalorder %s46, 0
      %p408 = por %p406, %p407
      %p409 = scmp.ne.s32.totalorder %s397, %s398
      %p410 = scmp.eq.s32.totalorder %s47, 1
      %p411 = por %p409, %p410
      %p413 = scmp.ne.s32.totalorder %s398, %s412
      %p414 = scmp.eq.s32.totalorder %s47, 0
      %p415 = por %p413, %p414
      %s417 = sadd.s32 %s416, 1
      %p420 = scmp.eq.s32.totalorder %s41, 1
      %p421 = scmp.ne.s32.totalorder %s416, %s418
      %p422 = scmp.eq.s32.totalorder %s41, 0
      %p423 = por %p421, %p422
      %p424 = scmp.ne.s32.totalorder %s416, %s418
      %p425 = scmp.eq.s32.totalorder %s46, 1
      %p426 = por %p424, %p425
      %p427 = scmp.ne.s32.totalorder %s418, %s419
      %p428 = scmp.eq.s32.totalorder %s46, 0
      %p429 = por %p427, %p428
      %p430 = scmp.ne.s32.totalorder %s418, %s419
      %p431 = scmp.eq.s32.totalorder %s47, 1
      %p432 = por %p430, %p431
      %p434 = scmp.ne.s32.totalorder %s419, %s433
      %p435 = scmp.eq.s32.totalorder %s47, 0
      %p436 = por %p434, %p435
      %s438 = sadd.s32 %s437, 1
      %p441 = scmp.eq.s32.totalorder %s41, 1
      %p442 = scmp.ne.s32.totalorder %s437, %s439
      %p443 = scmp.eq.s32.totalorder %s41, 0
      %p444 = por %p442, %p443
      %p445 = scmp.ne.s32.totalorder %s437, %s439
      %p446 = scmp.eq.s32.totalorder %s46, 1
      %p447 = por %p445, %p446
      %p448 = scmp.ne.s32.totalorder %s439, %s440
      %p449 = scmp.eq.s32.totalorder %s46, 0
      %p450 = por %p448, %p449
      %p451 = scmp.ne.s32.totalorder %s439, %s440
      %p452 = scmp.eq.s32.totalorder %s47, 1
      %p453 = por %p451, %p452
      %p455 = scmp.ne.s32.totalorder %s440, %s454
      %p456 = scmp.eq.s32.totalorder %s47, 0
      %p457 = por %p455, %p456
      %s459 = sadd.s32 %s458, 1
      %p462 = scmp.eq.s32.totalorder %s41, 1
      %p463 = scmp.ne.s32.totalorder %s458, %s460
      %p464 = scmp.eq.s32.totalorder %s41, 0
      %p465 = por %p463, %p464
      %p466 = scmp.ne.s32.totalorder %s458, %s460
      %p467 = scmp.eq.s32.totalorder %s46, 1
      %p468 = por %p466, %p467
      %p469 = scmp.ne.s32.totalorder %s460, %s461
      %p470 = scmp.eq.s32.totalorder %s46, 0
      %p471 = por %p469, %p470
      %p472 = scmp.ne.s32.totalorder %s460, %s461
      %p473 = scmp.eq.s32.totalorder %s47, 1
      %p474 = por %p472, %p473
      %p476 = scmp.ne.s32.totalorder %s461, %s475
      %p477 = scmp.eq.s32.totalorder %s47, 0
      %p478 = por %p476, %p477
      %s479 = ssub.s32 %s41, %s48
      %p480 = scmp.eq.s32.totalorder %s479, 0
      %s482 = sadd.s32 %s481, 1
      %s483 = scalar_select %p480, %s481, %s482
      %p486 = pneg %p480
      %p487 = scmp.eq.s32.totalorder %s41, 1
      %p488 = por %p486, %p487
      %p489 = scmp.ne.s32.totalorder %s481, %s484
      %p490 = scmp.eq.s32.totalorder %s41, 0
      %p491 = por %p489, %p490
      %p492 = scmp.ne.s32.totalorder %s481, %s484
      %p493 = scmp.eq.s32.totalorder %s46, 1
      %p494 = por %p492, %p493
      %p495 = scmp.ne.s32.totalorder %s484, %s485
      %p496 = scmp.eq.s32.totalorder %s46, 0
      %p497 = por %p495, %p496
      %p498 = scmp.ne.s32.totalorder %s484, %s485
      %p499 = scmp.eq.s32.totalorder %s47, 1
      %p500 = por %p498, %p499
      %p502 = scmp.ne.s32.totalorder %s485, %s501
      %p503 = scmp.eq.s32.totalorder %s47, 0
      %p504 = por %p502, %p503
      %p505 = scmp.le.s32.totalorder 1, %s41
      %p506 = scmp.lt.s32.totalorder %s41, 3
      %p507 = pnand %p505, %p506
      %p508 = pneg %p507
      // Predicated region
      $region9: #{cross_attention_block.1} parent=5 // pred_check
        _
      $region10: #{cross_attention_block.1} parent=5 // pred_check_branch
        %510 = sbr.rel (%p507) target = $region12
      $region11: #{cross_attention_block.1} parent=5 // pred_region
        %s511 = ssub.s32 %s41, 1
        // Predicated region
        $region13: #{cross_attention_block.1} parent=11 // pred_check
          %p512 = pneg %p114
        $region14: #{cross_attention_block.1} parent=11 // pred_check_branch
          %514 = sbr.rel (%p512) target = $region16
        $region15: #{cross_attention_block.1} parent=11 // pred_region
          %s516 = ssub.s32 16, 16
          %517 = vsyncadd [#allocation6], %s516
          %s519 = sshll.u32 [#allocation7], 4
          %s520 = int_to_ptr.vmem [resolvable:$true] %s519
          %522 = dma.hbm_to_vmem [thread:$0]  %s2, 16, %s520, [#allocation6]
        $region16: #{cross_attention_block.1} parent=11 // pred_fallthru
          _
        // Predicated region
        $region17: #{cross_attention_block.1} parent=11 // pred_check
          %p523 = pneg %p135
        $region18: #{cross_attention_block.1} parent=11 // pred_check_branch
          %525 = sbr.rel (%p523) target = $region20
        $region19: #{cross_attention_block.1} parent=11 // pred_region
          %s527 = ssub.s32 16, 16
          %528 = vsyncadd [#allocation9], %s527
          %s530 = sshll.u32 [#allocation8], 4
          %s531 = int_to_ptr.vmem [resolvable:$true] %s530
          %533 = dma.hbm_to_vmem [thread:$0]  %s3, 16, %s531, [#allocation9]
        $region20: #{cross_attention_block.1} parent=11 // pred_fallthru
          _
        // Predicated region
        $region21: #{cross_attention_block.1} parent=11 // pred_check
          %p534 = pneg %p156
        $region22: #{cross_attention_block.1} parent=11 // pred_check_branch
          %536 = sbr.rel (%p534) target = $region24
        $region23: #{cross_attention_block.1} parent=11 // pred_region
          %s538 = ssub.s32 16, 16
          %539 = vsyncadd [#allocation9], %s538
          %s541 = sshll.u32 [#allocation10], 4
          %s542 = int_to_ptr.vmem [resolvable:$true] %s541
          %544 = dma.hbm_to_vmem [thread:$0]  %s4, 16, %s542, [#allocation9]
        $region24: #{cross_attention_block.1} parent=11 // pred_fallthru
          _
        // Predicated region
        $region25: #{cross_attention_block.1} parent=11 // pred_check
          %p545 = pneg %p177
        $region26: #{cross_attention_block.1} parent=11 // pred_check_branch
          %547 = sbr.rel (%p545) target = $region28
        $region27: #{cross_attention_block.1} parent=11 // pred_region
          %s549 = ssub.s32 16, 16
          %550 = vsyncadd [#allocation12], %s549
          %s552 = sshll.u32 [#allocation11], 4
          %s553 = int_to_ptr.vmem [resolvable:$true] %s552
          %555 = dma.hbm_to_vmem [thread:$0]  %s5, 16, %s553, [#allocation12]
        $region28: #{cross_attention_block.1} parent=11 // pred_fallthru
          _
        // Predicated region
        $region29: #{cross_attention_block.1} parent=11 // pred_check
          %p556 = pneg %p198
        $region30: #{cross_attention_block.1} parent=11 // pred_check_branch
          %558 = sbr.rel (%p556) target = $region32
        $region31: #{cross_attention_block.1} parent=11 // pred_region
          _
        $region32: #{cross_attention_block.1} parent=11 // pred_fallthru
          _
        // Predicated region
        $region33: #{cross_attention_block.1} parent=11 // pred_check
          %p559 = pneg %p219
        $region34: #{cross_attention_block.1} parent=11 // pred_check_branch
          %561 = sbr.rel (%p559) target = $region36
        $region35: #{cross_attention_block.1} parent=11 // pred_region
          _
        $region36: #{cross_attention_block.1} parent=11 // pred_fallthru
          _
        // Predicated region
        $region37: #{cross_attention_block.1} parent=11 // pred_check
          %p562 = pneg %p240
        $region38: #{cross_attention_block.1} parent=11 // pred_check_branch
          %564 = sbr.rel (%p562) target = $region40
        $region39: #{cross_attention_block.1} parent=11 // pred_region
          _
        $region40: #{cross_attention_block.1} parent=11 // pred_fallthru
          _
        // Predicated region
        $region41: #{cross_attention_block.1} parent=11 // pred_check
          %p565 = pneg %p261
        $region42: #{cross_attention_block.1} parent=11 // pred_check_branch
          %567 = sbr.rel (%p565) target = $region44
        $region43: #{cross_attention_block.1} parent=11 // pred_region
          %s569 = ssub.s32 16, 16
          %570 = vsyncadd [#allocation12], %s569
          %s572 = sshll.u32 [#allocation13], 4
          %s573 = int_to_ptr.vmem [resolvable:$true] %s572
          %575 = dma.hbm_to_vmem [thread:$0]  %s9, 16, %s573, [#allocation12]
        $region44: #{cross_attention_block.1} parent=11 // pred_fallthru
          _
        // Predicated region
        $region45: #{cross_attention_block.1} parent=11 // pred_check
          %p576 = pneg %p282
        $region46: #{cross_attention_block.1} parent=11 // pred_check_branch
          %578 = sbr.rel (%p576) target = $region48
        $region47: #{cross_attention_block.1} parent=11 // pred_region
          _
        $region48: #{cross_attention_block.1} parent=11 // pred_fallthru
          _
        // Predicated region
        $region49: #{cross_attention_block.1} parent=11 // pred_check
          %p579 = pneg %p303
        $region50: #{cross_attention_block.1} parent=11 // pred_check_branch
          %581 = sbr.rel (%p579) target = $region52
        $region51: #{cross_attention_block.1} parent=11 // pred_region
          %s583 = ssub.s32 16, 16
          %584 = vsyncadd [#allocation15], %s583
          %s586 = sshll.u32 [#allocation14], 4
          %s587 = int_to_ptr.vmem [resolvable:$true] %s586
          %589 = dma.hbm_to_vmem [thread:$0]  %s11, 16, %s587, [#allocation15]
        $region52: #{cross_attention_block.1} parent=11 // pred_fallthru
          _
        // Predicated region
        $region53: #{cross_attention_block.1} parent=11 // pred_check
          %p590 = pneg %p324
        $region54: #{cross_attention_block.1} parent=11 // pred_check_branch
          %592 = sbr.rel (%p590) target = $region56
        $region55: #{cross_attention_block.1} parent=11 // pred_region
          _
        $region56: #{cross_attention_block.1} parent=11 // pred_fallthru
          _
        // Predicated region
        $region57: #{cross_attention_block.1} parent=11 // pred_check
          %p593 = pneg %p345
        $region58: #{cross_attention_block.1} parent=11 // pred_check_branch
          %595 = sbr.rel (%p593) target = $region60
        $region59: #{cross_attention_block.1} parent=11 // pred_region
          %s597 = ssub.s32 16, 16
          %598 = vsyncadd [#allocation15], %s597
          %s600 = sshll.u32 [#allocation16], 4
          %s601 = int_to_ptr.vmem [resolvable:$true] %s600
          %603 = dma.hbm_to_vmem [thread:$0]  %s13, 16, %s601, [#allocation15]
        $region60: #{cross_attention_block.1} parent=11 // pred_fallthru
          _
        // Predicated region
        $region61: #{cross_attention_block.1} parent=11 // pred_check
          %p604 = pneg %p366
        $region62: #{cross_attention_block.1} parent=11 // pred_check_branch
          %606 = sbr.rel (%p604) target = $region64
        $region63: #{cross_attention_block.1} parent=11 // pred_region
          %s608 = ssub.s32 16, 16
          %609 = vsyncadd [#allocation18], %s608
          %s611 = sshll.u32 [#allocation17], 4
          %s612 = int_to_ptr.vmem [resolvable:$true] %s611
          %614 = dma.hbm_to_vmem [thread:$0]  %s14, 16, %s612, [#allocation18]
        $region64: #{cross_attention_block.1} parent=11 // pred_fallthru
          _
        // Predicated region
        $region65: #{cross_attention_block.1} parent=11 // pred_check
          %p615 = pneg %p387
        $region66: #{cross_attention_block.1} parent=11 // pred_check_branch
          %617 = sbr.rel (%p615) target = $region68
        $region67: #{cross_attention_block.1} parent=11 // pred_region
          %s619 = ssub.s32 16, 16
          %620 = vsyncadd [#allocation18], %s619
          %s622 = sshll.u32 [#allocation19], 4
          %s623 = int_to_ptr.vmem [resolvable:$true] %s622
          %625 = dma.hbm_to_vmem [thread:$0]  %s15, 16, %s623, [#allocation18]
        $region68: #{cross_attention_block.1} parent=11 // pred_fallthru
          _
        // Predicated region
        $region69: #{cross_attention_block.1} parent=11 // pred_check
          %p626 = pneg %p408
        $region70: #{cross_attention_block.1} parent=11 // pred_check_branch
          %628 = sbr.rel (%p626) target = $region72
        $region71: #{cross_attention_block.1} parent=11 // pred_region
          %s630 = ssub.s32 4096, 4096
          %631 = vsyncadd [#allocation21], %s630
          %s632 = sshll.u32 [#allocation20], 4
          %s633 = int_to_ptr.vmem [resolvable:$true] %s632
          %638 = dma.hbm_to_vmem [thread:$0]  %s16, 4096, %s633, [#allocation21], 256, 256, 16
        $region72: #{cross_attention_block.1} parent=11 // pred_fallthru
          _
        // Predicated region
        $region73: #{cross_attention_block.1} parent=11 // pred_check
          %p639 = pneg %p429
        $region74: #{cross_attention_block.1} parent=11 // pred_check_branch
          %641 = sbr.rel (%p639) target = $region76
        $region75: #{cross_attention_block.1} parent=11 // pred_region
          %s643 = ssub.s32 64, 64
          %644 = vsyncadd [#allocation21], %s643
          %s646 = sshll.u32 [#allocation22], 4
          %s647 = int_to_ptr.vmem [resolvable:$true] %s646
          %649 = dma.hbm_to_vmem [thread:$0]  %s17, 64, %s647, [#allocation21]
        $region76: #{cross_attention_block.1} parent=11 // pred_fallthru
          _
        // Predicated region
        $region77: #{cross_attention_block.1} parent=11 // pred_check
          %p650 = pneg %p450
        $region78: #{cross_attention_block.1} parent=11 // pred_check_branch
          %652 = sbr.rel (%p650) target = $region80
        $region79: #{cross_attention_block.1} parent=11 // pred_region
          %s654 = ssub.s32 4096, 4096
          %655 = vsyncadd [#allocation24], %s654
          %s656 = sshll.u32 [#allocation23], 4
          %s657 = int_to_ptr.vmem [resolvable:$true] %s656
          %662 = dma.hbm_to_vmem [thread:$0]  %s18, 4096, %s657, [#allocation24], 64, 64, 4
        $region80: #{cross_attention_block.1} parent=11 // pred_fallthru
          _
        // Predicated region
        $region81: #{cross_attention_block.1} parent=11 // pred_check
          %p663 = pneg %p471
        $region82: #{cross_attention_block.1} parent=11 // pred_check_branch
          %665 = sbr.rel (%p663) target = $region84
        $region83: #{cross_attention_block.1} parent=11 // pred_region
          %s667 = ssub.s32 16, 16
          %668 = vsyncadd [#allocation24], %s667
          %s670 = sshll.u32 [#allocation25], 4
          %s671 = int_to_ptr.vmem [resolvable:$true] %s670
          %673 = dma.hbm_to_vmem [thread:$0]  %s19, 16, %s671, [#allocation24]
        $region84: #{cross_attention_block.1} parent=11 // pred_fallthru
          _
      $region12: #{cross_attention_block.1} parent=5 // pred_fallthru
        _
      %p674 = scmp.lt.s32.totalorder %s41, 2
      // Predicated region
      $region85: #{cross_attention_block.1} parent=5 // pred_check
        %p675 = pneg %p674
      $region86: #{cross_attention_block.1} parent=5 // pred_check_branch
        %677 = sbr.rel (%p675) target = $region88
      $region87: #{cross_attention_block.1} parent=5 // pred_region
        // Predicated region
        $region89: #{cross_attention_block.1} parent=87 // pred_check
          %p678 = pneg %p61
        $region90: #{cross_attention_block.1} parent=87 // pred_check_branch
          %680 = sbr.rel (%p678) target = $region92
        $region91: #{cross_attention_block.1} parent=87 // pred_region
          %s681 = sand.u32 %s51, 1
          %s682 = scalar_lea.sflag [#allocation3], %s681
          %s683 = sand.u32 %s51, 1
          %s684 = smul.addr %s683, 128
          %s685 = scalar_lea.vmem [#allocation2], %s684
          %s686 = smul.u32 8, %s41
          %s688 = ssub.s32 2048, 2048
          %689 = vsyncadd %s682, %s688
          %s690 = smul.addr %s686, 2
          %s691 = smul.addr %s690, 128
          %s692 = scalar_lea.hbm %s0, %s691
          %s693 = sshll.u32 %s685, 4
          %s694 = int_to_ptr.vmem [resolvable:$true] %s693
          %699 = dma.hbm_to_vmem [thread:$0]  %s692, 2048, %s694, %s682, 128, 128, 8
        $region92: #{cross_attention_block.1} parent=87 // pred_fallthru
          _
        // Predicated region
        $region93: #{cross_attention_block.1} parent=87 // pred_check
          %p700 = pneg %p87
        $region94: #{cross_attention_block.1} parent=87 // pred_check_branch
          %702 = sbr.rel (%p700) target = $region96
        $region95: #{cross_attention_block.1} parent=87 // pred_region
          %s703 = sand.u32 %s41, 1
          %s704 = scalar_lea.sflag [#allocation6], %s703
          %s705 = sand.u32 %s77, 1
          %s706 = smul.addr %s705, 256
          %s707 = scalar_lea.vmem [#allocation5], %s706
          %s708 = smul.u32 8, %s41
          %s710 = ssub.s32 4096, 4096
          %711 = vsyncadd %s704, %s710
          %s712 = smul.addr %s708, 4
          %s713 = smul.addr %s712, 128
          %s714 = scalar_lea.hbm %s1, %s713
          %s715 = sshll.u32 %s707, 4
          %s716 = int_to_ptr.vmem [resolvable:$true] %s715
          %721 = dma.hbm_to_vmem [thread:$0]  %s714, 4096, %s716, %s704, 128, 128, 8
        $region96: #{cross_attention_block.1} parent=87 // pred_fallthru
          _
      $region88: #{cross_attention_block.1} parent=5 // pred_fallthru
        _
      %p722 = scmp.le.s32.totalorder 1, %s41
      %p723 = scmp.lt.s32.totalorder %s41, 3
      %p724 = pnand %p722, %p723
      %p725 = pneg %p724
      // Predicated region
      $region97: #{cross_attention_block.1} parent=5 // pred_check
        _
      $region98: #{cross_attention_block.1} parent=5 // pred_check_branch
        %727 = sbr.rel (%p724) target = $region100
      $region99: #{cross_attention_block.1} parent=5 // pred_region
        %s728 = ssub.s32 %s41, 1
        %s729 = sand.u32 %s54, 1
        %s730 = scalar_lea.sflag [#allocation3], %s729
        %s731 = sand.u32 %s54, 1
        %s732 = smul.addr %s731, 128
        %s733 = scalar_lea.vmem [#allocation2], %s732
        // Predicated region
        $region101: #{cross_attention_block.1} parent=99 // pred_check
          %p734 = pneg %p67
        $region102: #{cross_attention_block.1} parent=99 // pred_check_branch
          %736 = sbr.rel (%p734) target = $region104
        $region103: #{cross_attention_block.1} parent=99 // pred_region
          %737 = dma.done %s730, 2048
        $region104: #{cross_attention_block.1} parent=99 // pred_fallthru
          _
        %s738 = sand.u32 %s46, 1
        %s739 = scalar_lea.sflag [#allocation6], %s738
        %s740 = sand.u32 %s80, 1
        %s741 = smul.addr %s740, 256
        %s742 = scalar_lea.vmem [#allocation5], %s741
        // Predicated region
        $region105: #{cross_attention_block.1} parent=99 // pred_check
          %p743 = pneg %p93
        $region106: #{cross_attention_block.1} parent=99 // pred_check_branch
          %745 = sbr.rel (%p743) target = $region108
        $region107: #{cross_attention_block.1} parent=99 // pred_region
          %746 = dma.done %s739, 4096
        $region108: #{cross_attention_block.1} parent=99 // pred_fallthru
          _
        // Predicated region
        $region109: #{cross_attention_block.1} parent=99 // pred_check
          %p747 = pneg %p114
        $region110: #{cross_attention_block.1} parent=99 // pred_check_branch
          %749 = sbr.rel (%p747) target = $region112
        $region111: #{cross_attention_block.1} parent=99 // pred_region
          %750 = dma.done [#allocation6], 16
        $region112: #{cross_attention_block.1} parent=99 // pred_fallthru
          _
        // Predicated region
        $region113: #{cross_attention_block.1} parent=99 // pred_check
          %p751 = pneg %p135
        $region114: #{cross_attention_block.1} parent=99 // pred_check_branch
          %753 = sbr.rel (%p751) target = $region116
        $region115: #{cross_attention_block.1} parent=99 // pred_region
          %754 = dma.done [#allocation9], 16
        $region116: #{cross_attention_block.1} parent=99 // pred_fallthru
          _
        // Predicated region
        $region117: #{cross_attention_block.1} parent=99 // pred_check
          %p755 = pneg %p156
        $region118: #{cross_attention_block.1} parent=99 // pred_check_branch
          %757 = sbr.rel (%p755) target = $region120
        $region119: #{cross_attention_block.1} parent=99 // pred_region
          %758 = dma.done [#allocation9], 16
        $region120: #{cross_attention_block.1} parent=99 // pred_fallthru
          _
        // Predicated region
        $region121: #{cross_attention_block.1} parent=99 // pred_check
          %p759 = pneg %p177
        $region122: #{cross_attention_block.1} parent=99 // pred_check_branch
          %761 = sbr.rel (%p759) target = $region124
        $region123: #{cross_attention_block.1} parent=99 // pred_region
          %762 = dma.done [#allocation12], 16
        $region124: #{cross_attention_block.1} parent=99 // pred_fallthru
          _
        // Predicated region
        $region125: #{cross_attention_block.1} parent=99 // pred_check
          %p763 = pneg %p261
        $region126: #{cross_attention_block.1} parent=99 // pred_check_branch
          %765 = sbr.rel (%p763) target = $region128
        $region127: #{cross_attention_block.1} parent=99 // pred_region
          %766 = dma.done [#allocation12], 16
        $region128: #{cross_attention_block.1} parent=99 // pred_fallthru
          _
        // Predicated region
        $region129: #{cross_attention_block.1} parent=99 // pred_check
          %p767 = pneg %p303
        $region130: #{cross_attention_block.1} parent=99 // pred_check_branch
          %769 = sbr.rel (%p767) target = $region132
        $region131: #{cross_attention_block.1} parent=99 // pred_region
          %770 = dma.done [#allocation15], 16
        $region132: #{cross_attention_block.1} parent=99 // pred_fallthru
          _
        // Predicated region
        $region133: #{cross_attention_block.1} parent=99 // pred_check
          %p771 = pneg %p345
        $region134: #{cross_attention_block.1} parent=99 // pred_check_branch
          %773 = sbr.rel (%p771) target = $region136
        $region135: #{cross_attention_block.1} parent=99 // pred_region
          %774 = dma.done [#allocation15], 16
        $region136: #{cross_attention_block.1} parent=99 // pred_fallthru
          _
        // Predicated region
        $region137: #{cross_attention_block.1} parent=99 // pred_check
          %p775 = pneg %p366
        $region138: #{cross_attention_block.1} parent=99 // pred_check_branch
          %777 = sbr.rel (%p775) target = $region140
        $region139: #{cross_attention_block.1} parent=99 // pred_region
          %778 = dma.done [#allocation18], 16
        $region140: #{cross_attention_block.1} parent=99 // pred_fallthru
          _
        // Predicated region
        $region141: #{cross_attention_block.1} parent=99 // pred_check
          %p779 = pneg %p387
        $region142: #{cross_attention_block.1} parent=99 // pred_check_branch
          %781 = sbr.rel (%p779) target = $region144
        $region143: #{cross_attention_block.1} parent=99 // pred_region
          %782 = dma.done [#allocation18], 16
        $region144: #{cross_attention_block.1} parent=99 // pred_fallthru
          _
        // Predicated region
        $region145: #{cross_attention_block.1} parent=99 // pred_check
          %p783 = pneg %p408
        $region146: #{cross_attention_block.1} parent=99 // pred_check_branch
          %785 = sbr.rel (%p783) target = $region148
        $region147: #{cross_attention_block.1} parent=99 // pred_region
          %786 = dma.done [#allocation21], 4096
        $region148: #{cross_attention_block.1} parent=99 // pred_fallthru
          _
        // Predicated region
        $region149: #{cross_attention_block.1} parent=99 // pred_check
          %p787 = pneg %p429
        $region150: #{cross_attention_block.1} parent=99 // pred_check_branch
          %789 = sbr.rel (%p787) target = $region152
        $region151: #{cross_attention_block.1} parent=99 // pred_region
          %790 = dma.done [#allocation21], 64
        $region152: #{cross_attention_block.1} parent=99 // pred_fallthru
          _
        // Predicated region
        $region153: #{cross_attention_block.1} parent=99 // pred_check
          %p791 = pneg %p450
        $region154: #{cross_attention_block.1} parent=99 // pred_check_branch
          %793 = sbr.rel (%p791) target = $region156
        $region155: #{cross_attention_block.1} parent=99 // pred_region
          %794 = dma.done [#allocation24], 4096
        $region156: #{cross_attention_block.1} parent=99 // pred_fallthru
          _
        // Predicated region
        $region157: #{cross_attention_block.1} parent=99 // pred_check
          %p795 = pneg %p471
        $region158: #{cross_attention_block.1} parent=99 // pred_check_branch
          %797 = sbr.rel (%p795) target = $region160
        $region159: #{cross_attention_block.1} parent=99 // pred_region
          %798 = dma.done [#allocation24], 16
        $region160: #{cross_attention_block.1} parent=99 // pred_fallthru
          _
        %s799 = sand.u32 %s54, 1
        %s800 = scalar_lea.sflag [#allocation3], %s799
        %s801 = sand.u32 %s54, 1
        %s802 = smul.addr %s801, 128
        %s803 = scalar_lea.vmem [#allocation2], %s802
        %p804 = pneg %p67
        %p805 = pneg %p64
        %s806 = sand.u32 %s46, 1
        %s807 = scalar_lea.sflag [#allocation6], %s806
        %s808 = sand.u32 %s80, 1
        %s809 = smul.addr %s808, 256
        %s810 = scalar_lea.vmem [#allocation5], %s809
        %p811 = pneg %p93
        %p812 = pneg %p90
        %p813 = pneg %p114
        %p814 = pneg %p111
        %p815 = pneg %p135
        %p816 = pneg %p132
        %p817 = pneg %p156
        %p818 = pneg %p153
        %p819 = pneg %p177
        %p820 = pneg %p174
        %p821 = pneg %p198
        %p822 = pneg %p195
        %p823 = pneg %p219
        %p824 = pneg %p216
        %p825 = pneg %p240
        %p826 = pneg %p237
        %p827 = pneg %p261
        %p828 = pneg %p258
        %p829 = pneg %p282
        %p830 = pneg %p279
        %p831 = pneg %p303
        %p832 = pneg %p300
        %p833 = pneg %p324
        %p834 = pneg %p321
        %p835 = pneg %p345
        %p836 = pneg %p342
        %p837 = pneg %p366
        %p838 = pneg %p363
        %p839 = pneg %p387
        %p840 = pneg %p384
        %p841 = pneg %p408
        %p842 = pneg %p405
        %p843 = pneg %p429
        %p844 = pneg %p426
        %p845 = pneg %p450
        %p846 = pneg %p447
        %p847 = pneg %p471
        %p848 = pneg %p468
        %p849 = pneg %p497
        %p850 = pneg %p494
        %s851 = sand.u32 %s484, 1
        %s852 = scalar_lea.sflag [#allocation4], %s851
        %s853 = sand.u32 %s484, 1
        %s854 = smul.addr %s853, 128
        %s855 = scalar_lea.vmem [#allocation26], %s854
        %s856 = smul.u32 8, %s46
        %s857 = smul.u32 8, %s46
        %s858 = smul.u32 8, %s46
        %v860 = vld [vmem:[%s733] sm:$0xff]
        %v861 = vld [vmem:[%s733 + $0x8] sm:$0xff]
        %v862 = vld [vmem:[%s733 + $0x10] sm:$0xff]
        %v863 = vld [vmem:[%s733 + $0x18] sm:$0xff]
        %v864 = vld [vmem:[%s733 + $0x20] sm:$0xff]
        %v865 = vld [vmem:[%s733 + $0x28] sm:$0xff]
        %v866 = vld [vmem:[%s733 + $0x30] sm:$0xff]
        %v867 = vld [vmem:[%s733 + $0x38] sm:$0xff]
        %v868 = vld [vmem:[%s733 + $0x40] sm:$0xff]
        %v869 = vld [vmem:[%s733 + $0x48] sm:$0xff]
        %v870 = vld [vmem:[%s733 + $0x50] sm:$0xff]
        %v871 = vld [vmem:[%s733 + $0x58] sm:$0xff]
        %v872 = vld [vmem:[%s733 + $0x60] sm:$0xff]
        %v873 = vld [vmem:[%s733 + $0x68] sm:$0xff]
        %v874 = vld [vmem:[%s733 + $0x70] sm:$0xff]
        %v875 = vld [vmem:[%s733 + $0x78] sm:$0xff]
        %v876 = vld [vmem:[%s742] sm:$0xff]
        %v877 = vld [vmem:[%s742 + $0x8] sm:$0xff]
        %v878 = vld [vmem:[%s742 + $0x10] sm:$0xff]
        %v879 = vld [vmem:[%s742 + $0x18] sm:$0xff]
        %v880 = vld [vmem:[%s742 + $0x20] sm:$0xff]
        %v881 = vld [vmem:[%s742 + $0x28] sm:$0xff]
        %v882 = vld [vmem:[%s742 + $0x30] sm:$0xff]
        %v883 = vld [vmem:[%s742 + $0x38] sm:$0xff]
        %v884 = vld [vmem:[%s742 + $0x40] sm:$0xff]
        %v885 = vld [vmem:[%s742 + $0x48] sm:$0xff]
        %v886 = vld [vmem:[%s742 + $0x50] sm:$0xff]
        %v887 = vld [vmem:[%s742 + $0x58] sm:$0xff]
        %v888 = vld [vmem:[%s742 + $0x60] sm:$0xff]
        %v889 = vld [vmem:[%s742 + $0x68] sm:$0xff]
        %v890 = vld [vmem:[%s742 + $0x70] sm:$0xff]
        %v891 = vld [vmem:[%s742 + $0x78] sm:$0xff]
        %v892 = vld [vmem:[%s742 + $0x80] sm:$0xff]
        %v893 = vld [vmem:[%s742 + $0x88] sm:$0xff]
        %v894 = vld [vmem:[%s742 + $0x90] sm:$0xff]
        %v895 = vld [vmem:[%s742 + $0x98] sm:$0xff]
        %v896 = vld [vmem:[%s742 + $0xa0] sm:$0xff]
        %v897 = vld [vmem:[%s742 + $0xa8] sm:$0xff]
        %v898 = vld [vmem:[%s742 + $0xb0] sm:$0xff]
        %v899 = vld [vmem:[%s742 + $0xb8] sm:$0xff]
        %v900 = vld [vmem:[%s742 + $0xc0] sm:$0xff]
        %v901 = vld [vmem:[%s742 + $0xc8] sm:$0xff]
        %v902 = vld [vmem:[%s742 + $0xd0] sm:$0xff]
        %v903 = vld [vmem:[%s742 + $0xd8] sm:$0xff]
        %v904 = vld [vmem:[%s742 + $0xe0] sm:$0xff]
        %v905 = vld [vmem:[%s742 + $0xe8] sm:$0xff]
        %v906 = vld [vmem:[%s742 + $0xf0] sm:$0xff]
        %v907 = vld [vmem:[%s742 + $0xf8] sm:$0xff]
        %v908 = vld [vmem:[#allocation7] sm:$0x1]
        %v909 = vld [vmem:[#allocation8] sm:$0x1]
        %910 = vadd.xlane.f32.xlu0 %v860
        %v911 = vpop.xlane.xlu0 %910
        %912 = vadd.xlane.f32.xlu0 %v861
        %v913 = vpop.xlane.xlu0 %912
        %914 = vadd.xlane.f32.xlu0 %v862
        %v915 = vpop.xlane.xlu0 %914
        %916 = vadd.xlane.f32.xlu0 %v863
        %v917 = vpop.xlane.xlu0 %916
        %918 = vadd.xlane.f32.xlu0 %v864
        %v919 = vpop.xlane.xlu0 %918
        %920 = vadd.xlane.f32.xlu0 %v865
        %v921 = vpop.xlane.xlu0 %920
        %922 = vadd.xlane.f32.xlu0 %v866
        %v923 = vpop.xlane.xlu0 %922
        %924 = vadd.xlane.f32.xlu0 %v867
        %v925 = vpop.xlane.xlu0 %924
        %926 = vadd.xlane.f32.xlu0 %v868
        %v927 = vpop.xlane.xlu0 %926
        %928 = vadd.xlane.f32.xlu0 %v869
        %v929 = vpop.xlane.xlu0 %928
        %930 = vadd.xlane.f32.xlu0 %v870
        %v931 = vpop.xlane.xlu0 %930
        %932 = vadd.xlane.f32.xlu0 %v871
        %v933 = vpop.xlane.xlu0 %932
        %934 = vadd.xlane.f32.xlu0 %v872
        %v935 = vpop.xlane.xlu0 %934
        %936 = vadd.xlane.f32.xlu0 %v873
        %v937 = vpop.xlane.xlu0 %936
        %938 = vadd.xlane.f32.xlu0 %v874
        %v939 = vpop.xlane.xlu0 %938
        %940 = vadd.xlane.f32.xlu0 %v875
        %v941 = vpop.xlane.xlu0 %940
        %v942 = vrcp.pop 128.0
        %v943 = vmul.f32 %v911, %v942
        %v944 = vmul.f32 %v913, %v942
        %v945 = vmul.f32 %v915, %v942
        %v946 = vmul.f32 %v917, %v942
        %v947 = vmul.f32 %v919, %v942
        %v948 = vmul.f32 %v921, %v942
        %v949 = vmul.f32 %v923, %v942
        %v950 = vmul.f32 %v925, %v942
        %v951 = vmul.f32 %v927, %v942
        %v952 = vmul.f32 %v929, %v942
        %v953 = vmul.f32 %v931, %v942
        %v954 = vmul.f32 %v933, %v942
        %v955 = vmul.f32 %v935, %v942
        %v956 = vmul.f32 %v937, %v942
        %v957 = vmul.f32 %v939, %v942
        %v958 = vmul.f32 %v941, %v942
        %v959 = vsub.f32 %v860, %v943
        %v960 = vsub.f32 %v861, %v944
        %v961 = vsub.f32 %v862, %v945
        %v962 = vsub.f32 %v863, %v946
        %v963 = vsub.f32 %v864, %v947
        %v964 = vsub.f32 %v865, %v948
        %v965 = vsub.f32 %v866, %v949
        %v966 = vsub.f32 %v867, %v950
        %v967 = vsub.f32 %v868, %v951
        %v968 = vsub.f32 %v869, %v952
        %v969 = vsub.f32 %v870, %v953
        %v970 = vsub.f32 %v871, %v954
        %v971 = vsub.f32 %v872, %v955
        %v972 = vsub.f32 %v873, %v956
        %v973 = vsub.f32 %v874, %v957
        %v974 = vsub.f32 %v875, %v958
        %v975 = vmul.f32 %v959, %v959
        %v976 = vmul.f32 %v960, %v960
        %v977 = vmul.f32 %v961, %v961
        %v978 = vmul.f32 %v962, %v962
        %v979 = vmul.f32 %v963, %v963
        %v980 = vmul.f32 %v964, %v964
        %v981 = vmul.f32 %v965, %v965
        %v982 = vmul.f32 %v966, %v966
        %v983 = vmul.f32 %v967, %v967
        %v984 = vmul.f32 %v968, %v968
        %v985 = vmul.f32 %v969, %v969
        %v986 = vmul.f32 %v970, %v970
        %v987 = vmul.f32 %v971, %v971
        %v988 = vmul.f32 %v972, %v972
        %v989 = vmul.f32 %v973, %v973
        %v990 = vmul.f32 %v974, %v974
        %991 = vadd.xlane.f32.xlu0 %v975
        %v992 = vpop.xlane.xlu0 %991
        %993 = vadd.xlane.f32.xlu0 %v976
        %v994 = vpop.xlane.xlu0 %993
        %995 = vadd.xlane.f32.xlu0 %v977
        %v996 = vpop.xlane.xlu0 %995
        %997 = vadd.xlane.f32.xlu0 %v978
        %v998 = vpop.xlane.xlu0 %997
        %999 = vadd.xlane.f32.xlu0 %v979
        %v1000 = vpop.xlane.xlu0 %999
        %1001 = vadd.xlane.f32.xlu0 %v980
        %v1002 = vpop.xlane.xlu0 %1001
        %1003 = vadd.xlane.f32.xlu0 %v981
        %v1004 = vpop.xlane.xlu0 %1003
        %1005 = vadd.xlane.f32.xlu0 %v982
        %v1006 = vpop.xlane.xlu0 %1005
        %1007 = vadd.xlane.f32.xlu0 %v983
        %v1008 = vpop.xlane.xlu0 %1007
        %1009 = vadd.xlane.f32.xlu0 %v984
        %v1010 = vpop.xlane.xlu0 %1009
        %1011 = vadd.xlane.f32.xlu0 %v985
        %v1012 = vpop.xlane.xlu0 %1011
        %1013 = vadd.xlane.f32.xlu0 %v986
        %v1014 = vpop.xlane.xlu0 %1013
        %1015 = vadd.xlane.f32.xlu0 %v987
        %v1016 = vpop.xlane.xlu0 %1015
        %1017 = vadd.xlane.f32.xlu0 %v988
        %v1018 = vpop.xlane.xlu0 %1017
        %1019 = vadd.xlane.f32.xlu0 %v989
        %v1020 = vpop.xlane.xlu0 %1019
        %1021 = vadd.xlane.f32.xlu0 %v990
        %v1022 = vpop.xlane.xlu0 %1021
        %v1023 = vmul.f32 %v992, %v942
        %v1024 = vmul.f32 %v994, %v942
        %v1025 = vmul.f32 %v996, %v942
        %v1026 = vmul.f32 %v998, %v942
        %v1027 = vmul.f32 %v1000, %v942
        %v1028 = vmul.f32 %v1002, %v942
        %v1029 = vmul.f32 %v1004, %v942
        %v1030 = vmul.f32 %v1006, %v942
        %v1031 = vmul.f32 %v1008, %v942
        %v1032 = vmul.f32 %v1010, %v942
        %v1033 = vmul.f32 %v1012, %v942
        %v1034 = vmul.f32 %v1014, %v942
        %v1035 = vmul.f32 %v1016, %v942
        %v1036 = vmul.f32 %v1018, %v942
        %v1037 = vmul.f32 %v1020, %v942
        %v1038 = vmul.f32 %v1022, %v942
        %v1039 = vadd.f32 %v1023, 1e-05
        %v1040 = vadd.f32 %v1024, 1e-05
        %v1041 = vadd.f32 %v1025, 1e-05
        %v1042 = vadd.f32 %v1026, 1e-05
        %v1043 = vadd.f32 %v1027, 1e-05
        %v1044 = vadd.f32 %v1028, 1e-05
        %v1045 = vadd.f32 %v1029, 1e-05
        %v1046 = vadd.f32 %v1030, 1e-05
        %v1047 = vadd.f32 %v1031, 1e-05
        %v1048 = vadd.f32 %v1032, 1e-05
        %v1049 = vadd.f32 %v1033, 1e-05
        %v1050 = vadd.f32 %v1034, 1e-05
        %v1051 = vadd.f32 %v1035, 1e-05
        %v1052 = vadd.f32 %v1036, 1e-05
        %v1053 = vadd.f32 %v1037, 1e-05
        %v1054 = vadd.f32 %v1038, 1e-05
        %v1055 = vrsqrt.pop %v1039
        %v1056 = vrsqrt.pop %v1040
        %v1057 = vrsqrt.pop %v1041
        %v1058 = vrsqrt.pop %v1042
        %v1059 = vrsqrt.pop %v1043
        %v1060 = vrsqrt.pop %v1044
        %v1061 = vrsqrt.pop %v1045
        %v1062 = vrsqrt.pop %v1046
        %v1063 = vrsqrt.pop %v1047
        %v1064 = vrsqrt.pop %v1048
        %v1065 = vrsqrt.pop %v1049
        %v1066 = vrsqrt.pop %v1050
        %v1067 = vrsqrt.pop %v1051
        %v1068 = vrsqrt.pop %v1052
        %v1069 = vrsqrt.pop %v1053
        %v1070 = vrsqrt.pop %v1054
        %v1071 = vmul.f32 %v959, %v1055
        %v1072 = vmul.f32 %v960, %v1056
        %v1073 = vmul.f32 %v961, %v1057
        %v1074 = vmul.f32 %v962, %v1058
        %v1075 = vmul.f32 %v963, %v1059
        %v1076 = vmul.f32 %v964, %v1060
        %v1077 = vmul.f32 %v965, %v1061
        %v1078 = vmul.f32 %v966, %v1062
        %v1079 = vmul.f32 %v967, %v1063
        %v1080 = vmul.f32 %v968, %v1064
        %v1081 = vmul.f32 %v969, %v1065
        %v1082 = vmul.f32 %v970, %v1066
        %v1083 = vmul.f32 %v971, %v1067
        %v1084 = vmul.f32 %v972, %v1068
        %v1085 = vmul.f32 %v973, %v1069
        %v1086 = vmul.f32 %v974, %v1070
        %v1088 = vlaneseq
        %v1089 = vshrl.u32 %v1088, 7
        %v1090 = vsub.s32 0, %v1089
        %v1091 = vrot.slane %v908, %v1090
        %v1093 = vmul.f32 %v1071, %v1091
        %v1094 = vmul.f32 %v1072, %v1091
        %v1095 = vmul.f32 %v1073, %v1091
        %v1096 = vmul.f32 %v1074, %v1091
        %v1097 = vmul.f32 %v1075, %v1091
        %v1098 = vmul.f32 %v1076, %v1091
        %v1099 = vmul.f32 %v1077, %v1091
        %v1100 = vmul.f32 %v1078, %v1091
        %v1101 = vmul.f32 %v1079, %v1091
        %v1102 = vmul.f32 %v1080, %v1091
        %v1103 = vmul.f32 %v1081, %v1091
        %v1104 = vmul.f32 %v1082, %v1091
        %v1105 = vmul.f32 %v1083, %v1091
        %v1106 = vmul.f32 %v1084, %v1091
        %v1107 = vmul.f32 %v1085, %v1091
        %v1108 = vmul.f32 %v1086, %v1091
        %v1110 = vlaneseq
        %v1111 = vshrl.u32 %v1110, 7
        %v1112 = vsub.s32 0, %v1111
        %v1113 = vrot.slane %v909, %v1112
        %v1115 = vadd.f32 %v1093, %v1113
        %v1116 = vadd.f32 %v1094, %v1113
        %v1117 = vadd.f32 %v1095, %v1113
        %v1118 = vadd.f32 %v1096, %v1113
        %v1119 = vadd.f32 %v1097, %v1113
        %v1120 = vadd.f32 %v1098, %v1113
        %v1121 = vadd.f32 %v1099, %v1113
        %v1122 = vadd.f32 %v1100, %v1113
        %v1123 = vadd.f32 %v1101, %v1113
        %v1124 = vadd.f32 %v1102, %v1113
        %v1125 = vadd.f32 %v1103, %v1113
        %v1126 = vadd.f32 %v1104, %v1113
        %v1127 = vadd.f32 %v1105, %v1113
        %v1128 = vadd.f32 %v1106, %v1113
        %v1129 = vadd.f32 %v1107, %v1113
        %v1130 = vadd.f32 %v1108, %v1113
        %v1131 = vpack.c.bf16 %v1116, %v1115
        %v1132 = vpack.c.bf16 %v1118, %v1117
        %v1133 = vpack.c.bf16 %v1120, %v1119
        %v1134 = vpack.c.bf16 %v1122, %v1121
        %v1135 = vpack.c.bf16 %v1124, %v1123
        %v1136 = vpack.c.bf16 %v1126, %v1125
        %v1137 = vpack.c.bf16 %v1128, %v1127
        %v1138 = vpack.c.bf16 %v1130, %v1129
        %v1139 = vld [vmem:[#allocation10] sm:$0x1]
        %v1140 = vld [vmem:[#allocation11] sm:$0x1]
        %1141 = vadd.xlane.f32.xlu0 %v876
        %v1142 = vpop.xlane.xlu0 %1141
        %1143 = vadd.xlane.f32.xlu0 %v877
        %v1144 = vpop.xlane.xlu0 %1143
        %1145 = vadd.xlane.f32.xlu0 %v878
        %v1146 = vpop.xlane.xlu0 %1145
        %1147 = vadd.xlane.f32.xlu0 %v879
        %v1148 = vpop.xlane.xlu0 %1147
        %1149 = vadd.xlane.f32.xlu0 %v880
        %v1150 = vpop.xlane.xlu0 %1149
        %1151 = vadd.xlane.f32.xlu0 %v881
        %v1152 = vpop.xlane.xlu0 %1151
        %1153 = vadd.xlane.f32.xlu0 %v882
        %v1154 = vpop.xlane.xlu0 %1153
        %1155 = vadd.xlane.f32.xlu0 %v883
        %v1156 = vpop.xlane.xlu0 %1155
        %1157 = vadd.xlane.f32.xlu0 %v884
        %v1158 = vpop.xlane.xlu0 %1157
        %1159 = vadd.xlane.f32.xlu0 %v885
        %v1160 = vpop.xlane.xlu0 %1159
        %1161 = vadd.xlane.f32.xlu0 %v886
        %v1162 = vpop.xlane.xlu0 %1161
        %1163 = vadd.xlane.f32.xlu0 %v887
        %v1164 = vpop.xlane.xlu0 %1163
        %1165 = vadd.xlane.f32.xlu0 %v888
        %v1166 = vpop.xlane.xlu0 %1165
        %1167 = vadd.xlane.f32.xlu0 %v889
        %v1168 = vpop.xlane.xlu0 %1167
        %1169 = vadd.xlane.f32.xlu0 %v890
        %v1170 = vpop.xlane.xlu0 %1169
        %1171 = vadd.xlane.f32.xlu0 %v891
        %v1172 = vpop.xlane.xlu0 %1171
        %1173 = vadd.xlane.f32.xlu0 %v892
        %v1174 = vpop.xlane.xlu0 %1173
        %1175 = vadd.xlane.f32.xlu0 %v893
        %v1176 = vpop.xlane.xlu0 %1175
        %1177 = vadd.xlane.f32.xlu0 %v894
        %v1178 = vpop.xlane.xlu0 %1177
        %1179 = vadd.xlane.f32.xlu0 %v895
        %v1180 = vpop.xlane.xlu0 %1179
        %1181 = vadd.xlane.f32.xlu0 %v896
        %v1182 = vpop.xlane.xlu0 %1181
        %1183 = vadd.xlane.f32.xlu0 %v897
        %v1184 = vpop.xlane.xlu0 %1183
        %1185 = vadd.xlane.f32.xlu0 %v898
        %v1186 = vpop.xlane.xlu0 %1185
        %1187 = vadd.xlane.f32.xlu0 %v899
        %v1188 = vpop.xlane.xlu0 %1187
        %1189 = vadd.xlane.f32.xlu0 %v900
        %v1190 = vpop.xlane.xlu0 %1189
        %1191 = vadd.xlane.f32.xlu0 %v901
        %v1192 = vpop.xlane.xlu0 %1191
        %1193 = vadd.xlane.f32.xlu0 %v902
        %v1194 = vpop.xlane.xlu0 %1193
        %1195 = vadd.xlane.f32.xlu0 %v903
        %v1196 = vpop.xlane.xlu0 %1195
        %1197 = vadd.xlane.f32.xlu0 %v904
        %v1198 = vpop.xlane.xlu0 %1197
        %1199 = vadd.xlane.f32.xlu0 %v905
        %v1200 = vpop.xlane.xlu0 %1199
        %1201 = vadd.xlane.f32.xlu0 %v906
        %v1202 = vpop.xlane.xlu0 %1201
        %1203 = vadd.xlane.f32.xlu0 %v907
        %v1204 = vpop.xlane.xlu0 %1203
        %v1205 = vmul.f32 %v1142, %v942
        %v1206 = vmul.f32 %v1144, %v942
        %v1207 = vmul.f32 %v1146, %v942
        %v1208 = vmul.f32 %v1148, %v942
        %v1209 = vmul.f32 %v1150, %v942
        %v1210 = vmul.f32 %v1152, %v942
        %v1211 = vmul.f32 %v1154, %v942
        %v1212 = vmul.f32 %v1156, %v942
        %v1213 = vmul.f32 %v1158, %v942
        %v1214 = vmul.f32 %v1160, %v942
        %v1215 = vmul.f32 %v1162, %v942
        %v1216 = vmul.f32 %v1164, %v942
        %v1217 = vmul.f32 %v1166, %v942
        %v1218 = vmul.f32 %v1168, %v942
        %v1219 = vmul.f32 %v1170, %v942
        %v1220 = vmul.f32 %v1172, %v942
        %v1221 = vmul.f32 %v1174, %v942
        %v1222 = vmul.f32 %v1176, %v942
        %v1223 = vmul.f32 %v1178, %v942
        %v1224 = vmul.f32 %v1180, %v942
        %v1225 = vmul.f32 %v1182, %v942
        %v1226 = vmul.f32 %v1184, %v942
        %v1227 = vmul.f32 %v1186, %v942
        %v1228 = vmul.f32 %v1188, %v942
        %v1229 = vmul.f32 %v1190, %v942
        %v1230 = vmul.f32 %v1192, %v942
        %v1231 = vmul.f32 %v1194, %v942
        %v1232 = vmul.f32 %v1196, %v942
        %v1233 = vmul.f32 %v1198, %v942
        %v1234 = vmul.f32 %v1200, %v942
        %v1235 = vmul.f32 %v1202, %v942
        %v1236 = vmul.f32 %v1204, %v942
        %v1237 = vsub.f32 %v876, %v1205
        %v1238 = vsub.f32 %v877, %v1206
        %v1239 = vsub.f32 %v878, %v1207
        %v1240 = vsub.f32 %v879, %v1208
        %v1241 = vsub.f32 %v880, %v1209
        %v1242 = vsub.f32 %v881, %v1210
        %v1243 = vsub.f32 %v882, %v1211
        %v1244 = vsub.f32 %v883, %v1212
        %v1245 = vsub.f32 %v884, %v1213
        %v1246 = vsub.f32 %v885, %v1214
        %v1247 = vsub.f32 %v886, %v1215
        %v1248 = vsub.f32 %v887, %v1216
        %v1249 = vsub.f32 %v888, %v1217
        %v1250 = vsub.f32 %v889, %v1218
        %v1251 = vsub.f32 %v890, %v1219
        %v1252 = vsub.f32 %v891, %v1220
        %v1253 = vsub.f32 %v892, %v1221
        %v1254 = vsub.f32 %v893, %v1222
        %v1255 = vsub.f32 %v894, %v1223
        %v1256 = vsub.f32 %v895, %v1224
        %v1257 = vsub.f32 %v896, %v1225
        %v1258 = vsub.f32 %v897, %v1226
        %v1259 = vsub.f32 %v898, %v1227
        %v1260 = vsub.f32 %v899, %v1228
        %v1261 = vsub.f32 %v900, %v1229
        %v1262 = vsub.f32 %v901, %v1230
        %v1263 = vsub.f32 %v902, %v1231
        %v1264 = vsub.f32 %v903, %v1232
        %v1265 = vsub.f32 %v904, %v1233
        %v1266 = vsub.f32 %v905, %v1234
        %v1267 = vsub.f32 %v906, %v1235
        %v1268 = vsub.f32 %v907, %v1236
        %v1269 = vmul.f32 %v1237, %v1237
        %v1270 = vmul.f32 %v1238, %v1238
        %v1271 = vmul.f32 %v1239, %v1239
        %v1272 = vmul.f32 %v1240, %v1240
        %v1273 = vmul.f32 %v1241, %v1241
        %v1274 = vmul.f32 %v1242, %v1242
        %v1275 = vmul.f32 %v1243, %v1243
        %v1276 = vmul.f32 %v1244, %v1244
        %v1277 = vmul.f32 %v1245, %v1245
        %v1278 = vmul.f32 %v1246, %v1246
        %v1279 = vmul.f32 %v1247, %v1247
        %v1280 = vmul.f32 %v1248, %v1248
        %v1281 = vmul.f32 %v1249, %v1249
        %v1282 = vmul.f32 %v1250, %v1250
        %v1283 = vmul.f32 %v1251, %v1251
        %v1284 = vmul.f32 %v1252, %v1252
        %v1285 = vmul.f32 %v1253, %v1253
        %v1286 = vmul.f32 %v1254, %v1254
        %v1287 = vmul.f32 %v1255, %v1255
        %v1288 = vmul.f32 %v1256, %v1256
        %v1289 = vmul.f32 %v1257, %v1257
        %v1290 = vmul.f32 %v1258, %v1258
        %v1291 = vmul.f32 %v1259, %v1259
        %v1292 = vmul.f32 %v1260, %v1260
        %v1293 = vmul.f32 %v1261, %v1261
        %v1294 = vmul.f32 %v1262, %v1262
        %v1295 = vmul.f32 %v1263, %v1263
        %v1296 = vmul.f32 %v1264, %v1264
        %v1297 = vmul.f32 %v1265, %v1265
        %v1298 = vmul.f32 %v1266, %v1266
        %v1299 = vmul.f32 %v1267, %v1267
        %v1300 = vmul.f32 %v1268, %v1268
        %1301 = vadd.xlane.f32.xlu0 %v1269
        %v1302 = vpop.xlane.xlu0 %1301
        %1303 = vadd.xlane.f32.xlu0 %v1270
        %v1304 = vpop.xlane.xlu0 %1303
        %1305 = vadd.xlane.f32.xlu0 %v1271
        %v1306 = vpop.xlane.xlu0 %1305
        %1307 = vadd.xlane.f32.xlu0 %v1272
        %v1308 = vpop.xlane.xlu0 %1307
        %1309 = vadd.xlane.f32.xlu0 %v1273
        %v1310 = vpop.xlane.xlu0 %1309
        %1311 = vadd.xlane.f32.xlu0 %v1274
        %v1312 = vpop.xlane.xlu0 %1311
        %1313 = vadd.xlane.f32.xlu0 %v1275
        %v1314 = vpop.xlane.xlu0 %1313
        %1315 = vadd.xlane.f32.xlu0 %v1276
        %v1316 = vpop.xlane.xlu0 %1315
        %1317 = vadd.xlane.f32.xlu0 %v1277
        %v1318 = vpop.xlane.xlu0 %1317
        %1319 = vadd.xlane.f32.xlu0 %v1278
        %v1320 = vpop.xlane.xlu0 %1319
        %1321 = vadd.xlane.f32.xlu0 %v1279
        %v1322 = vpop.xlane.xlu0 %1321
        %1323 = vadd.xlane.f32.xlu0 %v1280
        %v1324 = vpop.xlane.xlu0 %1323
        %1325 = vadd.xlane.f32.xlu0 %v1281
        %v1326 = vpop.xlane.xlu0 %1325
        %1327 = vadd.xlane.f32.xlu0 %v1282
        %v1328 = vpop.xlane.xlu0 %1327
        %1329 = vadd.xlane.f32.xlu0 %v1283
        %v1330 = vpop.xlane.xlu0 %1329
        %1331 = vadd.xlane.f32.xlu0 %v1284
        %v1332 = vpop.xlane.xlu0 %1331
        %1333 = vadd.xlane.f32.xlu0 %v1285
        %v1334 = vpop.xlane.xlu0 %1333
        %1335 = vadd.xlane.f32.xlu0 %v1286
        %v1336 = vpop.xlane.xlu0 %1335
        %1337 = vadd.xlane.f32.xlu0 %v1287
        %v1338 = vpop.xlane.xlu0 %1337
        %1339 = vadd.xlane.f32.xlu0 %v1288
        %v1340 = vpop.xlane.xlu0 %1339
        %1341 = vadd.xlane.f32.xlu0 %v1289
        %v1342 = vpop.xlane.xlu0 %1341
        %1343 = vadd.xlane.f32.xlu0 %v1290
        %v1344 = vpop.xlane.xlu0 %1343
        %1345 = vadd.xlane.f32.xlu0 %v1291
        %v1346 = vpop.xlane.xlu0 %1345
        %1347 = vadd.xlane.f32.xlu0 %v1292
        %v1348 = vpop.xlane.xlu0 %1347
        %1349 = vadd.xlane.f32.xlu0 %v1293
        %v1350 = vpop.xlane.xlu0 %1349
        %1351 = vadd.xlane.f32.xlu0 %v1294
        %v1352 = vpop.xlane.xlu0 %1351
        %1353 = vadd.xlane.f32.xlu0 %v1295
        %v1354 = vpop.xlane.xlu0 %1353
        %1355 = vadd.xlane.f32.xlu0 %v1296
        %v1356 = vpop.xlane.xlu0 %1355
        %1357 = vadd.xlane.f32.xlu0 %v1297
        %v1358 = vpop.xlane.xlu0 %1357
        %1359 = vadd.xlane.f32.xlu0 %v1298
        %v1360 = vpop.xlane.xlu0 %1359
        %1361 = vadd.xlane.f32.xlu0 %v1299
        %v1362 = vpop.xlane.xlu0 %1361
        %1363 = vadd.xlane.f32.xlu0 %v1300
        %v1364 = vpop.xlane.xlu0 %1363
        %v1365 = vmul.f32 %v1302, %v942
        %v1366 = vmul.f32 %v1304, %v942
        %v1367 = vmul.f32 %v1306, %v942
        %v1368 = vmul.f32 %v1308, %v942
        %v1369 = vmul.f32 %v1310, %v942
        %v1370 = vmul.f32 %v1312, %v942
        %v1371 = vmul.f32 %v1314, %v942
        %v1372 = vmul.f32 %v1316, %v942
        %v1373 = vmul.f32 %v1318, %v942
        %v1374 = vmul.f32 %v1320, %v942
        %v1375 = vmul.f32 %v1322, %v942
        %v1376 = vmul.f32 %v1324, %v942
        %v1377 = vmul.f32 %v1326, %v942
        %v1378 = vmul.f32 %v1328, %v942
        %v1379 = vmul.f32 %v1330, %v942
        %v1380 = vmul.f32 %v1332, %v942
        %v1381 = vmul.f32 %v1334, %v942
        %v1382 = vmul.f32 %v1336, %v942
        %v1383 = vmul.f32 %v1338, %v942
        %v1384 = vmul.f32 %v1340, %v942
        %v1385 = vmul.f32 %v1342, %v942
        %v1386 = vmul.f32 %v1344, %v942
        %v1387 = vmul.f32 %v1346, %v942
        %v1388 = vmul.f32 %v1348, %v942
        %v1389 = vmul.f32 %v1350, %v942
        %v1390 = vmul.f32 %v1352, %v942
        %v1391 = vmul.f32 %v1354, %v942
        %v1392 = vmul.f32 %v1356, %v942
        %v1393 = vmul.f32 %v1358, %v942
        %v1394 = vmul.f32 %v1360, %v942
        %v1395 = vmul.f32 %v1362, %v942
        %v1396 = vmul.f32 %v1364, %v942
        %v1397 = vadd.f32 %v1365, 1e-05
        %v1398 = vadd.f32 %v1366, 1e-05
        %v1399 = vadd.f32 %v1367, 1e-05
        %v1400 = vadd.f32 %v1368, 1e-05
        %v1401 = vadd.f32 %v1369, 1e-05
        %v1402 = vadd.f32 %v1370, 1e-05
        %v1403 = vadd.f32 %v1371, 1e-05
        %v1404 = vadd.f32 %v1372, 1e-05
        %v1405 = vadd.f32 %v1373, 1e-05
        %v1406 = vadd.f32 %v1374, 1e-05
        %v1407 = vadd.f32 %v1375, 1e-05
        %v1408 = vadd.f32 %v1376, 1e-05
        %v1409 = vadd.f32 %v1377, 1e-05
        %v1410 = vadd.f32 %v1378, 1e-05
        %v1411 = vadd.f32 %v1379, 1e-05
        %v1412 = vadd.f32 %v1380, 1e-05
        %v1413 = vadd.f32 %v1381, 1e-05
        %v1414 = vadd.f32 %v1382, 1e-05
        %v1415 = vadd.f32 %v1383, 1e-05
        %v1416 = vadd.f32 %v1384, 1e-05
        %v1417 = vadd.f32 %v1385, 1e-05
        %v1418 = vadd.f32 %v1386, 1e-05
        %v1419 = vadd.f32 %v1387, 1e-05
        %v1420 = vadd.f32 %v1388, 1e-05
        %v1421 = vadd.f32 %v1389, 1e-05
        %v1422 = vadd.f32 %v1390, 1e-05
        %v1423 = vadd.f32 %v1391, 1e-05
        %v1424 = vadd.f32 %v1392, 1e-05
        %v1425 = vadd.f32 %v1393, 1e-05
        %v1426 = vadd.f32 %v1394, 1e-05
        %v1427 = vadd.f32 %v1395, 1e-05
        %v1428 = vadd.f32 %v1396, 1e-05
        %v1429 = vrsqrt.pop %v1397
        %v1430 = vrsqrt.pop %v1398
        %v1431 = vrsqrt.pop %v1399
        %v1432 = vrsqrt.pop %v1400
        %v1433 = vrsqrt.pop %v1401
        %v1434 = vrsqrt.pop %v1402
        %v1435 = vrsqrt.pop %v1403
        %v1436 = vrsqrt.pop %v1404
        %v1437 = vrsqrt.pop %v1405
        %v1438 = vrsqrt.pop %v1406
        %v1439 = vrsqrt.pop %v1407
        %v1440 = vrsqrt.pop %v1408
        %v1441 = vrsqrt.pop %v1409
        %v1442 = vrsqrt.pop %v1410
        %v1443 = vrsqrt.pop %v1411
        %v1444 = vrsqrt.pop %v1412
        %v1445 = vrsqrt.pop %v1413
        %v1446 = vrsqrt.pop %v1414
        %v1447 = vrsqrt.pop %v1415
        %v1448 = vrsqrt.pop %v1416
        %v1449 = vrsqrt.pop %v1417
        %v1450 = vrsqrt.pop %v1418
        %v1451 = vrsqrt.pop %v1419
        %v1452 = vrsqrt.pop %v1420
        %v1453 = vrsqrt.pop %v1421
        %v1454 = vrsqrt.pop %v1422
        %v1455 = vrsqrt.pop %v1423
        %v1456 = vrsqrt.pop %v1424
        %v1457 = vrsqrt.pop %v1425
        %v1458 = vrsqrt.pop %v1426
        %v1459 = vrsqrt.pop %v1427
        %v1460 = vrsqrt.pop %v1428
        %v1461 = vmul.f32 %v1237, %v1429
        %v1462 = vmul.f32 %v1238, %v1430
        %v1463 = vmul.f32 %v1239, %v1431
        %v1464 = vmul.f32 %v1240, %v1432
        %v1465 = vmul.f32 %v1241, %v1433
        %v1466 = vmul.f32 %v1242, %v1434
        %v1467 = vmul.f32 %v1243, %v1435
        %v1468 = vmul.f32 %v1244, %v1436
        %v1469 = vmul.f32 %v1245, %v1437
        %v1470 = vmul.f32 %v1246, %v1438
        %v1471 = vmul.f32 %v1247, %v1439
        %v1472 = vmul.f32 %v1248, %v1440
        %v1473 = vmul.f32 %v1249, %v1441
        %v1474 = vmul.f32 %v1250, %v1442
        %v1475 = vmul.f32 %v1251, %v1443
        %v1476 = vmul.f32 %v1252, %v1444
        %v1477 = vmul.f32 %v1253, %v1445
        %v1478 = vmul.f32 %v1254, %v1446
        %v1479 = vmul.f32 %v1255, %v1447
        %v1480 = vmul.f32 %v1256, %v1448
        %v1481 = vmul.f32 %v1257, %v1449
        %v1482 = vmul.f32 %v1258, %v1450
        %v1483 = vmul.f32 %v1259, %v1451
        %v1484 = vmul.f32 %v1260, %v1452
        %v1485 = vmul.f32 %v1261, %v1453
        %v1486 = vmul.f32 %v1262, %v1454
        %v1487 = vmul.f32 %v1263, %v1455
        %v1488 = vmul.f32 %v1264, %v1456
        %v1489 = vmul.f32 %v1265, %v1457
        %v1490 = vmul.f32 %v1266, %v1458
        %v1491 = vmul.f32 %v1267, %v1459
        %v1492 = vmul.f32 %v1268, %v1460
        %v1494 = vlaneseq
        %v1495 = vshrl.u32 %v1494, 7
        %v1496 = vsub.s32 0, %v1495
        %v1497 = vrot.slane %v1139, %v1496
        %v1499 = vmul.f32 %v1461, %v1497
        %v1500 = vmul.f32 %v1462, %v1497
        %v1501 = vmul.f32 %v1463, %v1497
        %v1502 = vmul.f32 %v1464, %v1497
        %v1503 = vmul.f32 %v1465, %v1497
        %v1504 = vmul.f32 %v1466, %v1497
        %v1505 = vmul.f32 %v1467, %v1497
        %v1506 = vmul.f32 %v1468, %v1497
        %v1507 = vmul.f32 %v1469, %v1497
        %v1508 = vmul.f32 %v1470, %v1497
        %v1509 = vmul.f32 %v1471, %v1497
        %v1510 = vmul.f32 %v1472, %v1497
        %v1511 = vmul.f32 %v1473, %v1497
        %v1512 = vmul.f32 %v1474, %v1497
        %v1513 = vmul.f32 %v1475, %v1497
        %v1514 = vmul.f32 %v1476, %v1497
        %v1515 = vmul.f32 %v1477, %v1497
        %v1516 = vmul.f32 %v1478, %v1497
        %v1517 = vmul.f32 %v1479, %v1497
        %v1518 = vmul.f32 %v1480, %v1497
        %v1519 = vmul.f32 %v1481, %v1497
        %v1520 = vmul.f32 %v1482, %v1497
        %v1521 = vmul.f32 %v1483, %v1497
        %v1522 = vmul.f32 %v1484, %v1497
        %v1523 = vmul.f32 %v1485, %v1497
        %v1524 = vmul.f32 %v1486, %v1497
        %v1525 = vmul.f32 %v1487, %v1497
        %v1526 = vmul.f32 %v1488, %v1497
        %v1527 = vmul.f32 %v1489, %v1497
        %v1528 = vmul.f32 %v1490, %v1497
        %v1529 = vmul.f32 %v1491, %v1497
        %v1530 = vmul.f32 %v1492, %v1497
        %v1532 = vlaneseq
        %v1533 = vshrl.u32 %v1532, 7
        %v1534 = vsub.s32 0, %v1533
        %v1535 = vrot.slane %v1140, %v1534
        %v1537 = vadd.f32 %v1499, %v1535
        %v1538 = vadd.f32 %v1500, %v1535
        %v1539 = vadd.f32 %v1501, %v1535
        %v1540 = vadd.f32 %v1502, %v1535
        %v1541 = vadd.f32 %v1503, %v1535
        %v1542 = vadd.f32 %v1504, %v1535
        %v1543 = vadd.f32 %v1505, %v1535
        %v1544 = vadd.f32 %v1506, %v1535
        %v1545 = vadd.f32 %v1507, %v1535
        %v1546 = vadd.f32 %v1508, %v1535
        %v1547 = vadd.f32 %v1509, %v1535
        %v1548 = vadd.f32 %v1510, %v1535
        %v1549 = vadd.f32 %v1511, %v1535
        %v1550 = vadd.f32 %v1512, %v1535
        %v1551 = vadd.f32 %v1513, %v1535
        %v1552 = vadd.f32 %v1514, %v1535
        %v1553 = vadd.f32 %v1515, %v1535
        %v1554 = vadd.f32 %v1516, %v1535
        %v1555 = vadd.f32 %v1517, %v1535
        %v1556 = vadd.f32 %v1518, %v1535
        %v1557 = vadd.f32 %v1519, %v1535
        %v1558 = vadd.f32 %v1520, %v1535
        %v1559 = vadd.f32 %v1521, %v1535
        %v1560 = vadd.f32 %v1522, %v1535
        %v1561 = vadd.f32 %v1523, %v1535
        %v1562 = vadd.f32 %v1524, %v1535
        %v1563 = vadd.f32 %v1525, %v1535
        %v1564 = vadd.f32 %v1526, %v1535
        %v1565 = vadd.f32 %v1527, %v1535
        %v1566 = vadd.f32 %v1528, %v1535
        %v1567 = vadd.f32 %v1529, %v1535
        %v1568 = vadd.f32 %v1530, %v1535
        %v1569 = vpack.c.bf16 %v1538, %v1537
        %v1570 = vpack.c.bf16 %v1540, %v1539
        %v1571 = vpack.c.bf16 %v1542, %v1541
        %v1572 = vpack.c.bf16 %v1544, %v1543
        %v1573 = vpack.c.bf16 %v1546, %v1545
        %v1574 = vpack.c.bf16 %v1548, %v1547
        %v1575 = vpack.c.bf16 %v1550, %v1549
        %v1576 = vpack.c.bf16 %v1552, %v1551
        %v1577 = vpack.c.bf16 %v1554, %v1553
        %v1578 = vpack.c.bf16 %v1556, %v1555
        %v1579 = vpack.c.bf16 %v1558, %v1557
        %v1580 = vpack.c.bf16 %v1560, %v1559
        %v1581 = vpack.c.bf16 %v1562, %v1561
        %v1582 = vpack.c.bf16 %v1564, %v1563
        %v1583 = vpack.c.bf16 %v1566, %v1565
        %v1584 = vpack.c.bf16 %v1568, %v1567
        %v1585 = vld [vmem:[%s6] sm:$0xf]
        %v1586 = vld [vmem:[%s6 + $0x4] sm:$0xf]
        %v1587 = vld [vmem:[%s6 + $0x8] sm:$0xf]
        %v1588 = vld [vmem:[%s6 + $0xc] sm:$0xf]
        %v1589 = vld [vmem:[%s6 + $0x10] sm:$0xf]
        %v1590 = vld [vmem:[%s6 + $0x14] sm:$0xf]
        %v1591 = vld [vmem:[%s6 + $0x18] sm:$0xf]
        %v1592 = vld [vmem:[%s6 + $0x1c] sm:$0xf]
        %v1593 = vld [vmem:[%s6 + $0x20] sm:$0xf]
        %v1594 = vld [vmem:[%s6 + $0x24] sm:$0xf]
        %v1595 = vld [vmem:[%s6 + $0x28] sm:$0xf]
        %v1596 = vld [vmem:[%s6 + $0x2c] sm:$0xf]
        %v1597 = vld [vmem:[%s6 + $0x30] sm:$0xf]
        %v1598 = vld [vmem:[%s6 + $0x34] sm:$0xf]
        %v1599 = vld [vmem:[%s6 + $0x38] sm:$0xf]
        %v1600 = vld [vmem:[%s6 + $0x3c] sm:$0xf]
        %v1601 = vld [vmem:[%s7] sm:$0x1]
        %v1603 = vlaneseq
        %v1604 = vshrl.u32 %v1603, 7
        %v1605 = vsub.s32 0, %v1604
        %v1606 = vrot.slane %v1601, %v1605
        %v1624 = vunpack.c.l.b16 %v1585
        %v1625 = vunpack.c.l.b16 %v1586
        %v1626 = vunpack.c.l.b16 %v1587
        %v1627 = vunpack.c.l.b16 %v1588
        %v1628 = vunpack.c.l.b16 %v1589
        %v1629 = vunpack.c.l.b16 %v1590
        %v1630 = vunpack.c.l.b16 %v1591
        %v1631 = vunpack.c.l.b16 %v1592
        %v1632 = vunpack.c.l.b16 %v1593
        %v1633 = vunpack.c.l.b16 %v1594
        %v1634 = vunpack.c.l.b16 %v1595
        %v1635 = vunpack.c.l.b16 %v1596
        %v1636 = vunpack.c.l.b16 %v1597
        %v1637 = vunpack.c.l.b16 %v1598
        %v1638 = vunpack.c.l.b16 %v1599
        %v1639 = vunpack.c.l.b16 %v1600
        %v1640 = vpack.c.b16 %v1625, %v1624
        %v1641 = vpack.c.b16 %v1627, %v1626
        %v1642 = vpack.c.b16 %v1629, %v1628
        %v1643 = vpack.c.b16 %v1631, %v1630
        %v1644 = vpack.c.b16 %v1633, %v1632
        %v1645 = vpack.c.b16 %v1635, %v1634
        %v1646 = vpack.c.b16 %v1637, %v1636
        %v1647 = vpack.c.b16 %v1639, %v1638
        %1656 = vmatprep.subr.bf16.mxu0 0
        %1657 = vmatpush1.bf16.msra.mxu0 %v1640
        %1658 = vmatprep.subr.bf16.mxu0 0
        %1659 = vmatpush1.bf16.msra.mxu0 %v1641
        %1660 = vmatprep.subr.bf16.mxu0 0
        %1661 = vmatpush1.bf16.msra.mxu0 %v1642
        %1662 = vmatprep.subr.bf16.mxu0 0
        %1663 = vmatpush1.bf16.msra.mxu0 %v1643
        %1664 = vmatprep.subr.bf16.mxu0 0
        %1665 = vmatpush1.bf16.msra.mxu0 %v1644
        %1666 = vmatprep.subr.bf16.mxu0 0
        %1667 = vmatpush1.bf16.msra.mxu0 %v1645
        %1668 = vmatprep.subr.bf16.mxu0 0
        %1669 = vmatpush1.bf16.msra.mxu0 %v1646
        %1670 = vmatprep.subr.bf16.mxu0 0
        %1671 = vmatpush1.bf16.msra.mxu0 %v1647
        %1672 = vmatprep.subr.bf16.mxu0 0
        %1673 = vmatpush1.bf16.msra.mxu0 0
        %1674 = vmatprep.subr.bf16.mxu0 0
        %1675 = vmatpush1.bf16.msra.mxu0 0
        %1676 = vmatprep.subr.bf16.mxu0 0
        %1677 = vmatpush1.bf16.msra.mxu0 0
        %1678 = vmatprep.subr.bf16.mxu0 0
        %1679 = vmatpush1.bf16.msra.mxu0 0
        %1680 = vmatprep.subr.bf16.mxu0 0
        %1681 = vmatpush1.bf16.msra.mxu0 0
        %1682 = vmatprep.subr.bf16.mxu0 0
        %1683 = vmatpush1.bf16.msra.mxu0 0
        %1684 = vmatprep.subr.bf16.mxu0 0
        %1685 = vmatpush1.bf16.msra.mxu0 0
        %1686 = vmatprep.subr.bf16.mxu0 0
        %1687 = vmatpush1.bf16.msra.mxu0 0
        %1688 = vmatprep.mubr.bf16.mxu0 0
        %1689 = vmatmul.mubr.bf16.gmra.mrb[0].mxu0 %v1131
        %v1690 = vpop.f32.mrb[0].mxu0
        %v1691 = vadd.f32 %v1606, %v1690
        %v1692 = vpop.f32.mrb[0].mxu0
        %v1693 = vpop.f32.mrb[0].mxu0
        %v1694 = vadd.f32 %v1606, %v1693
        %v1695 = vpop.f32.mrb[0].mxu0
        %1696 = vmatprep.mubr.bf16.mxu0 0
        %1697 = vmatmul.mubr.bf16.gmra.mrb[0].mxu0 %v1132
        %v1698 = vpop.f32.mrb[0].mxu0
        %v1699 = vadd.f32 %v1606, %v1698
        %v1700 = vpop.f32.mrb[0].mxu0
        %v1701 = vpop.f32.mrb[0].mxu0
        %v1702 = vadd.f32 %v1606, %v1701
        %v1703 = vpop.f32.mrb[0].mxu0
        %1704 = vmatprep.mubr.bf16.mxu0 0
        %1705 = vmatmul.mubr.bf16.gmra.mrb[0].mxu0 %v1133
        %v1706 = vpop.f32.mrb[0].mxu0
        %v1707 = vadd.f32 %v1606, %v1706
        %v1708 = vpop.f32.mrb[0].mxu0
        %v1709 = vpop.f32.mrb[0].mxu0
        %v1710 = vadd.f32 %v1606, %v1709
        %v1711 = vpop.f32.mrb[0].mxu0
        %1712 = vmatprep.mubr.bf16.mxu0 0
        %1713 = vmatmul.mubr.bf16.gmra.mrb[0].mxu0 %v1134
        %v1714 = vpop.f32.mrb[0].mxu0
        %v1715 = vadd.f32 %v1606, %v1714
        %v1716 = vpop.f32.mrb[0].mxu0
        %v1717 = vpop.f32.mrb[0].mxu0
        %v1718 = vadd.f32 %v1606, %v1717
        %v1719 = vpop.f32.mrb[0].mxu0
        %1720 = vmatprep.mubr.bf16.mxu0 0
        %1721 = vmatmul.mubr.bf16.gmra.mrb[0].mxu0 %v1135
        %v1722 = vpop.f32.mrb[0].mxu0
        %v1723 = vadd.f32 %v1606, %v1722
        %v1724 = vpop.f32.mrb[0].mxu0
        %v1725 = vpop.f32.mrb[0].mxu0
        %v1726 = vadd.f32 %v1606, %v1725
        %v1727 = vpop.f32.mrb[0].mxu0
        %1728 = vmatprep.mubr.bf16.mxu0 0
        %1729 = vmatmul.mubr.bf16.gmra.mrb[0].mxu0 %v1136
        %v1730 = vpop.f32.mrb[0].mxu0
        %v1731 = vadd.f32 %v1606, %v1730
        %v1732 = vpop.f32.mrb[0].mxu0
        %v1733 = vpop.f32.mrb[0].mxu0
        %v1734 = vadd.f32 %v1606, %v1733
        %v1735 = vpop.f32.mrb[0].mxu0
        %1736 = vmatprep.mubr.bf16.mxu0 0
        %1737 = vmatmul.mubr.bf16.gmra.mrb[0].mxu0 %v1137
        %v1738 = vpop.f32.mrb[0].mxu0
        %v1739 = vadd.f32 %v1606, %v1738
        %v1740 = vpop.f32.mrb[0].mxu0
        %v1741 = vpop.f32.mrb[0].mxu0
        %v1742 = vadd.f32 %v1606, %v1741
        %v1743 = vpop.f32.mrb[0].mxu0
        %1744 = vmatprep.mubr.bf16.mxu0 0
        %1745 = vmatmul.mubr.bf16.gmra.mrb[0].mxu0 %v1138
        %v1746 = vpop.f32.mrb[0].mxu0
        %v1747 = vadd.f32 %v1606, %v1746
        %v1748 = vpop.f32.mrb[0].mxu0
        %v1749 = vpop.f32.mrb[0].mxu0
        %v1750 = vadd.f32 %v1606, %v1749
        %v1751 = vpop.f32.mrb[0].mxu0
        %1752 = vdwg.mxu0
        %v1753 = vld [vmem:[%s8] sm:$0xf]
        %v1754 = vld [vmem:[%s8 + $0x4] sm:$0xf]
        %v1755 = vld [vmem:[%s8 + $0x8] sm:$0xf]
        %v1756 = vld [vmem:[%s8 + $0xc] sm:$0xf]
        %v1757 = vld [vmem:[%s8 + $0x10] sm:$0xf]
        %v1758 = vld [vmem:[%s8 + $0x14] sm:$0xf]
        %v1759 = vld [vmem:[%s8 + $0x18] sm:$0xf]
        %v1760 = vld [vmem:[%s8 + $0x1c] sm:$0xf]
        %v1761 = vld [vmem:[%s8 + $0x20] sm:$0xf]
        %v1762 = vld [vmem:[%s8 + $0x24] sm:$0xf]
        %v1763 = vld [vmem:[%s8 + $0x28] sm:$0xf]
        %v1764 = vld [vmem:[%s8 + $0x2c] sm:$0xf]
        %v1765 = vld [vmem:[%s8 + $0x30] sm:$0xf]
        %v1766 = vld [vmem:[%s8 + $0x34] sm:$0xf]
        %v1767 = vld [vmem:[%s8 + $0x38] sm:$0xf]
        %v1768 = vld [vmem:[%s8 + $0x3c] sm:$0xf]
        %v1769 = vld [vmem:[#allocation13] sm:$0x1]
        %v1771 = vlaneseq
        %v1772 = vshrl.u32 %v1771, 7
        %v1773 = vsub.s32 0, %v1772
        %v1774 = vrot.slane %v1769, %v1773
        %v1792 = vunpack.c.l.b16 %v1753
        %v1793 = vunpack.c.l.b16 %v1754
        %v1794 = vunpack.c.l.b16 %v1755
        %v1795 = vunpack.c.l.b16 %v1756
        %v1796 = vunpack.c.l.b16 %v1757
        %v1797 = vunpack.c.l.b16 %v1758
        %v1798 = vunpack.c.l.b16 %v1759
        %v1799 = vunpack.c.l.b16 %v1760
        %v1800 = vunpack.c.l.b16 %v1761
        %v1801 = vunpack.c.l.b16 %v1762
        %v1802 = vunpack.c.l.b16 %v1763
        %v1803 = vunpack.c.l.b16 %v1764
        %v1804 = vunpack.c.l.b16 %v1765
        %v1805 = vunpack.c.l.b16 %v1766
        %v1806 = vunpack.c.l.b16 %v1767
        %v1807 = vunpack.c.l.b16 %v1768
        %v1808 = vpack.c.b16 %v1793, %v1792
        %v1809 = vpack.c.b16 %v1795, %v1794
        %v1810 = vpack.c.b16 %v1797, %v1796
        %v1811 = vpack.c.b16 %v1799, %v1798
        %v1812 = vpack.c.b16 %v1801, %v1800
        %v1813 = vpack.c.b16 %v1803, %v1802
        %v1814 = vpack.c.b16 %v1805, %v1804
        %v1815 = vpack.c.b16 %v1807, %v1806
        %1824 = vmatprep.subr.bf16.mxu0 0
        %1825 = vmatpush1.bf16.msra.mxu0 %v1808
        %1826 = vmatprep.subr.bf16.mxu0 0
        %1827 = vmatpush1.bf16.msra.mxu0 %v1809
        %1828 = vmatprep.subr.bf16.mxu0 0
        %1829 = vmatpush1.bf16.msra.mxu0 %v1810
        %1830 = vmatprep.subr.bf16.mxu0 0
        %1831 = vmatpush1.bf16.msra.mxu0 %v1811
        %1832 = vmatprep.subr.bf16.mxu0 0
        %1833 = vmatpush1.bf16.msra.mxu0 %v1812
        %1834 = vmatprep.subr.bf16.mxu0 0
        %1835 = vmatpush1.bf16.msra.mxu0 %v1813
        %1836 = vmatprep.subr.bf16.mxu0 0
        %1837 = vmatpush1.bf16.msra.mxu0 %v1814
        %1838 = vmatprep.subr.bf16.mxu0 0
        %1839 = vmatpush1.bf16.msra.mxu0 %v1815
        %1840 = vmatprep.subr.bf16.mxu0 0
        %1841 = vmatpush1.bf16.msra.mxu0 0
        %1842 = vmatprep.subr.bf16.mxu0 0
        %1843 = vmatpush1.bf16.msra.mxu0 0
        %1844 = vmatprep.subr.bf16.mxu0 0
        %1845 = vmatpush1.bf16.msra.mxu0 0
        %1846 = vmatprep.subr.bf16.mxu0 0
        %1847 = vmatpush1.bf16.msra.mxu0 0
        %1848 = vmatprep.subr.bf16.mxu0 0
        %1849 = vmatpush1.bf16.msra.mxu0 0
        %1850 = vmatprep.subr.bf16.mxu0 0
        %1851 = vmatpush1.bf16.msra.mxu0 0
        %1852 = vmatprep.subr.bf16.mxu0 0
        %1853 = vmatpush1.bf16.msra.mxu0 0
        %1854 = vmatprep.subr.bf16.mxu0 0
        %1855 = vmatpush1.bf16.msra.mxu0 0
        %1856 = vmatprep.mubr.bf16.mxu0 0
        %1857 = vmatmul.mubr.bf16.gmra.mrb[0].mxu0 %v1569
        %v1858 = vpop.f32.mrb[0].mxu0
        %v1859 = vadd.f32 %v1774, %v1858
        %v1860 = vpop.f32.mrb[0].mxu0
        %v1861 = vpop.f32.mrb[0].mxu0
        %v1862 = vadd.f32 %v1774, %v1861
        %v1863 = vpop.f32.mrb[0].mxu0
        %1864 = vmatprep.mubr.bf16.mxu0 0
        %1865 = vmatmul.mubr.bf16.gmra.mrb[0].mxu0 %v1570
        %v1866 = vpop.f32.mrb[0].mxu0
        %v1867 = vadd.f32 %v1774, %v1866
        %v1868 = vpop.f32.mrb[0].mxu0
        %v1869 = vpop.f32.mrb[0].mxu0
        %v1870 = vadd.f32 %v1774, %v1869
        %v1871 = vpop.f32.mrb[0].mxu0
        %1872 = vmatprep.mubr.bf16.mxu0 0
        %1873 = vmatmul.mubr.bf16.gmra.mrb[0].mxu0 %v1571
        %v1874 = vpop.f32.mrb[0].mxu0
        %v1875 = vadd.f32 %v1774, %v1874
        %v1876 = vpop.f32.mrb[0].mxu0
        %v1877 = vpop.f32.mrb[0].mxu0
        %v1878 = vadd.f32 %v1774, %v1877
        %v1879 = vpop.f32.mrb[0].mxu0
        %1880 = vmatprep.mubr.bf16.mxu0 0
        %1881 = vmatmul.mubr.bf16.gmra.mrb[0].mxu0 %v1572
        %v1882 = vpop.f32.mrb[0].mxu0
        %v1883 = vadd.f32 %v1774, %v1882
        %v1884 = vpop.f32.mrb[0].mxu0
        %v1885 = vpop.f32.mrb[0].mxu0
        %v1886 = vadd.f32 %v1774, %v1885
        %v1887 = vpop.f32.mrb[0].mxu0
        %1888 = vmatprep.mubr.bf16.mxu0 0
        %1889 = vmatmul.mubr.bf16.gmra.mrb[0].mxu0 %v1573
        %v1890 = vpop.f32.mrb[0].mxu0
        %v1891 = vadd.f32 %v1774, %v1890
        %v1892 = vpop.f32.mrb[0].mxu0
        %v1893 = vpop.f32.mrb[0].mxu0
        %v1894 = vadd.f32 %v1774, %v1893
        %v1895 = vpop.f32.mrb[0].mxu0
        %1896 = vmatprep.mubr.bf16.mxu0 0
        %1897 = vmatmul.mubr.bf16.gmra.mrb[0].mxu0 %v1574
        %v1898 = vpop.f32.mrb[0].mxu0
        %v1899 = vadd.f32 %v1774, %v1898
        %v1900 = vpop.f32.mrb[0].mxu0
        %v1901 = vpop.f32.mrb[0].mxu0
        %v1902 = vadd.f32 %v1774, %v1901
        %v1903 = vpop.f32.mrb[0].mxu0
        %1904 = vmatprep.mubr.bf16.mxu0 0
        %1905 = vmatmul.mubr.bf16.gmra.mrb[0].mxu0 %v1575
        %v1906 = vpop.f32.mrb[0].mxu0
        %v1907 = vadd.f32 %v1774, %v1906
        %v1908 = vpop.f32.mrb[0].mxu0
        %v1909 = vpop.f32.mrb[0].mxu0
        %v1910 = vadd.f32 %v1774, %v1909
        %v1911 = vpop.f32.mrb[0].mxu0
        %1912 = vmatprep.mubr.bf16.mxu0 0
        %1913 = vmatmul.mubr.bf16.gmra.mrb[0].mxu0 %v1576
        %v1914 = vpop.f32.mrb[0].mxu0
        %v1915 = vadd.f32 %v1774, %v1914
        %v1916 = vpop.f32.mrb[0].mxu0
        %v1917 = vpop.f32.mrb[0].mxu0
        %v1918 = vadd.f32 %v1774, %v1917
        %v1919 = vpop.f32.mrb[0].mxu0
        %1920 = vmatprep.mubr.bf16.mxu0 0
        %1921 = vmatmul.mubr.bf16.gmra.mrb[0].mxu0 %v1577
        %v1922 = vpop.f32.mrb[0].mxu0
        %v1923 = vadd.f32 %v1774, %v1922
        %v1924 = vpop.f32.mrb[0].mxu0
        %v1925 = vpop.f32.mrb[0].mxu0
        %v1926 = vadd.f32 %v1774, %v1925
        %v1927 = vpop.f32.mrb[0].mxu0
        %1928 = vmatprep.mubr.bf16.mxu0 0
        %1929 = vmatmul.mubr.bf16.gmra.mrb[0].mxu0 %v1578
        %v1930 = vpop.f32.mrb[0].mxu0
        %v1931 = vadd.f32 %v1774, %v1930
        %v1932 = vpop.f32.mrb[0].mxu0
        %v1933 = vpop.f32.mrb[0].mxu0
        %v1934 = vadd.f32 %v1774, %v1933
        %v1935 = vpop.f32.mrb[0].mxu0
        %1936 = vmatprep.mubr.bf16.mxu0 0
        %1937 = vmatmul.mubr.bf16.gmra.mrb[0].mxu0 %v1579
        %v1938 = vpop.f32.mrb[0].mxu0
        %v1939 = vadd.f32 %v1774, %v1938
        %v1940 = vpop.f32.mrb[0].mxu0
        %v1941 = vpop.f32.mrb[0].mxu0
        %v1942 = vadd.f32 %v1774, %v1941
        %v1943 = vpop.f32.mrb[0].mxu0
        %1944 = vmatprep.mubr.bf16.mxu0 0
        %1945 = vmatmul.mubr.bf16.gmra.mrb[0].mxu0 %v1580
        %v1946 = vpop.f32.mrb[0].mxu0
        %v1947 = vadd.f32 %v1774, %v1946
        %v1948 = vpop.f32.mrb[0].mxu0
        %v1949 = vpop.f32.mrb[0].mxu0
        %v1950 = vadd.f32 %v1774, %v1949
        %v1951 = vpop.f32.mrb[0].mxu0
        %1952 = vmatprep.mubr.bf16.mxu0 0
        %1953 = vmatmul.mubr.bf16.gmra.mrb[0].mxu0 %v1581
        %v1954 = vpop.f32.mrb[0].mxu0
        %v1955 = vadd.f32 %v1774, %v1954
        %v1956 = vpop.f32.mrb[0].mxu0
        %v1957 = vpop.f32.mrb[0].mxu0
        %v1958 = vadd.f32 %v1774, %v1957
        %v1959 = vpop.f32.mrb[0].mxu0
        %1960 = vmatprep.mubr.bf16.mxu0 0
        %1961 = vmatmul.mubr.bf16.gmra.mrb[0].mxu0 %v1582
        %v1962 = vpop.f32.mrb[0].mxu0
        %v1963 = vadd.f32 %v1774, %v1962
        %v1964 = vpop.f32.mrb[0].mxu0
        %v1965 = vpop.f32.mrb[0].mxu0
        %v1966 = vadd.f32 %v1774, %v1965
        %v1967 = vpop.f32.mrb[0].mxu0
        %1968 = vmatprep.mubr.bf16.mxu0 0
        %1969 = vmatmul.mubr.bf16.gmra.mrb[0].mxu0 %v1583
        %v1970 = vpop.f32.mrb[0].mxu0
        %v1971 = vadd.f32 %v1774, %v1970
        %v1972 = vpop.f32.mrb[0].mxu0
        %v1973 = vpop.f32.mrb[0].mxu0
        %v1974 = vadd.f32 %v1774, %v1973
        %v1975 = vpop.f32.mrb[0].mxu0
        %1976 = vmatprep.mubr.bf16.mxu0 0
        %1977 = vmatmul.mubr.bf16.gmra.mrb[0].mxu0 %v1584
        %v1978 = vpop.f32.mrb[0].mxu0
        %v1979 = vadd.f32 %v1774, %v1978
        %v1980 = vpop.f32.mrb[0].mxu0
        %v1981 = vpop.f32.mrb[0].mxu0
        %v1982 = vadd.f32 %v1774, %v1981
        %v1983 = vpop.f32.mrb[0].mxu0
        %1984 = vdwg.mxu0
        %v1985 = vld [vmem:[%s10] sm:$0xf]
        %v1986 = vld [vmem:[%s10 + $0x4] sm:$0xf]
        %v1987 = vld [vmem:[%s10 + $0x8] sm:$0xf]
        %v1988 = vld [vmem:[%s10 + $0xc] sm:$0xf]
        %v1989 = vld [vmem:[%s10 + $0x10] sm:$0xf]
        %v1990 = vld [vmem:[%s10 + $0x14] sm:$0xf]
        %v1991 = vld [vmem:[%s10 + $0x18] sm:$0xf]
        %v1992 = vld [vmem:[%s10 + $0x1c] sm:$0xf]
        %v1993 = vld [vmem:[%s10 + $0x20] sm:$0xf]
        %v1994 = vld [vmem:[%s10 + $0x24] sm:$0xf]
        %v1995 = vld [vmem:[%s10 + $0x28] sm:$0xf]
        %v1996 = vld [vmem:[%s10 + $0x2c] sm:$0xf]
        %v1997 = vld [vmem:[%s10 + $0x30] sm:$0xf]
        %v1998 = vld [vmem:[%s10 + $0x34] sm:$0xf]
        %v1999 = vld [vmem:[%s10 + $0x38] sm:$0xf]
        %v2000 = vld [vmem:[%s10 + $0x3c] sm:$0xf]
        %v2001 = vld [vmem:[#allocation14] sm:$0x1]
        %v2003 = vlaneseq
        %v2004 = vshrl.u32 %v2003, 7
        %v2005 = vsub.s32 0, %v2004
        %v2006 = vrot.slane %v2001, %v2005
        %v2024 = vunpack.c.l.b16 %v1985
        %v2025 = vunpack.c.l.b16 %v1986
        %v2026 = vunpack.c.l.b16 %v1987
        %v2027 = vunpack.c.l.b16 %v1988
        %v2028 = vunpack.c.l.b16 %v1989
        %v2029 = vunpack.c.l.b16 %v1990
        %v2030 = vunpack.c.l.b16 %v1991
        %v2031 = vunpack.c.l.b16 %v1992
        %v2032 = vunpack.c.l.b16 %v1993
        %v2033 = vunpack.c.l.b16 %v1994
        %v2034 = vunpack.c.l.b16 %v1995
        %v2035 = vunpack.c.l.b16 %v1996
        %v2036 = vunpack.c.l.b16 %v1997
        %v2037 = vunpack.c.l.b16 %v1998
        %v2038 = vunpack.c.l.b16 %v1999
        %v2039 = vunpack.c.l.b16 %v2000
        %v2040 = vpack.c.b16 %v2025, %v2024
        %v2041 = vpack.c.b16 %v2027, %v2026
        %v2042 = vpack.c.b16 %v2029, %v2028
        %v2043 = vpack.c.b16 %v2031, %v2030
        %v2044 = vpack.c.b16 %v2033, %v2032
        %v2045 = vpack.c.b16 %v2035, %v2034
        %v2046 = vpack.c.b16 %v2037, %v2036
        %v2047 = vpack.c.b16 %v2039, %v2038
        %2056 = vmatprep.subr.bf16.mxu0 0
        %2057 = vmatpush1.bf16.msra.mxu0 %v2040
        %2058 = vmatprep.subr.bf16.mxu0 0
        %2059 = vmatpush1.bf16.msra.mxu0 %v2041
        %2060 = vmatprep.subr.bf16.mxu0 0
        %2061 = vmatpush1.bf16.msra.mxu0 %v2042
        %2062 = vmatprep.subr.bf16.mxu0 0
        %2063 = vmatpush1.bf16.msra.mxu0 %v2043
        %2064 = vmatprep.subr.bf16.mxu0 0
        %2065 = vmatpush1.bf16.msra.mxu0 %v2044
        %2066 = vmatprep.subr.bf16.mxu0 0
        %2067 = vmatpush1.bf16.msra.mxu0 %v2045
        %2068 = vmatprep.subr.bf16.mxu0 0
        %2069 = vmatpush1.bf16.msra.mxu0 %v2046
        %2070 = vmatprep.subr.bf16.mxu0 0
        %2071 = vmatpush1.bf16.msra.mxu0 %v2047
        %2072 = vmatprep.subr.bf16.mxu0 0
        %2073 = vmatpush1.bf16.msra.mxu0 0
        %2074 = vmatprep.subr.bf16.mxu0 0
        %2075 = vmatpush1.bf16.msra.mxu0 0
        %2076 = vmatprep.subr.bf16.mxu0 0
        %2077 = vmatpush1.bf16.msra.mxu0 0
        %2078 = vmatprep.subr.bf16.mxu0 0
        %2079 = vmatpush1.bf16.msra.mxu0 0
        %2080 = vmatprep.subr.bf16.mxu0 0
        %2081 = vmatpush1.bf16.msra.mxu0 0
        %2082 = vmatprep.subr.bf16.mxu0 0
        %2083 = vmatpush1.bf16.msra.mxu0 0
        %2084 = vmatprep.subr.bf16.mxu0 0
        %2085 = vmatpush1.bf16.msra.mxu0 0
        %2086 = vmatprep.subr.bf16.mxu0 0
        %2087 = vmatpush1.bf16.msra.mxu0 0
        %2088 = vmatprep.mubr.bf16.mxu0 0
        %2089 = vmatmul.mubr.bf16.gmra.mrb[0].mxu0 %v1569
        %v2090 = vpop.f32.mrb[0].mxu0
        %v2091 = vadd.f32 %v2006, %v2090
        %v2092 = vpop.f32.mrb[0].mxu0
        %v2093 = vpop.f32.mrb[0].mxu0
        %v2094 = vadd.f32 %v2006, %v2093
        %v2095 = vpop.f32.mrb[0].mxu0
        %2096 = vmatprep.mubr.bf16.mxu0 0
        %2097 = vmatmul.mubr.bf16.gmra.mrb[0].mxu0 %v1570
        %v2098 = vpop.f32.mrb[0].mxu0
        %v2099 = vadd.f32 %v2006, %v2098
        %v2100 = vpop.f32.mrb[0].mxu0
        %v2101 = vpop.f32.mrb[0].mxu0
        %v2102 = vadd.f32 %v2006, %v2101
        %v2103 = vpop.f32.mrb[0].mxu0
        %2104 = vmatprep.mubr.bf16.mxu0 0
        %2105 = vmatmul.mubr.bf16.gmra.mrb[0].mxu0 %v1571
        %v2106 = vpop.f32.mrb[0].mxu0
        %v2107 = vadd.f32 %v2006, %v2106
        %v2108 = vpop.f32.mrb[0].mxu0
        %v2109 = vpop.f32.mrb[0].mxu0
        %v2110 = vadd.f32 %v2006, %v2109
        %v2111 = vpop.f32.mrb[0].mxu0
        %2112 = vmatprep.mubr.bf16.mxu0 0
        %2113 = vmatmul.mubr.bf16.gmra.mrb[0].mxu0 %v1572
        %v2114 = vpop.f32.mrb[0].mxu0
        %v2115 = vadd.f32 %v2006, %v2114
        %v2116 = vpop.f32.mrb[0].mxu0
        %v2117 = vpop.f32.mrb[0].mxu0
        %v2118 = vadd.f32 %v2006, %v2117
        %v2119 = vpop.f32.mrb[0].mxu0
        %2120 = vmatprep.mubr.bf16.mxu0 0
        %2121 = vmatmul.mubr.bf16.gmra.mrb[0].mxu0 %v1573
        %v2122 = vpop.f32.mrb[0].mxu0
        %v2123 = vadd.f32 %v2006, %v2122
        %v2124 = vpop.f32.mrb[0].mxu0
        %v2125 = vpop.f32.mrb[0].mxu0
        %v2126 = vadd.f32 %v2006, %v2125
        %v2127 = vpop.f32.mrb[0].mxu0
        %2128 = vmatprep.mubr.bf16.mxu0 0
        %2129 = vmatmul.mubr.bf16.gmra.mrb[0].mxu0 %v1574
        %v2130 = vpop.f32.mrb[0].mxu0
        %v2131 = vadd.f32 %v2006, %v2130
        %v2132 = vpop.f32.mrb[0].mxu0
        %v2133 = vpop.f32.mrb[0].mxu0
        %v2134 = vadd.f32 %v2006, %v2133
        %v2135 = vpop.f32.mrb[0].mxu0
        %2136 = vmatprep.mubr.bf16.mxu0 0
        %2137 = vmatmul.mubr.bf16.gmra.mrb[0].mxu0 %v1575
        %v2138 = vpop.f32.mrb[0].mxu0
        %v2139 = vadd.f32 %v2006, %v2138
        %v2140 = vpop.f32.mrb[0].mxu0
        %v2141 = vpop.f32.mrb[0].mxu0
        %v2142 = vadd.f32 %v2006, %v2141
        %v2143 = vpop.f32.mrb[0].mxu0
        %2144 = vmatprep.mubr.bf16.mxu0 0
        %2145 = vmatmul.mubr.bf16.gmra.mrb[0].mxu0 %v1576
        %v2146 = vpop.f32.mrb[0].mxu0
        %v2147 = vadd.f32 %v2006, %v2146
        %v2148 = vpop.f32.mrb[0].mxu0
        %v2149 = vpop.f32.mrb[0].mxu0
        %v2150 = vadd.f32 %v2006, %v2149
        %v2151 = vpop.f32.mrb[0].mxu0
        %2152 = vmatprep.mubr.bf16.mxu0 0
        %2153 = vmatmul.mubr.bf16.gmra.mrb[0].mxu0 %v1577
        %v2154 = vpop.f32.mrb[0].mxu0
        %v2155 = vadd.f32 %v2006, %v2154
        %v2156 = vpop.f32.mrb[0].mxu0
        %v2157 = vpop.f32.mrb[0].mxu0
        %v2158 = vadd.f32 %v2006, %v2157
        %v2159 = vpop.f32.mrb[0].mxu0
        %2160 = vmatprep.mubr.bf16.mxu0 0
        %2161 = vmatmul.mubr.bf16.gmra.mrb[0].mxu0 %v1578
        %v2162 = vpop.f32.mrb[0].mxu0
        %v2163 = vadd.f32 %v2006, %v2162
        %v2164 = vpop.f32.mrb[0].mxu0
        %v2165 = vpop.f32.mrb[0].mxu0
        %v2166 = vadd.f32 %v2006, %v2165
        %v2167 = vpop.f32.mrb[0].mxu0
        %2168 = vmatprep.mubr.bf16.mxu0 0
        %2169 = vmatmul.mubr.bf16.gmra.mrb[0].mxu0 %v1579
        %v2170 = vpop.f32.mrb[0].mxu0
        %v2171 = vadd.f32 %v2006, %v2170
        %v2172 = vpop.f32.mrb[0].mxu0
        %v2173 = vpop.f32.mrb[0].mxu0
        %v2174 = vadd.f32 %v2006, %v2173
        %v2175 = vpop.f32.mrb[0].mxu0
        %2176 = vmatprep.mubr.bf16.mxu0 0
        %2177 = vmatmul.mubr.bf16.gmra.mrb[0].mxu0 %v1580
        %v2178 = vpop.f32.mrb[0].mxu0
        %v2179 = vadd.f32 %v2006, %v2178
        %v2180 = vpop.f32.mrb[0].mxu0
        %v2181 = vpop.f32.mrb[0].mxu0
        %v2182 = vadd.f32 %v2006, %v2181
        %v2183 = vpop.f32.mrb[0].mxu0
        %2184 = vmatprep.mubr.bf16.mxu0 0
        %2185 = vmatmul.mubr.bf16.gmra.mrb[0].mxu0 %v1581
        %v2186 = vpop.f32.mrb[0].mxu0
        %v2187 = vadd.f32 %v2006, %v2186
        %v2188 = vpop.f32.mrb[0].mxu0
        %v2189 = vpop.f32.mrb[0].mxu0
        %v2190 = vadd.f32 %v2006, %v2189
        %v2191 = vpop.f32.mrb[0].mxu0
        %2192 = vmatprep.mubr.bf16.mxu0 0
        %2193 = vmatmul.mubr.bf16.gmra.mrb[0].mxu0 %v1582
        %v2194 = vpop.f32.mrb[0].mxu0
        %v2195 = vadd.f32 %v2006, %v2194
        %v2196 = vpop.f32.mrb[0].mxu0
        %v2197 = vpop.f32.mrb[0].mxu0
        %v2198 = vadd.f32 %v2006, %v2197
        %v2199 = vpop.f32.mrb[0].mxu0
        %2200 = vmatprep.mubr.bf16.mxu0 0
        %2201 = vmatmul.mubr.bf16.gmra.mrb[0].mxu0 %v1583
        %v2202 = vpop.f32.mrb[0].mxu0
        %v2203 = vadd.f32 %v2006, %v2202
        %v2204 = vpop.f32.mrb[0].mxu0
        %v2205 = vpop.f32.mrb[0].mxu0
        %v2206 = vadd.f32 %v2006, %v2205
        %v2207 = vpop.f32.mrb[0].mxu0
        %2208 = vmatprep.mubr.bf16.mxu0 0
        %2209 = vmatmul.mubr.bf16.gmra.mrb[0].mxu0 %v1584
        %v2210 = vpop.f32.mrb[0].mxu0
        %v2211 = vadd.f32 %v2006, %v2210
        %v2212 = vpop.f32.mrb[0].mxu0
        %v2213 = vpop.f32.mrb[0].mxu0
        %v2214 = vadd.f32 %v2006, %v2213
        %v2215 = vpop.f32.mrb[0].mxu0
        %2216 = vdwg.mxu0
        %v2217 = vpack.c.bf16 %v1694, %v1691
        %v2218 = vpack.c.bf16 %v1702, %v1699
        %v2219 = vpack.c.bf16 %v1710, %v1707
        %v2220 = vpack.c.bf16 %v1718, %v1715
        %v2221 = vpack.c.bf16 %v1726, %v1723
        %v2222 = vpack.c.bf16 %v1734, %v1731
        %v2223 = vpack.c.bf16 %v1742, %v1739
        %v2224 = vpack.c.bf16 %v1750, %v1747
        %v2225 = vpack.c.bf16 %v1862, %v1859
        %v2226 = vpack.c.bf16 %v1870, %v1867
        %v2227 = vpack.c.bf16 %v1878, %v1875
        %v2228 = vpack.c.bf16 %v1886, %v1883
        %v2229 = vpack.c.bf16 %v1894, %v1891
        %v2230 = vpack.c.bf16 %v1902, %v1899
        %v2231 = vpack.c.bf16 %v1910, %v1907
        %v2232 = vpack.c.bf16 %v1918, %v1915
        %v2233 = vpack.c.bf16 %v1926, %v1923
        %v2234 = vpack.c.bf16 %v1934, %v1931
        %v2235 = vpack.c.bf16 %v1942, %v1939
        %v2236 = vpack.c.bf16 %v1950, %v1947
        %v2237 = vpack.c.bf16 %v1958, %v1955
        %v2238 = vpack.c.bf16 %v1966, %v1963
        %v2239 = vpack.c.bf16 %v1974, %v1971
        %v2240 = vpack.c.bf16 %v1982, %v1979
        %2241 = vmatprep.subr.bf16.mxu0 0
        %2242 = vmatpush1.bf16.xpose.msra.mxu0 %v2225
        %2243 = vmatprep.subr.bf16.mxu0 0
        %2244 = vmatpush1.bf16.xpose.msra.mxu0 %v2226
        %2245 = vmatprep.subr.bf16.mxu0 0
        %2246 = vmatpush1.bf16.xpose.msra.mxu0 0
        %2247 = vmatprep.subr.bf16.mxu0 0
        %2248 = vmatpush1.bf16.xpose.msra.mxu0 0
        %2249 = vmatprep.subr.bf16.mxu0 0
        %2250 = vmatpush1.bf16.xpose.msra.mxu0 0
        %2251 = vmatprep.subr.bf16.mxu0 0
        %2252 = vmatpush1.bf16.xpose.msra.mxu0 0
        %2253 = vmatprep.subr.bf16.mxu0 0
        %2254 = vmatpush1.bf16.xpose.msra.mxu0 0
        %2255 = vmatprep.subr.bf16.mxu0 0
        %2256 = vmatpush1.bf16.xpose.msra.mxu0 0
        %2257 = vmatprep.subr.bf16.mxu0 0
        %2258 = vmatpush1.bf16.xpose.msra.mxu0 0
        %2259 = vmatprep.subr.bf16.mxu0 0
        %2260 = vmatpush1.bf16.xpose.msra.mxu0 0
        %2261 = vmatprep.subr.bf16.mxu0 0
        %2262 = vmatpush1.bf16.xpose.msra.mxu0 0
        %2263 = vmatprep.subr.bf16.mxu0 0
        %2264 = vmatpush1.bf16.xpose.msra.mxu0 0
        %2265 = vmatprep.subr.bf16.mxu0 0
        %2266 = vmatpush1.bf16.xpose.msra.mxu0 0
        %2267 = vmatprep.subr.bf16.mxu0 0
        %2268 = vmatpush1.bf16.xpose.msra.mxu0 0
        %2269 = vmatprep.subr.bf16.mxu0 0
        %2270 = vmatpush1.bf16.xpose.msra.mxu0 0
        %2271 = vmatprep.subr.bf16.mxu0 0
        %2272 = vmatpush1.bf16.xpose.msra.mxu0 0
        %2273 = vmatprep.mubr.bf16.mxu0 0
        %2274 = vmatmul.mubr.bf16.gmra.mrb[0].mxu0 %v2217
        %v2275 = vpop.f32.mrb[0].mxu0
        %v2276 = vadd.f32 0.0, %v2275
        %v2277 = vpop.f32.mrb[0].mxu0
        %v2278 = vpop.f32.mrb[0].mxu0
        %v2279 = vadd.f32 0.0, %v2278
        %v2280 = vpop.f32.mrb[0].mxu0
        %2281 = vdwg.mxu0
        %2282 = vmatprep.subr.bf16.mxu0 0
        %2283 = vmatpush1.bf16.xpose.msra.mxu0 %v2227
        %2284 = vmatprep.subr.bf16.mxu0 0
        %2285 = vmatpush1.bf16.xpose.msra.mxu0 %v2228
        %2286 = vmatprep.subr.bf16.mxu0 0
        %2287 = vmatpush1.bf16.xpose.msra.mxu0 0
        %2288 = vmatprep.subr.bf16.mxu0 0
        %2289 = vmatpush1.bf16.xpose.msra.mxu0 0
        %2290 = vmatprep.subr.bf16.mxu0 0
        %2291 = vmatpush1.bf16.xpose.msra.mxu0 0
        %2292 = vmatprep.subr.bf16.mxu0 0
        %2293 = vmatpush1.bf16.xpose.msra.mxu0 0
        %2294 = vmatprep.subr.bf16.mxu0 0
        %2295 = vmatpush1.bf16.xpose.msra.mxu0 0
        %2296 = vmatprep.subr.bf16.mxu0 0
        %2297 = vmatpush1.bf16.xpose.msra.mxu0 0
        %2298 = vmatprep.subr.bf16.mxu0 0
        %2299 = vmatpush1.bf16.xpose.msra.mxu0 0
        %2300 = vmatprep.subr.bf16.mxu0 0
        %2301 = vmatpush1.bf16.xpose.msra.mxu0 0
        %2302 = vmatprep.subr.bf16.mxu0 0
        %2303 = vmatpush1.bf16.xpose.msra.mxu0 0
        %2304 = vmatprep.subr.bf16.mxu0 0
        %2305 = vmatpush1.bf16.xpose.msra.mxu0 0
        %2306 = vmatprep.subr.bf16.mxu0 0
        %2307 = vmatpush1.bf16.xpose.msra.mxu0 0
        %2308 = vmatprep.subr.bf16.mxu0 0
        %2309 = vmatpush1.bf16.xpose.msra.mxu0 0
        %2310 = vmatprep.subr.bf16.mxu0 0
        %2311 = vmatpush1.bf16.xpose.msra.mxu0 0
        %2312 = vmatprep.subr.bf16.mxu0 0
        %2313 = vmatpush1.bf16.xpose.msra.mxu0 0
        %2314 = vmatprep.mubr.bf16.mxu0 0
        %2315 = vmatmul.mubr.bf16.gmra.mrb[0].mxu0 %v2218
        %v2316 = vpop.f32.mrb[0].mxu0
        %v2317 = vadd.f32 0.0, %v2316
        %v2318 = vpop.f32.mrb[0].mxu0
        %v2319 = vpop.f32.mrb[0].mxu0
        %v2320 = vadd.f32 0.0, %v2319
        %v2321 = vpop.f32.mrb[0].mxu0
        %2322 = vdwg.mxu0
        %2323 = vmatprep.subr.bf16.mxu0 0
        %2324 = vmatpush1.bf16.xpose.msra.mxu0 %v2229
        %2325 = vmatprep.subr.bf16.mxu0 0
        %2326 = vmatpush1.bf16.xpose.msra.mxu0 %v2230
        %2327 = vmatprep.subr.bf16.mxu0 0
        %2328 = vmatpush1.bf16.xpose.msra.mxu0 0
        %2329 = vmatprep.subr.bf16.mxu0 0
        %2330 = vmatpush1.bf16.xpose.msra.mxu0 0
        %2331 = vmatprep.subr.bf16.mxu0 0
        %2332 = vmatpush1.bf16.xpose.msra.mxu0 0
        %2333 = vmatprep.subr.bf16.mxu0 0
        %2334 = vmatpush1.bf16.xpose.msra.mxu0 0
        %2335 = vmatprep.subr.bf16.mxu0 0
        %2336 = vmatpush1.bf16.xpose.msra.mxu0 0
        %2337 = vmatprep.subr.bf16.mxu0 0
        %2338 = vmatpush1.bf16.xpose.msra.mxu0 0
        %2339 = vmatprep.subr.bf16.mxu0 0
        %2340 = vmatpush1.bf16.xpose.msra.mxu0 0
        %2341 = vmatprep.subr.bf16.mxu0 0
        %2342 = vmatpush1.bf16.xpose.msra.mxu0 0
        %2343 = vmatprep.subr.bf16.mxu0 0
        %2344 = vmatpush1.bf16.xpose.msra.mxu0 0
        %2345 = vmatprep.subr.bf16.mxu0 0
        %2346 = vmatpush1.bf16.xpose.msra.mxu0 0
        %2347 = vmatprep.subr.bf16.mxu0 0
        %2348 = vmatpush1.bf16.xpose.msra.mxu0 0
        %2349 = vmatprep.subr.bf16.mxu0 0
        %2350 = vmatpush1.bf16.xpose.msra.mxu0 0
        %2351 = vmatprep.subr.bf16.mxu0 0
        %2352 = vmatpush1.bf16.xpose.msra.mxu0 0
        %2353 = vmatprep.subr.bf16.mxu0 0
        %2354 = vmatpush1.bf16.xpose.msra.mxu0 0
        %2355 = vmatprep.mubr.bf16.mxu0 0
        %2356 = vmatmul.mubr.bf16.gmra.mrb[0].mxu0 %v2219
        %v2357 = vpop.f32.mrb[0].mxu0
        %v2358 = vadd.f32 0.0, %v2357
        %v2359 = vpop.f32.mrb[0].mxu0
        %v2360 = vpop.f32.mrb[0].mxu0
        %v2361 = vadd.f32 0.0, %v2360
        %v2362 = vpop.f32.mrb[0].mxu0
        %2363 = vdwg.mxu0
        %2364 = vmatprep.subr.bf16.mxu0 0
        %2365 = vmatpush1.bf16.xpose.msra.mxu0 %v2231
        %2366 = vmatprep.subr.bf16.mxu0 0
        %2367 = vmatpush1.bf16.xpose.msra.mxu0 %v2232
        %2368 = vmatprep.subr.bf16.mxu0 0
        %2369 = vmatpush1.bf16.xpose.msra.mxu0 0
        %2370 = vmatprep.subr.bf16.mxu0 0
        %2371 = vmatpush1.bf16.xpose.msra.mxu0 0
        %2372 = vmatprep.subr.bf16.mxu0 0
        %2373 = vmatpush1.bf16.xpose.msra.mxu0 0
        %2374 = vmatprep.subr.bf16.mxu0 0
        %2375 = vmatpush1.bf16.xpose.msra.mxu0 0
        %2376 = vmatprep.subr.bf16.mxu0 0
        %2377 = vmatpush1.bf16.xpose.msra.mxu0 0
        %2378 = vmatprep.subr.bf16.mxu0 0
        %2379 = vmatpush1.bf16.xpose.msra.mxu0 0
        %2380 = vmatprep.subr.bf16.mxu0 0
        %2381 = vmatpush1.bf16.xpose.msra.mxu0 0
        %2382 = vmatprep.subr.bf16.mxu0 0
        %2383 = vmatpush1.bf16.xpose.msra.mxu0 0
        %2384 = vmatprep.subr.bf16.mxu0 0
        %2385 = vmatpush1.bf16.xpose.msra.mxu0 0
        %2386 = vmatprep.subr.bf16.mxu0 0
        %2387 = vmatpush1.bf16.xpose.msra.mxu0 0
        %2388 = vmatprep.subr.bf16.mxu0 0
        %2389 = vmatpush1.bf16.xpose.msra.mxu0 0
        %2390 = vmatprep.subr.bf16.mxu0 0
        %2391 = vmatpush1.bf16.xpose.msra.mxu0 0
        %2392 = vmatprep.subr.bf16.mxu0 0
        %2393 = vmatpush1.bf16.xpose.msra.mxu0 0
        %2394 = vmatprep.subr.bf16.mxu0 0
        %2395 = vmatpush1.bf16.xpose.msra.mxu0 0
        %2396 = vmatprep.mubr.bf16.mxu0 0
        %2397 = vmatmul.mubr.bf16.gmra.mrb[0].mxu0 %v2220
        %v2398 = vpop.f32.mrb[0].mxu0
        %v2399 = vadd.f32 0.0, %v2398
        %v2400 = vpop.f32.mrb[0].mxu0
        %v2401 = vpop.f32.mrb[0].mxu0
        %v2402 = vadd.f32 0.0, %v2401
        %v2403 = vpop.f32.mrb[0].mxu0
        %2404 = vdwg.mxu0
        %2405 = vmatprep.subr.bf16.mxu0 0
        %2406 = vmatpush1.bf16.xpose.msra.mxu0 %v2233
        %2407 = vmatprep.subr.bf16.mxu0 0
        %2408 = vmatpush1.bf16.xpose.msra.mxu0 %v2234
        %2409 = vmatprep.subr.bf16.mxu0 0
        %2410 = vmatpush1.bf16.xpose.msra.mxu0 0
        %2411 = vmatprep.subr.bf16.mxu0 0
        %2412 = vmatpush1.bf16.xpose.msra.mxu0 0
        %2413 = vmatprep.subr.bf16.mxu0 0
        %2414 = vmatpush1.bf16.xpose.msra.mxu0 0
        %2415 = vmatprep.subr.bf16.mxu0 0
        %2416 = vmatpush1.bf16.xpose.msra.mxu0 0
        %2417 = vmatprep.subr.bf16.mxu0 0
        %2418 = vmatpush1.bf16.xpose.msra.mxu0 0
        %2419 = vmatprep.subr.bf16.mxu0 0
        %2420 = vmatpush1.bf16.xpose.msra.mxu0 0
        %2421 = vmatprep.subr.bf16.mxu0 0
        %2422 = vmatpush1.bf16.xpose.msra.mxu0 0
        %2423 = vmatprep.subr.bf16.mxu0 0
        %2424 = vmatpush1.bf16.xpose.msra.mxu0 0
        %2425 = vmatprep.subr.bf16.mxu0 0
        %2426 = vmatpush1.bf16.xpose.msra.mxu0 0
        %2427 = vmatprep.subr.bf16.mxu0 0
        %2428 = vmatpush1.bf16.xpose.msra.mxu0 0
        %2429 = vmatprep.subr.bf16.mxu0 0
        %2430 = vmatpush1.bf16.xpose.msra.mxu0 0
        %2431 = vmatprep.subr.bf16.mxu0 0
        %2432 = vmatpush1.bf16.xpose.msra.mxu0 0
        %2433 = vmatprep.subr.bf16.mxu0 0
        %2434 = vmatpush1.bf16.xpose.msra.mxu0 0
        %2435 = vmatprep.subr.bf16.mxu0 0
        %2436 = vmatpush1.bf16.xpose.msra.mxu0 0
        %2437 = vmatprep.mubr.bf16.mxu0 0
        %2438 = vmatmul.mubr.bf16.gmra.mrb[0].mxu0 %v2221
        %v2439 = vpop.f32.mrb[0].mxu0
        %v2440 = vadd.f32 0.0, %v2439
        %v2441 = vpop.f32.mrb[0].mxu0
        %v2442 = vpop.f32.mrb[0].mxu0
        %v2443 = vadd.f32 0.0, %v2442
        %v2444 = vpop.f32.mrb[0].mxu0
        %2445 = vdwg.mxu0
        %2446 = vmatprep.subr.bf16.mxu0 0
        %2447 = vmatpush1.bf16.xpose.msra.mxu0 %v2235
        %2448 = vmatprep.subr.bf16.mxu0 0
        %2449 = vmatpush1.bf16.xpose.msra.mxu0 %v2236
        %2450 = vmatprep.subr.bf16.mxu0 0
        %2451 = vmatpush1.bf16.xpose.msra.mxu0 0
        %2452 = vmatprep.subr.bf16.mxu0 0
        %2453 = vmatpush1.bf16.xpose.msra.mxu0 0
        %2454 = vmatprep.subr.bf16.mxu0 0
        %2455 = vmatpush1.bf16.xpose.msra.mxu0 0
        %2456 = vmatprep.subr.bf16.mxu0 0
        %2457 = vmatpush1.bf16.xpose.msra.mxu0 0
        %2458 = vmatprep.subr.bf16.mxu0 0
        %2459 = vmatpush1.bf16.xpose.msra.mxu0 0
        %2460 = vmatprep.subr.bf16.mxu0 0
        %2461 = vmatpush1.bf16.xpose.msra.mxu0 0
        %2462 = vmatprep.subr.bf16.mxu0 0
        %2463 = vmatpush1.bf16.xpose.msra.mxu0 0
        %2464 = vmatprep.subr.bf16.mxu0 0
        %2465 = vmatpush1.bf16.xpose.msra.mxu0 0
        %2466 = vmatprep.subr.bf16.mxu0 0
        %2467 = vmatpush1.bf16.xpose.msra.mxu0 0
        %2468 = vmatprep.subr.bf16.mxu0 0
        %2469 = vmatpush1.bf16.xpose.msra.mxu0 0
        %2470 = vmatprep.subr.bf16.mxu0 0
        %2471 = vmatpush1.bf16.xpose.msra.mxu0 0
        %2472 = vmatprep.subr.bf16.mxu0 0
        %2473 = vmatpush1.bf16.xpose.msra.mxu0 0
        %2474 = vmatprep.subr.bf16.mxu0 0
        %2475 = vmatpush1.bf16.xpose.msra.mxu0 0
        %2476 = vmatprep.subr.bf16.mxu0 0
        %2477 = vmatpush1.bf16.xpose.msra.mxu0 0
        %2478 = vmatprep.mubr.bf16.mxu0 0
        %2479 = vmatmul.mubr.bf16.gmra.mrb[0].mxu0 %v2222
        %v2480 = vpop.f32.mrb[0].mxu0
        %v2481 = vadd.f32 0.0, %v2480
        %v2482 = vpop.f32.mrb[0].mxu0
        %v2483 = vpop.f32.mrb[0].mxu0
        %v2484 = vadd.f32 0.0, %v2483
        %v2485 = vpop.f32.mrb[0].mxu0
        %2486 = vdwg.mxu0
        %2487 = vmatprep.subr.bf16.mxu0 0
        %2488 = vmatpush1.bf16.xpose.msra.mxu0 %v2237
        %2489 = vmatprep.subr.bf16.mxu0 0
        %2490 = vmatpush1.bf16.xpose.msra.mxu0 %v2238
        %2491 = vmatprep.subr.bf16.mxu0 0
        %2492 = vmatpush1.bf16.xpose.msra.mxu0 0
        %2493 = vmatprep.subr.bf16.mxu0 0
        %2494 = vmatpush1.bf16.xpose.msra.mxu0 0
        %2495 = vmatprep.subr.bf16.mxu0 0
        %2496 = vmatpush1.bf16.xpose.msra.mxu0 0
        %2497 = vmatprep.subr.bf16.mxu0 0
        %2498 = vmatpush1.bf16.xpose.msra.mxu0 0
        %2499 = vmatprep.subr.bf16.mxu0 0
        %2500 = vmatpush1.bf16.xpose.msra.mxu0 0
        %2501 = vmatprep.subr.bf16.mxu0 0
        %2502 = vmatpush1.bf16.xpose.msra.mxu0 0
        %2503 = vmatprep.subr.bf16.mxu0 0
        %2504 = vmatpush1.bf16.xpose.msra.mxu0 0
        %2505 = vmatprep.subr.bf16.mxu0 0
        %2506 = vmatpush1.bf16.xpose.msra.mxu0 0
        %2507 = vmatprep.subr.bf16.mxu0 0
        %2508 = vmatpush1.bf16.xpose.msra.mxu0 0
        %2509 = vmatprep.subr.bf16.mxu0 0
        %2510 = vmatpush1.bf16.xpose.msra.mxu0 0
        %2511 = vmatprep.subr.bf16.mxu0 0
        %2512 = vmatpush1.bf16.xpose.msra.mxu0 0
        %2513 = vmatprep.subr.bf16.mxu0 0
        %2514 = vmatpush1.bf16.xpose.msra.mxu0 0
        %2515 = vmatprep.subr.bf16.mxu0 0
        %2516 = vmatpush1.bf16.xpose.msra.mxu0 0
        %2517 = vmatprep.subr.bf16.mxu0 0
        %2518 = vmatpush1.bf16.xpose.msra.mxu0 0
        %2519 = vmatprep.mubr.bf16.mxu0 0
        %2520 = vmatmul.mubr.bf16.gmra.mrb[0].mxu0 %v2223
        %v2521 = vpop.f32.mrb[0].mxu0
        %v2522 = vadd.f32 0.0, %v2521
        %v2523 = vpop.f32.mrb[0].mxu0
        %v2524 = vpop.f32.mrb[0].mxu0
        %v2525 = vadd.f32 0.0, %v2524
        %v2526 = vpop.f32.mrb[0].mxu0
        %2527 = vdwg.mxu0
        %2528 = vmatprep.subr.bf16.mxu0 0
        %2529 = vmatpush1.bf16.xpose.msra.mxu0 %v2239
        %2530 = vmatprep.subr.bf16.mxu0 0
        %2531 = vmatpush1.bf16.xpose.msra.mxu0 %v2240
        %2532 = vmatprep.subr.bf16.mxu0 0
        %2533 = vmatpush1.bf16.xpose.msra.mxu0 0
        %2534 = vmatprep.subr.bf16.mxu0 0
        %2535 = vmatpush1.bf16.xpose.msra.mxu0 0
        %2536 = vmatprep.subr.bf16.mxu0 0
        %2537 = vmatpush1.bf16.xpose.msra.mxu0 0
        %2538 = vmatprep.subr.bf16.mxu0 0
        %2539 = vmatpush1.bf16.xpose.msra.mxu0 0
        %2540 = vmatprep.subr.bf16.mxu0 0
        %2541 = vmatpush1.bf16.xpose.msra.mxu0 0
        %2542 = vmatprep.subr.bf16.mxu0 0
        %2543 = vmatpush1.bf16.xpose.msra.mxu0 0
        %2544 = vmatprep.subr.bf16.mxu0 0
        %2545 = vmatpush1.bf16.xpose.msra.mxu0 0
        %2546 = vmatprep.subr.bf16.mxu0 0
        %2547 = vmatpush1.bf16.xpose.msra.mxu0 0
        %2548 = vmatprep.subr.bf16.mxu0 0
        %2549 = vmatpush1.bf16.xpose.msra.mxu0 0
        %2550 = vmatprep.subr.bf16.mxu0 0
        %2551 = vmatpush1.bf16.xpose.msra.mxu0 0
        %2552 = vmatprep.subr.bf16.mxu0 0
        %2553 = vmatpush1.bf16.xpose.msra.mxu0 0
        %2554 = vmatprep.subr.bf16.mxu0 0
        %2555 = vmatpush1.bf16.xpose.msra.mxu0 0
        %2556 = vmatprep.subr.bf16.mxu0 0
        %2557 = vmatpush1.bf16.xpose.msra.mxu0 0
        %2558 = vmatprep.subr.bf16.mxu0 0
        %2559 = vmatpush1.bf16.xpose.msra.mxu0 0
        %2560 = vmatprep.mubr.bf16.mxu0 0
        %2561 = vmatmul.mubr.bf16.gmra.mrb[0].mxu0 %v2224
        %v2562 = vpop.f32.mrb[0].mxu0
        %v2563 = vadd.f32 0.0, %v2562
        %v2564 = vpop.f32.mrb[0].mxu0
        %v2565 = vpop.f32.mrb[0].mxu0
        %v2566 = vadd.f32 0.0, %v2565
        %v2567 = vpop.f32.mrb[0].mxu0
        %2568 = vdwg.mxu0
        %vm2569 = vcmask 261120
        %v2570 = vsel %vm2569, %v2276, -inf
        %2571 = vmax.xlane.f32.xlu0 %v2570
        %v2572 = vpop.xlane.xlu0 %2571
        %v2573 = vsel %vm2569, %v2279, -inf
        %2574 = vmax.xlane.f32.xlu0 %v2573
        %v2575 = vpop.xlane.xlu0 %2574
        %v2576 = vsel %vm2569, %v2317, -inf
        %2577 = vmax.xlane.f32.xlu0 %v2576
        %v2578 = vpop.xlane.xlu0 %2577
        %v2579 = vsel %vm2569, %v2320, -inf
        %2580 = vmax.xlane.f32.xlu0 %v2579
        %v2581 = vpop.xlane.xlu0 %2580
        %v2582 = vsel %vm2569, %v2358, -inf
        %2583 = vmax.xlane.f32.xlu0 %v2582
        %v2584 = vpop.xlane.xlu0 %2583
        %v2585 = vsel %vm2569, %v2361, -inf
        %2586 = vmax.xlane.f32.xlu0 %v2585
        %v2587 = vpop.xlane.xlu0 %2586
        %v2588 = vsel %vm2569, %v2399, -inf
        %2589 = vmax.xlane.f32.xlu0 %v2588
        %v2590 = vpop.xlane.xlu0 %2589
        %v2591 = vsel %vm2569, %v2402, -inf
        %2592 = vmax.xlane.f32.xlu0 %v2591
        %v2593 = vpop.xlane.xlu0 %2592
        %v2594 = vsel %vm2569, %v2440, -inf
        %2595 = vmax.xlane.f32.xlu0 %v2594
        %v2596 = vpop.xlane.xlu0 %2595
        %v2597 = vsel %vm2569, %v2443, -inf
        %2598 = vmax.xlane.f32.xlu0 %v2597
        %v2599 = vpop.xlane.xlu0 %2598
        %v2600 = vsel %vm2569, %v2481, -inf
        %2601 = vmax.xlane.f32.xlu0 %v2600
        %v2602 = vpop.xlane.xlu0 %2601
        %v2603 = vsel %vm2569, %v2484, -inf
        %2604 = vmax.xlane.f32.xlu0 %v2603
        %v2605 = vpop.xlane.xlu0 %2604
        %v2606 = vsel %vm2569, %v2522, -inf
        %2607 = vmax.xlane.f32.xlu0 %v2606
        %v2608 = vpop.xlane.xlu0 %2607
        %v2609 = vsel %vm2569, %v2525, -inf
        %2610 = vmax.xlane.f32.xlu0 %v2609
        %v2611 = vpop.xlane.xlu0 %2610
        %v2612 = vsel %vm2569, %v2563, -inf
        %2613 = vmax.xlane.f32.xlu0 %v2612
        %v2614 = vpop.xlane.xlu0 %2613
        %v2615 = vsel %vm2569, %v2566, -inf
        %2616 = vmax.xlane.f32.xlu0 %v2615
        %v2617 = vpop.xlane.xlu0 %2616
        %v2618 = vsub.f32 %v2276, %v2572
        %v2619 = vsub.f32 %v2279, %v2575
        %v2620 = vsub.f32 %v2317, %v2578
        %v2621 = vsub.f32 %v2320, %v2581
        %v2622 = vsub.f32 %v2358, %v2584
        %v2623 = vsub.f32 %v2361, %v2587
        %v2624 = vsub.f32 %v2399, %v2590
        %v2625 = vsub.f32 %v2402, %v2593
        %v2626 = vsub.f32 %v2440, %v2596
        %v2627 = vsub.f32 %v2443, %v2599
        %v2628 = vsub.f32 %v2481, %v2602
        %v2629 = vsub.f32 %v2484, %v2605
        %v2630 = vsub.f32 %v2522, %v2608
        %v2631 = vsub.f32 %v2525, %v2611
        %v2632 = vsub.f32 %v2563, %v2614
        %v2633 = vsub.f32 %v2566, %v2617
        %v2634 = vmul.f32 %v2618, 1.442695
        %v2635 = vpow.pop %v2634
        %v2636 = vmul.f32 %v2619, 1.442695
        %v2637 = vpow.pop %v2636
        %v2638 = vmul.f32 %v2620, 1.442695
        %v2639 = vpow.pop %v2638
        %v2640 = vmul.f32 %v2621, 1.442695
        %v2641 = vpow.pop %v2640
        %v2642 = vmul.f32 %v2622, 1.442695
        %v2643 = vpow.pop %v2642
        %v2644 = vmul.f32 %v2623, 1.442695
        %v2645 = vpow.pop %v2644
        %v2646 = vmul.f32 %v2624, 1.442695
        %v2647 = vpow.pop %v2646
        %v2648 = vmul.f32 %v2625, 1.442695
        %v2649 = vpow.pop %v2648
        %v2650 = vmul.f32 %v2626, 1.442695
        %v2651 = vpow.pop %v2650
        %v2652 = vmul.f32 %v2627, 1.442695
        %v2653 = vpow.pop %v2652
        %v2654 = vmul.f32 %v2628, 1.442695
        %v2655 = vpow.pop %v2654
        %v2656 = vmul.f32 %v2629, 1.442695
        %v2657 = vpow.pop %v2656
        %v2658 = vmul.f32 %v2630, 1.442695
        %v2659 = vpow.pop %v2658
        %v2660 = vmul.f32 %v2631, 1.442695
        %v2661 = vpow.pop %v2660
        %v2662 = vmul.f32 %v2632, 1.442695
        %v2663 = vpow.pop %v2662
        %v2664 = vmul.f32 %v2633, 1.442695
        %v2665 = vpow.pop %v2664
        %v2666 = vsel %vm2569, %v2635, 0.0
        %2667 = vadd.xlane.f32.xlu0 %v2666
        %v2668 = vpop.xlane.xlu0 %2667
        %v2669 = vsel %vm2569, %v2637, 0.0
        %2670 = vadd.xlane.f32.xlu0 %v2669
        %v2671 = vpop.xlane.xlu0 %2670
        %v2672 = vsel %vm2569, %v2639, 0.0
        %2673 = vadd.xlane.f32.xlu0 %v2672
        %v2674 = vpop.xlane.xlu0 %2673
        %v2675 = vsel %vm2569, %v2641, 0.0
        %2676 = vadd.xlane.f32.xlu0 %v2675
        %v2677 = vpop.xlane.xlu0 %2676
        %v2678 = vsel %vm2569, %v2643, 0.0
        %2679 = vadd.xlane.f32.xlu0 %v2678
        %v2680 = vpop.xlane.xlu0 %2679
        %v2681 = vsel %vm2569, %v2645, 0.0
        %2682 = vadd.xlane.f32.xlu0 %v2681
        %v2683 = vpop.xlane.xlu0 %2682
        %v2684 = vsel %vm2569, %v2647, 0.0
        %2685 = vadd.xlane.f32.xlu0 %v2684
        %v2686 = vpop.xlane.xlu0 %2685
        %v2687 = vsel %vm2569, %v2649, 0.0
        %2688 = vadd.xlane.f32.xlu0 %v2687
        %v2689 = vpop.xlane.xlu0 %2688
        %v2690 = vsel %vm2569, %v2651, 0.0
        %2691 = vadd.xlane.f32.xlu0 %v2690
        %v2692 = vpop.xlane.xlu0 %2691
        %v2693 = vsel %vm2569, %v2653, 0.0
        %2694 = vadd.xlane.f32.xlu0 %v2693
        %v2695 = vpop.xlane.xlu0 %2694
        %v2696 = vsel %vm2569, %v2655, 0.0
        %2697 = vadd.xlane.f32.xlu0 %v2696
        %v2698 = vpop.xlane.xlu0 %2697
        %v2699 = vsel %vm2569, %v2657, 0.0
        %2700 = vadd.xlane.f32.xlu0 %v2699
        %v2701 = vpop.xlane.xlu0 %2700
        %v2702 = vsel %vm2569, %v2659, 0.0
        %2703 = vadd.xlane.f32.xlu0 %v2702
        %v2704 = vpop.xlane.xlu0 %2703
        %v2705 = vsel %vm2569, %v2661, 0.0
        %2706 = vadd.xlane.f32.xlu0 %v2705
        %v2707 = vpop.xlane.xlu0 %2706
        %v2708 = vsel %vm2569, %v2663, 0.0
        %2709 = vadd.xlane.f32.xlu0 %v2708
        %v2710 = vpop.xlane.xlu0 %2709
        %v2711 = vsel %vm2569, %v2665, 0.0
        %2712 = vadd.xlane.f32.xlu0 %v2711
        %v2713 = vpop.xlane.xlu0 %2712
        %v2714 = vrcp.pop %v2668
        %v2715 = vrcp.pop %v2671
        %v2716 = vrcp.pop %v2674
        %v2717 = vrcp.pop %v2677
        %v2718 = vrcp.pop %v2680
        %v2719 = vrcp.pop %v2683
        %v2720 = vrcp.pop %v2686
        %v2721 = vrcp.pop %v2689
        %v2722 = vrcp.pop %v2692
        %v2723 = vrcp.pop %v2695
        %v2724 = vrcp.pop %v2698
        %v2725 = vrcp.pop %v2701
        %v2726 = vrcp.pop %v2704
        %v2727 = vrcp.pop %v2707
        %v2728 = vrcp.pop %v2710
        %v2729 = vrcp.pop %v2713
        %v2730 = vmul.f32 %v2635, %v2714
        %v2731 = vmul.f32 %v2637, %v2715
        %v2732 = vmul.f32 %v2639, %v2716
        %v2733 = vmul.f32 %v2641, %v2717
        %v2734 = vmul.f32 %v2643, %v2718
        %v2735 = vmul.f32 %v2645, %v2719
        %v2736 = vmul.f32 %v2647, %v2720
        %v2737 = vmul.f32 %v2649, %v2721
        %v2738 = vmul.f32 %v2651, %v2722
        %v2739 = vmul.f32 %v2653, %v2723
        %v2740 = vmul.f32 %v2655, %v2724
        %v2741 = vmul.f32 %v2657, %v2725
        %v2742 = vmul.f32 %v2659, %v2726
        %v2743 = vmul.f32 %v2661, %v2727
        %v2744 = vmul.f32 %v2663, %v2728
        %v2745 = vmul.f32 %v2665, %v2729
        %v2746 = vpack.c.bf16 %v2731, %v2730
        %v2747 = vpack.c.bf16 %v2733, %v2732
        %v2748 = vpack.c.bf16 %v2735, %v2734
        %v2749 = vpack.c.bf16 %v2737, %v2736
        %v2750 = vpack.c.bf16 %v2739, %v2738
        %v2751 = vpack.c.bf16 %v2741, %v2740
        %v2752 = vpack.c.bf16 %v2743, %v2742
        %v2753 = vpack.c.bf16 %v2745, %v2744
        %v2754 = vpack.c.bf16 %v2094, %v2091
        %v2755 = vpack.c.bf16 %v2102, %v2099
        %v2756 = vpack.c.bf16 %v2110, %v2107
        %v2757 = vpack.c.bf16 %v2118, %v2115
        %v2758 = vpack.c.bf16 %v2126, %v2123
        %v2759 = vpack.c.bf16 %v2134, %v2131
        %v2760 = vpack.c.bf16 %v2142, %v2139
        %v2761 = vpack.c.bf16 %v2150, %v2147
        %v2762 = vpack.c.bf16 %v2158, %v2155
        %v2763 = vpack.c.bf16 %v2166, %v2163
        %v2764 = vpack.c.bf16 %v2174, %v2171
        %v2765 = vpack.c.bf16 %v2182, %v2179
        %v2766 = vpack.c.bf16 %v2190, %v2187
        %v2767 = vpack.c.bf16 %v2198, %v2195
        %v2768 = vpack.c.bf16 %v2206, %v2203
        %v2769 = vpack.c.bf16 %v2214, %v2211
        %v2771 = vsel %vm2569, %v2746, 0
        %2773 = vmatprep.subr.bf16.mxu0 0
        %2774 = vmatpush1.bf16.msra.mxu0 %v2754
        %2775 = vmatprep.subr.bf16.mxu0 0
        %2776 = vmatpush1.bf16.msra.mxu0 %v2755
        %2777 = vmatprep.subr.bf16.mxu0 0
        %2778 = vmatpush1.bf16.msra.mxu0 0
        %2779 = vmatprep.subr.bf16.mxu0 0
        %2780 = vmatpush1.bf16.msra.mxu0 0
        %2781 = vmatprep.subr.bf16.mxu0 0
        %2782 = vmatpush1.bf16.msra.mxu0 0
        %2783 = vmatprep.subr.bf16.mxu0 0
        %2784 = vmatpush1.bf16.msra.mxu0 0
        %2785 = vmatprep.subr.bf16.mxu0 0
        %2786 = vmatpush1.bf16.msra.mxu0 0
        %2787 = vmatprep.subr.bf16.mxu0 0
        %2788 = vmatpush1.bf16.msra.mxu0 0
        %2789 = vmatprep.subr.bf16.mxu0 0
        %2790 = vmatpush1.bf16.msra.mxu0 0
        %2791 = vmatprep.subr.bf16.mxu0 0
        %2792 = vmatpush1.bf16.msra.mxu0 0
        %2793 = vmatprep.subr.bf16.mxu0 0
        %2794 = vmatpush1.bf16.msra.mxu0 0
        %2795 = vmatprep.subr.bf16.mxu0 0
        %2796 = vmatpush1.bf16.msra.mxu0 0
        %2797 = vmatprep.subr.bf16.mxu0 0
        %2798 = vmatpush1.bf16.msra.mxu0 0
        %2799 = vmatprep.subr.bf16.mxu0 0
        %2800 = vmatpush1.bf16.msra.mxu0 0
        %2801 = vmatprep.subr.bf16.mxu0 0
        %2802 = vmatpush1.bf16.msra.mxu0 0
        %2803 = vmatprep.subr.bf16.mxu0 0
        %2804 = vmatpush1.bf16.msra.mxu0 0
        %2805 = vmatprep.mubr.bf16.mxu0 0
        %2806 = vmatmul.mubr.bf16.gmra.mrb[0].mxu0 %v2771
        %v2807 = vpop.f32.mrb[0].mxu0
        %v2808 = vadd.f32 0.0, %v2807
        %v2809 = vpop.f32.mrb[0].mxu0
        %v2810 = vpop.f32.mrb[0].mxu0
        %v2811 = vadd.f32 0.0, %v2810
        %v2812 = vpop.f32.mrb[0].mxu0
        %2813 = vdwg.mxu0
        %v2815 = vsel %vm2569, %v2747, 0
        %2817 = vmatprep.subr.bf16.mxu0 0
        %2818 = vmatpush1.bf16.msra.mxu0 %v2756
        %2819 = vmatprep.subr.bf16.mxu0 0
        %2820 = vmatpush1.bf16.msra.mxu0 %v2757
        %2821 = vmatprep.subr.bf16.mxu0 0
        %2822 = vmatpush1.bf16.msra.mxu0 0
        %2823 = vmatprep.subr.bf16.mxu0 0
        %2824 = vmatpush1.bf16.msra.mxu0 0
        %2825 = vmatprep.subr.bf16.mxu0 0
        %2826 = vmatpush1.bf16.msra.mxu0 0
        %2827 = vmatprep.subr.bf16.mxu0 0
        %2828 = vmatpush1.bf16.msra.mxu0 0
        %2829 = vmatprep.subr.bf16.mxu0 0
        %2830 = vmatpush1.bf16.msra.mxu0 0
        %2831 = vmatprep.subr.bf16.mxu0 0
        %2832 = vmatpush1.bf16.msra.mxu0 0
        %2833 = vmatprep.subr.bf16.mxu0 0
        %2834 = vmatpush1.bf16.msra.mxu0 0
        %2835 = vmatprep.subr.bf16.mxu0 0
        %2836 = vmatpush1.bf16.msra.mxu0 0
        %2837 = vmatprep.subr.bf16.mxu0 0
        %2838 = vmatpush1.bf16.msra.mxu0 0
        %2839 = vmatprep.subr.bf16.mxu0 0
        %2840 = vmatpush1.bf16.msra.mxu0 0
        %2841 = vmatprep.subr.bf16.mxu0 0
        %2842 = vmatpush1.bf16.msra.mxu0 0
        %2843 = vmatprep.subr.bf16.mxu0 0
        %2844 = vmatpush1.bf16.msra.mxu0 0
        %2845 = vmatprep.subr.bf16.mxu0 0
        %2846 = vmatpush1.bf16.msra.mxu0 0
        %2847 = vmatprep.subr.bf16.mxu0 0
        %2848 = vmatpush1.bf16.msra.mxu0 0
        %2849 = vmatprep.mubr.bf16.mxu0 0
        %2850 = vmatmul.mubr.bf16.gmra.mrb[0].mxu0 %v2815
        %v2851 = vpop.f32.mrb[0].mxu0
        %v2852 = vadd.f32 0.0, %v2851
        %v2853 = vpop.f32.mrb[0].mxu0
        %v2854 = vpop.f32.mrb[0].mxu0
        %v2855 = vadd.f32 0.0, %v2854
        %v2856 = vpop.f32.mrb[0].mxu0
        %2857 = vdwg.mxu0
        %v2859 = vsel %vm2569, %v2748, 0
        %2861 = vmatprep.subr.bf16.mxu0 0
        %2862 = vmatpush1.bf16.msra.mxu0 %v2758
        %2863 = vmatprep.subr.bf16.mxu0 0
        %2864 = vmatpush1.bf16.msra.mxu0 %v2759
        %2865 = vmatprep.subr.bf16.mxu0 0
        %2866 = vmatpush1.bf16.msra.mxu0 0
        %2867 = vmatprep.subr.bf16.mxu0 0
        %2868 = vmatpush1.bf16.msra.mxu0 0
        %2869 = vmatprep.subr.bf16.mxu0 0
        %2870 = vmatpush1.bf16.msra.mxu0 0
        %2871 = vmatprep.subr.bf16.mxu0 0
        %2872 = vmatpush1.bf16.msra.mxu0 0
        %2873 = vmatprep.subr.bf16.mxu0 0
        %2874 = vmatpush1.bf16.msra.mxu0 0
        %2875 = vmatprep.subr.bf16.mxu0 0
        %2876 = vmatpush1.bf16.msra.mxu0 0
        %2877 = vmatprep.subr.bf16.mxu0 0
        %2878 = vmatpush1.bf16.msra.mxu0 0
        %2879 = vmatprep.subr.bf16.mxu0 0
        %2880 = vmatpush1.bf16.msra.mxu0 0
        %2881 = vmatprep.subr.bf16.mxu0 0
        %2882 = vmatpush1.bf16.msra.mxu0 0
        %2883 = vmatprep.subr.bf16.mxu0 0
        %2884 = vmatpush1.bf16.msra.mxu0 0
        %2885 = vmatprep.subr.bf16.mxu0 0
        %2886 = vmatpush1.bf16.msra.mxu0 0
        %2887 = vmatprep.subr.bf16.mxu0 0
        %2888 = vmatpush1.bf16.msra.mxu0 0
        %2889 = vmatprep.subr.bf16.mxu0 0
        %2890 = vmatpush1.bf16.msra.mxu0 0
        %2891 = vmatprep.subr.bf16.mxu0 0
        %2892 = vmatpush1.bf16.msra.mxu0 0
        %2893 = vmatprep.mubr.bf16.mxu0 0
        %2894 = vmatmul.mubr.bf16.gmra.mrb[0].mxu0 %v2859
        %v2895 = vpop.f32.mrb[0].mxu0
        %v2896 = vadd.f32 0.0, %v2895
        %v2897 = vpop.f32.mrb[0].mxu0
        %v2898 = vpop.f32.mrb[0].mxu0
        %v2899 = vadd.f32 0.0, %v2898
        %v2900 = vpop.f32.mrb[0].mxu0
        %2901 = vdwg.mxu0
        %v2903 = vsel %vm2569, %v2749, 0
        %2905 = vmatprep.subr.bf16.mxu0 0
        %2906 = vmatpush1.bf16.msra.mxu0 %v2760
        %2907 = vmatprep.subr.bf16.mxu0 0
        %2908 = vmatpush1.bf16.msra.mxu0 %v2761
        %2909 = vmatprep.subr.bf16.mxu0 0
        %2910 = vmatpush1.bf16.msra.mxu0 0
        %2911 = vmatprep.subr.bf16.mxu0 0
        %2912 = vmatpush1.bf16.msra.mxu0 0
        %2913 = vmatprep.subr.bf16.mxu0 0
        %2914 = vmatpush1.bf16.msra.mxu0 0
        %2915 = vmatprep.subr.bf16.mxu0 0
        %2916 = vmatpush1.bf16.msra.mxu0 0
        %2917 = vmatprep.subr.bf16.mxu0 0
        %2918 = vmatpush1.bf16.msra.mxu0 0
        %2919 = vmatprep.subr.bf16.mxu0 0
        %2920 = vmatpush1.bf16.msra.mxu0 0
        %2921 = vmatprep.subr.bf16.mxu0 0
        %2922 = vmatpush1.bf16.msra.mxu0 0
        %2923 = vmatprep.subr.bf16.mxu0 0
        %2924 = vmatpush1.bf16.msra.mxu0 0
        %2925 = vmatprep.subr.bf16.mxu0 0
        %2926 = vmatpush1.bf16.msra.mxu0 0
        %2927 = vmatprep.subr.bf16.mxu0 0
        %2928 = vmatpush1.bf16.msra.mxu0 0
        %2929 = vmatprep.subr.bf16.mxu0 0
        %2930 = vmatpush1.bf16.msra.mxu0 0
        %2931 = vmatprep.subr.bf16.mxu0 0
        %2932 = vmatpush1.bf16.msra.mxu0 0
        %2933 = vmatprep.subr.bf16.mxu0 0
        %2934 = vmatpush1.bf16.msra.mxu0 0
        %2935 = vmatprep.subr.bf16.mxu0 0
        %2936 = vmatpush1.bf16.msra.mxu0 0
        %2937 = vmatprep.mubr.bf16.mxu0 0
        %2938 = vmatmul.mubr.bf16.gmra.mrb[0].mxu0 %v2903
        %v2939 = vpop.f32.mrb[0].mxu0
        %v2940 = vadd.f32 0.0, %v2939
        %v2941 = vpop.f32.mrb[0].mxu0
        %v2942 = vpop.f32.mrb[0].mxu0
        %v2943 = vadd.f32 0.0, %v2942
        %v2944 = vpop.f32.mrb[0].mxu0
        %2945 = vdwg.mxu0
        %v2947 = vsel %vm2569, %v2750, 0
        %2949 = vmatprep.subr.bf16.mxu0 0
        %2950 = vmatpush1.bf16.msra.mxu0 %v2762
        %2951 = vmatprep.subr.bf16.mxu0 0
        %2952 = vmatpush1.bf16.msra.mxu0 %v2763
        %2953 = vmatprep.subr.bf16.mxu0 0
        %2954 = vmatpush1.bf16.msra.mxu0 0
        %2955 = vmatprep.subr.bf16.mxu0 0
        %2956 = vmatpush1.bf16.msra.mxu0 0
        %2957 = vmatprep.subr.bf16.mxu0 0
        %2958 = vmatpush1.bf16.msra.mxu0 0
        %2959 = vmatprep.subr.bf16.mxu0 0
        %2960 = vmatpush1.bf16.msra.mxu0 0
        %2961 = vmatprep.subr.bf16.mxu0 0
        %2962 = vmatpush1.bf16.msra.mxu0 0
        %2963 = vmatprep.subr.bf16.mxu0 0
        %2964 = vmatpush1.bf16.msra.mxu0 0
        %2965 = vmatprep.subr.bf16.mxu0 0
        %2966 = vmatpush1.bf16.msra.mxu0 0
        %2967 = vmatprep.subr.bf16.mxu0 0
        %2968 = vmatpush1.bf16.msra.mxu0 0
        %2969 = vmatprep.subr.bf16.mxu0 0
        %2970 = vmatpush1.bf16.msra.mxu0 0
        %2971 = vmatprep.subr.bf16.mxu0 0
        %2972 = vmatpush1.bf16.msra.mxu0 0
        %2973 = vmatprep.subr.bf16.mxu0 0
        %2974 = vmatpush1.bf16.msra.mxu0 0
        %2975 = vmatprep.subr.bf16.mxu0 0
        %2976 = vmatpush1.bf16.msra.mxu0 0
        %2977 = vmatprep.subr.bf16.mxu0 0
        %2978 = vmatpush1.bf16.msra.mxu0 0
        %2979 = vmatprep.subr.bf16.mxu0 0
        %2980 = vmatpush1.bf16.msra.mxu0 0
        %2981 = vmatprep.mubr.bf16.mxu0 0
        %2982 = vmatmul.mubr.bf16.gmra.mrb[0].mxu0 %v2947
        %v2983 = vpop.f32.mrb[0].mxu0
        %v2984 = vadd.f32 0.0, %v2983
        %v2985 = vpop.f32.mrb[0].mxu0
        %v2986 = vpop.f32.mrb[0].mxu0
        %v2987 = vadd.f32 0.0, %v2986
        %v2988 = vpop.f32.mrb[0].mxu0
        %2989 = vdwg.mxu0
        %v2991 = vsel %vm2569, %v2751, 0
        %2993 = vmatprep.subr.bf16.mxu0 0
        %2994 = vmatpush1.bf16.msra.mxu0 %v2764
        %2995 = vmatprep.subr.bf16.mxu0 0
        %2996 = vmatpush1.bf16.msra.mxu0 %v2765
        %2997 = vmatprep.subr.bf16.mxu0 0
        %2998 = vmatpush1.bf16.msra.mxu0 0
        %2999 = vmatprep.subr.bf16.mxu0 0
        %3000 = vmatpush1.bf16.msra.mxu0 0
        %3001 = vmatprep.subr.bf16.mxu0 0
        %3002 = vmatpush1.bf16.msra.mxu0 0
        %3003 = vmatprep.subr.bf16.mxu0 0
        %3004 = vmatpush1.bf16.msra.mxu0 0
        %3005 = vmatprep.subr.bf16.mxu0 0
        %3006 = vmatpush1.bf16.msra.mxu0 0
        %3007 = vmatprep.subr.bf16.mxu0 0
        %3008 = vmatpush1.bf16.msra.mxu0 0
        %3009 = vmatprep.subr.bf16.mxu0 0
        %3010 = vmatpush1.bf16.msra.mxu0 0
        %3011 = vmatprep.subr.bf16.mxu0 0
        %3012 = vmatpush1.bf16.msra.mxu0 0
        %3013 = vmatprep.subr.bf16.mxu0 0
        %3014 = vmatpush1.bf16.msra.mxu0 0
        %3015 = vmatprep.subr.bf16.mxu0 0
        %3016 = vmatpush1.bf16.msra.mxu0 0
        %3017 = vmatprep.subr.bf16.mxu0 0
        %3018 = vmatpush1.bf16.msra.mxu0 0
        %3019 = vmatprep.subr.bf16.mxu0 0
        %3020 = vmatpush1.bf16.msra.mxu0 0
        %3021 = vmatprep.subr.bf16.mxu0 0
        %3022 = vmatpush1.bf16.msra.mxu0 0
        %3023 = vmatprep.subr.bf16.mxu0 0
        %3024 = vmatpush1.bf16.msra.mxu0 0
        %3025 = vmatprep.mubr.bf16.mxu0 0
        %3026 = vmatmul.mubr.bf16.gmra.mrb[0].mxu0 %v2991
        %v3027 = vpop.f32.mrb[0].mxu0
        %v3028 = vadd.f32 0.0, %v3027
        %v3029 = vpop.f32.mrb[0].mxu0
        %v3030 = vpop.f32.mrb[0].mxu0
        %v3031 = vadd.f32 0.0, %v3030
        %v3032 = vpop.f32.mrb[0].mxu0
        %3033 = vdwg.mxu0
        %v3035 = vsel %vm2569, %v2752, 0
        %3037 = vmatprep.subr.bf16.mxu0 0
        %3038 = vmatpush1.bf16.msra.mxu0 %v2766
        %3039 = vmatprep.subr.bf16.mxu0 0
        %3040 = vmatpush1.bf16.msra.mxu0 %v2767
        %3041 = vmatprep.subr.bf16.mxu0 0
        %3042 = vmatpush1.bf16.msra.mxu0 0
        %3043 = vmatprep.subr.bf16.mxu0 0
        %3044 = vmatpush1.bf16.msra.mxu0 0
        %3045 = vmatprep.subr.bf16.mxu0 0
        %3046 = vmatpush1.bf16.msra.mxu0 0
        %3047 = vmatprep.subr.bf16.mxu0 0
        %3048 = vmatpush1.bf16.msra.mxu0 0
        %3049 = vmatprep.subr.bf16.mxu0 0
        %3050 = vmatpush1.bf16.msra.mxu0 0
        %3051 = vmatprep.subr.bf16.mxu0 0
        %3052 = vmatpush1.bf16.msra.mxu0 0
        %3053 = vmatprep.subr.bf16.mxu0 0
        %3054 = vmatpush1.bf16.msra.mxu0 0
        %3055 = vmatprep.subr.bf16.mxu0 0
        %3056 = vmatpush1.bf16.msra.mxu0 0
        %3057 = vmatprep.subr.bf16.mxu0 0
        %3058 = vmatpush1.bf16.msra.mxu0 0
        %3059 = vmatprep.subr.bf16.mxu0 0
        %3060 = vmatpush1.bf16.msra.mxu0 0
        %3061 = vmatprep.subr.bf16.mxu0 0
        %3062 = vmatpush1.bf16.msra.mxu0 0
        %3063 = vmatprep.subr.bf16.mxu0 0
        %3064 = vmatpush1.bf16.msra.mxu0 0
        %3065 = vmatprep.subr.bf16.mxu0 0
        %3066 = vmatpush1.bf16.msra.mxu0 0
        %3067 = vmatprep.subr.bf16.mxu0 0
        %3068 = vmatpush1.bf16.msra.mxu0 0
        %3069 = vmatprep.mubr.bf16.mxu0 0
        %3070 = vmatmul.mubr.bf16.gmra.mrb[0].mxu0 %v3035
        %v3071 = vpop.f32.mrb[0].mxu0
        %v3072 = vadd.f32 0.0, %v3071
        %v3073 = vpop.f32.mrb[0].mxu0
        %v3074 = vpop.f32.mrb[0].mxu0
        %v3075 = vadd.f32 0.0, %v3074
        %v3076 = vpop.f32.mrb[0].mxu0
        %3077 = vdwg.mxu0
        %v3079 = vsel %vm2569, %v2753, 0
        %3081 = vmatprep.subr.bf16.mxu0 0
        %3082 = vmatpush1.bf16.msra.mxu0 %v2768
        %3083 = vmatprep.subr.bf16.mxu0 0
        %3084 = vmatpush1.bf16.msra.mxu0 %v2769
        %3085 = vmatprep.subr.bf16.mxu0 0
        %3086 = vmatpush1.bf16.msra.mxu0 0
        %3087 = vmatprep.subr.bf16.mxu0 0
        %3088 = vmatpush1.bf16.msra.mxu0 0
        %3089 = vmatprep.subr.bf16.mxu0 0
        %3090 = vmatpush1.bf16.msra.mxu0 0
        %3091 = vmatprep.subr.bf16.mxu0 0
        %3092 = vmatpush1.bf16.msra.mxu0 0
        %3093 = vmatprep.subr.bf16.mxu0 0
        %3094 = vmatpush1.bf16.msra.mxu0 0
        %3095 = vmatprep.subr.bf16.mxu0 0
        %3096 = vmatpush1.bf16.msra.mxu0 0
        %3097 = vmatprep.subr.bf16.mxu0 0
        %3098 = vmatpush1.bf16.msra.mxu0 0
        %3099 = vmatprep.subr.bf16.mxu0 0
        %3100 = vmatpush1.bf16.msra.mxu0 0
        %3101 = vmatprep.subr.bf16.mxu0 0
        %3102 = vmatpush1.bf16.msra.mxu0 0
        %3103 = vmatprep.subr.bf16.mxu0 0
        %3104 = vmatpush1.bf16.msra.mxu0 0
        %3105 = vmatprep.subr.bf16.mxu0 0
        %3106 = vmatpush1.bf16.msra.mxu0 0
        %3107 = vmatprep.subr.bf16.mxu0 0
        %3108 = vmatpush1.bf16.msra.mxu0 0
        %3109 = vmatprep.subr.bf16.mxu0 0
        %3110 = vmatpush1.bf16.msra.mxu0 0
        %3111 = vmatprep.subr.bf16.mxu0 0
        %3112 = vmatpush1.bf16.msra.mxu0 0
        %3113 = vmatprep.mubr.bf16.mxu0 0
        %3114 = vmatmul.mubr.bf16.gmra.mrb[0].mxu0 %v3079
        %v3115 = vpop.f32.mrb[0].mxu0
        %v3116 = vadd.f32 0.0, %v3115
        %v3117 = vpop.f32.mrb[0].mxu0
        %v3118 = vpop.f32.mrb[0].mxu0
        %v3119 = vadd.f32 0.0, %v3118
        %v3120 = vpop.f32.mrb[0].mxu0
        %3121 = vdwg.mxu0
        %v3122 = vpack.c.bf16 %v2811, %v2808
        %v3123 = vpack.c.bf16 %v2855, %v2852
        %v3124 = vpack.c.bf16 %v2899, %v2896
        %v3125 = vpack.c.bf16 %v2943, %v2940
        %v3126 = vpack.c.bf16 %v2987, %v2984
        %v3127 = vpack.c.bf16 %v3031, %v3028
        %v3128 = vpack.c.bf16 %v3075, %v3072
        %v3129 = vpack.c.bf16 %v3119, %v3116
        %v3130 = vld [vmem:[%s12] sm:$0xf]
        %v3131 = vld [vmem:[%s12 + $0x4] sm:$0xf]
        %v3132 = vld [vmem:[%s12 + $0x8] sm:$0xf]
        %v3133 = vld [vmem:[%s12 + $0xc] sm:$0xf]
        %v3134 = vld [vmem:[%s12 + $0x10] sm:$0xf]
        %v3135 = vld [vmem:[%s12 + $0x14] sm:$0xf]
        %v3136 = vld [vmem:[%s12 + $0x18] sm:$0xf]
        %v3137 = vld [vmem:[%s12 + $0x1c] sm:$0xf]
        %v3138 = vld [vmem:[%s12 + $0x20] sm:$0xf]
        %v3139 = vld [vmem:[%s12 + $0x24] sm:$0xf]
        %v3140 = vld [vmem:[%s12 + $0x28] sm:$0xf]
        %v3141 = vld [vmem:[%s12 + $0x2c] sm:$0xf]
        %v3142 = vld [vmem:[%s12 + $0x30] sm:$0xf]
        %v3143 = vld [vmem:[%s12 + $0x34] sm:$0xf]
        %v3144 = vld [vmem:[%s12 + $0x38] sm:$0xf]
        %v3145 = vld [vmem:[%s12 + $0x3c] sm:$0xf]
        %v3146 = vld [vmem:[#allocation16] sm:$0x1]
        %v3148 = vlaneseq
        %v3149 = vshrl.u32 %v3148, 7
        %v3150 = vsub.s32 0, %v3149
        %v3151 = vrot.slane %v3146, %v3150
        %v3169 = vunpack.c.l.b16 %v3130
        %v3170 = vunpack.c.l.b16 %v3131
        %v3171 = vunpack.c.l.b16 %v3132
        %v3172 = vunpack.c.l.b16 %v3133
        %v3173 = vunpack.c.l.b16 %v3134
        %v3174 = vunpack.c.l.b16 %v3135
        %v3175 = vunpack.c.l.b16 %v3136
        %v3176 = vunpack.c.l.b16 %v3137
        %v3177 = vunpack.c.l.b16 %v3138
        %v3178 = vunpack.c.l.b16 %v3139
        %v3179 = vunpack.c.l.b16 %v3140
        %v3180 = vunpack.c.l.b16 %v3141
        %v3181 = vunpack.c.l.b16 %v3142
        %v3182 = vunpack.c.l.b16 %v3143
        %v3183 = vunpack.c.l.b16 %v3144
        %v3184 = vunpack.c.l.b16 %v3145
        %v3185 = vpack.c.b16 %v3170, %v3169
        %v3186 = vpack.c.b16 %v3172, %v3171
        %v3187 = vpack.c.b16 %v3174, %v3173
        %v3188 = vpack.c.b16 %v3176, %v3175
        %v3189 = vpack.c.b16 %v3178, %v3177
        %v3190 = vpack.c.b16 %v3180, %v3179
        %v3191 = vpack.c.b16 %v3182, %v3181
        %v3192 = vpack.c.b16 %v3184, %v3183
        %3201 = vmatprep.subr.bf16.mxu0 0
        %3202 = vmatpush1.bf16.msra.mxu0 %v3185
        %3203 = vmatprep.subr.bf16.mxu0 0
        %3204 = vmatpush1.bf16.msra.mxu0 %v3186
        %3205 = vmatprep.subr.bf16.mxu0 0
        %3206 = vmatpush1.bf16.msra.mxu0 %v3187
        %3207 = vmatprep.subr.bf16.mxu0 0
        %3208 = vmatpush1.bf16.msra.mxu0 %v3188
        %3209 = vmatprep.subr.bf16.mxu0 0
        %3210 = vmatpush1.bf16.msra.mxu0 %v3189
        %3211 = vmatprep.subr.bf16.mxu0 0
        %3212 = vmatpush1.bf16.msra.mxu0 %v3190
        %3213 = vmatprep.subr.bf16.mxu0 0
        %3214 = vmatpush1.bf16.msra.mxu0 %v3191
        %3215 = vmatprep.subr.bf16.mxu0 0
        %3216 = vmatpush1.bf16.msra.mxu0 %v3192
        %3217 = vmatprep.subr.bf16.mxu0 0
        %3218 = vmatpush1.bf16.msra.mxu0 0
        %3219 = vmatprep.subr.bf16.mxu0 0
        %3220 = vmatpush1.bf16.msra.mxu0 0
        %3221 = vmatprep.subr.bf16.mxu0 0
        %3222 = vmatpush1.bf16.msra.mxu0 0
        %3223 = vmatprep.subr.bf16.mxu0 0
        %3224 = vmatpush1.bf16.msra.mxu0 0
        %3225 = vmatprep.subr.bf16.mxu0 0
        %3226 = vmatpush1.bf16.msra.mxu0 0
        %3227 = vmatprep.subr.bf16.mxu0 0
        %3228 = vmatpush1.bf16.msra.mxu0 0
        %3229 = vmatprep.subr.bf16.mxu0 0
        %3230 = vmatpush1.bf16.msra.mxu0 0
        %3231 = vmatprep.subr.bf16.mxu0 0
        %3232 = vmatpush1.bf16.msra.mxu0 0
        %3233 = vmatprep.mubr.bf16.mxu0 0
        %3234 = vmatmul.mubr.bf16.gmra.mrb[0].mxu0 %v3122
        %v3235 = vpop.f32.mrb[0].mxu0
        %v3236 = vadd.f32 %v3151, %v3235
        %v3237 = vpop.f32.mrb[0].mxu0
        %v3238 = vpop.f32.mrb[0].mxu0
        %v3239 = vadd.f32 %v3151, %v3238
        %v3240 = vpop.f32.mrb[0].mxu0
        %3241 = vmatprep.mubr.bf16.mxu0 0
        %3242 = vmatmul.mubr.bf16.gmra.mrb[0].mxu0 %v3123
        %v3243 = vpop.f32.mrb[0].mxu0
        %v3244 = vadd.f32 %v3151, %v3243
        %v3245 = vpop.f32.mrb[0].mxu0
        %v3246 = vpop.f32.mrb[0].mxu0
        %v3247 = vadd.f32 %v3151, %v3246
        %v3248 = vpop.f32.mrb[0].mxu0
        %3249 = vmatprep.mubr.bf16.mxu0 0
        %3250 = vmatmul.mubr.bf16.gmra.mrb[0].mxu0 %v3124
        %v3251 = vpop.f32.mrb[0].mxu0
        %v3252 = vadd.f32 %v3151, %v3251
        %v3253 = vpop.f32.mrb[0].mxu0
        %v3254 = vpop.f32.mrb[0].mxu0
        %v3255 = vadd.f32 %v3151, %v3254
        %v3256 = vpop.f32.mrb[0].mxu0
        %3257 = vmatprep.mubr.bf16.mxu0 0
        %3258 = vmatmul.mubr.bf16.gmra.mrb[0].mxu0 %v3125
        %v3259 = vpop.f32.mrb[0].mxu0
        %v3260 = vadd.f32 %v3151, %v3259
        %v3261 = vpop.f32.mrb[0].mxu0
        %v3262 = vpop.f32.mrb[0].mxu0
        %v3263 = vadd.f32 %v3151, %v3262
        %v3264 = vpop.f32.mrb[0].mxu0
        %3265 = vmatprep.mubr.bf16.mxu0 0
        %3266 = vmatmul.mubr.bf16.gmra.mrb[0].mxu0 %v3126
        %v3267 = vpop.f32.mrb[0].mxu0
        %v3268 = vadd.f32 %v3151, %v3267
        %v3269 = vpop.f32.mrb[0].mxu0
        %v3270 = vpop.f32.mrb[0].mxu0
        %v3271 = vadd.f32 %v3151, %v3270
        %v3272 = vpop.f32.mrb[0].mxu0
        %3273 = vmatprep.mubr.bf16.mxu0 0
        %3274 = vmatmul.mubr.bf16.gmra.mrb[0].mxu0 %v3127
        %v3275 = vpop.f32.mrb[0].mxu0
        %v3276 = vadd.f32 %v3151, %v3275
        %v3277 = vpop.f32.mrb[0].mxu0
        %v3278 = vpop.f32.mrb[0].mxu0
        %v3279 = vadd.f32 %v3151, %v3278
        %v3280 = vpop.f32.mrb[0].mxu0
        %3281 = vmatprep.mubr.bf16.mxu0 0
        %3282 = vmatmul.mubr.bf16.gmra.mrb[0].mxu0 %v3128
        %v3283 = vpop.f32.mrb[0].mxu0
        %v3284 = vadd.f32 %v3151, %v3283
        %v3285 = vpop.f32.mrb[0].mxu0
        %v3286 = vpop.f32.mrb[0].mxu0
        %v3287 = vadd.f32 %v3151, %v3286
        %v3288 = vpop.f32.mrb[0].mxu0
        %3289 = vmatprep.mubr.bf16.mxu0 0
        %3290 = vmatmul.mubr.bf16.gmra.mrb[0].mxu0 %v3129
        %v3291 = vpop.f32.mrb[0].mxu0
        %v3292 = vadd.f32 %v3151, %v3291
        %v3293 = vpop.f32.mrb[0].mxu0
        %v3294 = vpop.f32.mrb[0].mxu0
        %v3295 = vadd.f32 %v3151, %v3294
        %v3296 = vpop.f32.mrb[0].mxu0
        %3297 = vdwg.mxu0
        %v3298 = vadd.f32 %v860, %v3236
        %v3299 = vadd.f32 %v861, %v3239
        %v3300 = vadd.f32 %v862, %v3244
        %v3301 = vadd.f32 %v863, %v3247
        %v3302 = vadd.f32 %v864, %v3252
        %v3303 = vadd.f32 %v865, %v3255
        %v3304 = vadd.f32 %v866, %v3260
        %v3305 = vadd.f32 %v867, %v3263
        %v3306 = vadd.f32 %v868, %v3268
        %v3307 = vadd.f32 %v869, %v3271
        %v3308 = vadd.f32 %v870, %v3276
        %v3309 = vadd.f32 %v871, %v3279
        %v3310 = vadd.f32 %v872, %v3284
        %v3311 = vadd.f32 %v873, %v3287
        %v3312 = vadd.f32 %v874, %v3292
        %v3313 = vadd.f32 %v875, %v3295
        %v3314 = vld [vmem:[#allocation17] sm:$0x1]
        %v3315 = vld [vmem:[#allocation19] sm:$0x1]
        %3316 = vadd.xlane.f32.xlu0 %v3298
        %v3317 = vpop.xlane.xlu0 %3316
        %3318 = vadd.xlane.f32.xlu0 %v3299
        %v3319 = vpop.xlane.xlu0 %3318
        %3320 = vadd.xlane.f32.xlu0 %v3300
        %v3321 = vpop.xlane.xlu0 %3320
        %3322 = vadd.xlane.f32.xlu0 %v3301
        %v3323 = vpop.xlane.xlu0 %3322
        %3324 = vadd.xlane.f32.xlu0 %v3302
        %v3325 = vpop.xlane.xlu0 %3324
        %3326 = vadd.xlane.f32.xlu0 %v3303
        %v3327 = vpop.xlane.xlu0 %3326
        %3328 = vadd.xlane.f32.xlu0 %v3304
        %v3329 = vpop.xlane.xlu0 %3328
        %3330 = vadd.xlane.f32.xlu0 %v3305
        %v3331 = vpop.xlane.xlu0 %3330
        %3332 = vadd.xlane.f32.xlu0 %v3306
        %v3333 = vpop.xlane.xlu0 %3332
        %3334 = vadd.xlane.f32.xlu0 %v3307
        %v3335 = vpop.xlane.xlu0 %3334
        %3336 = vadd.xlane.f32.xlu0 %v3308
        %v3337 = vpop.xlane.xlu0 %3336
        %3338 = vadd.xlane.f32.xlu0 %v3309
        %v3339 = vpop.xlane.xlu0 %3338
        %3340 = vadd.xlane.f32.xlu0 %v3310
        %v3341 = vpop.xlane.xlu0 %3340
        %3342 = vadd.xlane.f32.xlu0 %v3311
        %v3343 = vpop.xlane.xlu0 %3342
        %3344 = vadd.xlane.f32.xlu0 %v3312
        %v3345 = vpop.xlane.xlu0 %3344
        %3346 = vadd.xlane.f32.xlu0 %v3313
        %v3347 = vpop.xlane.xlu0 %3346
        %v3348 = vmul.f32 %v3317, %v942
        %v3349 = vmul.f32 %v3319, %v942
        %v3350 = vmul.f32 %v3321, %v942
        %v3351 = vmul.f32 %v3323, %v942
        %v3352 = vmul.f32 %v3325, %v942
        %v3353 = vmul.f32 %v3327, %v942
        %v3354 = vmul.f32 %v3329, %v942
        %v3355 = vmul.f32 %v3331, %v942
        %v3356 = vmul.f32 %v3333, %v942
        %v3357 = vmul.f32 %v3335, %v942
        %v3358 = vmul.f32 %v3337, %v942
        %v3359 = vmul.f32 %v3339, %v942
        %v3360 = vmul.f32 %v3341, %v942
        %v3361 = vmul.f32 %v3343, %v942
        %v3362 = vmul.f32 %v3345, %v942
        %v3363 = vmul.f32 %v3347, %v942
        %v3364 = vsub.f32 %v3298, %v3348
        %v3365 = vsub.f32 %v3299, %v3349
        %v3366 = vsub.f32 %v3300, %v3350
        %v3367 = vsub.f32 %v3301, %v3351
        %v3368 = vsub.f32 %v3302, %v3352
        %v3369 = vsub.f32 %v3303, %v3353
        %v3370 = vsub.f32 %v3304, %v3354
        %v3371 = vsub.f32 %v3305, %v3355
        %v3372 = vsub.f32 %v3306, %v3356
        %v3373 = vsub.f32 %v3307, %v3357
        %v3374 = vsub.f32 %v3308, %v3358
        %v3375 = vsub.f32 %v3309, %v3359
        %v3376 = vsub.f32 %v3310, %v3360
        %v3377 = vsub.f32 %v3311, %v3361
        %v3378 = vsub.f32 %v3312, %v3362
        %v3379 = vsub.f32 %v3313, %v3363
        %v3380 = vmul.f32 %v3364, %v3364
        %v3381 = vmul.f32 %v3365, %v3365
        %v3382 = vmul.f32 %v3366, %v3366
        %v3383 = vmul.f32 %v3367, %v3367
        %v3384 = vmul.f32 %v3368, %v3368
        %v3385 = vmul.f32 %v3369, %v3369
        %v3386 = vmul.f32 %v3370, %v3370
        %v3387 = vmul.f32 %v3371, %v3371
        %v3388 = vmul.f32 %v3372, %v3372
        %v3389 = vmul.f32 %v3373, %v3373
        %v3390 = vmul.f32 %v3374, %v3374
        %v3391 = vmul.f32 %v3375, %v3375
        %v3392 = vmul.f32 %v3376, %v3376
        %v3393 = vmul.f32 %v3377, %v3377
        %v3394 = vmul.f32 %v3378, %v3378
        %v3395 = vmul.f32 %v3379, %v3379
        %3396 = vadd.xlane.f32.xlu0 %v3380
        %v3397 = vpop.xlane.xlu0 %3396
        %3398 = vadd.xlane.f32.xlu0 %v3381
        %v3399 = vpop.xlane.xlu0 %3398
        %3400 = vadd.xlane.f32.xlu0 %v3382
        %v3401 = vpop.xlane.xlu0 %3400
        %3402 = vadd.xlane.f32.xlu0 %v3383
        %v3403 = vpop.xlane.xlu0 %3402
        %3404 = vadd.xlane.f32.xlu0 %v3384
        %v3405 = vpop.xlane.xlu0 %3404
        %3406 = vadd.xlane.f32.xlu0 %v3385
        %v3407 = vpop.xlane.xlu0 %3406
        %3408 = vadd.xlane.f32.xlu0 %v3386
        %v3409 = vpop.xlane.xlu0 %3408
        %3410 = vadd.xlane.f32.xlu0 %v3387
        %v3411 = vpop.xlane.xlu0 %3410
        %3412 = vadd.xlane.f32.xlu0 %v3388
        %v3413 = vpop.xlane.xlu0 %3412
        %3414 = vadd.xlane.f32.xlu0 %v3389
        %v3415 = vpop.xlane.xlu0 %3414
        %3416 = vadd.xlane.f32.xlu0 %v3390
        %v3417 = vpop.xlane.xlu0 %3416
        %3418 = vadd.xlane.f32.xlu0 %v3391
        %v3419 = vpop.xlane.xlu0 %3418
        %3420 = vadd.xlane.f32.xlu0 %v3392
        %v3421 = vpop.xlane.xlu0 %3420
        %3422 = vadd.xlane.f32.xlu0 %v3393
        %v3423 = vpop.xlane.xlu0 %3422
        %3424 = vadd.xlane.f32.xlu0 %v3394
        %v3425 = vpop.xlane.xlu0 %3424
        %3426 = vadd.xlane.f32.xlu0 %v3395
        %v3427 = vpop.xlane.xlu0 %3426
        %v3428 = vmul.f32 %v3397, %v942
        %v3429 = vmul.f32 %v3399, %v942
        %v3430 = vmul.f32 %v3401, %v942
        %v3431 = vmul.f32 %v3403, %v942
        %v3432 = vmul.f32 %v3405, %v942
        %v3433 = vmul.f32 %v3407, %v942
        %v3434 = vmul.f32 %v3409, %v942
        %v3435 = vmul.f32 %v3411, %v942
        %v3436 = vmul.f32 %v3413, %v942
        %v3437 = vmul.f32 %v3415, %v942
        %v3438 = vmul.f32 %v3417, %v942
        %v3439 = vmul.f32 %v3419, %v942
        %v3440 = vmul.f32 %v3421, %v942
        %v3441 = vmul.f32 %v3423, %v942
        %v3442 = vmul.f32 %v3425, %v942
        %v3443 = vmul.f32 %v3427, %v942
        %v3444 = vadd.f32 %v3428, 1e-05
        %v3445 = vadd.f32 %v3429, 1e-05
        %v3446 = vadd.f32 %v3430, 1e-05
        %v3447 = vadd.f32 %v3431, 1e-05
        %v3448 = vadd.f32 %v3432, 1e-05
        %v3449 = vadd.f32 %v3433, 1e-05
        %v3450 = vadd.f32 %v3434, 1e-05
        %v3451 = vadd.f32 %v3435, 1e-05
        %v3452 = vadd.f32 %v3436, 1e-05
        %v3453 = vadd.f32 %v3437, 1e-05
        %v3454 = vadd.f32 %v3438, 1e-05
        %v3455 = vadd.f32 %v3439, 1e-05
        %v3456 = vadd.f32 %v3440, 1e-05
        %v3457 = vadd.f32 %v3441, 1e-05
        %v3458 = vadd.f32 %v3442, 1e-05
        %v3459 = vadd.f32 %v3443, 1e-05
        %v3460 = vrsqrt.pop %v3444
        %v3461 = vrsqrt.pop %v3445
        %v3462 = vrsqrt.pop %v3446
        %v3463 = vrsqrt.pop %v3447
        %v3464 = vrsqrt.pop %v3448
        %v3465 = vrsqrt.pop %v3449
        %v3466 = vrsqrt.pop %v3450
        %v3467 = vrsqrt.pop %v3451
        %v3468 = vrsqrt.pop %v3452
        %v3469 = vrsqrt.pop %v3453
        %v3470 = vrsqrt.pop %v3454
        %v3471 = vrsqrt.pop %v3455
        %v3472 = vrsqrt.pop %v3456
        %v3473 = vrsqrt.pop %v3457
        %v3474 = vrsqrt.pop %v3458
        %v3475 = vrsqrt.pop %v3459
        %v3476 = vmul.f32 %v3364, %v3460
        %v3477 = vmul.f32 %v3365, %v3461
        %v3478 = vmul.f32 %v3366, %v3462
        %v3479 = vmul.f32 %v3367, %v3463
        %v3480 = vmul.f32 %v3368, %v3464
        %v3481 = vmul.f32 %v3369, %v3465
        %v3482 = vmul.f32 %v3370, %v3466
        %v3483 = vmul.f32 %v3371, %v3467
        %v3484 = vmul.f32 %v3372, %v3468
        %v3485 = vmul.f32 %v3373, %v3469
        %v3486 = vmul.f32 %v3374, %v3470
        %v3487 = vmul.f32 %v3375, %v3471
        %v3488 = vmul.f32 %v3376, %v3472
        %v3489 = vmul.f32 %v3377, %v3473
        %v3490 = vmul.f32 %v3378, %v3474
        %v3491 = vmul.f32 %v3379, %v3475
        %v3493 = vlaneseq
        %v3494 = vshrl.u32 %v3493, 7
        %v3495 = vsub.s32 0, %v3494
        %v3496 = vrot.slane %v3314, %v3495
        %v3498 = vmul.f32 %v3476, %v3496
        %v3499 = vmul.f32 %v3477, %v3496
        %v3500 = vmul.f32 %v3478, %v3496
        %v3501 = vmul.f32 %v3479, %v3496
        %v3502 = vmul.f32 %v3480, %v3496
        %v3503 = vmul.f32 %v3481, %v3496
        %v3504 = vmul.f32 %v3482, %v3496
        %v3505 = vmul.f32 %v3483, %v3496
        %v3506 = vmul.f32 %v3484, %v3496
        %v3507 = vmul.f32 %v3485, %v3496
        %v3508 = vmul.f32 %v3486, %v3496
        %v3509 = vmul.f32 %v3487, %v3496
        %v3510 = vmul.f32 %v3488, %v3496
        %v3511 = vmul.f32 %v3489, %v3496
        %v3512 = vmul.f32 %v3490, %v3496
        %v3513 = vmul.f32 %v3491, %v3496
        %v3515 = vlaneseq
        %v3516 = vshrl.u32 %v3515, 7
        %v3517 = vsub.s32 0, %v3516
        %v3518 = vrot.slane %v3315, %v3517
        %v3520 = vadd.f32 %v3498, %v3518
        %v3521 = vadd.f32 %v3499, %v3518
        %v3522 = vadd.f32 %v3500, %v3518
        %v3523 = vadd.f32 %v3501, %v3518
        %v3524 = vadd.f32 %v3502, %v3518
        %v3525 = vadd.f32 %v3503, %v3518
        %v3526 = vadd.f32 %v3504, %v3518
        %v3527 = vadd.f32 %v3505, %v3518
        %v3528 = vadd.f32 %v3506, %v3518
        %v3529 = vadd.f32 %v3507, %v3518
        %v3530 = vadd.f32 %v3508, %v3518
        %v3531 = vadd.f32 %v3509, %v3518
        %v3532 = vadd.f32 %v3510, %v3518
        %v3533 = vadd.f32 %v3511, %v3518
        %v3534 = vadd.f32 %v3512, %v3518
        %v3535 = vadd.f32 %v3513, %v3518
        %v3536 = vpack.c.bf16 %v3521, %v3520
        %v3537 = vpack.c.bf16 %v3523, %v3522
        %v3538 = vpack.c.bf16 %v3525, %v3524
        %v3539 = vpack.c.bf16 %v3527, %v3526
        %v3540 = vpack.c.bf16 %v3529, %v3528
        %v3541 = vpack.c.bf16 %v3531, %v3530
        %v3542 = vpack.c.bf16 %v3533, %v3532
        %v3543 = vpack.c.bf16 %v3535, %v3534
        %v3544 = vld [vmem:[#allocation20] sm:$0xff]
        %v3545 = vld [vmem:[#allocation20 + $0x8] sm:$0xff]
        %v3546 = vld [vmem:[#allocation20 + $0x10] sm:$0xff]
        %v3547 = vld [vmem:[#allocation20 + $0x18] sm:$0xff]
        %v3548 = vld [vmem:[#allocation20 + $0x20] sm:$0xff]
        %v3549 = vld [vmem:[#allocation20 + $0x28] sm:$0xff]
        %v3550 = vld [vmem:[#allocation20 + $0x30] sm:$0xff]
        %v3551 = vld [vmem:[#allocation20 + $0x38] sm:$0xff]
        %v3552 = vld [vmem:[#allocation20 + $0x40] sm:$0xff]
        %v3553 = vld [vmem:[#allocation20 + $0x48] sm:$0xff]
        %v3554 = vld [vmem:[#allocation20 + $0x50] sm:$0xff]
        %v3555 = vld [vmem:[#allocation20 + $0x58] sm:$0xff]
        %v3556 = vld [vmem:[#allocation20 + $0x60] sm:$0xff]
        %v3557 = vld [vmem:[#allocation20 + $0x68] sm:$0xff]
        %v3558 = vld [vmem:[#allocation20 + $0x70] sm:$0xff]
        %v3559 = vld [vmem:[#allocation20 + $0x78] sm:$0xff]
        %v3560 = vld [vmem:[#allocation20 + $0x80] sm:$0xff]
        %v3561 = vld [vmem:[#allocation20 + $0x88] sm:$0xff]
        %v3562 = vld [vmem:[#allocation20 + $0x90] sm:$0xff]
        %v3563 = vld [vmem:[#allocation20 + $0x98] sm:$0xff]
        %v3564 = vld [vmem:[#allocation20 + $0xa0] sm:$0xff]
        %v3565 = vld [vmem:[#allocation20 + $0xa8] sm:$0xff]
        %v3566 = vld [vmem:[#allocation20 + $0xb0] sm:$0xff]
        %v3567 = vld [vmem:[#allocation20 + $0xb8] sm:$0xff]
        %v3568 = vld [vmem:[#allocation20 + $0xc0] sm:$0xff]
        %v3569 = vld [vmem:[#allocation20 + $0xc8] sm:$0xff]
        %v3570 = vld [vmem:[#allocation20 + $0xd0] sm:$0xff]
        %v3571 = vld [vmem:[#allocation20 + $0xd8] sm:$0xff]
        %v3572 = vld [vmem:[#allocation20 + $0xe0] sm:$0xff]
        %v3573 = vld [vmem:[#allocation20 + $0xe8] sm:$0xff]
        %v3574 = vld [vmem:[#allocation20 + $0xf0] sm:$0xff]
        %v3575 = vld [vmem:[#allocation20 + $0xf8] sm:$0xff]
        %v3576 = vld [vmem:[#allocation22] sm:$0xf]
        %v3578 = vlaneseq
        %v3579 = vshrl.u32 %v3578, 7
        %v3580 = vsub.s32 0, %v3579
        %v3581 = vrot.slane %v3576, %v3580
        %v3582 = vlaneseq
        %v3583 = vshrl.u32 %v3582, 7
        %v3584 = vsub.s32 1, %v3583
        %v3585 = vrot.slane %v3576, %v3584
        %v3586 = vlaneseq
        %v3587 = vshrl.u32 %v3586, 7
        %v3588 = vsub.s32 2, %v3587
        %v3589 = vrot.slane %v3576, %v3588
        %v3590 = vlaneseq
        %v3591 = vshrl.u32 %v3590, 7
        %v3592 = vsub.s32 3, %v3591
        %v3593 = vrot.slane %v3576, %v3592
        %v3630 = vunpack.c.l.b16 %v3544
        %v3631 = vunpack.c.h.b16 %v3544
        %v3632 = vunpack.c.l.b16 %v3545
        %v3633 = vunpack.c.h.b16 %v3545
        %v3634 = vunpack.c.l.b16 %v3546
        %v3635 = vunpack.c.h.b16 %v3546
        %v3636 = vunpack.c.l.b16 %v3547
        %v3637 = vunpack.c.h.b16 %v3547
        %v3638 = vunpack.c.l.b16 %v3548
        %v3639 = vunpack.c.h.b16 %v3548
        %v3640 = vunpack.c.l.b16 %v3549
        %v3641 = vunpack.c.h.b16 %v3549
        %v3642 = vunpack.c.l.b16 %v3550
        %v3643 = vunpack.c.h.b16 %v3550
        %v3644 = vunpack.c.l.b16 %v3551
        %v3645 = vunpack.c.h.b16 %v3551
        %v3646 = vunpack.c.l.b16 %v3552
        %v3647 = vunpack.c.h.b16 %v3552
        %v3648 = vunpack.c.l.b16 %v3553
        %v3649 = vunpack.c.h.b16 %v3553
        %v3650 = vunpack.c.l.b16 %v3554
        %v3651 = vunpack.c.h.b16 %v3554
        %v3652 = vunpack.c.l.b16 %v3555
        %v3653 = vunpack.c.h.b16 %v3555
        %v3654 = vunpack.c.l.b16 %v3556
        %v3655 = vunpack.c.h.b16 %v3556
        %v3656 = vunpack.c.l.b16 %v3557
        %v3657 = vunpack.c.h.b16 %v3557
        %v3658 = vunpack.c.l.b16 %v3558
        %v3659 = vunpack.c.h.b16 %v3558
        %v3660 = vunpack.c.l.b16 %v3559
        %v3661 = vunpack.c.h.b16 %v3559
        %v3662 = vunpack.c.l.b16 %v3560
        %v3663 = vunpack.c.h.b16 %v3560
        %v3664 = vunpack.c.l.b16 %v3561
        %v3665 = vunpack.c.h.b16 %v3561
        %v3666 = vunpack.c.l.b16 %v3562
        %v3667 = vunpack.c.h.b16 %v3562
        %v3668 = vunpack.c.l.b16 %v3563
        %v3669 = vunpack.c.h.b16 %v3563
        %v3670 = vunpack.c.l.b16 %v3564
        %v3671 = vunpack.c.h.b16 %v3564
        %v3672 = vunpack.c.l.b16 %v3565
        %v3673 = vunpack.c.h.b16 %v3565
        %v3674 = vunpack.c.l.b16 %v3566
        %v3675 = vunpack.c.h.b16 %v3566
        %v3676 = vunpack.c.l.b16 %v3567
        %v3677 = vunpack.c.h.b16 %v3567
        %v3678 = vunpack.c.l.b16 %v3568
        %v3679 = vunpack.c.h.b16 %v3568
        %v3680 = vunpack.c.l.b16 %v3569
        %v3681 = vunpack.c.h.b16 %v3569
        %v3682 = vunpack.c.l.b16 %v3570
        %v3683 = vunpack.c.h.b16 %v3570
        %v3684 = vunpack.c.l.b16 %v3571
        %v3685 = vunpack.c.h.b16 %v3571
        %v3686 = vunpack.c.l.b16 %v3572
        %v3687 = vunpack.c.h.b16 %v3572
        %v3688 = vunpack.c.l.b16 %v3573
        %v3689 = vunpack.c.h.b16 %v3573
        %v3690 = vunpack.c.l.b16 %v3574
        %v3691 = vunpack.c.h.b16 %v3574
        %v3692 = vunpack.c.l.b16 %v3575
        %v3693 = vunpack.c.h.b16 %v3575
        %v3694 = vpack.c.b16 %v3634, %v3630
        %v3695 = vpack.c.b16 %v3635, %v3631
        %v3696 = vpack.c.b16 %v3636, %v3632
        %v3697 = vpack.c.b16 %v3637, %v3633
        %v3698 = vpack.c.b16 %v3642, %v3638
        %v3699 = vpack.c.b16 %v3643, %v3639
        %v3700 = vpack.c.b16 %v3644, %v3640
        %v3701 = vpack.c.b16 %v3645, %v3641
        %v3702 = vpack.c.b16 %v3650, %v3646
        %v3703 = vpack.c.b16 %v3651, %v3647
        %v3704 = vpack.c.b16 %v3652, %v3648
        %v3705 = vpack.c.b16 %v3653, %v3649
        %v3706 = vpack.c.b16 %v3658, %v3654
        %v3707 = vpack.c.b16 %v3659, %v3655
        %v3708 = vpack.c.b16 %v3660, %v3656
        %v3709 = vpack.c.b16 %v3661, %v3657
        %v3710 = vpack.c.b16 %v3666, %v3662
        %v3711 = vpack.c.b16 %v3667, %v3663
        %v3712 = vpack.c.b16 %v3668, %v3664
        %v3713 = vpack.c.b16 %v3669, %v3665
        %v3714 = vpack.c.b16 %v3674, %v3670
        %v3715 = vpack.c.b16 %v3675, %v3671
        %v3716 = vpack.c.b16 %v3676, %v3672
        %v3717 = vpack.c.b16 %v3677, %v3673
        %v3718 = vpack.c.b16 %v3682, %v3678
        %v3719 = vpack.c.b16 %v3683, %v3679
        %v3720 = vpack.c.b16 %v3684, %v3680
        %v3721 = vpack.c.b16 %v3685, %v3681
        %v3722 = vpack.c.b16 %v3690, %v3686
        %v3723 = vpack.c.b16 %v3691, %v3687
        %v3724 = vpack.c.b16 %v3692, %v3688
        %v3725 = vpack.c.b16 %v3693, %v3689
        %3758 = vmatprep.subr.bf16.mxu0 %v3695
        %3759 = vmatpush1.bf16.msra.mxu0 %v3694
        %3760 = vmatprep.subr.bf16.mxu0 %v3699
        %3761 = vmatpush1.bf16.msra.mxu0 %v3698
        %3762 = vmatprep.subr.bf16.mxu0 %v3703
        %3763 = vmatpush1.bf16.msra.mxu0 %v3702
        %3764 = vmatprep.subr.bf16.mxu0 %v3707
        %3765 = vmatpush1.bf16.msra.mxu0 %v3706
        %3766 = vmatprep.subr.bf16.mxu0 %v3711
        %3767 = vmatpush1.bf16.msra.mxu0 %v3710
        %3768 = vmatprep.subr.bf16.mxu0 %v3715
        %3769 = vmatpush1.bf16.msra.mxu0 %v3714
        %3770 = vmatprep.subr.bf16.mxu0 %v3719
        %3771 = vmatpush1.bf16.msra.mxu0 %v3718
        %3772 = vmatprep.subr.bf16.mxu0 %v3723
        %3773 = vmatpush1.bf16.msra.mxu0 %v3722
        %3774 = vmatprep.subr.bf16.mxu0 0
        %3775 = vmatpush1.bf16.msra.mxu0 0
        %3776 = vmatprep.subr.bf16.mxu0 0
        %3777 = vmatpush1.bf16.msra.mxu0 0
        %3778 = vmatprep.subr.bf16.mxu0 0
        %3779 = vmatpush1.bf16.msra.mxu0 0
        %3780 = vmatprep.subr.bf16.mxu0 0
        %3781 = vmatpush1.bf16.msra.mxu0 0
        %3782 = vmatprep.subr.bf16.mxu0 0
        %3783 = vmatpush1.bf16.msra.mxu0 0
        %3784 = vmatprep.subr.bf16.mxu0 0
        %3785 = vmatpush1.bf16.msra.mxu0 0
        %3786 = vmatprep.subr.bf16.mxu0 0
        %3787 = vmatpush1.bf16.msra.mxu0 0
        %3788 = vmatprep.subr.bf16.mxu0 0
        %3789 = vmatpush1.bf16.msra.mxu0 0
        %3790 = vmatprep.mubr.bf16.mxu0 0
        %3791 = vmatmul.mubr.bf16.gmra.mrb[0].mxu0 %v3536
        %v3792 = vpop.f32.mrb[0].mxu0
        %v3793 = vadd.f32 %v3581, %v3792
        %v3794 = vpop.f32.mrb[0].mxu0
        %v3795 = vadd.f32 %v3585, %v3794
        %v3796 = vpop.f32.mrb[0].mxu0
        %v3797 = vadd.f32 %v3581, %v3796
        %v3798 = vpop.f32.mrb[0].mxu0
        %v3799 = vadd.f32 %v3585, %v3798
        %3800 = vmatprep.mubr.bf16.mxu0 0
        %3801 = vmatmul.mubr.bf16.gmra.mrb[0].mxu0 %v3537
        %v3802 = vpop.f32.mrb[0].mxu0
        %v3803 = vadd.f32 %v3581, %v3802
        %v3804 = vpop.f32.mrb[0].mxu0
        %v3805 = vadd.f32 %v3585, %v3804
        %v3806 = vpop.f32.mrb[0].mxu0
        %v3807 = vadd.f32 %v3581, %v3806
        %v3808 = vpop.f32.mrb[0].mxu0
        %v3809 = vadd.f32 %v3585, %v3808
        %3810 = vmatprep.mubr.bf16.mxu0 0
        %3811 = vmatmul.mubr.bf16.gmra.mrb[0].mxu0 %v3538
        %v3812 = vpop.f32.mrb[0].mxu0
        %v3813 = vadd.f32 %v3581, %v3812
        %v3814 = vpop.f32.mrb[0].mxu0
        %v3815 = vadd.f32 %v3585, %v3814
        %v3816 = vpop.f32.mrb[0].mxu0
        %v3817 = vadd.f32 %v3581, %v3816
        %v3818 = vpop.f32.mrb[0].mxu0
        %v3819 = vadd.f32 %v3585, %v3818
        %3820 = vmatprep.mubr.bf16.mxu0 0
        %3821 = vmatmul.mubr.bf16.gmra.mrb[0].mxu0 %v3539
        %v3822 = vpop.f32.mrb[0].mxu0
        %v3823 = vadd.f32 %v3581, %v3822
        %v3824 = vpop.f32.mrb[0].mxu0
        %v3825 = vadd.f32 %v3585, %v3824
        %v3826 = vpop.f32.mrb[0].mxu0
        %v3827 = vadd.f32 %v3581, %v3826
        %v3828 = vpop.f32.mrb[0].mxu0
        %v3829 = vadd.f32 %v3585, %v3828
        %3830 = vmatprep.mubr.bf16.mxu0 0
        %3831 = vmatmul.mubr.bf16.gmra.mrb[0].mxu0 %v3540
        %v3832 = vpop.f32.mrb[0].mxu0
        %v3833 = vadd.f32 %v3581, %v3832
        %v3834 = vpop.f32.mrb[0].mxu0
        %v3835 = vadd.f32 %v3585, %v3834
        %v3836 = vpop.f32.mrb[0].mxu0
        %v3837 = vadd.f32 %v3581, %v3836
        %v3838 = vpop.f32.mrb[0].mxu0
        %v3839 = vadd.f32 %v3585, %v3838
        %3840 = vmatprep.mubr.bf16.mxu0 0
        %3841 = vmatmul.mubr.bf16.gmra.mrb[0].mxu0 %v3541
        %v3842 = vpop.f32.mrb[0].mxu0
        %v3843 = vadd.f32 %v3581, %v3842
        %v3844 = vpop.f32.mrb[0].mxu0
        %v3845 = vadd.f32 %v3585, %v3844
        %v3846 = vpop.f32.mrb[0].mxu0
        %v3847 = vadd.f32 %v3581, %v3846
        %v3848 = vpop.f32.mrb[0].mxu0
        %v3849 = vadd.f32 %v3585, %v3848
        %3850 = vmatprep.mubr.bf16.mxu0 0
        %3851 = vmatmul.mubr.bf16.gmra.mrb[0].mxu0 %v3542
        %v3852 = vpop.f32.mrb[0].mxu0
        %v3853 = vadd.f32 %v3581, %v3852
        %v3854 = vpop.f32.mrb[0].mxu0
        %v3855 = vadd.f32 %v3585, %v3854
        %v3856 = vpop.f32.mrb[0].mxu0
        %v3857 = vadd.f32 %v3581, %v3856
        %v3858 = vpop.f32.mrb[0].mxu0
        %v3859 = vadd.f32 %v3585, %v3858
        %3860 = vmatprep.mubr.bf16.mxu0 0
        %3861 = vmatmul.mubr.bf16.gmra.mrb[0].mxu0 %v3543
        %v3862 = vpop.f32.mrb[0].mxu0
        %v3863 = vadd.f32 %v3581, %v3862
        %v3864 = vpop.f32.mrb[0].mxu0
        %v3865 = vadd.f32 %v3585, %v3864
        %v3866 = vpop.f32.mrb[0].mxu0
        %v3867 = vadd.f32 %v3581, %v3866
        %v3868 = vpop.f32.mrb[0].mxu0
        %v3869 = vadd.f32 %v3585, %v3868
        %3870 = vdwg.mxu0
        %3871 = vmatprep.subr.bf16.mxu0 %v3697
        %3872 = vmatpush1.bf16.msra.mxu0 %v3696
        %3873 = vmatprep.subr.bf16.mxu0 %v3701
        %3874 = vmatpush1.bf16.msra.mxu0 %v3700
        %3875 = vmatprep.subr.bf16.mxu0 %v3705
        %3876 = vmatpush1.bf16.msra.mxu0 %v3704
        %3877 = vmatprep.subr.bf16.mxu0 %v3709
        %3878 = vmatpush1.bf16.msra.mxu0 %v3708
        %3879 = vmatprep.subr.bf16.mxu0 %v3713
        %3880 = vmatpush1.bf16.msra.mxu0 %v3712
        %3881 = vmatprep.subr.bf16.mxu0 %v3717
        %3882 = vmatpush1.bf16.msra.mxu0 %v3716
        %3883 = vmatprep.subr.bf16.mxu0 %v3721
        %3884 = vmatpush1.bf16.msra.mxu0 %v3720
        %3885 = vmatprep.subr.bf16.mxu0 %v3725
        %3886 = vmatpush1.bf16.msra.mxu0 %v3724
        %3887 = vmatprep.subr.bf16.mxu0 0
        %3888 = vmatpush1.bf16.msra.mxu0 0
        %3889 = vmatprep.subr.bf16.mxu0 0
        %3890 = vmatpush1.bf16.msra.mxu0 0
        %3891 = vmatprep.subr.bf16.mxu0 0
        %3892 = vmatpush1.bf16.msra.mxu0 0
        %3893 = vmatprep.subr.bf16.mxu0 0
        %3894 = vmatpush1.bf16.msra.mxu0 0
        %3895 = vmatprep.subr.bf16.mxu0 0
        %3896 = vmatpush1.bf16.msra.mxu0 0
        %3897 = vmatprep.subr.bf16.mxu0 0
        %3898 = vmatpush1.bf16.msra.mxu0 0
        %3899 = vmatprep.subr.bf16.mxu0 0
        %3900 = vmatpush1.bf16.msra.mxu0 0
        %3901 = vmatprep.subr.bf16.mxu0 0
        %3902 = vmatpush1.bf16.msra.mxu0 0
        %3903 = vmatprep.mubr.bf16.mxu0 0
        %3904 = vmatmul.mubr.bf16.gmra.mrb[0].mxu0 %v3536
        %v3905 = vpop.f32.mrb[0].mxu0
        %v3906 = vadd.f32 %v3589, %v3905
        %v3907 = vpop.f32.mrb[0].mxu0
        %v3908 = vadd.f32 %v3593, %v3907
        %v3909 = vpop.f32.mrb[0].mxu0
        %v3910 = vadd.f32 %v3589, %v3909
        %v3911 = vpop.f32.mrb[0].mxu0
        %v3912 = vadd.f32 %v3593, %v3911
        %3913 = vmatprep.mubr.bf16.mxu0 0
        %3914 = vmatmul.mubr.bf16.gmra.mrb[0].mxu0 %v3537
        %v3915 = vpop.f32.mrb[0].mxu0
        %v3916 = vadd.f32 %v3589, %v3915
        %v3917 = vpop.f32.mrb[0].mxu0
        %v3918 = vadd.f32 %v3593, %v3917
        %v3919 = vpop.f32.mrb[0].mxu0
        %v3920 = vadd.f32 %v3589, %v3919
        %v3921 = vpop.f32.mrb[0].mxu0
        %v3922 = vadd.f32 %v3593, %v3921
        %3923 = vmatprep.mubr.bf16.mxu0 0
        %3924 = vmatmul.mubr.bf16.gmra.mrb[0].mxu0 %v3538
        %v3925 = vpop.f32.mrb[0].mxu0
        %v3926 = vadd.f32 %v3589, %v3925
        %v3927 = vpop.f32.mrb[0].mxu0
        %v3928 = vadd.f32 %v3593, %v3927
        %v3929 = vpop.f32.mrb[0].mxu0
        %v3930 = vadd.f32 %v3589, %v3929
        %v3931 = vpop.f32.mrb[0].mxu0
        %v3932 = vadd.f32 %v3593, %v3931
        %3933 = vmatprep.mubr.bf16.mxu0 0
        %3934 = vmatmul.mubr.bf16.gmra.mrb[0].mxu0 %v3539
        %v3935 = vpop.f32.mrb[0].mxu0
        %v3936 = vadd.f32 %v3589, %v3935
        %v3937 = vpop.f32.mrb[0].mxu0
        %v3938 = vadd.f32 %v3593, %v3937
        %v3939 = vpop.f32.mrb[0].mxu0
        %v3940 = vadd.f32 %v3589, %v3939
        %v3941 = vpop.f32.mrb[0].mxu0
        %v3942 = vadd.f32 %v3593, %v3941
        %3943 = vmatprep.mubr.bf16.mxu0 0
        %3944 = vmatmul.mubr.bf16.gmra.mrb[0].mxu0 %v3540
        %v3945 = vpop.f32.mrb[0].mxu0
        %v3946 = vadd.f32 %v3589, %v3945
        %v3947 = vpop.f32.mrb[0].mxu0
        %v3948 = vadd.f32 %v3593, %v3947
        %v3949 = vpop.f32.mrb[0].mxu0
        %v3950 = vadd.f32 %v3589, %v3949
        %v3951 = vpop.f32.mrb[0].mxu0
        %v3952 = vadd.f32 %v3593, %v3951
        %3953 = vmatprep.mubr.bf16.mxu0 0
        %3954 = vmatmul.mubr.bf16.gmra.mrb[0].mxu0 %v3541
        %v3955 = vpop.f32.mrb[0].mxu0
        %v3956 = vadd.f32 %v3589, %v3955
        %v3957 = vpop.f32.mrb[0].mxu0
        %v3958 = vadd.f32 %v3593, %v3957
        %v3959 = vpop.f32.mrb[0].mxu0
        %v3960 = vadd.f32 %v3589, %v3959
        %v3961 = vpop.f32.mrb[0].mxu0
        %v3962 = vadd.f32 %v3593, %v3961
        %3963 = vmatprep.mubr.bf16.mxu0 0
        %3964 = vmatmul.mubr.bf16.gmra.mrb[0].mxu0 %v3542
        %v3965 = vpop.f32.mrb[0].mxu0
        %v3966 = vadd.f32 %v3589, %v3965
        %v3967 = vpop.f32.mrb[0].mxu0
        %v3968 = vadd.f32 %v3593, %v3967
        %v3969 = vpop.f32.mrb[0].mxu0
        %v3970 = vadd.f32 %v3589, %v3969
        %v3971 = vpop.f32.mrb[0].mxu0
        %v3972 = vadd.f32 %v3593, %v3971
        %3973 = vmatprep.mubr.bf16.mxu0 0
        %3974 = vmatmul.mubr.bf16.gmra.mrb[0].mxu0 %v3543
        %v3975 = vpop.f32.mrb[0].mxu0
        %v3976 = vadd.f32 %v3589, %v3975
        %v3977 = vpop.f32.mrb[0].mxu0
        %v3978 = vadd.f32 %v3593, %v3977
        %v3979 = vpop.f32.mrb[0].mxu0
        %v3980 = vadd.f32 %v3589, %v3979
        %v3981 = vpop.f32.mrb[0].mxu0
        %v3982 = vadd.f32 %v3593, %v3981
        %3983 = vdwg.mxu0
        %v3984 = vmul.f32 %v3793, 0.5
        %v3985 = vmul.f32 %v3795, 0.5
        %v3986 = vmul.f32 %v3906, 0.5
        %v3987 = vmul.f32 %v3908, 0.5
        %v3988 = vmul.f32 %v3797, 0.5
        %v3989 = vmul.f32 %v3799, 0.5
        %v3990 = vmul.f32 %v3910, 0.5
        %v3991 = vmul.f32 %v3912, 0.5
        %v3992 = vmul.f32 %v3803, 0.5
        %v3993 = vmul.f32 %v3805, 0.5
        %v3994 = vmul.f32 %v3916, 0.5
        %v3995 = vmul.f32 %v3918, 0.5
        %v3996 = vmul.f32 %v3807, 0.5
        %v3997 = vmul.f32 %v3809, 0.5
        %v3998 = vmul.f32 %v3920, 0.5
        %v3999 = vmul.f32 %v3922, 0.5
        %v4000 = vmul.f32 %v3813, 0.5
        %v4001 = vmul.f32 %v3815, 0.5
        %v4002 = vmul.f32 %v3926, 0.5
        %v4003 = vmul.f32 %v3928, 0.5
        %v4004 = vmul.f32 %v3817, 0.5
        %v4005 = vmul.f32 %v3819, 0.5
        %v4006 = vmul.f32 %v3930, 0.5
        %v4007 = vmul.f32 %v3932, 0.5
        %v4008 = vmul.f32 %v3823, 0.5
        %v4009 = vmul.f32 %v3825, 0.5
        %v4010 = vmul.f32 %v3936, 0.5
        %v4011 = vmul.f32 %v3938, 0.5
        %v4012 = vmul.f32 %v3827, 0.5
        %v4013 = vmul.f32 %v3829, 0.5
        %v4014 = vmul.f32 %v3940, 0.5
        %v4015 = vmul.f32 %v3942, 0.5
        %v4016 = vmul.f32 %v3833, 0.5
        %v4017 = vmul.f32 %v3835, 0.5
        %v4018 = vmul.f32 %v3946, 0.5
        %v4019 = vmul.f32 %v3948, 0.5
        %v4020 = vmul.f32 %v3837, 0.5
        %v4021 = vmul.f32 %v3839, 0.5
        %v4022 = vmul.f32 %v3950, 0.5
        %v4023 = vmul.f32 %v3952, 0.5
        %v4024 = vmul.f32 %v3843, 0.5
        %v4025 = vmul.f32 %v3845, 0.5
        %v4026 = vmul.f32 %v3956, 0.5
        %v4027 = vmul.f32 %v3958, 0.5
        %v4028 = vmul.f32 %v3847, 0.5
        %v4029 = vmul.f32 %v3849, 0.5
        %v4030 = vmul.f32 %v3960, 0.5
        %v4031 = vmul.f32 %v3962, 0.5
        %v4032 = vmul.f32 %v3853, 0.5
        %v4033 = vmul.f32 %v3855, 0.5
        %v4034 = vmul.f32 %v3966, 0.5
        %v4035 = vmul.f32 %v3968, 0.5
        %v4036 = vmul.f32 %v3857, 0.5
        %v4037 = vmul.f32 %v3859, 0.5
        %v4038 = vmul.f32 %v3970, 0.5
        %v4039 = vmul.f32 %v3972, 0.5
        %v4040 = vmul.f32 %v3863, 0.5
        %v4041 = vmul.f32 %v3865, 0.5
        %v4042 = vmul.f32 %v3976, 0.5
        %v4043 = vmul.f32 %v3978, 0.5
        %v4044 = vmul.f32 %v3867, 0.5
        %v4045 = vmul.f32 %v3869, 0.5
        %v4046 = vmul.f32 %v3980, 0.5
        %v4047 = vmul.f32 %v3982, 0.5
        %v4048 = vmul.f32 %v3793, 0.70710677
        %v4049 = vmul.f32 %v3795, 0.70710677
        %v4050 = vmul.f32 %v3906, 0.70710677
        %v4051 = vmul.f32 %v3908, 0.70710677
        %v4052 = vmul.f32 %v3797, 0.70710677
        %v4053 = vmul.f32 %v3799, 0.70710677
        %v4054 = vmul.f32 %v3910, 0.70710677
        %v4055 = vmul.f32 %v3912, 0.70710677
        %v4056 = vmul.f32 %v3803, 0.70710677
        %v4057 = vmul.f32 %v3805, 0.70710677
        %v4058 = vmul.f32 %v3916, 0.70710677
        %v4059 = vmul.f32 %v3918, 0.70710677
        %v4060 = vmul.f32 %v3807, 0.70710677
        %v4061 = vmul.f32 %v3809, 0.70710677
        %v4062 = vmul.f32 %v3920, 0.70710677
        %v4063 = vmul.f32 %v3922, 0.70710677
        %v4064 = vmul.f32 %v3813, 0.70710677
        %v4065 = vmul.f32 %v3815, 0.70710677
        %v4066 = vmul.f32 %v3926, 0.70710677
        %v4067 = vmul.f32 %v3928, 0.70710677
        %v4068 = vmul.f32 %v3817, 0.70710677
        %v4069 = vmul.f32 %v3819, 0.70710677
        %v4070 = vmul.f32 %v3930, 0.70710677
        %v4071 = vmul.f32 %v3932, 0.70710677
        %v4072 = vmul.f32 %v3823, 0.70710677
        %v4073 = vmul.f32 %v3825, 0.70710677
        %v4074 = vmul.f32 %v3936, 0.70710677
        %v4075 = vmul.f32 %v3938, 0.70710677
        %v4076 = vmul.f32 %v3827, 0.70710677
        %v4077 = vmul.f32 %v3829, 0.70710677
        %v4078 = vmul.f32 %v3940, 0.70710677
        %v4079 = vmul.f32 %v3942, 0.70710677
        %v4080 = vmul.f32 %v3833, 0.70710677
        %v4081 = vmul.f32 %v3835, 0.70710677
        %v4082 = vmul.f32 %v3946, 0.70710677
        %v4083 = vmul.f32 %v3948, 0.70710677
        %v4084 = vmul.f32 %v3837, 0.70710677
        %v4085 = vmul.f32 %v3839, 0.70710677
        %v4086 = vmul.f32 %v3950, 0.70710677
        %v4087 = vmul.f32 %v3952, 0.70710677
        %v4088 = vmul.f32 %v3843, 0.70710677
        %v4089 = vmul.f32 %v3845, 0.70710677
        %v4090 = vmul.f32 %v3956, 0.70710677
        %v4091 = vmul.f32 %v3958, 0.70710677
        %v4092 = vmul.f32 %v3847, 0.70710677
        %v4093 = vmul.f32 %v3849, 0.70710677
        %v4094 = vmul.f32 %v3960, 0.70710677
        %v4095 = vmul.f32 %v3962, 0.70710677
        %v4096 = vmul.f32 %v3853, 0.70710677
        %v4097 = vmul.f32 %v3855, 0.70710677
        %v4098 = vmul.f32 %v3966, 0.70710677
        %v4099 = vmul.f32 %v3968, 0.70710677
        %v4100 = vmul.f32 %v3857, 0.70710677
        %v4101 = vmul.f32 %v3859, 0.70710677
        %v4102 = vmul.f32 %v3970, 0.70710677
        %v4103 = vmul.f32 %v3972, 0.70710677
        %v4104 = vmul.f32 %v3863, 0.70710677
        %v4105 = vmul.f32 %v3865, 0.70710677
        %v4106 = vmul.f32 %v3976, 0.70710677
        %v4107 = vmul.f32 %v3978, 0.70710677
        %v4108 = vmul.f32 %v3867, 0.70710677
        %v4109 = vmul.f32 %v3869, 0.70710677
        %v4110 = vmul.f32 %v3980, 0.70710677
        %v4111 = vmul.f32 %v3982, 0.70710677
        %v4112 = verf.f32.pop %v4048
        %v4113 = verf.f32.pop %v4049
        %v4114 = verf.f32.pop %v4050
        %v4115 = verf.f32.pop %v4051
        %v4116 = verf.f32.pop %v4052
        %v4117 = verf.f32.pop %v4053
        %v4118 = verf.f32.pop %v4054
        %v4119 = verf.f32.pop %v4055
        %v4120 = verf.f32.pop %v4056
        %v4121 = verf.f32.pop %v4057
        %v4122 = verf.f32.pop %v4058
        %v4123 = verf.f32.pop %v4059
        %v4124 = verf.f32.pop %v4060
        %v4125 = verf.f32.pop %v4061
        %v4126 = verf.f32.pop %v4062
        %v4127 = verf.f32.pop %v4063
        %v4128 = verf.f32.pop %v4064
        %v4129 = verf.f32.pop %v4065
        %v4130 = verf.f32.pop %v4066
        %v4131 = verf.f32.pop %v4067
        %v4132 = verf.f32.pop %v4068
        %v4133 = verf.f32.pop %v4069
        %v4134 = verf.f32.pop %v4070
        %v4135 = verf.f32.pop %v4071
        %v4136 = verf.f32.pop %v4072
        %v4137 = verf.f32.pop %v4073
        %v4138 = verf.f32.pop %v4074
        %v4139 = verf.f32.pop %v4075
        %v4140 = verf.f32.pop %v4076
        %v4141 = verf.f32.pop %v4077
        %v4142 = verf.f32.pop %v4078
        %v4143 = verf.f32.pop %v4079
        %v4144 = verf.f32.pop %v4080
        %v4145 = verf.f32.pop %v4081
        %v4146 = verf.f32.pop %v4082
        %v4147 = verf.f32.pop %v4083
        %v4148 = verf.f32.pop %v4084
        %v4149 = verf.f32.pop %v4085
        %v4150 = verf.f32.pop %v4086
        %v4151 = verf.f32.pop %v4087
        %v4152 = verf.f32.pop %v4088
        %v4153 = verf.f32.pop %v4089
        %v4154 = verf.f32.pop %v4090
        %v4155 = verf.f32.pop %v4091
        %v4156 = verf.f32.pop %v4092
        %v4157 = verf.f32.pop %v4093
        %v4158 = verf.f32.pop %v4094
        %v4159 = verf.f32.pop %v4095
        %v4160 = verf.f32.pop %v4096
        %v4161 = verf.f32.pop %v4097
        %v4162 = verf.f32.pop %v4098
        %v4163 = verf.f32.pop %v4099
        %v4164 = verf.f32.pop %v4100
        %v4165 = verf.f32.pop %v4101
        %v4166 = verf.f32.pop %v4102
        %v4167 = verf.f32.pop %v4103
        %v4168 = verf.f32.pop %v4104
        %v4169 = verf.f32.pop %v4105
        %v4170 = verf.f32.pop %v4106
        %v4171 = verf.f32.pop %v4107
        %v4172 = verf.f32.pop %v4108
        %v4173 = verf.f32.pop %v4109
        %v4174 = verf.f32.pop %v4110
        %v4175 = verf.f32.pop %v4111
        %v4176 = vadd.f32 %v4112, 1.0
        %v4177 = vadd.f32 %v4113, 1.0
        %v4178 = vadd.f32 %v4114, 1.0
        %v4179 = vadd.f32 %v4115, 1.0
        %v4180 = vadd.f32 %v4116, 1.0
        %v4181 = vadd.f32 %v4117, 1.0
        %v4182 = vadd.f32 %v4118, 1.0
        %v4183 = vadd.f32 %v4119, 1.0
        %v4184 = vadd.f32 %v4120, 1.0
        %v4185 = vadd.f32 %v4121, 1.0
        %v4186 = vadd.f32 %v4122, 1.0
        %v4187 = vadd.f32 %v4123, 1.0
        %v4188 = vadd.f32 %v4124, 1.0
        %v4189 = vadd.f32 %v4125, 1.0
        %v4190 = vadd.f32 %v4126, 1.0
        %v4191 = vadd.f32 %v4127, 1.0
        %v4192 = vadd.f32 %v4128, 1.0
        %v4193 = vadd.f32 %v4129, 1.0
        %v4194 = vadd.f32 %v4130, 1.0
        %v4195 = vadd.f32 %v4131, 1.0
        %v4196 = vadd.f32 %v4132, 1.0
        %v4197 = vadd.f32 %v4133, 1.0
        %v4198 = vadd.f32 %v4134, 1.0
        %v4199 = vadd.f32 %v4135, 1.0
        %v4200 = vadd.f32 %v4136, 1.0
        %v4201 = vadd.f32 %v4137, 1.0
        %v4202 = vadd.f32 %v4138, 1.0
        %v4203 = vadd.f32 %v4139, 1.0
        %v4204 = vadd.f32 %v4140, 1.0
        %v4205 = vadd.f32 %v4141, 1.0
        %v4206 = vadd.f32 %v4142, 1.0
        %v4207 = vadd.f32 %v4143, 1.0
        %v4208 = vadd.f32 %v4144, 1.0
        %v4209 = vadd.f32 %v4145, 1.0
        %v4210 = vadd.f32 %v4146, 1.0
        %v4211 = vadd.f32 %v4147, 1.0
        %v4212 = vadd.f32 %v4148, 1.0
        %v4213 = vadd.f32 %v4149, 1.0
        %v4214 = vadd.f32 %v4150, 1.0
        %v4215 = vadd.f32 %v4151, 1.0
        %v4216 = vadd.f32 %v4152, 1.0
        %v4217 = vadd.f32 %v4153, 1.0
        %v4218 = vadd.f32 %v4154, 1.0
        %v4219 = vadd.f32 %v4155, 1.0
        %v4220 = vadd.f32 %v4156, 1.0
        %v4221 = vadd.f32 %v4157, 1.0
        %v4222 = vadd.f32 %v4158, 1.0
        %v4223 = vadd.f32 %v4159, 1.0
        %v4224 = vadd.f32 %v4160, 1.0
        %v4225 = vadd.f32 %v4161, 1.0
        %v4226 = vadd.f32 %v4162, 1.0
        %v4227 = vadd.f32 %v4163, 1.0
        %v4228 = vadd.f32 %v4164, 1.0
        %v4229 = vadd.f32 %v4165, 1.0
        %v4230 = vadd.f32 %v4166, 1.0
        %v4231 = vadd.f32 %v4167, 1.0
        %v4232 = vadd.f32 %v4168, 1.0
        %v4233 = vadd.f32 %v4169, 1.0
        %v4234 = vadd.f32 %v4170, 1.0
        %v4235 = vadd.f32 %v4171, 1.0
        %v4236 = vadd.f32 %v4172, 1.0
        %v4237 = vadd.f32 %v4173, 1.0
        %v4238 = vadd.f32 %v4174, 1.0
        %v4239 = vadd.f32 %v4175, 1.0
        %v4240 = vmul.f32 %v3984, %v4176
        %v4241 = vmul.f32 %v3985, %v4177
        %v4242 = vmul.f32 %v3986, %v4178
        %v4243 = vmul.f32 %v3987, %v4179
        %v4244 = vmul.f32 %v3988, %v4180
        %v4245 = vmul.f32 %v3989, %v4181
        %v4246 = vmul.f32 %v3990, %v4182
        %v4247 = vmul.f32 %v3991, %v4183
        %v4248 = vmul.f32 %v3992, %v4184
        %v4249 = vmul.f32 %v3993, %v4185
        %v4250 = vmul.f32 %v3994, %v4186
        %v4251 = vmul.f32 %v3995, %v4187
        %v4252 = vmul.f32 %v3996, %v4188
        %v4253 = vmul.f32 %v3997, %v4189
        %v4254 = vmul.f32 %v3998, %v4190
        %v4255 = vmul.f32 %v3999, %v4191
        %v4256 = vmul.f32 %v4000, %v4192
        %v4257 = vmul.f32 %v4001, %v4193
        %v4258 = vmul.f32 %v4002, %v4194
        %v4259 = vmul.f32 %v4003, %v4195
        %v4260 = vmul.f32 %v4004, %v4196
        %v4261 = vmul.f32 %v4005, %v4197
        %v4262 = vmul.f32 %v4006, %v4198
        %v4263 = vmul.f32 %v4007, %v4199
        %v4264 = vmul.f32 %v4008, %v4200
        %v4265 = vmul.f32 %v4009, %v4201
        %v4266 = vmul.f32 %v4010, %v4202
        %v4267 = vmul.f32 %v4011, %v4203
        %v4268 = vmul.f32 %v4012, %v4204
        %v4269 = vmul.f32 %v4013, %v4205
        %v4270 = vmul.f32 %v4014, %v4206
        %v4271 = vmul.f32 %v4015, %v4207
        %v4272 = vmul.f32 %v4016, %v4208
        %v4273 = vmul.f32 %v4017, %v4209
        %v4274 = vmul.f32 %v4018, %v4210
        %v4275 = vmul.f32 %v4019, %v4211
        %v4276 = vmul.f32 %v4020, %v4212
        %v4277 = vmul.f32 %v4021, %v4213
        %v4278 = vmul.f32 %v4022, %v4214
        %v4279 = vmul.f32 %v4023, %v4215
        %v4280 = vmul.f32 %v4024, %v4216
        %v4281 = vmul.f32 %v4025, %v4217
        %v4282 = vmul.f32 %v4026, %v4218
        %v4283 = vmul.f32 %v4027, %v4219
        %v4284 = vmul.f32 %v4028, %v4220
        %v4285 = vmul.f32 %v4029, %v4221
        %v4286 = vmul.f32 %v4030, %v4222
        %v4287 = vmul.f32 %v4031, %v4223
        %v4288 = vmul.f32 %v4032, %v4224
        %v4289 = vmul.f32 %v4033, %v4225
        %v4290 = vmul.f32 %v4034, %v4226
        %v4291 = vmul.f32 %v4035, %v4227
        %v4292 = vmul.f32 %v4036, %v4228
        %v4293 = vmul.f32 %v4037, %v4229
        %v4294 = vmul.f32 %v4038, %v4230
        %v4295 = vmul.f32 %v4039, %v4231
        %v4296 = vmul.f32 %v4040, %v4232
        %v4297 = vmul.f32 %v4041, %v4233
        %v4298 = vmul.f32 %v4042, %v4234
        %v4299 = vmul.f32 %v4043, %v4235
        %v4300 = vmul.f32 %v4044, %v4236
        %v4301 = vmul.f32 %v4045, %v4237
        %v4302 = vmul.f32 %v4046, %v4238
        %v4303 = vmul.f32 %v4047, %v4239
        %v4304 = vpack.c.bf16 %v4244, %v4240
        %v4305 = vpack.c.bf16 %v4245, %v4241
        %v4306 = vpack.c.bf16 %v4246, %v4242
        %v4307 = vpack.c.bf16 %v4247, %v4243
        %v4308 = vpack.c.bf16 %v4252, %v4248
        %v4309 = vpack.c.bf16 %v4253, %v4249
        %v4310 = vpack.c.bf16 %v4254, %v4250
        %v4311 = vpack.c.bf16 %v4255, %v4251
        %v4312 = vpack.c.bf16 %v4260, %v4256
        %v4313 = vpack.c.bf16 %v4261, %v4257
        %v4314 = vpack.c.bf16 %v4262, %v4258
        %v4315 = vpack.c.bf16 %v4263, %v4259
        %v4316 = vpack.c.bf16 %v4268, %v4264
        %v4317 = vpack.c.bf16 %v4269, %v4265
        %v4318 = vpack.c.bf16 %v4270, %v4266
        %v4319 = vpack.c.bf16 %v4271, %v4267
        %v4320 = vpack.c.bf16 %v4276, %v4272
        %v4321 = vpack.c.bf16 %v4277, %v4273
        %v4322 = vpack.c.bf16 %v4278, %v4274
        %v4323 = vpack.c.bf16 %v4279, %v4275
        %v4324 = vpack.c.bf16 %v4284, %v4280
        %v4325 = vpack.c.bf16 %v4285, %v4281
        %v4326 = vpack.c.bf16 %v4286, %v4282
        %v4327 = vpack.c.bf16 %v4287, %v4283
        %v4328 = vpack.c.bf16 %v4292, %v4288
        %v4329 = vpack.c.bf16 %v4293, %v4289
        %v4330 = vpack.c.bf16 %v4294, %v4290
        %v4331 = vpack.c.bf16 %v4295, %v4291
        %v4332 = vpack.c.bf16 %v4300, %v4296
        %v4333 = vpack.c.bf16 %v4301, %v4297
        %v4334 = vpack.c.bf16 %v4302, %v4298
        %v4335 = vpack.c.bf16 %v4303, %v4299
        %v4336 = vld [vmem:[#allocation23] sm:$0xf]
        %v4337 = vld [vmem:[#allocation23 + $0x4] sm:$0xf]
        %v4338 = vld [vmem:[#allocation23 + $0x8] sm:$0xf]
        %v4339 = vld [vmem:[#allocation23 + $0xc] sm:$0xf]
        %v4340 = vld [vmem:[#allocation23 + $0x10] sm:$0xf]
        %v4341 = vld [vmem:[#allocation23 + $0x14] sm:$0xf]
        %v4342 = vld [vmem:[#allocation23 + $0x18] sm:$0xf]
        %v4343 = vld [vmem:[#allocation23 + $0x1c] sm:$0xf]
        %v4344 = vld [vmem:[#allocation23 + $0x20] sm:$0xf]
        %v4345 = vld [vmem:[#allocation23 + $0x24] sm:$0xf]
        %v4346 = vld [vmem:[#allocation23 + $0x28] sm:$0xf]
        %v4347 = vld [vmem:[#allocation23 + $0x2c] sm:$0xf]
        %v4348 = vld [vmem:[#allocation23 + $0x30] sm:$0xf]
        %v4349 = vld [vmem:[#allocation23 + $0x34] sm:$0xf]
        %v4350 = vld [vmem:[#allocation23 + $0x38] sm:$0xf]
        %v4351 = vld [vmem:[#allocation23 + $0x3c] sm:$0xf]
        %v4352 = vld [vmem:[#allocation23 + $0x40] sm:$0xf]
        %v4353 = vld [vmem:[#allocation23 + $0x44] sm:$0xf]
        %v4354 = vld [vmem:[#allocation23 + $0x48] sm:$0xf]
        %v4355 = vld [vmem:[#allocation23 + $0x4c] sm:$0xf]
        %v4356 = vld [vmem:[#allocation23 + $0x50] sm:$0xf]
        %v4357 = vld [vmem:[#allocation23 + $0x54] sm:$0xf]
        %v4358 = vld [vmem:[#allocation23 + $0x58] sm:$0xf]
        %v4359 = vld [vmem:[#allocation23 + $0x5c] sm:$0xf]
        %v4360 = vld [vmem:[#allocation23 + $0x60] sm:$0xf]
        %v4361 = vld [vmem:[#allocation23 + $0x64] sm:$0xf]
        %v4362 = vld [vmem:[#allocation23 + $0x68] sm:$0xf]
        %v4363 = vld [vmem:[#allocation23 + $0x6c] sm:$0xf]
        %v4364 = vld [vmem:[#allocation23 + $0x70] sm:$0xf]
        %v4365 = vld [vmem:[#allocation23 + $0x74] sm:$0xf]
        %v4366 = vld [vmem:[#allocation23 + $0x78] sm:$0xf]
        %v4367 = vld [vmem:[#allocation23 + $0x7c] sm:$0xf]
        %v4368 = vld [vmem:[#allocation23 + $0x80] sm:$0xf]
        %v4369 = vld [vmem:[#allocation23 + $0x84] sm:$0xf]
        %v4370 = vld [vmem:[#allocation23 + $0x88] sm:$0xf]
        %v4371 = vld [vmem:[#allocation23 + $0x8c] sm:$0xf]
        %v4372 = vld [vmem:[#allocation23 + $0x90] sm:$0xf]
        %v4373 = vld [vmem:[#allocation23 + $0x94] sm:$0xf]
        %v4374 = vld [vmem:[#allocation23 + $0x98] sm:$0xf]
        %v4375 = vld [vmem:[#allocation23 + $0x9c] sm:$0xf]
        %v4376 = vld [vmem:[#allocation23 + $0xa0] sm:$0xf]
        %v4377 = vld [vmem:[#allocation23 + $0xa4] sm:$0xf]
        %v4378 = vld [vmem:[#allocation23 + $0xa8] sm:$0xf]
        %v4379 = vld [vmem:[#allocation23 + $0xac] sm:$0xf]
        %v4380 = vld [vmem:[#allocation23 + $0xb0] sm:$0xf]
        %v4381 = vld [vmem:[#allocation23 + $0xb4] sm:$0xf]
        %v4382 = vld [vmem:[#allocation23 + $0xb8] sm:$0xf]
        %v4383 = vld [vmem:[#allocation23 + $0xbc] sm:$0xf]
        %v4384 = vld [vmem:[#allocation23 + $0xc0] sm:$0xf]
        %v4385 = vld [vmem:[#allocation23 + $0xc4] sm:$0xf]
        %v4386 = vld [vmem:[#allocation23 + $0xc8] sm:$0xf]
        %v4387 = vld [vmem:[#allocation23 + $0xcc] sm:$0xf]
        %v4388 = vld [vmem:[#allocation23 + $0xd0] sm:$0xf]
        %v4389 = vld [vmem:[#allocation23 + $0xd4] sm:$0xf]
        %v4390 = vld [vmem:[#allocation23 + $0xd8] sm:$0xf]
        %v4391 = vld [vmem:[#allocation23 + $0xdc] sm:$0xf]
        %v4392 = vld [vmem:[#allocation23 + $0xe0] sm:$0xf]
        %v4393 = vld [vmem:[#allocation23 + $0xe4] sm:$0xf]
        %v4394 = vld [vmem:[#allocation23 + $0xe8] sm:$0xf]
        %v4395 = vld [vmem:[#allocation23 + $0xec] sm:$0xf]
        %v4396 = vld [vmem:[#allocation23 + $0xf0] sm:$0xf]
        %v4397 = vld [vmem:[#allocation23 + $0xf4] sm:$0xf]
        %v4398 = vld [vmem:[#allocation23 + $0xf8] sm:$0xf]
        %v4399 = vld [vmem:[#allocation23 + $0xfc] sm:$0xf]
        %v4400 = vld [vmem:[#allocation25] sm:$0x1]
        %v4402 = vlaneseq
        %v4403 = vshrl.u32 %v4402, 7
        %v4404 = vsub.s32 0, %v4403
        %v4405 = vrot.slane %v4400, %v4404
        %v4471 = vunpack.c.l.b16 %v4336
        %v4472 = vunpack.c.l.b16 %v4337
        %v4473 = vunpack.c.l.b16 %v4338
        %v4474 = vunpack.c.l.b16 %v4339
        %v4475 = vunpack.c.l.b16 %v4340
        %v4476 = vunpack.c.l.b16 %v4341
        %v4477 = vunpack.c.l.b16 %v4342
        %v4478 = vunpack.c.l.b16 %v4343
        %v4479 = vunpack.c.l.b16 %v4344
        %v4480 = vunpack.c.l.b16 %v4345
        %v4481 = vunpack.c.l.b16 %v4346
        %v4482 = vunpack.c.l.b16 %v4347
        %v4483 = vunpack.c.l.b16 %v4348
        %v4484 = vunpack.c.l.b16 %v4349
        %v4485 = vunpack.c.l.b16 %v4350
        %v4486 = vunpack.c.l.b16 %v4351
        %v4487 = vunpack.c.l.b16 %v4352
        %v4488 = vunpack.c.l.b16 %v4353
        %v4489 = vunpack.c.l.b16 %v4354
        %v4490 = vunpack.c.l.b16 %v4355
        %v4491 = vunpack.c.l.b16 %v4356
        %v4492 = vunpack.c.l.b16 %v4357
        %v4493 = vunpack.c.l.b16 %v4358
        %v4494 = vunpack.c.l.b16 %v4359
        %v4495 = vunpack.c.l.b16 %v4360
        %v4496 = vunpack.c.l.b16 %v4361
        %v4497 = vunpack.c.l.b16 %v4362
        %v4498 = vunpack.c.l.b16 %v4363
        %v4499 = vunpack.c.l.b16 %v4364
        %v4500 = vunpack.c.l.b16 %v4365
        %v4501 = vunpack.c.l.b16 %v4366
        %v4502 = vunpack.c.l.b16 %v4367
        %v4503 = vunpack.c.l.b16 %v4368
        %v4504 = vunpack.c.l.b16 %v4369
        %v4505 = vunpack.c.l.b16 %v4370
        %v4506 = vunpack.c.l.b16 %v4371
        %v4507 = vunpack.c.l.b16 %v4372
        %v4508 = vunpack.c.l.b16 %v4373
        %v4509 = vunpack.c.l.b16 %v4374
        %v4510 = vunpack.c.l.b16 %v4375
        %v4511 = vunpack.c.l.b16 %v4376
        %v4512 = vunpack.c.l.b16 %v4377
        %v4513 = vunpack.c.l.b16 %v4378
        %v4514 = vunpack.c.l.b16 %v4379
        %v4515 = vunpack.c.l.b16 %v4380
        %v4516 = vunpack.c.l.b16 %v4381
        %v4517 = vunpack.c.l.b16 %v4382
        %v4518 = vunpack.c.l.b16 %v4383
        %v4519 = vunpack.c.l.b16 %v4384
        %v4520 = vunpack.c.l.b16 %v4385
        %v4521 = vunpack.c.l.b16 %v4386
        %v4522 = vunpack.c.l.b16 %v4387
        %v4523 = vunpack.c.l.b16 %v4388
        %v4524 = vunpack.c.l.b16 %v4389
        %v4525 = vunpack.c.l.b16 %v4390
        %v4526 = vunpack.c.l.b16 %v4391
        %v4527 = vunpack.c.l.b16 %v4392
        %v4528 = vunpack.c.l.b16 %v4393
        %v4529 = vunpack.c.l.b16 %v4394
        %v4530 = vunpack.c.l.b16 %v4395
        %v4531 = vunpack.c.l.b16 %v4396
        %v4532 = vunpack.c.l.b16 %v4397
        %v4533 = vunpack.c.l.b16 %v4398
        %v4534 = vunpack.c.l.b16 %v4399
        %v4535 = vpack.c.b16 %v4472, %v4471
        %v4536 = vpack.c.b16 %v4474, %v4473
        %v4537 = vpack.c.b16 %v4476, %v4475
        %v4538 = vpack.c.b16 %v4478, %v4477
        %v4539 = vpack.c.b16 %v4480, %v4479
        %v4540 = vpack.c.b16 %v4482, %v4481
        %v4541 = vpack.c.b16 %v4484, %v4483
        %v4542 = vpack.c.b16 %v4486, %v4485
        %v4543 = vpack.c.b16 %v4488, %v4487
        %v4544 = vpack.c.b16 %v4490, %v4489
        %v4545 = vpack.c.b16 %v4492, %v4491
        %v4546 = vpack.c.b16 %v4494, %v4493
        %v4547 = vpack.c.b16 %v4496, %v4495
        %v4548 = vpack.c.b16 %v4498, %v4497
        %v4549 = vpack.c.b16 %v4500, %v4499
        %v4550 = vpack.c.b16 %v4502, %v4501
        %v4551 = vpack.c.b16 %v4504, %v4503
        %v4552 = vpack.c.b16 %v4506, %v4505
        %v4553 = vpack.c.b16 %v4508, %v4507
        %v4554 = vpack.c.b16 %v4510, %v4509
        %v4555 = vpack.c.b16 %v4512, %v4511
        %v4556 = vpack.c.b16 %v4514, %v4513
        %v4557 = vpack.c.b16 %v4516, %v4515
        %v4558 = vpack.c.b16 %v4518, %v4517
        %v4559 = vpack.c.b16 %v4520, %v4519
        %v4560 = vpack.c.b16 %v4522, %v4521
        %v4561 = vpack.c.b16 %v4524, %v4523
        %v4562 = vpack.c.b16 %v4526, %v4525
        %v4563 = vpack.c.b16 %v4528, %v4527
        %v4564 = vpack.c.b16 %v4530, %v4529
        %v4565 = vpack.c.b16 %v4532, %v4531
        %v4566 = vpack.c.b16 %v4534, %v4533
        %4599 = vmatprep.subr.bf16.mxu0 0
        %4600 = vmatpush1.bf16.msra.mxu0 %v4535
        %4601 = vmatprep.subr.bf16.mxu0 0
        %4602 = vmatpush1.bf16.msra.mxu0 %v4536
        %4603 = vmatprep.subr.bf16.mxu0 0
        %4604 = vmatpush1.bf16.msra.mxu0 %v4537
        %4605 = vmatprep.subr.bf16.mxu0 0
        %4606 = vmatpush1.bf16.msra.mxu0 %v4538
        %4607 = vmatprep.subr.bf16.mxu0 0
        %4608 = vmatpush1.bf16.msra.mxu0 %v4539
        %4609 = vmatprep.subr.bf16.mxu0 0
        %4610 = vmatpush1.bf16.msra.mxu0 %v4540
        %4611 = vmatprep.subr.bf16.mxu0 0
        %4612 = vmatpush1.bf16.msra.mxu0 %v4541
        %4613 = vmatprep.subr.bf16.mxu0 0
        %4614 = vmatpush1.bf16.msra.mxu0 %v4542
        %4615 = vmatprep.subr.bf16.mxu0 0
        %4616 = vmatpush1.bf16.msra.mxu0 %v4543
        %4617 = vmatprep.subr.bf16.mxu0 0
        %4618 = vmatpush1.bf16.msra.mxu0 %v4544
        %4619 = vmatprep.subr.bf16.mxu0 0
        %4620 = vmatpush1.bf16.msra.mxu0 %v4545
        %4621 = vmatprep.subr.bf16.mxu0 0
        %4622 = vmatpush1.bf16.msra.mxu0 %v4546
        %4623 = vmatprep.subr.bf16.mxu0 0
        %4624 = vmatpush1.bf16.msra.mxu0 %v4547
        %4625 = vmatprep.subr.bf16.mxu0 0
        %4626 = vmatpush1.bf16.msra.mxu0 %v4548
        %4627 = vmatprep.subr.bf16.mxu0 0
        %4628 = vmatpush1.bf16.msra.mxu0 %v4549
        %4629 = vmatprep.subr.bf16.mxu0 0
        %4630 = vmatpush1.bf16.msra.mxu0 %v4550
        %4631 = vmatprep.mubr.bf16.mxu0 %v4305
        %4632 = vmatmul.mubr.bf16.gmra.mrb[0].mxu0 %v4304
        %v4633 = vpop.f32.mrb[0].mxu0
        %v4634 = vadd.f32 %v4405, %v4633
        %v4635 = vpop.f32.mrb[0].mxu0
        %v4636 = vpop.f32.mrb[0].mxu0
        %v4637 = vadd.f32 %v4405, %v4636
        %v4638 = vpop.f32.mrb[0].mxu0
        %4639 = vmatprep.mubr.bf16.mxu0 %v4309
        %4640 = vmatmul.mubr.bf16.gmra.mrb[0].mxu0 %v4308
        %v4641 = vpop.f32.mrb[0].mxu0
        %v4642 = vadd.f32 %v4405, %v4641
        %v4643 = vpop.f32.mrb[0].mxu0
        %v4644 = vpop.f32.mrb[0].mxu0
        %v4645 = vadd.f32 %v4405, %v4644
        %v4646 = vpop.f32.mrb[0].mxu0
        %4647 = vmatprep.mubr.bf16.mxu0 %v4313
        %4648 = vmatmul.mubr.bf16.gmra.mrb[0].mxu0 %v4312
        %v4649 = vpop.f32.mrb[0].mxu0
        %v4650 = vadd.f32 %v4405, %v4649
        %v4651 = vpop.f32.mrb[0].mxu0
        %v4652 = vpop.f32.mrb[0].mxu0
        %v4653 = vadd.f32 %v4405, %v4652
        %v4654 = vpop.f32.mrb[0].mxu0
        %4655 = vmatprep.mubr.bf16.mxu0 %v4317
        %4656 = vmatmul.mubr.bf16.gmra.mrb[0].mxu0 %v4316
        %v4657 = vpop.f32.mrb[0].mxu0
        %v4658 = vadd.f32 %v4405, %v4657
        %v4659 = vpop.f32.mrb[0].mxu0
        %v4660 = vpop.f32.mrb[0].mxu0
        %v4661 = vadd.f32 %v4405, %v4660
        %v4662 = vpop.f32.mrb[0].mxu0
        %4663 = vmatprep.mubr.bf16.mxu0 %v4321
        %4664 = vmatmul.mubr.bf16.gmra.mrb[0].mxu0 %v4320
        %v4665 = vpop.f32.mrb[0].mxu0
        %v4666 = vadd.f32 %v4405, %v4665
        %v4667 = vpop.f32.mrb[0].mxu0
        %v4668 = vpop.f32.mrb[0].mxu0
        %v4669 = vadd.f32 %v4405, %v4668
        %v4670 = vpop.f32.mrb[0].mxu0
        %4671 = vmatprep.mubr.bf16.mxu0 %v4325
        %4672 = vmatmul.mubr.bf16.gmra.mrb[0].mxu0 %v4324
        %v4673 = vpop.f32.mrb[0].mxu0
        %v4674 = vadd.f32 %v4405, %v4673
        %v4675 = vpop.f32.mrb[0].mxu0
        %v4676 = vpop.f32.mrb[0].mxu0
        %v4677 = vadd.f32 %v4405, %v4676
        %v4678 = vpop.f32.mrb[0].mxu0
        %4679 = vmatprep.mubr.bf16.mxu0 %v4329
        %4680 = vmatmul.mubr.bf16.gmra.mrb[0].mxu0 %v4328
        %v4681 = vpop.f32.mrb[0].mxu0
        %v4682 = vadd.f32 %v4405, %v4681
        %v4683 = vpop.f32.mrb[0].mxu0
        %v4684 = vpop.f32.mrb[0].mxu0
        %v4685 = vadd.f32 %v4405, %v4684
        %v4686 = vpop.f32.mrb[0].mxu0
        %4687 = vmatprep.mubr.bf16.mxu0 %v4333
        %4688 = vmatmul.mubr.bf16.gmra.mrb[0].mxu0 %v4332
        %v4689 = vpop.f32.mrb[0].mxu0
        %v4690 = vadd.f32 %v4405, %v4689
        %v4691 = vpop.f32.mrb[0].mxu0
        %v4692 = vpop.f32.mrb[0].mxu0
        %v4693 = vadd.f32 %v4405, %v4692
        %v4694 = vpop.f32.mrb[0].mxu0
        %4695 = vdwg.mxu0
        %4696 = vmatprep.subr.bf16.mxu0 0
        %4697 = vmatpush1.bf16.msra.mxu0 %v4551
        %4698 = vmatprep.subr.bf16.mxu0 0
        %4699 = vmatpush1.bf16.msra.mxu0 %v4552
        %4700 = vmatprep.subr.bf16.mxu0 0
        %4701 = vmatpush1.bf16.msra.mxu0 %v4553
        %4702 = vmatprep.subr.bf16.mxu0 0
        %4703 = vmatpush1.bf16.msra.mxu0 %v4554
        %4704 = vmatprep.subr.bf16.mxu0 0
        %4705 = vmatpush1.bf16.msra.mxu0 %v4555
        %4706 = vmatprep.subr.bf16.mxu0 0
        %4707 = vmatpush1.bf16.msra.mxu0 %v4556
        %4708 = vmatprep.subr.bf16.mxu0 0
        %4709 = vmatpush1.bf16.msra.mxu0 %v4557
        %4710 = vmatprep.subr.bf16.mxu0 0
        %4711 = vmatpush1.bf16.msra.mxu0 %v4558
        %4712 = vmatprep.subr.bf16.mxu0 0
        %4713 = vmatpush1.bf16.msra.mxu0 %v4559
        %4714 = vmatprep.subr.bf16.mxu0 0
        %4715 = vmatpush1.bf16.msra.mxu0 %v4560
        %4716 = vmatprep.subr.bf16.mxu0 0
        %4717 = vmatpush1.bf16.msra.mxu0 %v4561
        %4718 = vmatprep.subr.bf16.mxu0 0
        %4719 = vmatpush1.bf16.msra.mxu0 %v4562
        %4720 = vmatprep.subr.bf16.mxu0 0
        %4721 = vmatpush1.bf16.msra.mxu0 %v4563
        %4722 = vmatprep.subr.bf16.mxu0 0
        %4723 = vmatpush1.bf16.msra.mxu0 %v4564
        %4724 = vmatprep.subr.bf16.mxu0 0
        %4725 = vmatpush1.bf16.msra.mxu0 %v4565
        %4726 = vmatprep.subr.bf16.mxu0 0
        %4727 = vmatpush1.bf16.msra.mxu0 %v4566
        %4728 = vmatprep.mubr.bf16.mxu0 %v4307
        %4729 = vmatmul.mubr.bf16.gmra.mrb[0].mxu0 %v4306
        %v4730 = vpop.f32.mrb[0].mxu0
        %v4731 = vadd.f32 %v4634, %v4730
        %v4732 = vpop.f32.mrb[0].mxu0
        %v4733 = vpop.f32.mrb[0].mxu0
        %v4734 = vadd.f32 %v4637, %v4733
        %v4735 = vpop.f32.mrb[0].mxu0
        %4736 = vmatprep.mubr.bf16.mxu0 %v4311
        %4737 = vmatmul.mubr.bf16.gmra.mrb[0].mxu0 %v4310
        %v4738 = vpop.f32.mrb[0].mxu0
        %v4739 = vadd.f32 %v4642, %v4738
        %v4740 = vpop.f32.mrb[0].mxu0
        %v4741 = vpop.f32.mrb[0].mxu0
        %v4742 = vadd.f32 %v4645, %v4741
        %v4743 = vpop.f32.mrb[0].mxu0
        %4744 = vmatprep.mubr.bf16.mxu0 %v4315
        %4745 = vmatmul.mubr.bf16.gmra.mrb[0].mxu0 %v4314
        %v4746 = vpop.f32.mrb[0].mxu0
        %v4747 = vadd.f32 %v4650, %v4746
        %v4748 = vpop.f32.mrb[0].mxu0
        %v4749 = vpop.f32.mrb[0].mxu0
        %v4750 = vadd.f32 %v4653, %v4749
        %v4751 = vpop.f32.mrb[0].mxu0
        %4752 = vmatprep.mubr.bf16.mxu0 %v4319
        %4753 = vmatmul.mubr.bf16.gmra.mrb[0].mxu0 %v4318
        %v4754 = vpop.f32.mrb[0].mxu0
        %v4755 = vadd.f32 %v4658, %v4754
        %v4756 = vpop.f32.mrb[0].mxu0
        %v4757 = vpop.f32.mrb[0].mxu0
        %v4758 = vadd.f32 %v4661, %v4757
        %v4759 = vpop.f32.mrb[0].mxu0
        %4760 = vmatprep.mubr.bf16.mxu0 %v4323
        %4761 = vmatmul.mubr.bf16.gmra.mrb[0].mxu0 %v4322
        %v4762 = vpop.f32.mrb[0].mxu0
        %v4763 = vadd.f32 %v4666, %v4762
        %v4764 = vpop.f32.mrb[0].mxu0
        %v4765 = vpop.f32.mrb[0].mxu0
        %v4766 = vadd.f32 %v4669, %v4765
        %v4767 = vpop.f32.mrb[0].mxu0
        %4768 = vmatprep.mubr.bf16.mxu0 %v4327
        %4769 = vmatmul.mubr.bf16.gmra.mrb[0].mxu0 %v4326
        %v4770 = vpop.f32.mrb[0].mxu0
        %v4771 = vadd.f32 %v4674, %v4770
        %v4772 = vpop.f32.mrb[0].mxu0
        %v4773 = vpop.f32.mrb[0].mxu0
        %v4774 = vadd.f32 %v4677, %v4773
        %v4775 = vpop.f32.mrb[0].mxu0
        %4776 = vmatprep.mubr.bf16.mxu0 %v4331
        %4777 = vmatmul.mubr.bf16.gmra.mrb[0].mxu0 %v4330
        %v4778 = vpop.f32.mrb[0].mxu0
        %v4779 = vadd.f32 %v4682, %v4778
        %v4780 = vpop.f32.mrb[0].mxu0
        %v4781 = vpop.f32.mrb[0].mxu0
        %v4782 = vadd.f32 %v4685, %v4781
        %v4783 = vpop.f32.mrb[0].mxu0
        %4784 = vmatprep.mubr.bf16.mxu0 %v4335
        %4785 = vmatmul.mubr.bf16.gmra.mrb[0].mxu0 %v4334
        %v4786 = vpop.f32.mrb[0].mxu0
        %v4787 = vadd.f32 %v4690, %v4786
        %v4788 = vpop.f32.mrb[0].mxu0
        %v4789 = vpop.f32.mrb[0].mxu0
        %v4790 = vadd.f32 %v4693, %v4789
        %v4791 = vpop.f32.mrb[0].mxu0
        %4792 = vdwg.mxu0
        %v4793 = vadd.f32 %v3298, %v4731
        %v4794 = vadd.f32 %v3299, %v4734
        %v4795 = vadd.f32 %v3300, %v4739
        %v4796 = vadd.f32 %v3301, %v4742
        %v4797 = vadd.f32 %v3302, %v4747
        %v4798 = vadd.f32 %v3303, %v4750
        %v4799 = vadd.f32 %v3304, %v4755
        %v4800 = vadd.f32 %v3305, %v4758
        %v4801 = vadd.f32 %v3306, %v4763
        %v4802 = vadd.f32 %v3307, %v4766
        %v4803 = vadd.f32 %v3308, %v4771
        %v4804 = vadd.f32 %v3309, %v4774
        %v4805 = vadd.f32 %v3310, %v4779
        %v4806 = vadd.f32 %v3311, %v4782
        %v4807 = vadd.f32 %v3312, %v4787
        %v4808 = vadd.f32 %v3313, %v4790
        %4809 = vst [vmem:[%s855] sm:$0xff] %v4793
        %4810 = vst [vmem:[%s855 + $0x8] sm:$0xff] %v4794
        %4811 = vst [vmem:[%s855 + $0x10] sm:$0xff] %v4795
        %4812 = vst [vmem:[%s855 + $0x18] sm:$0xff] %v4796
        %4813 = vst [vmem:[%s855 + $0x20] sm:$0xff] %v4797
        %4814 = vst [vmem:[%s855 + $0x28] sm:$0xff] %v4798
        %4815 = vst [vmem:[%s855 + $0x30] sm:$0xff] %v4799
        %4816 = vst [vmem:[%s855 + $0x38] sm:$0xff] %v4800
        %4817 = vst [vmem:[%s855 + $0x40] sm:$0xff] %v4801
        %4818 = vst [vmem:[%s855 + $0x48] sm:$0xff] %v4802
        %4819 = vst [vmem:[%s855 + $0x50] sm:$0xff] %v4803
        %4820 = vst [vmem:[%s855 + $0x58] sm:$0xff] %v4804
        %4821 = vst [vmem:[%s855 + $0x60] sm:$0xff] %v4805
        %4822 = vst [vmem:[%s855 + $0x68] sm:$0xff] %v4806
        %4823 = vst [vmem:[%s855 + $0x70] sm:$0xff] %v4807
        %4824 = vst [vmem:[%s855 + $0x78] sm:$0xff] %v4808
        %s4825 = sand.u32 %s484, 1
        %s4826 = scalar_lea.sflag [#allocation4], %s4825
        %s4827 = sand.u32 %s484, 1
        %s4828 = smul.addr %s4827, 128
        %s4829 = scalar_lea.vmem [#allocation26], %s4828
        // Predicated region
        $region161: #{cross_attention_block.1} parent=99 // pred_check
          %p4830 = pneg %p494
        $region162: #{cross_attention_block.1} parent=99 // pred_check_branch
          %4832 = sbr.rel (%p4830) target = $region164
        $region163: #{cross_attention_block.1} parent=99 // pred_region
          %s4833 = smul.u32 8, %s46
          %s4835 = ssub.s32 2048, 2048
          %4836 = vsyncadd %s4826, %s4835
          %s4837 = smul.addr %s4833, 2
          %s4838 = smul.addr %s4837, 128
          %s4839 = scalar_lea.hbm %s20, %s4838
          %s4840 = sshll.u32 %s4829, 4
          %s4841 = int_to_ptr.vmem [resolvable:$true] %s4840
          %4846 = dma.vmem_to_hbm [thread:$0]  %s4841, 2048, %s4839, %s4826, 128, 128, 8
        $region164: #{cross_attention_block.1} parent=99 // pred_fallthru
          _
      $region100: #{cross_attention_block.1} parent=5 // pred_fallthru
        _
      %p4847 = scmp.le.s32.totalorder 2, %s41
      // Predicated region
      $region165: #{cross_attention_block.1} parent=5 // pred_check
        %p4848 = pneg %p4847
      $region166: #{cross_attention_block.1} parent=5 // pred_check_branch
        %4850 = sbr.rel (%p4848) target = $region168
      $region167: #{cross_attention_block.1} parent=5 // pred_region
        %s4851 = ssub.s32 %s41, 2
        // Predicated region
        $region169: #{cross_attention_block.1} parent=167 // pred_check
          %p4852 = pneg %p500
        $region170: #{cross_attention_block.1} parent=167 // pred_check_branch
          %4854 = sbr.rel (%p4852) target = $region172
        $region171: #{cross_attention_block.1} parent=167 // pred_region
          %s4855 = sand.u32 %s485, 1
          %s4856 = scalar_lea.sflag [#allocation4], %s4855
          %s4857 = sand.u32 %s485, 1
          %s4858 = smul.addr %s4857, 128
          %s4859 = scalar_lea.vmem [#allocation26], %s4858
          %4860 = dma.done %s4856, 2048
        $region172: #{cross_attention_block.1} parent=167 // pred_fallthru
          _
      $region168: #{cross_attention_block.1} parent=5 // pred_fallthru
        _
    $region6: #{cross_attention_block.1} parent=1 // loop_footer
      %s45 = sadd.s32 1, %s41
    $region7: #{cross_attention_block.1} parent=1 // loop_footer_branch
      %40 = sbr.rel target = $region3
    $region8: #{cross_attention_block.1} parent=1 // loop_exit
      _
    %4861 = vsyncpa [#allocation3], 1
    %s4862 = scalar_lea.sflag [#allocation3], 1
    %4863 = vsyncpa %s4862, 1
    %4864 = vsyncpa [#allocation6], 1
    %s4865 = scalar_lea.sflag [#allocation6], 1
    %4866 = vsyncpa %s4865, 1
    %4867 = vsyncpa [#allocation9], 1
    %4868 = vsyncpa [#allocation12], 1
    %4869 = vsyncpa [#allocation15], 1
    %4870 = vsyncpa [#allocation18], 1
    %4871 = vsyncpa [#allocation21], 1
    %4872 = vsyncpa [#allocation24], 1
    %4873 = vsyncpa [#allocation4], 1
    %s4874 = scalar_lea.sflag [#allocation4], 1
    %4875 = vsyncpa %s4874, 1

// kernel: cross_attention_block.1
$region0: #{cross_attention_block.1}
  #allocation0 [shape = 'u32[]', space=smem, size = 0x4, offset = 0x4, fixed_abs, tag = 'smem constant byte address 0x4 - core index']
  #allocation1 [shape = 'u32[144,128]{1,0:T(1,128)}', space=vmem, size = 0x12000, scoped, tag = 'internal scratch']
  %s0 = inlined_call_operand.hbm [shape: f32[16,16,128], index: 0, kind: input, shape index: {}]
  %s1 = inlined_call_operand.hbm [shape: f32[16,32,128], index: 1, kind: input, shape index: {}]
  %s2 = inlined_call_operand.hbm [shape: f32[1,128], index: 2, kind: input, shape index: {}]
  %s3 = inlined_call_operand.hbm [shape: f32[1,128], index: 3, kind: input, shape index: {}]
  %s4 = inlined_call_operand.hbm [shape: f32[1,128], index: 4, kind: input, shape index: {}]
  %s5 = inlined_call_operand.hbm [shape: f32[1,128], index: 5, kind: input, shape index: {}]
  %s6 = inlined_call_operand.vmem [shape: bf16[128,128], index: 6, kind: input, shape index: {}]
  %s7 = inlined_call_operand.vmem [shape: f32[1,128], index: 7, kind: input, shape index: {}]
  %s8 = inlined_call_operand.vmem [shape: bf16[128,128], index: 8, kind: input, shape index: {}]
  %s9 = inlined_call_operand.hbm [shape: f32[1,128], index: 9, kind: input, shape index: {}]
  %s10 = inlined_call_operand.vmem [shape: bf16[128,128], index: 10, kind: input, shape index: {}]
  %s11 = inlined_call_operand.hbm [shape: f32[1,128], index: 11, kind: input, shape index: {}]
  %s12 = inlined_call_operand.vmem [shape: bf16[128,128], index: 12, kind: input, shape index: {}]
  %s13 = inlined_call_operand.hbm [shape: f32[1,128], index: 13, kind: input, shape index: {}]
  %s14 = inlined_call_operand.hbm [shape: f32[1,128], index: 14, kind: input, shape index: {}]
  %s15 = inlined_call_operand.hbm [shape: f32[1,128], index: 15, kind: input, shape index: {}]
  %s16 = inlined_call_operand.hbm [shape: bf16[128,512], index: 16, kind: input, shape index: {}]
  %s17 = inlined_call_operand.hbm [shape: f32[1,512], index: 17, kind: input, shape index: {}]
  %s18 = inlined_call_operand.hbm [shape: bf16[512,128], index: 18, kind: input, shape index: {}]
  %s19 = inlined_call_operand.hbm [shape: f32[1,128], index: 19, kind: input, shape index: {}]
  %s20 = inlined_call_operand.hbm [shape: f32[16,16,128], index: 20, kind: output, shape index: {}]
  %s21 = sld [smem:[#allocation0]]
  $region173: #{cross_attention_block.1} parent=0
    _
  %s23 = ssub.s32 1, %s21
  %s24 = scalar_select 0, %s23, %s21
  $region1: #{cross_attention_block.1} parent=0
    #allocation2 [shape = 'u8[131072]{0}', space=vmem, size = 0x20000, scoped, tag = 'input window, operand 0']
    #allocation3 [shape = 's32[2]{0}', space=sflag, size = 0x8, scoped, tag = 'scoped memory for cross_attention_block.1']
    #allocation4 [shape = 's32[2]{0}', space=sflag, size = 0x8, scoped, tag = 'scoped memory for cross_attention_block.1']
    #allocation5 [shape = 'u8[262144]{0}', space=vmem, size = 0x40000, scoped, tag = 'input window, operand 1']
    #allocation6 [shape = 's32[2]{0}', space=sflag, size = 0x8, scoped, tag = 'scoped memory for cross_attention_block.1']
    #allocation7 [shape = 'u8[512]{0}', space=vmem, size = 0x400, scoped, tag = 'input window, operand 2, single buffered']
    #allocation8 [shape = 'u8[512]{0}', space=vmem, size = 0x400, scoped, tag = 'input window, operand 3, single buffered']
    #allocation9 [shape = 's32[1]{0}', space=sflag, size = 0x4, scoped, tag = 'scoped memory for cross_attention_block.1']
    #allocation10 [shape = 'u8[512]{0}', space=vmem, size = 0x400, scoped, tag = 'input window, operand 4, single buffered']
    #allocation11 [shape = 'u8[512]{0}', space=vmem, size = 0x400, scoped, tag = 'input window, operand 5, single buffered']
    #allocation12 [shape = 's32[1]{0}', space=sflag, size = 0x4, scoped, tag = 'scoped memory for cross_attention_block.1']
    #allocation13 [shape = 'u8[512]{0}', space=vmem, size = 0x400, scoped, tag = 'input window, operand 9, single buffered']
    #allocation14 [shape = 'u8[512]{0}', space=vmem, size = 0x400, scoped, tag = 'input window, operand 11, single buffered']
    #allocation15 [shape = 's32[1]{0}', space=sflag, size = 0x4, scoped, tag = 'scoped memory for cross_attention_block.1']
    #allocation16 [shape = 'u8[512]{0}', space=vmem, size = 0x400, scoped, tag = 'input window, operand 13, single buffered']
    #allocation17 [shape = 'u8[512]{0}', space=vmem, size = 0x400, scoped, tag = 'input window, operand 14, single buffered']
    #allocation18 [shape = 's32[1]{0}', space=sflag, size = 0x4, scoped, tag = 'scoped memory for cross_attention_block.1']
    #allocation19 [shape = 'u8[512]{0}', space=vmem, size = 0x400, scoped, tag = 'input window, operand 15, single buffered']
    #allocation20 [shape = 'u8[131072]{0}', space=vmem, size = 0x20000, scoped, tag = 'input window, operand 16, single buffered']
    #allocation21 [shape = 's32[1]{0}', space=sflag, size = 0x4, scoped, tag = 'scoped memory for cross_attention_block.1']
    #allocation22 [shape = 'u8[2048]{0}', space=vmem, size = 0x800, scoped, tag = 'input window, operand 17, single buffered']
    #allocation23 [shape = 'u8[131072]{0}', space=vmem, size = 0x20000, scoped, tag = 'input window, operand 18, single buffered']
    #allocation24 [shape = 's32[1]{0}', space=sflag, size = 0x4, scoped, tag = 'scoped memory for cross_attention_block.1']
    #allocation25 [shape = 'u8[512]{0}', space=vmem, size = 0x400, scoped, tag = 'input window, operand 19, single buffered']
    #allocation26 [shape = 'u8[131072]{0}', space=vmem, size = 0x20000, scoped, tag = 'output window, operand 0']
    %25 = vsyncpa [#allocation3], 0
    %s26 = scalar_lea.sflag [#allocation3], 1
    %27 = vsyncpa %s26, 0
    %28 = vsyncpa [#allocation6], 0
    %s29 = scalar_lea.sflag [#allocation6], 1
    %30 = vsyncpa %s29, 0
    %31 = vsyncpa [#allocation9], 0
    %32 = vsyncpa [#allocation12], 0
    %33 = vsyncpa [#allocation15], 0
    %34 = vsyncpa [#allocation18], 0
    %35 = vsyncpa [#allocation21], 0
    %36 = vsyncpa [#allocation24], 0
    %37 = vsyncpa [#allocation4], 0
    %s38 = scalar_lea.sflag [#allocation4], 1
    %39 = vsyncpa %s38, 0
    loop: start=0, step=1, limit=4
    $region2: #{cross_attention_block.1} parent=1 // loop_pre_header
      _
    $region3: #{cross_attention_block.1} parent=1 // loop_header
      %s41 = sphi 0, %s45
      %p42 = scmp.ge.s32.totalorder %s41, 4
      %s51 = sphi 0, %s53
      %s54 = sphi 0, %s51
      %s55 = sphi 0, %s54
      %s71 = sphi 0, %s55
      %s77 = sphi 0, %s79
      %s80 = sphi 0, %s77
      %s81 = sphi 0, %s80
      %s97 = sphi 0, %s81
      %s101 = sphi 0, %s101
      %s103 = sphi 0, %s101
      %s104 = sphi 0, %s103
      %s118 = sphi 0, %s104
      %s122 = sphi 0, %s122
      %s124 = sphi 0, %s122
      %s125 = sphi 0, %s124
      %s139 = sphi 0, %s125
      %s143 = sphi 0, %s143
      %s145 = sphi 0, %s143
      %s146 = sphi 0, %s145
      %s160 = sphi 0, %s146
      %s164 = sphi 0, %s164
      %s166 = sphi 0, %s164
      %s167 = sphi 0, %s166
      %s181 = sphi 0, %s167
      %s185 = sphi 0, %s185
      %s187 = sphi 0, %s185
      %s188 = sphi 0, %s187
      %s202 = sphi 0, %s188
      %s206 = sphi 0, %s206
      %s208 = sphi 0, %s206
      %s209 = sphi 0, %s208
      %s223 = sphi 0, %s209
      %s227 = sphi 0, %s227
      %s229 = sphi 0, %s227
      %s230 = sphi 0, %s229
      %s244 = sphi 0, %s230
      %s248 = sphi 0, %s248
      %s250 = sphi 0, %s248
      %s251 = sphi 0, %s250
      %s265 = sphi 0, %s251
      %s269 = sphi 0, %s269
      %s271 = sphi 0, %s269
      %s272 = sphi 0, %s271
      %s286 = sphi 0, %s272
      %s290 = sphi 0, %s290
      %s292 = sphi 0, %s290
      %s293 = sphi 0, %s292
      %s307 = sphi 0, %s293
      %s311 = sphi 0, %s311
      %s313 = sphi 0, %s311
      %s314 = sphi 0, %s313
      %s328 = sphi 0, %s314
      %s332 = sphi 0, %s332
      %s334 = sphi 0, %s332
      %s335 = sphi 0, %s334
      %s349 = sphi 0, %s335
      %s353 = sphi 0, %s353
      %s355 = sphi 0, %s353
      %s356 = sphi 0, %s355
      %s370 = sphi 0, %s356
      %s374 = sphi 0, %s374
      %s376 = sphi 0, %s374
      %s377 = sphi 0, %s376
      %s391 = sphi 0, %s377
      %s395 = sphi 0, %s395
      %s397 = sphi 0, %s395
      %s398 = sphi 0, %s397
      %s412 = sphi 0, %s398
      %s416 = sphi 0, %s416
      %s418 = sphi 0, %s416
      %s419 = sphi 0, %s418
      %s433 = sphi 0, %s419
      %s437 = sphi 0, %s437
      %s439 = sphi 0, %s437
      %s440 = sphi 0, %s439
      %s454 = sphi 0, %s440
      %s458 = sphi 0, %s458
      %s460 = sphi 0, %s458
      %s461 = sphi 0, %s460
      %s475 = sphi 0, %s461
      %s481 = sphi 0, %s483
      %s484 = sphi 0, %s481
      %s485 = sphi 0, %s484
      %s501 = sphi 0, %s485
    $region4: #{cross_attention_block.1} parent=1 // loop_header_branch
      %44 = sbr.rel (%p42) target = $region8
    $region5: #{cross_attention_block.1} parent=1 // loop_body
      %s46 = ssub.s32 %s41, 1
      %s47 = ssub.s32 %s41, 2
      %s48 = sadd.s32 %s41, 1
      %s49 = ssub.s32 %s41, %s48
      %p50 = scmp.eq.s32.totalorder %s49, 0
      %s52 = sadd.s32 %s51, 1
      %s53 = scalar_select %p50, %s51, %s52
      %p56 = pneg %p50
      %p57 = scmp.eq.s32.totalorder %s41, 1
      %p58 = por %p56, %p57
      %p59 = scmp.ne.s32.totalorder %s51, %s54
      %p60 = scmp.eq.s32.totalorder %s41, 0
      %p61 = por %p59, %p60
      %p62 = scmp.ne.s32.totalorder %s51, %s54
      %p63 = scmp.eq.s32.totalorder %s46, 1
      %p64 = por %p62, %p63
      %p65 = scmp.ne.s32.totalorder %s54, %s55
      %p66 = scmp.eq.s32.totalorder %s46, 0
      %p67 = por %p65, %p66
      %p68 = scmp.ne.s32.totalorder %s54, %s55
      %p69 = scmp.eq.s32.totalorder %s47, 1
      %p70 = por %p68, %p69
      %p72 = scmp.ne.s32.totalorder %s55, %s71
      %p73 = scmp.eq.s32.totalorder %s47, 0
      %p74 = por %p72, %p73
      %s75 = ssub.s32 %s41, %s48
      %p76 = scmp.eq.s32.totalorder %s75, 0
      %s78 = sadd.s32 %s77, 1
      %s79 = scalar_select %p76, %s77, %s78
      %p82 = pneg %p76
      %p83 = scmp.eq.s32.totalorder %s41, 1
      %p84 = por %p82, %p83
      %p85 = scmp.ne.s32.totalorder %s77, %s80
      %p86 = scmp.eq.s32.totalorder %s41, 0
      %p87 = por %p85, %p86
      %p88 = scmp.ne.s32.totalorder %s77, %s80
      %p89 = scmp.eq.s32.totalorder %s46, 1
      %p90 = por %p88, %p89
      %p91 = scmp.ne.s32.totalorder %s80, %s81
      %p92 = scmp.eq.s32.totalorder %s46, 0
      %p93 = por %p91, %p92
      %p94 = scmp.ne.s32.totalorder %s80, %s81
      %p95 = scmp.eq.s32.totalorder %s47, 1
      %p96 = por %p94, %p95
      %p98 = scmp.ne.s32.totalorder %s81, %s97
      %p99 = scmp.eq.s32.totalorder %s47, 0
      %p100 = por %p98, %p99
      %s102 = sadd.s32 %s101, 1
      %p105 = scmp.eq.s32.totalorder %s41, 1
      %p106 = scmp.ne.s32.totalorder %s101, %s103
      %p107 = scmp.eq.s32.totalorder %s41, 0
      %p108 = por %p106, %p107
      %p109 = scmp.ne.s32.totalorder %s101, %s103
      %p110 = scmp.eq.s32.totalorder %s46, 1
      %p111 = por %p109, %p110
      %p112 = scmp.ne.s32.totalorder %s103, %s104
      %p113 = scmp.eq.s32.totalorder %s46, 0
      %p114 = por %p112, %p113
      %p115 = scmp.ne.s32.totalorder %s103, %s104
      %p116 = scmp.eq.s32.totalorder %s47, 1
      %p117 = por %p115, %p116
      %p119 = scmp.ne.s32.totalorder %s104, %s118
      %p120 = scmp.eq.s32.totalorder %s47, 0
      %p121 = por %p119, %p120
      %s123 = sadd.s32 %s122, 1
      %p126 = scmp.eq.s32.totalorder %s41, 1
      %p127 = scmp.ne.s32.totalorder %s122, %s124
      %p128 = scmp.eq.s32.totalorder %s41, 0
      %p129 = por %p127, %p128
      %p130 = scmp.ne.s32.totalorder %s122, %s124
      %p131 = scmp.eq.s32.totalorder %s46, 1
      %p132 = por %p130, %p131
      %p133 = scmp.ne.s32.totalorder %s124, %s125
      %p134 = scmp.eq.s32.totalorder %s46, 0
      %p135 = por %p133, %p134
      %p136 = scmp.ne.s32.totalorder %s124, %s125
      %p137 = scmp.eq.s32.totalorder %s47, 1
      %p138 = por %p136, %p137
      %p140 = scmp.ne.s32.totalorder %s125, %s139
      %p141 = scmp.eq.s32.totalorder %s47, 0
      %p142 = por %p140, %p141
      %s144 = sadd.s32 %s143, 1
      %p147 = scmp.eq.s32.totalorder %s41, 1
      %p148 = scmp.ne.s32.totalorder %s143, %s145
      %p149 = scmp.eq.s32.totalorder %s41, 0
      %p150 = por %p148, %p149
      %p151 = scmp.ne.s32.totalorder %s143, %s145
      %p152 = scmp.eq.s32.totalorder %s46, 1
      %p153 = por %p151, %p152
      %p154 = scmp.ne.s32.totalorder %s145, %s146
      %p155 = scmp.eq.s32.totalorder %s46, 0
      %p156 = por %p154, %p155
      %p157 = scmp.ne.s32.totalorder %s145, %s146
      %p158 = scmp.eq.s32.totalorder %s47, 1
      %p159 = por %p157, %p158
      %p161 = scmp.ne.s32.totalorder %s146, %s160
      %p162 = scmp.eq.s32.totalorder %s47, 0
      %p163 = por %p161, %p162
      %s165 = sadd.s32 %s164, 1
      %p168 = scmp.eq.s32.totalorder %s41, 1
      %p169 = scmp.ne.s32.totalorder %s164, %s166
      %p170 = scmp.eq.s32.totalorder %s41, 0
      %p171 = por %p169, %p170
      %p172 = scmp.ne.s32.totalorder %s164, %s166
      %p173 = scmp.eq.s32.totalorder %s46, 1
      %p174 = por %p172, %p173
      %p175 = scmp.ne.s32.totalorder %s166, %s167
      %p176 = scmp.eq.s32.totalorder %s46, 0
      %p177 = por %p175, %p176
      %p178 = scmp.ne.s32.totalorder %s166, %s167
      %p179 = scmp.eq.s32.totalorder %s47, 1
      %p180 = por %p178, %p179
      %p182 = scmp.ne.s32.totalorder %s167, %s181
      %p183 = scmp.eq.s32.totalorder %s47, 0
      %p184 = por %p182, %p183
      %s186 = sadd.s32 %s185, 1
      %p189 = scmp.eq.s32.totalorder %s41, 1
      %p190 = scmp.ne.s32.totalorder %s185, %s187
      %p191 = scmp.eq.s32.totalorder %s41, 0
      %p192 = por %p190, %p191
      %p193 = scmp.ne.s32.totalorder %s185, %s187
      %p194 = scmp.eq.s32.totalorder %s46, 1
      %p195 = por %p193, %p194
      %p196 = scmp.ne.s32.totalorder %s187, %s188
      %p197 = scmp.eq.s32.totalorder %s46, 0
      %p198 = por %p196, %p197
      %p199 = scmp.ne.s32.totalorder %s187, %s188
      %p200 = scmp.eq.s32.totalorder %s47, 1
      %p201 = por %p199, %p200
      %p203 = scmp.ne.s32.totalorder %s188, %s202
      %p204 = scmp.eq.s32.totalorder %s47, 0
      %p205 = por %p203, %p204
      %s207 = sadd.s32 %s206, 1
      %p210 = scmp.eq.s32.totalorder %s41, 1
      %p211 = scmp.ne.s32.totalorder %s206, %s208
      %p212 = scmp.eq.s32.totalorder %s41, 0
      %p213 = por %p211, %p212
      %p214 = scmp.ne.s32.totalorder %s206, %s208
      %p215 = scmp.eq.s32.totalorder %s46, 1
      %p216 = por %p214, %p215
      %p217 = scmp.ne.s32.totalorder %s208, %s209
      %p218 = scmp.eq.s32.totalorder %s46, 0
      %p219 = por %p217, %p218
      %p220 = scmp.ne.s32.totalorder %s208, %s209
      %p221 = scmp.eq.s32.totalorder %s47, 1
      %p222 = por %p220, %p221
      %p224 = scmp.ne.s32.totalorder %s209, %s223
      %p225 = scmp.eq.s32.totalorder %s47, 0
      %p226 = por %p224, %p225
      %s228 = sadd.s32 %s227, 1
      %p231 = scmp.eq.s32.totalorder %s41, 1
      %p232 = scmp.ne.s32.totalorder %s227, %s229
      %p233 = scmp.eq.s32.totalorder %s41, 0
      %p234 = por %p232, %p233
      %p235 = scmp.ne.s32.totalorder %s227, %s229
      %p236 = scmp.eq.s32.totalorder %s46, 1
      %p237 = por %p235, %p236
      %p238 = scmp.ne.s32.totalorder %s229, %s230
      %p239 = scmp.eq.s32.totalorder %s46, 0
      %p240 = por %p238, %p239
      %p241 = scmp.ne.s32.totalorder %s229, %s230
      %p242 = scmp.eq.s32.totalorder %s47, 1
      %p243 = por %p241, %p242
      %p245 = scmp.ne.s32.totalorder %s230, %s244
      %p246 = scmp.eq.s32.totalorder %s47, 0
      %p247 = por %p245, %p246
      %s249 = sadd.s32 %s248, 1
      %p252 = scmp.eq.s32.totalorder %s41, 1
      %p253 = scmp.ne.s32.totalorder %s248, %s250
      %p254 = scmp.eq.s32.totalorder %s41, 0
      %p255 = por %p253, %p254
      %p256 = scmp.ne.s32.totalorder %s248, %s250
      %p257 = scmp.eq.s32.totalorder %s46, 1
      %p258 = por %p256, %p257
      %p259 = scmp.ne.s32.totalorder %s250, %s251
      %p260 = scmp.eq.s32.totalorder %s46, 0
      %p261 = por %p259, %p260
      %p262 = scmp.ne.s32.totalorder %s250, %s251
      %p263 = scmp.eq.s32.totalorder %s47, 1
      %p264 = por %p262, %p263
      %p266 = scmp.ne.s32.totalorder %s251, %s265
      %p267 = scmp.eq.s32.totalorder %s47, 0
      %p268 = por %p266, %p267
      %s270 = sadd.s32 %s269, 1
      %p273 = scmp.eq.s32.totalorder %s41, 1
      %p274 = scmp.ne.s32.totalorder %s269, %s271
      %p275 = scmp.eq.s32.totalorder %s41, 0
      %p276 = por %p274, %p275
      %p277 = scmp.ne.s32.totalorder %s269, %s271
      %p278 = scmp.eq.s32.totalorder %s46, 1
      %p279 = por %p277, %p278
      %p280 = scmp.ne.s32.totalorder %s271, %s272
      %p281 = scmp.eq.s32.totalorder %s46, 0
      %p282 = por %p280, %p281
      %p283 = scmp.ne.s32.totalorder %s271, %s272
      %p284 = scmp.eq.s32.totalorder %s47, 1
      %p285 = por %p283, %p284
      %p287 = scmp.ne.s32.totalorder %s272, %s286
      %p288 = scmp.eq.s32.totalorder %s47, 0
      %p289 = por %p287, %p288
      %s291 = sadd.s32 %s290, 1
      %p294 = scmp.eq.s32.totalorder %s41, 1
      %p295 = scmp.ne.s32.totalorder %s290, %s292
      %p296 = scmp.eq.s32.totalorder %s41, 0
      %p297 = por %p295, %p296
      %p298 = scmp.ne.s32.totalorder %s290, %s292
      %p299 = scmp.eq.s32.totalorder %s46, 1
      %p300 = por %p298, %p299
      %p301 = scmp.ne.s32.totalorder %s292, %s293
      %p302 = scmp.eq.s32.totalorder %s46, 0
      %p303 = por %p301, %p302
      %p304 = scmp.ne.s32.totalorder %s292, %s293
      %p305 = scmp.eq.s32.totalorder %s47, 1
      %p306 = por %p304, %p305
      %p308 = scmp.ne.s32.totalorder %s293, %s307
      %p309 = scmp.eq.s32.totalorder %s47, 0
      %p310 = por %p308, %p309
      %s312 = sadd.s32 %s311, 1
      %p315 = scmp.eq.s32.totalorder %s41, 1
      %p316 = scmp.ne.s32.totalorder %s311, %s313
      %p317 = scmp.eq.s32.totalorder %s41, 0
      %p318 = por %p316, %p317
      %p319 = scmp.ne.s32.totalorder %s311, %s313
      %p320 = scmp.eq.s32.totalorder %s46, 1
      %p321 = por %p319, %p320
      %p322 = scmp.ne.s32.totalorder %s313, %s314
      %p323 = scmp.eq.s32.totalorder %s46, 0
      %p324 = por %p322, %p323
      %p325 = scmp.ne.s32.totalorder %s313, %s314
      %p326 = scmp.eq.s32.totalorder %s47, 1
      %p327 = por %p325, %p326
      %p329 = scmp.ne.s32.totalorder %s314, %s328
      %p330 = scmp.eq.s32.totalorder %s47, 0
      %p331 = por %p329, %p330
      %s333 = sadd.s32 %s332, 1
      %p336 = scmp.eq.s32.totalorder %s41, 1
      %p337 = scmp.ne.s32.totalorder %s332, %s334
      %p338 = scmp.eq.s32.totalorder %s41, 0
      %p339 = por %p337, %p338
      %p340 = scmp.ne.s32.totalorder %s332, %s334
      %p341 = scmp.eq.s32.totalorder %s46, 1
      %p342 = por %p340, %p341
      %p343 = scmp.ne.s32.totalorder %s334, %s335
      %p344 = scmp.eq.s32.totalorder %s46, 0
      %p345 = por %p343, %p344
      %p346 = scmp.ne.s32.totalorder %s334, %s335
      %p347 = scmp.eq.s32.totalorder %s47, 1
      %p348 = por %p346, %p347
      %p350 = scmp.ne.s32.totalorder %s335, %s349
      %p351 = scmp.eq.s32.totalorder %s47, 0
      %p352 = por %p350, %p351
      %s354 = sadd.s32 %s353, 1
      %p357 = scmp.eq.s32.totalorder %s41, 1
      %p358 = scmp.ne.s32.totalorder %s353, %s355
      %p359 = scmp.eq.s32.totalorder %s41, 0
      %p360 = por %p358, %p359
      %p361 = scmp.ne.s32.totalorder %s353, %s355
      %p362 = scmp.eq.s32.totalorder %s46, 1
      %p363 = por %p361, %p362
      %p364 = scmp.ne.s32.totalorder %s355, %s356
      %p365 = scmp.eq.s32.totalorder %s46, 0
      %p366 = por %p364, %p365
      %p367 = scmp.ne.s32.totalorder %s355, %s356
      %p368 = scmp.eq.s32.totalorder %s47, 1
      %p369 = por %p367, %p368
      %p371 = scmp.ne.s32.totalorder %s356, %s370
      %p372 = scmp.eq.s32.totalorder %s47, 0
      %p373 = por %p371, %p372
      %s375 = sadd.s32 %s374, 1
      %p378 = scmp.eq.s32.totalorder %s41, 1
      %p379 = scmp.ne.s32.totalorder %s374, %s376
      %p380 = scmp.eq.s32.totalorder %s41, 0
      %p381 = por %p379, %p380
      %p382 = scmp.ne.s32.totalorder %s374, %s376
      %p383 = scmp.eq.s32.totalorder %s46, 1
      %p384 = por %p382, %p383
      %p385 = scmp.ne.s32.totalorder %s376, %s377
      %p386 = scmp.eq.s32.totalorder %s46, 0
      %p387 = por %p385, %p386
      %p388 = scmp.ne.s32.totalorder %s376, %s377
      %p389 = scmp.eq.s32.totalorder %s47, 1
      %p390 = por %p388, %p389
      %p392 = scmp.ne.s32.totalorder %s377, %s391
      %p393 = scmp.eq.s32.totalorder %s47, 0
      %p394 = por %p392, %p393
      %s396 = sadd.s32 %s395, 1
      %p399 = scmp.eq.s32.totalorder %s41, 1
      %p400 = scmp.ne.s32.totalorder %s395, %s397
      %p401 = scmp.eq.s32.totalorder %s41, 0
      %p402 = por %p400, %p401
      %p403 = scmp.ne.s32.totalorder %s395, %s397
      %p404 = scmp.eq.s32.totalorder %s46, 1
      %p405 = por %p403, %p404
      %p406 = scmp.ne.s32.totalorder %s397, %s398
      %p407 = scmp.eq.s32.totalorder %s46, 0
      %p408 = por %p406, %p407
      %p409 = scmp.ne.s32.totalorder %s397, %s398
      %p410 = scmp.eq.s32.totalorder %s47, 1
      %p411 = por %p409, %p410
      %p413 = scmp.ne.s32.totalorder %s398, %s412
      %p414 = scmp.eq.s32.totalorder %s47, 0
      %p415 = por %p413, %p414
      %s417 = sadd.s32 %s416, 1
      %p420 = scmp.eq.s32.totalorder %s41, 1
      %p421 = scmp.ne.s32.totalorder %s416, %s418
      %p422 = scmp.eq.s32.totalorder %s41, 0
      %p423 = por %p421, %p422
      %p424 = scmp.ne.s32.totalorder %s416, %s418
      %p425 = scmp.eq.s32.totalorder %s46, 1
      %p426 = por %p424, %p425
      %p427 = scmp.ne.s32.totalorder %s418, %s419
      %p428 = scmp.eq.s32.totalorder %s46, 0
      %p429 = por %p427, %p428
      %p430 = scmp.ne.s32.totalorder %s418, %s419
      %p431 = scmp.eq.s32.totalorder %s47, 1
      %p432 = por %p430, %p431
      %p434 = scmp.ne.s32.totalorder %s419, %s433
      %p435 = scmp.eq.s32.totalorder %s47, 0
      %p436 = por %p434, %p435
      %s438 = sadd.s32 %s437, 1
      %p441 = scmp.eq.s32.totalorder %s41, 1
      %p442 = scmp.ne.s32.totalorder %s437, %s439
      %p443 = scmp.eq.s32.totalorder %s41, 0
      %p444 = por %p442, %p443
      %p445 = scmp.ne.s32.totalorder %s437, %s439
      %p446 = scmp.eq.s32.totalorder %s46, 1
      %p447 = por %p445, %p446
      %p448 = scmp.ne.s32.totalorder %s439, %s440
      %p449 = scmp.eq.s32.totalorder %s46, 0
      %p450 = por %p448, %p449
      %p451 = scmp.ne.s32.totalorder %s439, %s440
      %p452 = scmp.eq.s32.totalorder %s47, 1
      %p453 = por %p451, %p452
      %p455 = scmp.ne.s32.totalorder %s440, %s454
      %p456 = scmp.eq.s32.totalorder %s47, 0
      %p457 = por %p455, %p456
      %s459 = sadd.s32 %s458, 1
      %p462 = scmp.eq.s32.totalorder %s41, 1
      %p463 = scmp.ne.s32.totalorder %s458, %s460
      %p464 = scmp.eq.s32.totalorder %s41, 0
      %p465 = por %p463, %p464
      %p466 = scmp.ne.s32.totalorder %s458, %s460
      %p467 = scmp.eq.s32.totalorder %s46, 1
      %p468 = por %p466, %p467
      %p469 = scmp.ne.s32.totalorder %s460, %s461
      %p470 = scmp.eq.s32.totalorder %s46, 0
      %p471 = por %p469, %p470
      %p472 = scmp.ne.s32.totalorder %s460, %s461
      %p473 = scmp.eq.s32.totalorder %s47, 1
      %p474 = por %p472, %p473
      %p476 = scmp.ne.s32.totalorder %s461, %s475
      %p477 = scmp.eq.s32.totalorder %s47, 0
      %p478 = por %p476, %p477
      %s479 = ssub.s32 %s41, %s48
      %p480 = scmp.eq.s32.totalorder %s479, 0
      %s482 = sadd.s32 %s481, 1
      %s483 = scalar_select %p480, %s481, %s482
      %p486 = pneg %p480
      %p487 = scmp.eq.s32.totalorder %s41, 1
      %p488 = por %p486, %p487
      %p489 = scmp.ne.s32.totalorder %s481, %s484
      %p490 = scmp.eq.s32.totalorder %s41, 0
      %p491 = por %p489, %p490
      %p492 = scmp.ne.s32.totalorder %s481, %s484
      %p493 = scmp.eq.s32.totalorder %s46, 1
      %p494 = por %p492, %p493
      %p495 = scmp.ne.s32.totalorder %s484, %s485
      %p496 = scmp.eq.s32.totalorder %s46, 0
      %p497 = por %p495, %p496
      %p498 = scmp.ne.s32.totalorder %s484, %s485
      %p499 = scmp.eq.s32.totalorder %s47, 1
      %p500 = por %p498, %p499
      %p502 = scmp.ne.s32.totalorder %s485, %s501
      %p503 = scmp.eq.s32.totalorder %s47, 0
      %p504 = por %p502, %p503
      %p505 = scmp.le.s32.totalorder 1, %s41
      %p506 = scmp.lt.s32.totalorder %s41, 3
      %p507 = pnand %p505, %p506
      %p508 = pneg %p507
      // Predicated region
      $region9: #{cross_attention_block.1} parent=5 // pred_check
        _
      $region10: #{cross_attention_block.1} parent=5 // pred_check_branch
        %510 = sbr.rel (%p507) target = $region12
      $region11: #{cross_attention_block.1} parent=5 // pred_region
        %s511 = ssub.s32 %s41, 1
        // Predicated region
        $region13: #{cross_attention_block.1} parent=11 // pred_check
          %p512 = pneg %p114
        $region14: #{cross_attention_block.1} parent=11 // pred_check_branch
          %514 = sbr.rel (%p512) target = $region16
        $region15: #{cross_attention_block.1} parent=11 // pred_region
          %s516 = ssub.s32 16, 16
          %517 = vsyncadd [#allocation6], %s516
          %s519 = sshll.u32 [#allocation7], 4
          %s520 = int_to_ptr.vmem [resolvable:$true] %s519
          %522 = dma.hbm_to_vmem [thread:$0]  %s2, 16, %s520, [#allocation6]
        $region16: #{cross_attention_block.1} parent=11 // pred_fallthru
          _
        // Predicated region
        $region17: #{cross_attention_block.1} parent=11 // pred_check
          %p523 = pneg %p135
        $region18: #{cross_attention_block.1} parent=11 // pred_check_branch
          %525 = sbr.rel (%p523) target = $region20
        $region19: #{cross_attention_block.1} parent=11 // pred_region
          %s527 = ssub.s32 16, 16
          %528 = vsyncadd [#allocation9], %s527
          %s530 = sshll.u32 [#allocation8], 4
          %s531 = int_to_ptr.vmem [resolvable:$true] %s530
          %533 = dma.hbm_to_vmem [thread:$0]  %s3, 16, %s531, [#allocation9]
        $region20: #{cross_attention_block.1} parent=11 // pred_fallthru
          _
        // Predicated region
        $region21: #{cross_attention_block.1} parent=11 // pred_check
          %p534 = pneg %p156
        $region22: #{cross_attention_block.1} parent=11 // pred_check_branch
          %536 = sbr.rel (%p534) target = $region24
        $region23: #{cross_attention_block.1} parent=11 // pred_region
          %s538 = ssub.s32 16, 16
          %539 = vsyncadd [#allocation9], %s538
          %s541 = sshll.u32 [#allocation10], 4
          %s542 = int_to_ptr.vmem [resolvable:$true] %s541
          %544 = dma.hbm_to_vmem [thread:$0]  %s4, 16, %s542, [#allocation9]
        $region24: #{cross_attention_block.1} parent=11 // pred_fallthru
          _
        // Predicated region
        $region25: #{cross_attention_block.1} parent=11 // pred_check
          %p545 = pneg %p177
        $region26: #{cross_attention_block.1} parent=11 // pred_check_branch
          %547 = sbr.rel (%p545) target = $region28
        $region27: #{cross_attention_block.1} parent=11 // pred_region
          %s549 = ssub.s32 16, 16
          %550 = vsyncadd [#allocation12], %s549
          %s552 = sshll.u32 [#allocation11], 4
          %s553 = int_to_ptr.vmem [resolvable:$true] %s552
          %555 = dma.hbm_to_vmem [thread:$0]  %s5, 16, %s553, [#allocation12]
        $region28: #{cross_attention_block.1} parent=11 // pred_fallthru
          _
        // Predicated region
        $region29: #{cross_attention_block.1} parent=11 // pred_check
          %p556 = pneg %p198
        $region30: #{cross_attention_block.1} parent=11 // pred_check_branch
          %558 = sbr.rel (%p556) target = $region32
        $region31: #{cross_attention_block.1} parent=11 // pred_region
          _
        $region32: #{cross_attention_block.1} parent=11 // pred_fallthru
          _
        // Predicated region
        $region33: #{cross_attention_block.1} parent=11 // pred_check
          %p559 = pneg %p219
        $region34: #{cross_attention_block.1} parent=11 // pred_check_branch
          %561 = sbr.rel (%p559) target = $region36
        $region35: #{cross_attention_block.1} parent=11 // pred_region
          _
        $region36: #{cross_attention_block.1} parent=11 // pred_fallthru
          _
        // Predicated region
        $region37: #{cross_attention_block.1} parent=11 // pred_check
          %p562 = pneg %p240
        $region38: #{cross_attention_block.1} parent=11 // pred_check_branch
          %564 = sbr.rel (%p562) target = $region40
        $region39: #{cross_attention_block.1} parent=11 // pred_region
          _
        $region40: #{cross_attention_block.1} parent=11 // pred_fallthru
          _
        // Predicated region
        $region41: #{cross_attention_block.1} parent=11 // pred_check
          %p565 = pneg %p261
        $region42: #{cross_attention_block.1} parent=11 // pred_check_branch
          %567 = sbr.rel (%p565) target = $region44
        $region43: #{cross_attention_block.1} parent=11 // pred_region
          %s569 = ssub.s32 16, 16
          %570 = vsyncadd [#allocation12], %s569
          %s572 = sshll.u32 [#allocation13], 4
          %s573 = int_to_ptr.vmem [resolvable:$true] %s572
          %575 = dma.hbm_to_vmem [thread:$0]  %s9, 16, %s573, [#allocation12]
        $region44: #{cross_attention_block.1} parent=11 // pred_fallthru
          _
        // Predicated region
        $region45: #{cross_attention_block.1} parent=11 // pred_check
          %p576 = pneg %p282
        $region46: #{cross_attention_block.1} parent=11 // pred_check_branch
          %578 = sbr.rel (%p576) target = $region48
        $region47: #{cross_attention_block.1} parent=11 // pred_region
          _
        $region48: #{cross_attention_block.1} parent=11 // pred_fallthru
          _
        // Predicated region
        $region49: #{cross_attention_block.1} parent=11 // pred_check
          %p579 = pneg %p303
        $region50: #{cross_attention_block.1} parent=11 // pred_check_branch
          %581 = sbr.rel (%p579) target = $region52
        $region51: #{cross_attention_block.1} parent=11 // pred_region
          %s583 = ssub.s32 16, 16
          %584 = vsyncadd [#allocation15], %s583
          %s586 = sshll.u32 [#allocation14], 4
          %s587 = int_to_ptr.vmem [resolvable:$true] %s586
          %589 = dma.hbm_to_vmem [thread:$0]  %s11, 16, %s587, [#allocation15]
        $region52: #{cross_attention_block.1} parent=11 // pred_fallthru
          _
        // Predicated region
        $region53: #{cross_attention_block.1} parent=11 // pred_check
          %p590 = pneg %p324
        $region54: #{cross_attention_block.1} parent=11 // pred_check_branch
          %592 = sbr.rel (%p590) target = $region56
        $region55: #{cross_attention_block.1} parent=11 // pred_region
          _
        $region56: #{cross_attention_block.1} parent=11 // pred_fallthru
          _
        // Predicated region
        $region57: #{cross_attention_block.1} parent=11 // pred_check
          %p593 = pneg %p345
        $region58: #{cross_attention_block.1} parent=11 // pred_check_branch
          %595 = sbr.rel (%p593) target = $region60
        $region59: #{cross_attention_block.1} parent=11 // pred_region
          %s597 = ssub.s32 16, 16
          %598 = vsyncadd [#allocation15], %s597
          %s600 = sshll.u32 [#allocation16], 4
          %s601 = int_to_ptr.vmem [resolvable:$true] %s600
          %603 = dma.hbm_to_vmem [thread:$0]  %s13, 16, %s601, [#allocation15]
        $region60: #{cross_attention_block.1} parent=11 // pred_fallthru
          _
        // Predicated region
        $region61: #{cross_attention_block.1} parent=11 // pred_check
          %p604 = pneg %p366
        $region62: #{cross_attention_block.1} parent=11 // pred_check_branch
          %606 = sbr.rel (%p604) target = $region64
        $region63: #{cross_attention_block.1} parent=11 // pred_region
          %s608 = ssub.s32 16, 16
          %609 = vsyncadd [#allocation18], %s608
          %s611 = sshll.u32 [#allocation17], 4
          %s612 = int_to_ptr.vmem [resolvable:$true] %s611
          %614 = dma.hbm_to_vmem [thread:$0]  %s14, 16, %s612, [#allocation18]
        $region64: #{cross_attention_block.1} parent=11 // pred_fallthru
          _
        // Predicated region
        $region65: #{cross_attention_block.1} parent=11 // pred_check
          %p615 = pneg %p387
        $region66: #{cross_attention_block.1} parent=11 // pred_check_branch
          %617 = sbr.rel (%p615) target = $region68
        $region67: #{cross_attention_block.1} parent=11 // pred_region
          %s619 = ssub.s32 16, 16
          %620 = vsyncadd [#allocation18], %s619
          %s622 = sshll.u32 [#allocation19], 4
          %s623 = int_to_ptr.vmem [resolvable:$true] %s622
          %625 = dma.hbm_to_vmem [thread:$0]  %s15, 16, %s623, [#allocation18]
        $region68: #{cross_attention_block.1} parent=11 // pred_fallthru
          _
        // Predicated region
        $region69: #{cross_attention_block.1} parent=11 // pred_check
          %p626 = pneg %p408
        $region70: #{cross_attention_block.1} parent=11 // pred_check_branch
          %628 = sbr.rel (%p626) target = $region72
        $region71: #{cross_attention_block.1} parent=11 // pred_region
          %s630 = ssub.s32 4096, 4096
          %631 = vsyncadd [#allocation21], %s630
          %s632 = sshll.u32 [#allocation20], 4
          %s633 = int_to_ptr.vmem [resolvable:$true] %s632
          %638 = dma.hbm_to_vmem [thread:$0]  %s16, 4096, %s633, [#allocation21], 256, 256, 16
        $region72: #{cross_attention_block.1} parent=11 // pred_fallthru
          _
        // Predicated region
        $region73: #{cross_attention_block.1} parent=11 // pred_check
          %p639 = pneg %p429
        $region74: #{cross_attention_block.1} parent=11 // pred_check_branch
          %641 = sbr.rel (%p639) target = $region76
        $region75: #{cross_attention_block.1} parent=11 // pred_region
          %s643 = ssub.s32 64, 64
          %644 = vsyncadd [#allocation21], %s643
          %s646 = sshll.u32 [#allocation22], 4
          %s647 = int_to_ptr.vmem [resolvable:$true] %s646
          %649 = dma.hbm_to_vmem [thread:$0]  %s17, 64, %s647, [#allocation21]
        $region76: #{cross_attention_block.1} parent=11 // pred_fallthru
          _
        // Predicated region
        $region77: #{cross_attention_block.1} parent=11 // pred_check
          %p650 = pneg %p450
        $region78: #{cross_attention_block.1} parent=11 // pred_check_branch
          %652 = sbr.rel (%p650) target = $region80
        $region79: #{cross_attention_block.1} parent=11 // pred_region
          %s654 = ssub.s32 4096, 4096
          %655 = vsyncadd [#allocation24], %s654
          %s656 = sshll.u32 [#allocation23], 4
          %s657 = int_to_ptr.vmem [resolvable:$true] %s656
          %662 = dma.hbm_to_vmem [thread:$0]  %s18, 4096, %s657, [#allocation24], 64, 64, 4
        $region80: #{cross_attention_block.1} parent=11 // pred_fallthru
          _
        // Predicated region
        $region81: #{cross_attention_block.1} parent=11 // pred_check
          %p663 = pneg %p471
        $region82: #{cross_attention_block.1} parent=11 // pred_check_branch
          %665 = sbr.rel (%p663) target = $region84
        $region83: #{cross_attention_block.1} parent=11 // pred_region
          %s667 = ssub.s32 16, 16
          %668 = vsyncadd [#allocation24], %s667
          %s670 = sshll.u32 [#allocation25], 4
          %s671 = int_to_ptr.vmem [resolvable:$true] %s670
          %673 = dma.hbm_to_vmem [thread:$0]  %s19, 16, %s671, [#allocation24]
        $region84: #{cross_attention_block.1} parent=11 // pred_fallthru
          _
      $region12: #{cross_attention_block.1} parent=5 // pred_fallthru
        _
      %p674 = scmp.lt.s32.totalorder %s41, 2
      // Predicated region
      $region85: #{cross_attention_block.1} parent=5 // pred_check
        %p675 = pneg %p674
      $region86: #{cross_attention_block.1} parent=5 // pred_check_branch
        %677 = sbr.rel (%p675) target = $region88
      $region87: #{cross_attention_block.1} parent=5 // pred_region
        // Predicated region
        $region89: #{cross_attention_block.1} parent=87 // pred_check
          %p678 = pneg %p61
        $region90: #{cross_attention_block.1} parent=87 // pred_check_branch
          %680 = sbr.rel (%p678) target = $region92
        $region91: #{cross_attention_block.1} parent=87 // pred_region
          %s681 = sand.u32 %s51, 1
          %s682 = scalar_lea.sflag [#allocation3], %s681
          %s683 = sand.u32 %s51, 1
          %s684 = smul.addr %s683, 128
          %s685 = scalar_lea.vmem [#allocation2], %s684
          %s686 = smul.u32 8, %s41
          %s688 = ssub.s32 2048, 2048
          %689 = vsyncadd %s682, %s688
          %s690 = smul.addr %s686, 2
          %s691 = smul.addr %s690, 128
          %s692 = scalar_lea.hbm %s0, %s691
          %s693 = sshll.u32 %s685, 4
          %s694 = int_to_ptr.vmem [resolvable:$true] %s693
          %699 = dma.hbm_to_vmem [thread:$0]  %s692, 2048, %s694, %s682, 128, 128, 8
        $region92: #{cross_attention_block.1} parent=87 // pred_fallthru
          _
        // Predicated region
        $region93: #{cross_attention_block.1} parent=87 // pred_check
          %p700 = pneg %p87
        $region94: #{cross_attention_block.1} parent=87 // pred_check_branch
          %702 = sbr.rel (%p700) target = $region96
        $region95: #{cross_attention_block.1} parent=87 // pred_region
          %s703 = sand.u32 %s41, 1
          %s704 = scalar_lea.sflag [#allocation6], %s703
          %s705 = sand.u32 %s77, 1
          %s706 = smul.addr %s705, 256
          %s707 = scalar_lea.vmem [#allocation5], %s706
          %s708 = smul.u32 8, %s41
          %s710 = ssub.s32 4096, 4096
          %711 = vsyncadd %s704, %s710
          %s712 = smul.addr %s708, 4
          %s713 = smul.addr %s712, 128
          %s714 = scalar_lea.hbm %s1, %s713
          %s715 = sshll.u32 %s707, 4
          %s716 = int_to_ptr.vmem [resolvable:$true] %s715
          %721 = dma.hbm_to_vmem [thread:$0]  %s714, 4096, %s716, %s704, 128, 128, 8
        $region96: #{cross_attention_block.1} parent=87 // pred_fallthru
          _
      $region88: #{cross_attention_block.1} parent=5 // pred_fallthru
        _
      %p722 = scmp.le.s32.totalorder 1, %s41
      %p723 = scmp.lt.s32.totalorder %s41, 3
      %p724 = pnand %p722, %p723
      %p725 = pneg %p724
      // Predicated region
      $region97: #{cross_attention_block.1} parent=5 // pred_check
        _
      $region98: #{cross_attention_block.1} parent=5 // pred_check_branch
        %727 = sbr.rel (%p724) target = $region100
      $region99: #{cross_attention_block.1} parent=5 // pred_region
        %s728 = ssub.s32 %s41, 1
        %s729 = sand.u32 %s54, 1
        %s730 = scalar_lea.sflag [#allocation3], %s729
        %s731 = sand.u32 %s54, 1
        %s732 = smul.addr %s731, 128
        %s733 = scalar_lea.vmem [#allocation2], %s732
        // Predicated region
        $region101: #{cross_attention_block.1} parent=99 // pred_check
          %p734 = pneg %p67
        $region102: #{cross_attention_block.1} parent=99 // pred_check_branch
          %736 = sbr.rel (%p734) target = $region104
        $region103: #{cross_attention_block.1} parent=99 // pred_region
          %737 = dma.done %s730, 2048
        $region104: #{cross_attention_block.1} parent=99 // pred_fallthru
          _
        %s738 = sand.u32 %s46, 1
        %s739 = scalar_lea.sflag [#allocation6], %s738
        %s740 = sand.u32 %s80, 1
        %s741 = smul.addr %s740, 256
        %s742 = scalar_lea.vmem [#allocation5], %s741
        // Predicated region
        $region105: #{cross_attention_block.1} parent=99 // pred_check
          %p743 = pneg %p93
        $region106: #{cross_attention_block.1} parent=99 // pred_check_branch
          %745 = sbr.rel (%p743) target = $region108
        $region107: #{cross_attention_block.1} parent=99 // pred_region
          %746 = dma.done %s739, 4096
        $region108: #{cross_attention_block.1} parent=99 // pred_fallthru
          _
        // Predicated region
        $region109: #{cross_attention_block.1} parent=99 // pred_check
          %p747 = pneg %p114
        $region110: #{cross_attention_block.1} parent=99 // pred_check_branch
          %749 = sbr.rel (%p747) target = $region112
        $region111: #{cross_attention_block.1} parent=99 // pred_region
          %750 = dma.done [#allocation6], 16
        $region112: #{cross_attention_block.1} parent=99 // pred_fallthru
          _
        // Predicated region
        $region113: #{cross_attention_block.1} parent=99 // pred_check
          %p751 = pneg %p135
        $region114: #{cross_attention_block.1} parent=99 // pred_check_branch
          %753 = sbr.rel (%p751) target = $region116
        $region115: #{cross_attention_block.1} parent=99 // pred_region
          %754 = dma.done [#allocation9], 16
        $region116: #{cross_attention_block.1} parent=99 // pred_fallthru
          _
        // Predicated region
        $region117: #{cross_attention_block.1} parent=99 // pred_check
          %p755 = pneg %p156
        $region118: #{cross_attention_block.1} parent=99 // pred_check_branch
          %757 = sbr.rel (%p755) target = $region120
        $region119: #{cross_attention_block.1} parent=99 // pred_region
          %758 = dma.done [#allocation9], 16
        $region120: #{cross_attention_block.1} parent=99 // pred_fallthru
          _
        // Predicated region
        $region121: #{cross_attention_block.1} parent=99 // pred_check
          %p759 = pneg %p177
        $region122: #{cross_attention_block.1} parent=99 // pred_check_branch
          %761 = sbr.rel (%p759) target = $region124
        $region123: #{cross_attention_block.1} parent=99 // pred_region
          %762 = dma.done [#allocation12], 16
        $region124: #{cross_attention_block.1} parent=99 // pred_fallthru
          _
        // Predicated region
        $region125: #{cross_attention_block.1} parent=99 // pred_check
          %p763 = pneg %p261
        $region126: #{cross_attention_block.1} parent=99 // pred_check_branch
          %765 = sbr.rel (%p763) target = $region128
        $region127: #{cross_attention_block.1} parent=99 // pred_region
          %766 = dma.done [#allocation12], 16
        $region128: #{cross_attention_block.1} parent=99 // pred_fallthru
          _
        // Predicated region
        $region129: #{cross_attention_block.1} parent=99 // pred_check
          %p767 = pneg %p303
        $region130: #{cross_attention_block.1} parent=99 // pred_check_branch
          %769 = sbr.rel (%p767) target = $region132
        $region131: #{cross_attention_block.1} parent=99 // pred_region
          %770 = dma.done [#allocation15], 16
        $region132: #{cross_attention_block.1} parent=99 // pred_fallthru
          _
        // Predicated region
        $region133: #{cross_attention_block.1} parent=99 // pred_check
          %p771 = pneg %p345
        $region134: #{cross_attention_block.1} parent=99 // pred_check_branch
          %773 = sbr.rel (%p771) target = $region136
        $region135: #{cross_attention_block.1} parent=99 // pred_region
          %774 = dma.done [#allocation15], 16
        $region136: #{cross_attention_block.1} parent=99 // pred_fallthru
          _
        // Predicated region
        $region137: #{cross_attention_block.1} parent=99 // pred_check
          %p775 = pneg %p366
        $region138: #{cross_attention_block.1} parent=99 // pred_check_branch
          %777 = sbr.rel (%p775) target = $region140
        $region139: #{cross_attention_block.1} parent=99 // pred_region
          %778 = dma.done [#allocation18], 16
        $region140: #{cross_attention_block.1} parent=99 // pred_fallthru
          _
        // Predicated region
        $region141: #{cross_attention_block.1} parent=99 // pred_check
          %p779 = pneg %p387
        $region142: #{cross_attention_block.1} parent=99 // pred_check_branch
          %781 = sbr.rel (%p779) target = $region144
        $region143: #{cross_attention_block.1} parent=99 // pred_region
          %782 = dma.done [#allocation18], 16
        $region144: #{cross_attention_block.1} parent=99 // pred_fallthru
          _
        // Predicated region
        $region145: #{cross_attention_block.1} parent=99 // pred_check
          %p783 = pneg %p408
        $region146: #{cross_attention_block.1} parent=99 // pred_check_branch
          %785 = sbr.rel (%p783) target = $region148
        $region147: #{cross_attention_block.1} parent=99 // pred_region
          %786 = dma.done [#allocation21], 4096
        $region148: #{cross_attention_block.1} parent=99 // pred_fallthru
          _
        // Predicated region
        $region149: #{cross_attention_block.1} parent=99 // pred_check
          %p787 = pneg %p429
        $region150: #{cross_attention_block.1} parent=99 // pred_check_branch
          %789 = sbr.rel (%p787) target = $region152
        $region151: #{cross_attention_block.1} parent=99 // pred_region
          %790 = dma.done [#allocation21], 64
        $region152: #{cross_attention_block.1} parent=99 // pred_fallthru
          _
        // Predicated region
        $region153: #{cross_attention_block.1} parent=99 // pred_check
          %p791 = pneg %p450
        $region154: #{cross_attention_block.1} parent=99 // pred_check_branch
          %793 = sbr.rel (%p791) target = $region156
        $region155: #{cross_attention_block.1} parent=99 // pred_region
          %794 = dma.done [#allocation24], 4096
        $region156: #{cross_attention_block.1} parent=99 // pred_fallthru
          _
        // Predicated region
        $region157: #{cross_attention_block.1} parent=99 // pred_check
          %p795 = pneg %p471
        $region158: #{cross_attention_block.1} parent=99 // pred_check_branch
          %797 = sbr.rel (%p795) target = $region160
        $region159: #{cross_attention_block.1} parent=99 // pred_region
          %798 = dma.done [#allocation24], 16
        $region160: #{cross_attention_block.1} parent=99 // pred_fallthru
          _
        %s799 = sand.u32 %s54, 1
        %s800 = scalar_lea.sflag [#allocation3], %s799
        %s801 = sand.u32 %s54, 1
        %s802 = smul.addr %s801, 128
        %s803 = scalar_lea.vmem [#allocation2], %s802
        %p804 = pneg %p67
        %p805 = pneg %p64
        %s806 = sand.u32 %s46, 1
        %s807 = scalar_lea.sflag [#allocation6], %s806
        %s808 = sand.u32 %s80, 1
        %s809 = smul.addr %s808, 256
        %s810 = scalar_lea.vmem [#allocation5], %s809
        %p811 = pneg %p93
        %p812 = pneg %p90
        %p813 = pneg %p114
        %p814 = pneg %p111
        %p815 = pneg %p135
        %p816 = pneg %p132
        %p817 = pneg %p156
        %p818 = pneg %p153
        %p819 = pneg %p177
        %p820 = pneg %p174
        %p821 = pneg %p198
        %p822 = pneg %p195
        %p823 = pneg %p219
        %p824 = pneg %p216
        %p825 = pneg %p240
        %p826 = pneg %p237
        %p827 = pneg %p261
        %p828 = pneg %p258
        %p829 = pneg %p282
        %p830 = pneg %p279
        %p831 = pneg %p303
        %p832 = pneg %p300
        %p833 = pneg %p324
        %p834 = pneg %p321
        %p835 = pneg %p345
        %p836 = pneg %p342
        %p837 = pneg %p366
        %p838 = pneg %p363
        %p839 = pneg %p387
        %p840 = pneg %p384
        %p841 = pneg %p408
        %p842 = pneg %p405
        %p843 = pneg %p429
        %p844 = pneg %p426
        %p845 = pneg %p450
        %p846 = pneg %p447
        %p847 = pneg %p471
        %p848 = pneg %p468
        %p849 = pneg %p497
        %p850 = pneg %p494
        %s851 = sand.u32 %s484, 1
        %s852 = scalar_lea.sflag [#allocation4], %s851
        %s853 = sand.u32 %s484, 1
        %s854 = smul.addr %s853, 128
        %s855 = scalar_lea.vmem [#allocation26], %s854
        %s856 = smul.u32 8, %s46
        %s857 = smul.u32 8, %s46
        %s858 = smul.u32 8, %s46
        %v860 = vld [vmem:[%s733] sm:$0xff]
        %v861 = vld [vmem:[%s733 + $0x8] sm:$0xff]
        %v862 = vld [vmem:[%s733 + $0x10] sm:$0xff]
        %v863 = vld [vmem:[%s733 + $0x18] sm:$0xff]
        %v864 = vld [vmem:[%s733 + $0x20] sm:$0xff]
        %v865 = vld [vmem:[%s733 + $0x28] sm:$0xff]
        %v866 = vld [vmem:[%s733 + $0x30] sm:$0xff]
        %v867 = vld [vmem:[%s733 + $0x38] sm:$0xff]
        %v868 = vld [vmem:[%s733 + $0x40] sm:$0xff]
        %v869 = vld [vmem:[%s733 + $0x48] sm:$0xff]
        %v870 = vld [vmem:[%s733 + $0x50] sm:$0xff]
        %v871 = vld [vmem:[%s733 + $0x58] sm:$0xff]
        %v872 = vld [vmem:[%s733 + $0x60] sm:$0xff]
        %v873 = vld [vmem:[%s733 + $0x68] sm:$0xff]
        %v874 = vld [vmem:[%s733 + $0x70] sm:$0xff]
        %v875 = vld [vmem:[%s733 + $0x78] sm:$0xff]
        %v876 = vld [vmem:[%s742] sm:$0xff]
        %v877 = vld [vmem:[%s742 + $0x8] sm:$0xff]
        %v878 = vld [vmem:[%s742 + $0x10] sm:$0xff]
        %v879 = vld [vmem:[%s742 + $0x18] sm:$0xff]
        %v880 = vld [vmem:[%s742 + $0x20] sm:$0xff]
        %v881 = vld [vmem:[%s742 + $0x28] sm:$0xff]
        %v882 = vld [vmem:[%s742 + $0x30] sm:$0xff]
        %v883 = vld [vmem:[%s742 + $0x38] sm:$0xff]
        %v884 = vld [vmem:[%s742 + $0x40] sm:$0xff]
        %v885 = vld [vmem:[%s742 + $0x48] sm:$0xff]
        %v886 = vld [vmem:[%s742 + $0x50] sm:$0xff]
        %v887 = vld [vmem:[%s742 + $0x58] sm:$0xff]
        %v888 = vld [vmem:[%s742 + $0x60] sm:$0xff]
        %v889 = vld [vmem:[%s742 + $0x68] sm:$0xff]
        %v890 = vld [vmem:[%s742 + $0x70] sm:$0xff]
        %v891 = vld [vmem:[%s742 + $0x78] sm:$0xff]
        %v892 = vld [vmem:[%s742 + $0x80] sm:$0xff]
        %v893 = vld [vmem:[%s742 + $0x88] sm:$0xff]
        %v894 = vld [vmem:[%s742 + $0x90] sm:$0xff]
        %v895 = vld [vmem:[%s742 + $0x98] sm:$0xff]
        %v896 = vld [vmem:[%s742 + $0xa0] sm:$0xff]
        %v897 = vld [vmem:[%s742 + $0xa8] sm:$0xff]
        %v898 = vld [vmem:[%s742 + $0xb0] sm:$0xff]
        %v899 = vld [vmem:[%s742 + $0xb8] sm:$0xff]
        %v900 = vld [vmem:[%s742 + $0xc0] sm:$0xff]
        %v901 = vld [vmem:[%s742 + $0xc8] sm:$0xff]
        %v902 = vld [vmem:[%s742 + $0xd0] sm:$0xff]
        %v903 = vld [vmem:[%s742 + $0xd8] sm:$0xff]
        %v904 = vld [vmem:[%s742 + $0xe0] sm:$0xff]
        %v905 = vld [vmem:[%s742 + $0xe8] sm:$0xff]
        %v906 = vld [vmem:[%s742 + $0xf0] sm:$0xff]
        %v907 = vld [vmem:[%s742 + $0xf8] sm:$0xff]
        %v908 = vld [vmem:[#allocation7] sm:$0x1]
        %v909 = vld [vmem:[#allocation8] sm:$0x1]
        %910 = vadd.xlane.f32.xlu0 %v860
        %v911 = vpop.xlane.xlu0 %910
        %912 = vadd.xlane.f32.xlu0 %v861
        %v913 = vpop.xlane.xlu0 %912
        %914 = vadd.xlane.f32.xlu0 %v862
        %v915 = vpop.xlane.xlu0 %914
        %916 = vadd.xlane.f32.xlu0 %v863
        %v917 = vpop.xlane.xlu0 %916
        %918 = vadd.xlane.f32.xlu0 %v864
        %v919 = vpop.xlane.xlu0 %918
        %920 = vadd.xlane.f32.xlu0 %v865
        %v921 = vpop.xlane.xlu0 %920
        %922 = vadd.xlane.f32.xlu0 %v866
        %v923 = vpop.xlane.xlu0 %922
        %924 = vadd.xlane.f32.xlu0 %v867
        %v925 = vpop.xlane.xlu0 %924
        %926 = vadd.xlane.f32.xlu0 %v868
        %v927 = vpop.xlane.xlu0 %926
        %928 = vadd.xlane.f32.xlu0 %v869
        %v929 = vpop.xlane.xlu0 %928
        %930 = vadd.xlane.f32.xlu0 %v870
        %v931 = vpop.xlane.xlu0 %930
        %932 = vadd.xlane.f32.xlu0 %v871
        %v933 = vpop.xlane.xlu0 %932
        %934 = vadd.xlane.f32.xlu0 %v872
        %v935 = vpop.xlane.xlu0 %934
        %936 = vadd.xlane.f32.xlu0 %v873
        %v937 = vpop.xlane.xlu0 %936
        %938 = vadd.xlane.f32.xlu0 %v874
        %v939 = vpop.xlane.xlu0 %938
        %940 = vadd.xlane.f32.xlu0 %v875
        %v941 = vpop.xlane.xlu0 %940
        %v942 = vrcp.pop 128.0
        %v943 = vmul.f32 %v911, %v942
        %v944 = vmul.f32 %v913, %v942
        %v945 = vmul.f32 %v915, %v942
        %v946 = vmul.f32 %v917, %v942
        %v947 = vmul.f32 %v919, %v942
        %v948 = vmul.f32 %v921, %v942
        %v949 = vmul.f32 %v923, %v942
        %v950 = vmul.f32 %v925, %v942
        %v951 = vmul.f32 %v927, %v942
        %v952 = vmul.f32 %v929, %v942
        %v953 = vmul.f32 %v931, %v942
        %v954 = vmul.f32 %v933, %v942
        %v955 = vmul.f32 %v935, %v942
        %v956 = vmul.f32 %v937, %v942
        %v957 = vmul.f32 %v939, %v942
        %v958 = vmul.f32 %v941, %v942
        %v959 = vsub.f32 %v860, %v943
        %v960 = vsub.f32 %v861, %v944
        %v961 = vsub.f32 %v862, %v945
        %v962 = vsub.f32 %v863, %v946
        %v963 = vsub.f32 %v864, %v947
        %v964 = vsub.f32 %v865, %v948
        %v965 = vsub.f32 %v866, %v949
        %v966 = vsub.f32 %v867, %v950
        %v967 = vsub.f32 %v868, %v951
        %v968 = vsub.f32 %v869, %v952
        %v969 = vsub.f32 %v870, %v953
        %v970 = vsub.f32 %v871, %v954
        %v971 = vsub.f32 %v872, %v955
        %v972 = vsub.f32 %v873, %v956
        %v973 = vsub.f32 %v874, %v957
        %v974 = vsub.f32 %v875, %v958
        %v975 = vmul.f32 %v959, %v959
        %v976 = vmul.f32 %v960, %v960
        %v977 = vmul.f32 %v961, %v961
        %v978 = vmul.f32 %v962, %v962
        %v979 = vmul.f32 %v963, %v963
        %v980 = vmul.f32 %v964, %v964
        %v981 = vmul.f32 %v965, %v965
        %v982 = vmul.f32 %v966, %v966
        %v983 = vmul.f32 %v967, %v967
        %v984 = vmul.f32 %v968, %v968
        %v985 = vmul.f32 %v969, %v969
        %v986 = vmul.f32 %v970, %v970
        %v987 = vmul.f32 %v971, %v971
        %v988 = vmul.f32 %v972, %v972
        %v989 = vmul.f32 %v973, %v973
        %v990 = vmul.f32 %v974, %v974
        %991 = vadd.xlane.f32.xlu0 %v975
        %v992 = vpop.xlane.xlu0 %991
        %993 = vadd.xlane.f32.xlu0 %v976
        %v994 = vpop.xlane.xlu0 %993
        %995 = vadd.xlane.f32.xlu0 %v977
        %v996 = vpop.xlane.xlu0 %995
        %997 = vadd.xlane.f32.xlu0 %v978
        %v998 = vpop.xlane.xlu0 %997
        %999 = vadd.xlane.f32.xlu0 %v979
        %v1000 = vpop.xlane.xlu0 %999
        %1001 = vadd.xlane.f32.xlu0 %v980
        %v1002 = vpop.xlane.xlu0 %1001
        %1003 = vadd.xlane.f32.xlu0 %v981
        %v1004 = vpop.xlane.xlu0 %1003
        %1005 = vadd.xlane.f32.xlu0 %v982
        %v1006 = vpop.xlane.xlu0 %1005
        %1007 = vadd.xlane.f32.xlu0 %v983
        %v1008 = vpop.xlane.xlu0 %1007
        %1009 = vadd.xlane.f32.xlu0 %v984
        %v1010 = vpop.xlane.xlu0 %1009
        %1011 = vadd.xlane.f32.xlu0 %v985
        %v1012 = vpop.xlane.xlu0 %1011
        %1013 = vadd.xlane.f32.xlu0 %v986
        %v1014 = vpop.xlane.xlu0 %1013
        %1015 = vadd.xlane.f32.xlu0 %v987
        %v1016 = vpop.xlane.xlu0 %1015
        %1017 = vadd.xlane.f32.xlu0 %v988
        %v1018 = vpop.xlane.xlu0 %1017
        %1019 = vadd.xlane.f32.xlu0 %v989
        %v1020 = vpop.xlane.xlu0 %1019
        %1021 = vadd.xlane.f32.xlu0 %v990
        %v1022 = vpop.xlane.xlu0 %1021
        %v1023 = vmul.f32 %v992, %v942
        %v1024 = vmul.f32 %v994, %v942
        %v1025 = vmul.f32 %v996, %v942
        %v1026 = vmul.f32 %v998, %v942
        %v1027 = vmul.f32 %v1000, %v942
        %v1028 = vmul.f32 %v1002, %v942
        %v1029 = vmul.f32 %v1004, %v942
        %v1030 = vmul.f32 %v1006, %v942
        %v1031 = vmul.f32 %v1008, %v942
        %v1032 = vmul.f32 %v1010, %v942
        %v1033 = vmul.f32 %v1012, %v942
        %v1034 = vmul.f32 %v1014, %v942
        %v1035 = vmul.f32 %v1016, %v942
        %v1036 = vmul.f32 %v1018, %v942
        %v1037 = vmul.f32 %v1020, %v942
        %v1038 = vmul.f32 %v1022, %v942
        %v1039 = vadd.f32 %v1023, 1e-05
        %v1040 = vadd.f32 %v1024, 1e-05
        %v1041 = vadd.f32 %v1025, 1e-05
        %v1042 = vadd.f32 %v1026, 1e-05
        %v1043 = vadd.f32 %v1027, 1e-05
        %v1044 = vadd.f32 %v1028, 1e-05
        %v1045 = vadd.f32 %v1029, 1e-05
        %v1046 = vadd.f32 %v1030, 1e-05
        %v1047 = vadd.f32 %v1031, 1e-05
        %v1048 = vadd.f32 %v1032, 1e-05
        %v1049 = vadd.f32 %v1033, 1e-05
        %v1050 = vadd.f32 %v1034, 1e-05
        %v1051 = vadd.f32 %v1035, 1e-05
        %v1052 = vadd.f32 %v1036, 1e-05
        %v1053 = vadd.f32 %v1037, 1e-05
        %v1054 = vadd.f32 %v1038, 1e-05
        %v1055 = vrsqrt.pop %v1039
        %v1056 = vrsqrt.pop %v1040
        %v1057 = vrsqrt.pop %v1041
        %v1058 = vrsqrt.pop %v1042
        %v1059 = vrsqrt.pop %v1043
        %v1060 = vrsqrt.pop %v1044
        %v1061 = vrsqrt.pop %v1045
        %v1062 = vrsqrt.pop %v1046
        %v1063 = vrsqrt.pop %v1047
        %v1064 = vrsqrt.pop %v1048
        %v1065 = vrsqrt.pop %v1049
        %v1066 = vrsqrt.pop %v1050
        %v1067 = vrsqrt.pop %v1051
        %v1068 = vrsqrt.pop %v1052
        %v1069 = vrsqrt.pop %v1053
        %v1070 = vrsqrt.pop %v1054
        %v1071 = vmul.f32 %v959, %v1055
        %v1072 = vmul.f32 %v960, %v1056
        %v1073 = vmul.f32 %v961, %v1057
        %v1074 = vmul.f32 %v962, %v1058
        %v1075 = vmul.f32 %v963, %v1059
        %v1076 = vmul.f32 %v964, %v1060
        %v1077 = vmul.f32 %v965, %v1061
        %v1078 = vmul.f32 %v966, %v1062
        %v1079 = vmul.f32 %v967, %v1063
        %v1080 = vmul.f32 %v968, %v1064
        %v1081 = vmul.f32 %v969, %v1065
        %v1082 = vmul.f32 %v970, %v1066
        %v1083 = vmul.f32 %v971, %v1067
        %v1084 = vmul.f32 %v972, %v1068
        %v1085 = vmul.f32 %v973, %v1069
        %v1086 = vmul.f32 %v974, %v1070
        %v1088 = vlaneseq
        %v1089 = vshrl.u32 %v1088, 7
        %v1090 = vsub.s32 0, %v1089
        %v1091 = vrot.slane %v908, %v1090
        %v1093 = vmul.f32 %v1071, %v1091
        %v1094 = vmul.f32 %v1072, %v1091
        %v1095 = vmul.f32 %v1073, %v1091
        %v1096 = vmul.f32 %v1074, %v1091
        %v1097 = vmul.f32 %v1075, %v1091
        %v1098 = vmul.f32 %v1076, %v1091
        %v1099 = vmul.f32 %v1077, %v1091
        %v1100 = vmul.f32 %v1078, %v1091
        %v1101 = vmul.f32 %v1079, %v1091
        %v1102 = vmul.f32 %v1080, %v1091
        %v1103 = vmul.f32 %v1081, %v1091
        %v1104 = vmul.f32 %v1082, %v1091
        %v1105 = vmul.f32 %v1083, %v1091
        %v1106 = vmul.f32 %v1084, %v1091
        %v1107 = vmul.f32 %v1085, %v1091
        %v1108 = vmul.f32 %v1086, %v1091
        %v1110 = vlaneseq
        %v1111 = vshrl.u32 %v1110, 7
        %v1112 = vsub.s32 0, %v1111
        %v1113 = vrot.slane %v909, %v1112
        %v1115 = vadd.f32 %v1093, %v1113
        %v1116 = vadd.f32 %v1094, %v1113
        %v1117 = vadd.f32 %v1095, %v1113
        %v1118 = vadd.f32 %v1096, %v1113
        %v1119 = vadd.f32 %v1097, %v1113
        %v1120 = vadd.f32 %v1098, %v1113
        %v1121 = vadd.f32 %v1099, %v1113
        %v1122 = vadd.f32 %v1100, %v1113
        %v1123 = vadd.f32 %v1101, %v1113
        %v1124 = vadd.f32 %v1102, %v1113
        %v1125 = vadd.f32 %v1103, %v1113
        %v1126 = vadd.f32 %v1104, %v1113
        %v1127 = vadd.f32 %v1105, %v1113
        %v1128 = vadd.f32 %v1106, %v1113
        %v1129 = vadd.f32 %v1107, %v1113
        %v1130 = vadd.f32 %v1108, %v1113
        %v1131 = vpack.c.bf16 %v1116, %v1115
        %v1132 = vpack.c.bf16 %v1118, %v1117
        %v1133 = vpack.c.bf16 %v1120, %v1119
        %v1134 = vpack.c.bf16 %v1122, %v1121
        %v1135 = vpack.c.bf16 %v1124, %v1123
        %v1136 = vpack.c.bf16 %v1126, %v1125
        %v1137 = vpack.c.bf16 %v1128, %v1127
        %v1138 = vpack.c.bf16 %v1130, %v1129
        %v1139 = vld [vmem:[#allocation10] sm:$0x1]
        %v1140 = vld [vmem:[#allocation11] sm:$0x1]
        %1141 = vadd.xlane.f32.xlu0 %v876
        %v1142 = vpop.xlane.xlu0 %1141
        %1143 = vadd.xlane.f32.xlu0 %v877
        %v1144 = vpop.xlane.xlu0 %1143
        %1145 = vadd.xlane.f32.xlu0 %v878
        %v1146 = vpop.xlane.xlu0 %1145
        %1147 = vadd.xlane.f32.xlu0 %v879
        %v1148 = vpop.xlane.xlu0 %1147
        %1149 = vadd.xlane.f32.xlu0 %v880
        %v1150 = vpop.xlane.xlu0 %1149
        %1151 = vadd.xlane.f32.xlu0 %v881
        %v1152 = vpop.xlane.xlu0 %1151
        %1153 = vadd.xlane.f32.xlu0 %v882
        %v1154 = vpop.xlane.xlu0 %1153
        %1155 = vadd.xlane.f32.xlu0 %v883
        %v1156 = vpop.xlane.xlu0 %1155
        %1157 = vadd.xlane.f32.xlu0 %v884
        %v1158 = vpop.xlane.xlu0 %1157
        %1159 = vadd.xlane.f32.xlu0 %v885
        %v1160 = vpop.xlane.xlu0 %1159
        %1161 = vadd.xlane.f32.xlu0 %v886
        %v1162 = vpop.xlane.xlu0 %1161
        %1163 = vadd.xlane.f32.xlu0 %v887
        %v1164 = vpop.xlane.xlu0 %1163
        %1165 = vadd.xlane.f32.xlu0 %v888
        %v1166 = vpop.xlane.xlu0 %1165
        %1167 = vadd.xlane.f32.xlu0 %v889
        %v1168 = vpop.xlane.xlu0 %1167
        %1169 = vadd.xlane.f32.xlu0 %v890
        %v1170 = vpop.xlane.xlu0 %1169
        %1171 = vadd.xlane.f32.xlu0 %v891
        %v1172 = vpop.xlane.xlu0 %1171
        %1173 = vadd.xlane.f32.xlu0 %v892
        %v1174 = vpop.xlane.xlu0 %1173
        %1175 = vadd.xlane.f32.xlu0 %v893
        %v1176 = vpop.xlane.xlu0 %1175
        %1177 = vadd.xlane.f32.xlu0 %v894
        %v1178 = vpop.xlane.xlu0 %1177
        %1179 = vadd.xlane.f32.xlu0 %v895
        %v1180 = vpop.xlane.xlu0 %1179
        %1181 = vadd.xlane.f32.xlu0 %v896
        %v1182 = vpop.xlane.xlu0 %1181
        %1183 = vadd.xlane.f32.xlu0 %v897
        %v1184 = vpop.xlane.xlu0 %1183
        %1185 = vadd.xlane.f32.xlu0 %v898
        %v1186 = vpop.xlane.xlu0 %1185
        %1187 = vadd.xlane.f32.xlu0 %v899
        %v1188 = vpop.xlane.xlu0 %1187
        %1189 = vadd.xlane.f32.xlu0 %v900
        %v1190 = vpop.xlane.xlu0 %1189
        %1191 = vadd.xlane.f32.xlu0 %v901
        %v1192 = vpop.xlane.xlu0 %1191
        %1193 = vadd.xlane.f32.xlu0 %v902
        %v1194 = vpop.xlane.xlu0 %1193
        %1195 = vadd.xlane.f32.xlu0 %v903
        %v1196 = vpop.xlane.xlu0 %1195
        %1197 = vadd.xlane.f32.xlu0 %v904
        %v1198 = vpop.xlane.xlu0 %1197
        %1199 = vadd.xlane.f32.xlu0 %v905
        %v1200 = vpop.xlane.xlu0 %1199
        %1201 = vadd.xlane.f32.xlu0 %v906
        %v1202 = vpop.xlane.xlu0 %1201
        %1203 = vadd.xlane.f32.xlu0 %v907
        %v1204 = vpop.xlane.xlu0 %1203
        %v1205 = vmul.f32 %v1142, %v942
        %v1206 = vmul.f32 %v1144, %v942
        %v1207 = vmul.f32 %v1146, %v942
        %v1208 = vmul.f32 %v1148, %v942
        %v1209 = vmul.f32 %v1150, %v942
        %v1210 = vmul.f32 %v1152, %v942
        %v1211 = vmul.f32 %v1154, %v942
        %v1212 = vmul.f32 %v1156, %v942
        %v1213 = vmul.f32 %v1158, %v942
        %v1214 = vmul.f32 %v1160, %v942
        %v1215 = vmul.f32 %v1162, %v942
        %v1216 = vmul.f32 %v1164, %v942
        %v1217 = vmul.f32 %v1166, %v942
        %v1218 = vmul.f32 %v1168, %v942
        %v1219 = vmul.f32 %v1170, %v942
        %v1220 = vmul.f32 %v1172, %v942
        %v1221 = vmul.f32 %v1174, %v942
        %v1222 = vmul.f32 %v1176, %v942
        %v1223 = vmul.f32 %v1178, %v942
        %v1224 = vmul.f32 %v1180, %v942
        %v1225 = vmul.f32 %v1182, %v942
        %v1226 = vmul.f32 %v1184, %v942
        %v1227 = vmul.f32 %v1186, %v942
        %v1228 = vmul.f32 %v1188, %v942
        %v1229 = vmul.f32 %v1190, %v942
        %v1230 = vmul.f32 %v1192, %v942
        %v1231 = vmul.f32 %v1194, %v942
        %v1232 = vmul.f32 %v1196, %v942
        %v1233 = vmul.f32 %v1198, %v942
        %v1234 = vmul.f32 %v1200, %v942
        %v1235 = vmul.f32 %v1202, %v942
        %v1236 = vmul.f32 %v1204, %v942
        %v1237 = vsub.f32 %v876, %v1205
        %v1238 = vsub.f32 %v877, %v1206
        %v1239 = vsub.f32 %v878, %v1207
        %v1240 = vsub.f32 %v879, %v1208
        %v1241 = vsub.f32 %v880, %v1209
        %v1242 = vsub.f32 %v881, %v1210
        %v1243 = vsub.f32 %v882, %v1211
        %v1244 = vsub.f32 %v883, %v1212
        %v1245 = vsub.f32 %v884, %v1213
        %v1246 = vsub.f32 %v885, %v1214
        %v1247 = vsub.f32 %v886, %v1215
        %v1248 = vsub.f32 %v887, %v1216
        %v1249 = vsub.f32 %v888, %v1217
        %v1250 = vsub.f32 %v889, %v1218
        %v1251 = vsub.f32 %v890, %v1219
        %v1252 = vsub.f32 %v891, %v1220
        %v1253 = vsub.f32 %v892, %v1221
        %v1254 = vsub.f32 %v893, %v1222
        %v1255 = vsub.f32 %v894, %v1223
        %v1256 = vsub.f32 %v895, %v1224
        %v1257 = vsub.f32 %v896, %v1225
        %v1258 = vsub.f32 %v897, %v1226
        %v1259 = vsub.f32 %v898, %v1227
        %v1260 = vsub.f32 %v899, %v1228
        %v1261 = vsub.f32 %v900, %v1229
        %v1262 = vsub.f32 %v901, %v1230
        %v1263 = vsub.f32 %v902, %v1231
        %v1264 = vsub.f32 %v903, %v1232
        %v1265 = vsub.f32 %v904, %v1233
        %v1266 = vsub.f32 %v905, %v1234
        %v1267 = vsub.f32 %v906, %v1235
        %v1268 = vsub.f32 %v907, %v1236
        %v1269 = vmul.f32 %v1237, %v1237
        %v1270 = vmul.f32 %v1238, %v1238
        %v1271 = vmul.f32 %v1239, %v1239
        %v1272 = vmul.f32 %v1240, %v1240
        %v1273 = vmul.f32 %v1241, %v1241
        %v1274 = vmul.f32 %v1242, %v1242
        %v1275 = vmul.f32 %v1243, %v1243
        %v1276 = vmul.f32 %v1244, %v1244
        %v1277 = vmul.f32 %v1245, %v1245
        %v1278 = vmul.f32 %v1246, %v1246
        %v1279 = vmul.f32 %v1247, %v1247
        %v1280 = vmul.f32 %v1248, %v1248
        %v1281 = vmul.f32 %v1249, %v1249
        %v1282 = vmul.f32 %v1250, %v1250
        %v1283 = vmul.f32 %v1251, %v1251
        %v1284 = vmul.f32 %v1252, %v1252
        %v1285 = vmul.f32 %v1253, %v1253
        %v1286 = vmul.f32 %v1254, %v1254
        %v1287 = vmul.f32 %v1255, %v1255
        %v1288 = vmul.f32 %v1256, %v1256
        %v1289 = vmul.f32 %v1257, %v1257
        %v1290 = vmul.f32 %v1258, %v1258
        %v1291 = vmul.f32 %v1259, %v1259
        %v1292 = vmul.f32 %v1260, %v1260
        %v1293 = vmul.f32 %v1261, %v1261
        %v1294 = vmul.f32 %v1262, %v1262
        %v1295 = vmul.f32 %v1263, %v1263
        %v1296 = vmul.f32 %v1264, %v1264
        %v1297 = vmul.f32 %v1265, %v1265
        %v1298 = vmul.f32 %v1266, %v1266
        %v1299 = vmul.f32 %v1267, %v1267
        %v1300 = vmul.f32 %v1268, %v1268
        %1301 = vadd.xlane.f32.xlu0 %v1269
        %v1302 = vpop.xlane.xlu0 %1301
        %1303 = vadd.xlane.f32.xlu0 %v1270
        %v1304 = vpop.xlane.xlu0 %1303
        %1305 = vadd.xlane.f32.xlu0 %v1271
        %v1306 = vpop.xlane.xlu0 %1305
        %1307 = vadd.xlane.f32.xlu0 %v1272
        %v1308 = vpop.xlane.xlu0 %1307
        %1309 = vadd.xlane.f32.xlu0 %v1273
        %v1310 = vpop.xlane.xlu0 %1309
        %1311 = vadd.xlane.f32.xlu0 %v1274
        %v1312 = vpop.xlane.xlu0 %1311
        %1313 = vadd.xlane.f32.xlu0 %v1275
        %v1314 = vpop.xlane.xlu0 %1313
        %1315 = vadd.xlane.f32.xlu0 %v1276
        %v1316 = vpop.xlane.xlu0 %1315
        %1317 = vadd.xlane.f32.xlu0 %v1277
        %v1318 = vpop.xlane.xlu0 %1317
        %1319 = vadd.xlane.f32.xlu0 %v1278
        %v1320 = vpop.xlane.xlu0 %1319
        %1321 = vadd.xlane.f32.xlu0 %v1279
        %v1322 = vpop.xlane.xlu0 %1321
        %1323 = vadd.xlane.f32.xlu0 %v1280
        %v1324 = vpop.xlane.xlu0 %1323
        %1325 = vadd.xlane.f32.xlu0 %v1281
        %v1326 = vpop.xlane.xlu0 %1325
        %1327 = vadd.xlane.f32.xlu0 %v1282
        %v1328 = vpop.xlane.xlu0 %1327
        %1329 = vadd.xlane.f32.xlu0 %v1283
        %v1330 = vpop.xlane.xlu0 %1329
        %1331 = vadd.xlane.f32.xlu0 %v1284
        %v1332 = vpop.xlane.xlu0 %1331
        %1333 = vadd.xlane.f32.xlu0 %v1285
        %v1334 = vpop.xlane.xlu0 %1333
        %1335 = vadd.xlane.f32.xlu0 %v1286
        %v1336 = vpop.xlane.xlu0 %1335
        %1337 = vadd.xlane.f32.xlu0 %v1287
        %v1338 = vpop.xlane.xlu0 %1337
        %1339 = vadd.xlane.f32.xlu0 %v1288
        %v1340 = vpop.xlane.xlu0 %1339
        %1341 = vadd.xlane.f32.xlu0 %v1289
        %v1342 = vpop.xlane.xlu0 %1341
        %1343 = vadd.xlane.f32.xlu0 %v1290
        %v1344 = vpop.xlane.xlu0 %1343
        %1345 = vadd.xlane.f32.xlu0 %v1291
        %v1346 = vpop.xlane.xlu0 %1345
        %1347 = vadd.xlane.f32.xlu0 %v1292
        %v1348 = vpop.xlane.xlu0 %1347
        %1349 = vadd.xlane.f32.xlu0 %v1293
        %v1350 = vpop.xlane.xlu0 %1349
        %1351 = vadd.xlane.f32.xlu0 %v1294
        %v1352 = vpop.xlane.xlu0 %1351
        %1353 = vadd.xlane.f32.xlu0 %v1295
        %v1354 = vpop.xlane.xlu0 %1353
        %1355 = vadd.xlane.f32.xlu0 %v1296
        %v1356 = vpop.xlane.xlu0 %1355
        %1357 = vadd.xlane.f32.xlu0 %v1297
        %v1358 = vpop.xlane.xlu0 %1357
        %1359 = vadd.xlane.f32.xlu0 %v1298
        %v1360 = vpop.xlane.xlu0 %1359
        %1361 = vadd.xlane.f32.xlu0 %v1299
        %v1362 = vpop.xlane.xlu0 %1361
        %1363 = vadd.xlane.f32.xlu0 %v1300
        %v1364 = vpop.xlane.xlu0 %1363
        %v1365 = vmul.f32 %v1302, %v942
        %v1366 = vmul.f32 %v1304, %v942
        %v1367 = vmul.f32 %v1306, %v942
        %v1368 = vmul.f32 %v1308, %v942
        %v1369 = vmul.f32 %v1310, %v942
        %v1370 = vmul.f32 %v1312, %v942
        %v1371 = vmul.f32 %v1314, %v942
        %v1372 = vmul.f32 %v1316, %v942
        %v1373 = vmul.f32 %v1318, %v942
        %v1374 = vmul.f32 %v1320, %v942
        %v1375 = vmul.f32 %v1322, %v942
        %v1376 = vmul.f32 %v1324, %v942
        %v1377 = vmul.f32 %v1326, %v942
        %v1378 = vmul.f32 %v1328, %v942
        %v1379 = vmul.f32 %v1330, %v942
        %v1380 = vmul.f32 %v1332, %v942
        %v1381 = vmul.f32 %v1334, %v942
        %v1382 = vmul.f32 %v1336, %v942
        %v1383 = vmul.f32 %v1338, %v942
        %v1384 = vmul.f32 %v1340, %v942
        %v1385 = vmul.f32 %v1342, %v942
        %v1386 = vmul.f32 %v1344, %v942
        %v1387 = vmul.f32 %v1346, %v942
        %v1388 = vmul.f32 %v1348, %v942
        %v1389 = vmul.f32 %v1350, %v942
        %v1390 = vmul.f32 %v1352, %v942
        %v1391 = vmul.f32 %v1354, %v942
        %v1392 = vmul.f32 %v1356, %v942
        %v1393 = vmul.f32 %v1358, %v942
        %v1394 = vmul.f32 %v1360, %v942
        %v1395 = vmul.f32 %v1362, %v942
        %v1396 = vmul.f32 %v1364, %v942
        %v1397 = vadd.f32 %v1365, 1e-05
        %v1398 = vadd.f32 %v1366, 1e-05
        %v1399 = vadd.f32 %v1367, 1e-05
        %v1400 = vadd.f32 %v1368, 1e-05
        %v1401 = vadd.f32 %v1369, 1e-05
        %v1402 = vadd.f32 %v1370, 1e-05
        %v1403 = vadd.f32 %v1371, 1e-05
        %v1404 = vadd.f32 %v1372, 1e-05
        %v1405 = vadd.f32 %v1373, 1e-05
        %v1406 = vadd.f32 %v1374, 1e-05
        %v1407 = vadd.f32 %v1375, 1e-05
        %v1408 = vadd.f32 %v1376, 1e-05
        %v1409 = vadd.f32 %v1377, 1e-05
        %v1410 = vadd.f32 %v1378, 1e-05
        %v1411 = vadd.f32 %v1379, 1e-05
        %v1412 = vadd.f32 %v1380, 1e-05
        %v1413 = vadd.f32 %v1381, 1e-05
        %v1414 = vadd.f32 %v1382, 1e-05
        %v1415 = vadd.f32 %v1383, 1e-05
        %v1416 = vadd.f32 %v1384, 1e-05
        %v1417 = vadd.f32 %v1385, 1e-05
        %v1418 = vadd.f32 %v1386, 1e-05
        %v1419 = vadd.f32 %v1387, 1e-05
        %v1420 = vadd.f32 %v1388, 1e-05
        %v1421 = vadd.f32 %v1389, 1e-05
        %v1422 = vadd.f32 %v1390, 1e-05
        %v1423 = vadd.f32 %v1391, 1e-05
        %v1424 = vadd.f32 %v1392, 1e-05
        %v1425 = vadd.f32 %v1393, 1e-05
        %v1426 = vadd.f32 %v1394, 1e-05
        %v1427 = vadd.f32 %v1395, 1e-05
        %v1428 = vadd.f32 %v1396, 1e-05
        %v1429 = vrsqrt.pop %v1397
        %v1430 = vrsqrt.pop %v1398
        %v1431 = vrsqrt.pop %v1399
        %v1432 = vrsqrt.pop %v1400
        %v1433 = vrsqrt.pop %v1401
        %v1434 = vrsqrt.pop %v1402
        %v1435 = vrsqrt.pop %v1403
        %v1436 = vrsqrt.pop %v1404
        %v1437 = vrsqrt.pop %v1405
        %v1438 = vrsqrt.pop %v1406
        %v1439 = vrsqrt.pop %v1407
        %v1440 = vrsqrt.pop %v1408
        %v1441 = vrsqrt.pop %v1409
        %v1442 = vrsqrt.pop %v1410
        %v1443 = vrsqrt.pop %v1411
        %v1444 = vrsqrt.pop %v1412
        %v1445 = vrsqrt.pop %v1413
        %v1446 = vrsqrt.pop %v1414
        %v1447 = vrsqrt.pop %v1415
        %v1448 = vrsqrt.pop %v1416
        %v1449 = vrsqrt.pop %v1417
        %v1450 = vrsqrt.pop %v1418
        %v1451 = vrsqrt.pop %v1419
        %v1452 = vrsqrt.pop %v1420
        %v1453 = vrsqrt.pop %v1421
        %v1454 = vrsqrt.pop %v1422
        %v1455 = vrsqrt.pop %v1423
        %v1456 = vrsqrt.pop %v1424
        %v1457 = vrsqrt.pop %v1425
        %v1458 = vrsqrt.pop %v1426
        %v1459 = vrsqrt.pop %v1427
        %v1460 = vrsqrt.pop %v1428
        %v1461 = vmul.f32 %v1237, %v1429
        %v1462 = vmul.f32 %v1238, %v1430
        %v1463 = vmul.f32 %v1239, %v1431
        %v1464 = vmul.f32 %v1240, %v1432
        %v1465 = vmul.f32 %v1241, %v1433
        %v1466 = vmul.f32 %v1242, %v1434
        %v1467 = vmul.f32 %v1243, %v1435
        %v1468 = vmul.f32 %v1244, %v1436
        %v1469 = vmul.f32 %v1245, %v1437
        %v1470 = vmul.f32 %v1246, %v1438
        %v1471 = vmul.f32 %v1247, %v1439
        %v1472 = vmul.f32 %v1248, %v1440
        %v1473 = vmul.f32 %v1249, %v1441
        %v1474 = vmul.f32 %v1250, %v1442
        %v1475 = vmul.f32 %v1251, %v1443
        %v1476 = vmul.f32 %v1252, %v1444
        %v1477 = vmul.f32 %v1253, %v1445
        %v1478 = vmul.f32 %v1254, %v1446
        %v1479 = vmul.f32 %v1255, %v1447
        %v1480 = vmul.f32 %v1256, %v1448
        %v1481 = vmul.f32 %v1257, %v1449
        %v1482 = vmul.f32 %v1258, %v1450
        %v1483 = vmul.f32 %v1259, %v1451
        %v1484 = vmul.f32 %v1260, %v1452
        %v1485 = vmul.f32 %v1261, %v1453
        %v1486 = vmul.f32 %v1262, %v1454
        %v1487 = vmul.f32 %v1263, %v1455
        %v1488 = vmul.f32 %v1264, %v1456
        %v1489 = vmul.f32 %v1265, %v1457
        %v1490 = vmul.f32 %v1266, %v1458
        %v1491 = vmul.f32 %v1267, %v1459
        %v1492 = vmul.f32 %v1268, %v1460
        %v1494 = vlaneseq
        %v1495 = vshrl.u32 %v1494, 7
        %v1496 = vsub.s32 0, %v1495
        %v1497 = vrot.slane %v1139, %v1496
        %v1499 = vmul.f32 %v1461, %v1497
        %v1500 = vmul.f32 %v1462, %v1497
        %v1501 = vmul.f32 %v1463, %v1497
        %v1502 = vmul.f32 %v1464, %v1497
        %v1503 = vmul.f32 %v1465, %v1497
        %v1504 = vmul.f32 %v1466, %v1497
        %v1505 = vmul.f32 %v1467, %v1497
        %v1506 = vmul.f32 %v1468, %v1497
        %v1507 = vmul.f32 %v1469, %v1497
        %v1508 = vmul.f32 %v1470, %v1497
        %v1509 = vmul.f32 %v1471, %v1497
        %v1510 = vmul.f32 %v1472, %v1497
        %v1511 = vmul.f32 %v1473, %v1497
        %v1512 = vmul.f32 %v1474, %v1497
        %v1513 = vmul.f32 %v1475, %v1497
        %v1514 = vmul.f32 %v1476, %v1497
        %v1515 = vmul.f32 %v1477, %v1497
        %v1516 = vmul.f32 %v1478, %v1497
        %v1517 = vmul.f32 %v1479, %v1497
        %v1518 = vmul.f32 %v1480, %v1497
        %v1519 = vmul.f32 %v1481, %v1497
        %v1520 = vmul.f32 %v1482, %v1497
        %v1521 = vmul.f32 %v1483, %v1497
        %v1522 = vmul.f32 %v1484, %v1497
        %v1523 = vmul.f32 %v1485, %v1497
        %v1524 = vmul.f32 %v1486, %v1497
        %v1525 = vmul.f32 %v1487, %v1497
        %v1526 = vmul.f32 %v1488, %v1497
        %v1527 = vmul.f32 %v1489, %v1497
        %v1528 = vmul.f32 %v1490, %v1497
        %v1529 = vmul.f32 %v1491, %v1497
        %v1530 = vmul.f32 %v1492, %v1497
        %v1532 = vlaneseq
        %v1533 = vshrl.u32 %v1532, 7
        %v1534 = vsub.s32 0, %v1533
        %v1535 = vrot.slane %v1140, %v1534
        %v1537 = vadd.f32 %v1499, %v1535
        %v1538 = vadd.f32 %v1500, %v1535
        %v1539 = vadd.f32 %v1501, %v1535
        %v1540 = vadd.f32 %v1502, %v1535
        %v1541 = vadd.f32 %v1503, %v1535
        %v1542 = vadd.f32 %v1504, %v1535
        %v1543 = vadd.f32 %v1505, %v1535
        %v1544 = vadd.f32 %v1506, %v1535
        %v1545 = vadd.f32 %v1507, %v1535
        %v1546 = vadd.f32 %v1508, %v1535
        %v1547 = vadd.f32 %v1509, %v1535
        %v1548 = vadd.f32 %v1510, %v1535
        %v1549 = vadd.f32 %v1511, %v1535
        %v1550 = vadd.f32 %v1512, %v1535
        %v1551 = vadd.f32 %v1513, %v1535
        %v1552 = vadd.f32 %v1514, %v1535
        %v1553 = vadd.f32 %v1515, %v1535
        %v1554 = vadd.f32 %v1516, %v1535
        %v1555 = vadd.f32 %v1517, %v1535
        %v1556 = vadd.f32 %v1518, %v1535
        %v1557 = vadd.f32 %v1519, %v1535
        %v1558 = vadd.f32 %v1520, %v1535
        %v1559 = vadd.f32 %v1521, %v1535
        %v1560 = vadd.f32 %v1522, %v1535
        %v1561 = vadd.f32 %v1523, %v1535
        %v1562 = vadd.f32 %v1524, %v1535
        %v1563 = vadd.f32 %v1525, %v1535
        %v1564 = vadd.f32 %v1526, %v1535
        %v1565 = vadd.f32 %v1527, %v1535
        %v1566 = vadd.f32 %v1528, %v1535
        %v1567 = vadd.f32 %v1529, %v1535
        %v1568 = vadd.f32 %v1530, %v1535
        %v1569 = vpack.c.bf16 %v1538, %v1537
        %v1570 = vpack.c.bf16 %v1540, %v1539
        %v1571 = vpack.c.bf16 %v1542, %v1541
        %v1572 = vpack.c.bf16 %v1544, %v1543
        %v1573 = vpack.c.bf16 %v1546, %v1545
        %v1574 = vpack.c.bf16 %v1548, %v1547
        %v1575 = vpack.c.bf16 %v1550, %v1549
        %v1576 = vpack.c.bf16 %v1552, %v1551
        %v1577 = vpack.c.bf16 %v1554, %v1553
        %v1578 = vpack.c.bf16 %v1556, %v1555
        %v1579 = vpack.c.bf16 %v1558, %v1557
        %v1580 = vpack.c.bf16 %v1560, %v1559
        %v1581 = vpack.c.bf16 %v1562, %v1561
        %v1582 = vpack.c.bf16 %v1564, %v1563
        %v1583 = vpack.c.bf16 %v1566, %v1565
        %v1584 = vpack.c.bf16 %v1568, %v1567
        %v1585 = vld [vmem:[%s6] sm:$0xf]
        %v1586 = vld [vmem:[%s6 + $0x4] sm:$0xf]
        %v1587 = vld [vmem:[%s6 + $0x8] sm:$0xf]
        %v1588 = vld [vmem:[%s6 + $0xc] sm:$0xf]
        %v1589 = vld [vmem:[%s6 + $0x10] sm:$0xf]
        %v1590 = vld [vmem:[%s6 + $0x14] sm:$0xf]
        %v1591 = vld [vmem:[%s6 + $0x18] sm:$0xf]
        %v1592 = vld [vmem:[%s6 + $0x1c] sm:$0xf]
        %v1593 = vld [vmem:[%s6 + $0x20] sm:$0xf]
        %v1594 = vld [vmem:[%s6 + $0x24] sm:$0xf]
        %v1595 = vld [vmem:[%s6 + $0x28] sm:$0xf]
        %v1596 = vld [vmem:[%s6 + $0x2c] sm:$0xf]
        %v1597 = vld [vmem:[%s6 + $0x30] sm:$0xf]
        %v1598 = vld [vmem:[%s6 + $0x34] sm:$0xf]
        %v1599 = vld [vmem:[%s6 + $0x38] sm:$0xf]
        %v1600 = vld [vmem:[%s6 + $0x3c] sm:$0xf]
        %v1601 = vld [vmem:[%s7] sm:$0x1]
        %v1603 = vlaneseq
        %v1604 = vshrl.u32 %v1603, 7
        %v1605 = vsub.s32 0, %v1604
        %v1606 = vrot.slane %v1601, %v1605
        %v1624 = vunpack.c.l.b16 %v1585
        %v1625 = vunpack.c.l.b16 %v1586
        %v1626 = vunpack.c.l.b16 %v1587
        %v1627 = vunpack.c.l.b16 %v1588
        %v1628 = vunpack.c.l.b16 %v1589
        %v1629 = vunpack.c.l.b16 %v1590
        %v1630 = vunpack.c.l.b16 %v1591
        %v1631 = vunpack.c.l.b16 %v1592
        %v1632 = vunpack.c.l.b16 %v1593
        %v1633 = vunpack.c.l.b16 %v1594
        %v1634 = vunpack.c.l.b16 %v1595
        %v1635 = vunpack.c.l.b16 %v1596
        %v1636 = vunpack.c.l.b16 %v1597
        %v1637 = vunpack.c.l.b16 %v1598
        %v1638 = vunpack.c.l.b16 %v1599
        %v1639 = vunpack.c.l.b16 %v1600
        %v1640 = vpack.c.b16 %v1625, %v1624
        %v1641 = vpack.c.b16 %v1627, %v1626
        %v1642 = vpack.c.b16 %v1629, %v1628
        %v1643 = vpack.c.b16 %v1631, %v1630
        %v1644 = vpack.c.b16 %v1633, %v1632
        %v1645 = vpack.c.b16 %v1635, %v1634
        %v1646 = vpack.c.b16 %v1637, %v1636
        %v1647 = vpack.c.b16 %v1639, %v1638
        %1656 = vmatprep.subr.bf16.mxu0 0
        %1657 = vmatpush1.bf16.msra.mxu0 %v1640
        %1658 = vmatprep.subr.bf16.mxu0 0
        %1659 = vmatpush1.bf16.msra.mxu0 %v1641
        %1660 = vmatprep.subr.bf16.mxu0 0
        %1661 = vmatpush1.bf16.msra.mxu0 %v1642
        %1662 = vmatprep.subr.bf16.mxu0 0
        %1663 = vmatpush1.bf16.msra.mxu0 %v1643
        %1664 = vmatprep.subr.bf16.mxu0 0
        %1665 = vmatpush1.bf16.msra.mxu0 %v1644
        %1666 = vmatprep.subr.bf16.mxu0 0
        %1667 = vmatpush1.bf16.msra.mxu0 %v1645
        %1668 = vmatprep.subr.bf16.mxu0 0
        %1669 = vmatpush1.bf16.msra.mxu0 %v1646
        %1670 = vmatprep.subr.bf16.mxu0 0
        %1671 = vmatpush1.bf16.msra.mxu0 %v1647
        %1672 = vmatprep.subr.bf16.mxu0 0
        %1673 = vmatpush1.bf16.msra.mxu0 0
        %1674 = vmatprep.subr.bf16.mxu0 0
        %1675 = vmatpush1.bf16.msra.mxu0 0
        %1676 = vmatprep.subr.bf16.mxu0 0
        %1677 = vmatpush1.bf16.msra.mxu0 0
        %1678 = vmatprep.subr.bf16.mxu0 0
        %1679 = vmatpush1.bf16.msra.mxu0 0
        %1680 = vmatprep.subr.bf16.mxu0 0
        %1681 = vmatpush1.bf16.msra.mxu0 0
        %1682 = vmatprep.subr.bf16.mxu0 0
        %1683 = vmatpush1.bf16.msra.mxu0 0
        %1684 = vmatprep.subr.bf16.mxu0 0
        %1685 = vmatpush1.bf16.msra.mxu0 0
        %1686 = vmatprep.subr.bf16.mxu0 0
        %1687 = vmatpush1.bf16.msra.mxu0 0
        %1688 = vmatprep.mubr.bf16.mxu0 0
        %1689 = vmatmul.mubr.bf16.gmra.mrb[0].mxu0 %v1131
        %v1690 = vpop.f32.mrb[0].mxu0
        %v1691 = vadd.f32 %v1606, %v1690
        %v1692 = vpop.f32.mrb[0].mxu0
        %v1693 = vpop.f32.mrb[0].mxu0
        %v1694 = vadd.f32 %v1606, %v1693
        %v1695 = vpop.f32.mrb[0].mxu0
        %1696 = vmatprep.mubr.bf16.mxu0 0
        %1697 = vmatmul.mubr.bf16.gmra.mrb[0].mxu0 %v1132
        %v1698 = vpop.f32.mrb[0].mxu0
        %v1699 = vadd.f32 %v1606, %v1698
        %v1700 = vpop.f32.mrb[0].mxu0
        %v1701 = vpop.f32.mrb[0].mxu0
        %v1702 = vadd.f32 %v1606, %v1701
        %v1703 = vpop.f32.mrb[0].mxu0
        %1704 = vmatprep.mubr.bf16.mxu0 0
        %1705 = vmatmul.mubr.bf16.gmra.mrb[0].mxu0 %v1133
        %v1706 = vpop.f32.mrb[0].mxu0
        %v1707 = vadd.f32 %v1606, %v1706
        %v1708 = vpop.f32.mrb[0].mxu0
        %v1709 = vpop.f32.mrb[0].mxu0
        %v1710 = vadd.f32 %v1606, %v1709
        %v1711 = vpop.f32.mrb[0].mxu0
        %1712 = vmatprep.mubr.bf16.mxu0 0
        %1713 = vmatmul.mubr.bf16.gmra.mrb[0].mxu0 %v1134
        %v1714 = vpop.f32.mrb[0].mxu0
        %v1715 = vadd.f32 %v1606, %v1714
        %v1716 = vpop.f32.mrb[0].mxu0
        %v1717 = vpop.f32.mrb[0].mxu0
        %v1718 = vadd.f32 %v1606, %v1717
        %v1719 = vpop.f32.mrb[0].mxu0
        %1720 = vmatprep.mubr.bf16.mxu0 0
        %1721 = vmatmul.mubr.bf16.gmra.mrb[0].mxu0 %v1135
        %v1722 = vpop.f32.mrb[0].mxu0
        %v1723 = vadd.f32 %v1606, %v1722
        %v1724 = vpop.f32.mrb[0].mxu0
        %v1725 = vpop.f32.mrb[0].mxu0
        %v1726 = vadd.f32 %v1606, %v1725
        %v1727 = vpop.f32.mrb[0].mxu0
        %1728 = vmatprep.mubr.bf16.mxu0 0
        %1729 = vmatmul.mubr.bf16.gmra.mrb[0].mxu0 %v1136
        %v1730 = vpop.f32.mrb[0].mxu0
        %v1731 = vadd.f32 %v1606, %v1730
        %v1732 = vpop.f32.mrb[0].mxu0
        %v1733 = vpop.f32.mrb[0].mxu0
        %v1734 = vadd.f32 %v1606, %v1733
        %v1735 = vpop.f32.mrb[0].mxu0
        %1736 = vmatprep.mubr.bf16.mxu0 0
        %1737 = vmatmul.mubr.bf16.gmra.mrb[0].mxu0 %v1137
        %v1738 = vpop.f32.mrb[0].mxu0
        %v1739 = vadd.f32 %v1606, %v1738
        %v1740 = vpop.f32.mrb[0].mxu0
        %v1741 = vpop.f32.mrb[0].mxu0
        %v1742 = vadd.f32 %v1606, %v1741
        %v1743 = vpop.f32.mrb[0].mxu0
        %1744 = vmatprep.mubr.bf16.mxu0 0
        %1745 = vmatmul.mubr.bf16.gmra.mrb[0].mxu0 %v1138
        %v1746 = vpop.f32.mrb[0].mxu0
        %v1747 = vadd.f32 %v1606, %v1746
        %v1748 = vpop.f32.mrb[0].mxu0
        %v1749 = vpop.f32.mrb[0].mxu0
        %v1750 = vadd.f32 %v1606, %v1749
        %v1751 = vpop.f32.mrb[0].mxu0
        %1752 = vdwg.mxu0
        %v1753 = vld [vmem:[%s8] sm:$0xf]
        %v1754 = vld [vmem:[%s8 + $0x4] sm:$0xf]
        %v1755 = vld [vmem:[%s8 + $0x8] sm:$0xf]
        %v1756 = vld [vmem:[%s8 + $0xc] sm:$0xf]
        %v1757 = vld [vmem:[%s8 + $0x10] sm:$0xf]
        %v1758 = vld [vmem:[%s8 + $0x14] sm:$0xf]
        %v1759 = vld [vmem:[%s8 + $0x18] sm:$0xf]
        %v1760 = vld [vmem:[%s8 + $0x1c] sm:$0xf]
        %v1761 = vld [vmem:[%s8 + $0x20] sm:$0xf]
        %v1762 = vld [vmem:[%s8 + $0x24] sm:$0xf]
        %v1763 = vld [vmem:[%s8 + $0x28] sm:$0xf]
        %v1764 = vld [vmem:[%s8 + $0x2c] sm:$0xf]
        %v1765 = vld [vmem:[%s8 + $0x30] sm:$0xf]
        %v1766 = vld [vmem:[%s8 + $0x34] sm:$0xf]
        %v1767 = vld [vmem:[%s8 + $0x38] sm:$0xf]
        %v1768 = vld [vmem:[%s8 + $0x3c] sm:$0xf]
        %v1769 = vld [vmem:[#allocation13] sm:$0x1]
        %v1771 = vlaneseq
        %v1772 = vshrl.u32 %v1771, 7
        %v1773 = vsub.s32 0, %v1772
        %v1774 = vrot.slane %v1769, %v1773
        %v1792 = vunpack.c.l.b16 %v1753
        %v1793 = vunpack.c.l.b16 %v1754
        %v1794 = vunpack.c.l.b16 %v1755
        %v1795 = vunpack.c.l.b16 %v1756
        %v1796 = vunpack.c.l.b16 %v1757
        %v1797 = vunpack.c.l.b16 %v1758
        %v1798 = vunpack.c.l.b16 %v1759
        %v1799 = vunpack.c.l.b16 %v1760
        %v1800 = vunpack.c.l.b16 %v1761
        %v1801 = vunpack.c.l.b16 %v1762
        %v1802 = vunpack.c.l.b16 %v1763
        %v1803 = vunpack.c.l.b16 %v1764
        %v1804 = vunpack.c.l.b16 %v1765
        %v1805 = vunpack.c.l.b16 %v1766
        %v1806 = vunpack.c.l.b16 %v1767
        %v1807 = vunpack.c.l.b16 %v1768
        %v1808 = vpack.c.b16 %v1793, %v1792
        %v1809 = vpack.c.b16 %v1795, %v1794
        %v1810 = vpack.c.b16 %v1797, %v1796
        %v1811 = vpack.c.b16 %v1799, %v1798
        %v1812 = vpack.c.b16 %v1801, %v1800
        %v1813 = vpack.c.b16 %v1803, %v1802
        %v1814 = vpack.c.b16 %v1805, %v1804
        %v1815 = vpack.c.b16 %v1807, %v1806
        %1824 = vmatprep.subr.bf16.mxu0 0
        %1825 = vmatpush1.bf16.msra.mxu0 %v1808
        %1826 = vmatprep.subr.bf16.mxu0 0
        %1827 = vmatpush1.bf16.msra.mxu0 %v1809
        %1828 = vmatprep.subr.bf16.mxu0 0
        %1829 = vmatpush1.bf16.msra.mxu0 %v1810
        %1830 = vmatprep.subr.bf16.mxu0 0
        %1831 = vmatpush1.bf16.msra.mxu0 %v1811
        %1832 = vmatprep.subr.bf16.mxu0 0
        %1833 = vmatpush1.bf16.msra.mxu0 %v1812
        %1834 = vmatprep.subr.bf16.mxu0 0
        %1835 = vmatpush1.bf16.msra.mxu0 %v1813
        %1836 = vmatprep.subr.bf16.mxu0 0
        %1837 = vmatpush1.bf16.msra.mxu0 %v1814
        %1838 = vmatprep.subr.bf16.mxu0 0
        %1839 = vmatpush1.bf16.msra.mxu0 %v1815
        %1840 = vmatprep.subr.bf16.mxu0 0
        %1841 = vmatpush1.bf16.msra.mxu0 0
        %1842 = vmatprep.subr.bf16.mxu0 0
        %1843 = vmatpush1.bf16.msra.mxu0 0
        %1844 = vmatprep.subr.bf16.mxu0 0
        %1845 = vmatpush1.bf16.msra.mxu0 0
        %1846 = vmatprep.subr.bf16.mxu0 0
        %1847 = vmatpush1.bf16.msra.mxu0 0
        %1848 = vmatprep.subr.bf16.mxu0 0
        %1849 = vmatpush1.bf16.msra.mxu0 0
        %1850 = vmatprep.subr.bf16.mxu0 0
        %1851 = vmatpush1.bf16.msra.mxu0 0
        %1852 = vmatprep.subr.bf16.mxu0 0
        %1853 = vmatpush1.bf16.msra.mxu0 0
        %1854 = vmatprep.subr.bf16.mxu0 0
        %1855 = vmatpush1.bf16.msra.mxu0 0
        %1856 = vmatprep.mubr.bf16.mxu0 0
        %1857 = vmatmul.mubr.bf16.gmra.mrb[0].mxu0 %v1569
        %v1858 = vpop.f32.mrb[0].mxu0
        %v1859 = vadd.f32 %v1774, %v1858
        %v1860 = vpop.f32.mrb[0].mxu0
        %v1861 = vpop.f32.mrb[0].mxu0
        %v1862 = vadd.f32 %v1774, %v1861
        %v1863 = vpop.f32.mrb[0].mxu0
        %1864 = vmatprep.mubr.bf16.mxu0 0
        %1865 = vmatmul.mubr.bf16.gmra.mrb[0].mxu0 %v1570
        %v1866 = vpop.f32.mrb[0].mxu0
        %v1867 = vadd.f32 %v1774, %v1866
        %v1868 = vpop.f32.mrb[0].mxu0
        %v1869 = vpop.f32.mrb[0].mxu0
        %v1870 = vadd.f32 %v1774, %v1869
        %v1871 = vpop.f32.mrb[0].mxu0
        %1872 = vmatprep.mubr.bf16.mxu0 0
        %1873 = vmatmul.mubr.bf16.gmra.mrb[0].mxu0 %v1571
        %v1874 = vpop.f32.mrb[0].mxu0
        %v1875 = vadd.f32 %v1774, %v1874
        %v1876 = vpop.f32.mrb[0].mxu0
        %v1877 = vpop.f32.mrb[0].mxu0
        %v1878 = vadd.f32 %v1774, %v1877
        %v1879 = vpop.f32.mrb[0].mxu0
        %1880 = vmatprep.mubr.bf16.mxu0 0
        %1881 = vmatmul.mubr.bf16.gmra.mrb[0].mxu0 %v1572
        %v1882 = vpop.f32.mrb[0].mxu0
        %v1883 = vadd.f32 %v1774, %v1882
        %v1884 = vpop.f32.mrb[0].mxu0
        %v1885 = vpop.f32.mrb[0].mxu0
        %v1886 = vadd.f32 %v1774, %v1885
        %v1887 = vpop.f32.mrb[0].mxu0
        %1888 = vmatprep.mubr.bf16.mxu0 0
        %1889 = vmatmul.mubr.bf16.gmra.mrb[0].mxu0 %v1573
        %v1890 = vpop.f32.mrb[0].mxu0
        %v1891 = vadd.f32 %v1774, %v1890
        %v1892 = vpop.f32.mrb[0].mxu0
        %v1893 = vpop.f32.mrb[0].mxu0
        %v1894 = vadd.f32 %v1774, %v1893
        %v1895 = vpop.f32.mrb[0].mxu0
        %1896 = vmatprep.mubr.bf16.mxu0 0
        %1897 = vmatmul.mubr.bf16.gmra.mrb[0].mxu0 %v1574
        %v1898 = vpop.f32.mrb[0].mxu0
        %v1899 = vadd.f32 %v1774, %v1898
        %v1900 = vpop.f32.mrb[0].mxu0
        %v1901 = vpop.f32.mrb[0].mxu0
        %v1902 = vadd.f32 %v1774, %v1901
        %v1903 = vpop.f32.mrb[0].mxu0
        %1904 = vmatprep.mubr.bf16.mxu0 0
        %1905 = vmatmul.mubr.bf16.gmra.mrb[0].mxu0 %v1575
        %v1906 = vpop.f32.mrb[0].mxu0
        %v1907 = vadd.f32 %v1774, %v1906
        %v1908 = vpop.f32.mrb[0].mxu0
        %v1909 = vpop.f32.mrb[0].mxu0
        %v1910 = vadd.f32 %v1774, %v1909
        %v1911 = vpop.f32.mrb[0].mxu0
        %1912 = vmatprep.mubr.bf16.mxu0 0
        %1913 = vmatmul.mubr.bf16.gmra.mrb[0].mxu0 %v1576
        %v1914 = vpop.f32.mrb[0].mxu0
        %v1915 = vadd.f32 %v1774, %v1914
        %v1916 = vpop.f32.mrb[0].mxu0
        %v1917 = vpop.f32.mrb[0].mxu0
        %v1918 = vadd.f32 %v1774, %v1917
        %v1919 = vpop.f32.mrb[0].mxu0
        %1920 = vmatprep.mubr.bf16.mxu0 0
        %1921 = vmatmul.mubr.bf16.gmra.mrb[0].mxu0 %v1577
        %v1922 = vpop.f32.mrb[0].mxu0
        %v1923 = vadd.f32 %v1774, %v1922
        %v1924 = vpop.f32.mrb[0].mxu0
        %v1925 = vpop.f32.mrb[0].mxu0
        %v1926 = vadd.f32 %v1774, %v1925
        %v1927 = vpop.f32.mrb[0].mxu0
        %1928 = vmatprep.mubr.bf16.mxu0 0
        %1929 = vmatmul.mubr.bf16.gmra.mrb[0].mxu0 %v1578
        %v1930 = vpop.f32.mrb[0].mxu0
        %v1931 = vadd.f32 %v1774, %v1930
        %v1932 = vpop.f32.mrb[0].mxu0
        %v1933 = vpop.f32.mrb[0].mxu0
        %v1934 = vadd.f32 %v1774, %v1933
        %v1935 = vpop.f32.mrb[0].mxu0
        %1936 = vmatprep.mubr.bf16.mxu0 0
        %1937 = vmatmul.mubr.bf16.gmra.mrb[0].mxu0 %v1579
        %v1938 = vpop.f32.mrb[0].mxu0
        %v1939 = vadd.f32 %v1774, %v1938
        %v1940 = vpop.f32.mrb[0].mxu0
        %v1941 = vpop.f32.mrb[0].mxu0
        %v1942 = vadd.f32 %v1774, %v1941
        %v1943 = vpop.f32.mrb[0].mxu0
        %1944 = vmatprep.mubr.bf16.mxu0 0
        %1945 = vmatmul.mubr.bf16.gmra.mrb[0].mxu0 %v1580
        %v1946 = vpop.f32.mrb[0].mxu0
        %v1947 = vadd.f32 %v1774, %v1946
        %v1948 = vpop.f32.mrb[0].mxu0
        %v1949 = vpop.f32.mrb[0].mxu0
        %v1950 = vadd.f32 %v1774, %v1949
        %v1951 = vpop.f32.mrb[0].mxu0
        %1952 = vmatprep.mubr.bf16.mxu0 0
        %1953 = vmatmul.mubr.bf16.gmra.mrb[0].mxu0 %v1581
        %v1954 = vpop.f32.mrb[0].mxu0
        %v1955 = vadd.f32 %v1774, %v1954
        %v1956 = vpop.f32.mrb[0].mxu0
        %v1957 = vpop.f32.mrb[0].mxu0
        %v1958 = vadd.f32 %v1774, %v1957
        %v1959 = vpop.f32.mrb[0].mxu0
        %1960 = vmatprep.mubr.bf16.mxu0 0
        %1961 = vmatmul.mubr.bf16.gmra.mrb[0].mxu0 %v1582
        %v1962 = vpop.f32.mrb[0].mxu0
        %v1963 = vadd.f32 %v1774, %v1962
        %v1964 = vpop.f32.mrb[0].mxu0
        %v1965 = vpop.f32.mrb[0].mxu0
        %v1966 = vadd.f32 %v1774, %v1965
        %v1967 = vpop.f32.mrb[0].mxu0
        %1968 = vmatprep.mubr.bf16.mxu0 0
        %1969 = vmatmul.mubr.bf16.gmra.mrb[0].mxu0 %v1583
        %v1970 = vpop.f32.mrb[0].mxu0
        %v1971 = vadd.f32 %v1774, %v1970
        %v1972 = vpop.f32.mrb[0].mxu0
        %v1973 = vpop.f32.mrb[0].mxu0
        %v1974 = vadd.f32 %v1774, %v1973
        %v1975 = vpop.f32.mrb[0].mxu0
        %1976 = vmatprep.mubr.bf16.mxu0 0
        %1977 = vmatmul.mubr.bf16.gmra.mrb[0].mxu0 %v1584
        %v1978 = vpop.f32.mrb[0].mxu0
        %v1979 = vadd.f32 %v1774, %v1978
        %v1980 = vpop.f32.mrb[0].mxu0
        %v1981 = vpop.f32.mrb[0].mxu0
        %v1982 = vadd.f32 %v1774, %v1981
        %v1983 = vpop.f32.mrb[0].mxu0
        %1984 = vdwg.mxu0
        %v1985 = vld [vmem:[%s10] sm:$0xf]
        %v1986 = vld [vmem:[%s10 + $0x4] sm:$0xf]
        %v1987 = vld [vmem:[%s10 + $0x8] sm:$0xf]
        %v1988 = vld [vmem:[%s10 + $0xc] sm:$0xf]
        %v1989 = vld [vmem:[%s10 + $0x10] sm:$0xf]
        %v1990 = vld [vmem:[%s10 + $0x14] sm:$0xf]
        %v1991 = vld [vmem:[%s10 + $0x18] sm:$0xf]
        %v1992 = vld [vmem:[%s10 + $0x1c] sm:$0xf]
        %v1993 = vld [vmem:[%s10 + $0x20] sm:$0xf]
        %v1994 = vld [vmem:[%s10 + $0x24] sm:$0xf]
        %v1995 = vld [vmem:[%s10 + $0x28] sm:$0xf]
        %v1996 = vld [vmem:[%s10 + $0x2c] sm:$0xf]
        %v1997 = vld [vmem:[%s10 + $0x30] sm:$0xf]
        %v1998 = vld [vmem:[%s10 + $0x34] sm:$0xf]
        %v1999 = vld [vmem:[%s10 + $0x38] sm:$0xf]
        %v2000 = vld [vmem:[%s10 + $0x3c] sm:$0xf]
        %v2001 = vld [vmem:[#allocation14] sm:$0x1]
        %v2003 = vlaneseq
        %v2004 = vshrl.u32 %v2003, 7
        %v2005 = vsub.s32 0, %v2004
        %v2006 = vrot.slane %v2001, %v2005
        %v2024 = vunpack.c.l.b16 %v1985
        %v2025 = vunpack.c.l.b16 %v1986
        %v2026 = vunpack.c.l.b16 %v1987
        %v2027 = vunpack.c.l.b16 %v1988
        %v2028 = vunpack.c.l.b16 %v1989
        %v2029 = vunpack.c.l.b16 %v1990
        %v2030 = vunpack.c.l.b16 %v1991
        %v2031 = vunpack.c.l.b16 %v1992
        %v2032 = vunpack.c.l.b16 %v1993
        %v2033 = vunpack.c.l.b16 %v1994
        %v2034 = vunpack.c.l.b16 %v1995
        %v2035 = vunpack.c.l.b16 %v1996
        %v2036 = vunpack.c.l.b16 %v1997
        %v2037 = vunpack.c.l.b16 %v1998
        %v2038 = vunpack.c.l.b16 %v1999
        %v2039 = vunpack.c.l.b16 %v2000
        %v2040 = vpack.c.b16 %v2025, %v2024
        %v2041 = vpack.c.b16 %v2027, %v2026
        %v2042 = vpack.c.b16 %v2029, %v2028
        %v2043 = vpack.c.b16 %v2031, %v2030
        %v2044 = vpack.c.b16 %v2033, %v2032
        %v2045 = vpack.c.b16 %v2035, %v2034
        %v2046 = vpack.c.b16 %v2037, %v2036
        %v2047 = vpack.c.b16 %v2039, %v2038
        %2056 = vmatprep.subr.bf16.mxu0 0
        %2057 = vmatpush1.bf16.msra.mxu0 %v2040
        %2058 = vmatprep.subr.bf16.mxu0 0
        %2059 = vmatpush1.bf16.msra.mxu0 %v2041
        %2060 = vmatprep.subr.bf16.mxu0 0
        %2061 = vmatpush1.bf16.msra.mxu0 %v2042
        %2062 = vmatprep.subr.bf16.mxu0 0
        %2063 = vmatpush1.bf16.msra.mxu0 %v2043
        %2064 = vmatprep.subr.bf16.mxu0 0
        %2065 = vmatpush1.bf16.msra.mxu0 %v2044
        %2066 = vmatprep.subr.bf16.mxu0 0
        %2067 = vmatpush1.bf16.msra.mxu0 %v2045
        %2068 = vmatprep.subr.bf16.mxu0 0
        %2069 = vmatpush1.bf16.msra.mxu0 %v2046
        %2070 = vmatprep.subr.bf16.mxu0 0
        %2071 = vmatpush1.bf16.msra.mxu0 %v2047
        %2072 = vmatprep.subr.bf16.mxu0 0
        %2073 = vmatpush1.bf16.msra.mxu0 0
        %2074 = vmatprep.subr.bf16.mxu0 0
        %2075 = vmatpush1.bf16.msra.mxu0 0
        %2076 = vmatprep.subr.bf16.mxu0 0
        %2077 = vmatpush1.bf16.msra.mxu0 0
        %2078 = vmatprep.subr.bf16.mxu0 0
        %2079 = vmatpush1.bf16.msra.mxu0 0
        %2080 = vmatprep.subr.bf16.mxu0 0
        %2081 = vmatpush1.bf16.msra.mxu0 0
        %2082 = vmatprep.subr.bf16.mxu0 0
        %2083 = vmatpush1.bf16.msra.mxu0 0
        %2084 = vmatprep.subr.bf16.mxu0 0
        %2085 = vmatpush1.bf16.msra.mxu0 0
        %2086 = vmatprep.subr.bf16.mxu0 0
        %2087 = vmatpush1.bf16.msra.mxu0 0
        %2088 = vmatprep.mubr.bf16.mxu0 0
        %2089 = vmatmul.mubr.bf16.gmra.mrb[0].mxu0 %v1569
        %v2090 = vpop.f32.mrb[0].mxu0
        %v2091 = vadd.f32 %v2006, %v2090
        %v2092 = vpop.f32.mrb[0].mxu0
        %v2093 = vpop.f32.mrb[0].mxu0
        %v2094 = vadd.f32 %v2006, %v2093
        %v2095 = vpop.f32.mrb[0].mxu0
        %2096 = vmatprep.mubr.bf16.mxu0 0
        %2097 = vmatmul.mubr.bf16.gmra.mrb[0].mxu0 %v1570
        %v2098 = vpop.f32.mrb[0].mxu0
        %v2099 = vadd.f32 %v2006, %v2098
        %v2100 = vpop.f32.mrb[0].mxu0
        %v2101 = vpop.f32.mrb[0].mxu0
        %v2102 = vadd.f32 %v2006, %v2101
        %v2103 = vpop.f32.mrb[0].mxu0
        %2104 = vmatprep.mubr.bf16.mxu0 0
        %2105 = vmatmul.mubr.bf16.gmra.mrb[0].mxu0 %v1571
        %v2106 = vpop.f32.mrb[0].mxu0
        %v2107 = vadd.f32 %v2006, %v2106
        %v2108 = vpop.f32.mrb[0].mxu0
        %v2109 = vpop.f32.mrb[0].mxu0
        %v2110 = vadd.f32 %v2006, %v2109
        %v2111 = vpop.f32.mrb[0].mxu0
        %2112 = vmatprep.mubr.bf16.mxu0 0
        %2113 = vmatmul.mubr.bf16.gmra.mrb[0].mxu0 %v1572
        %v2114 = vpop.f32.mrb[0].mxu0
        %v2115 = vadd.f32 %v2006, %v2114
        %v2116 = vpop.f32.mrb[0].mxu0
        %v2117 = vpop.f32.mrb[0].mxu0
        %v2118 = vadd.f32 %v2006, %v2117
        %v2119 = vpop.f32.mrb[0].mxu0
        %2120 = vmatprep.mubr.bf16.mxu0 0
        %2121 = vmatmul.mubr.bf16.gmra.mrb[0].mxu0 %v1573
        %v2122 = vpop.f32.mrb[0].mxu0
        %v2123 = vadd.f32 %v2006, %v2122
        %v2124 = vpop.f32.mrb[0].mxu0
        %v2125 = vpop.f32.mrb[0].mxu0
        %v2126 = vadd.f32 %v2006, %v2125
        %v2127 = vpop.f32.mrb[0].mxu0
        %2128 = vmatprep.mubr.bf16.mxu0 0
        %2129 = vmatmul.mubr.bf16.gmra.mrb[0].mxu0 %v1574
        %v2130 = vpop.f32.mrb[0].mxu0
        %v2131 = vadd.f32 %v2006, %v2130
        %v2132 = vpop.f32.mrb[0].mxu0
        %v2133 = vpop.f32.mrb[0].mxu0
        %v2134 = vadd.f32 %v2006, %v2133
        %v2135 = vpop.f32.mrb[0].mxu0
        %2136 = vmatprep.mubr.bf16.mxu0 0
        %2137 = vmatmul.mubr.bf16.gmra.mrb[0].mxu0 %v1575
        %v2138 = vpop.f32.mrb[0].mxu0
        %v2139 = vadd.f32 %v2006, %v2138
        %v2140 = vpop.f32.mrb[0].mxu0
        %v2141 = vpop.f32.mrb[0].mxu0
        %v2142 = vadd.f32 %v2006, %v2141
        %v2143 = vpop.f32.mrb[0].mxu0
        %2144 = vmatprep.mubr.bf16.mxu0 0
        %2145 = vmatmul.mubr.bf16.gmra.mrb[0].mxu0 %v1576
        %v2146 = vpop.f32.mrb[0].mxu0
        %v2147 = vadd.f32 %v2006, %v2146
        %v2148 = vpop.f32.mrb[0].mxu0
        %v2149 = vpop.f32.mrb[0].mxu0
        %v2150 = vadd.f32 %v2006, %v2149
        %v2151 = vpop.f32.mrb[0].mxu0
        %2152 = vmatprep.mubr.bf16.mxu0 0
        %2153 = vmatmul.mubr.bf16.gmra.mrb[0].mxu0 %v1577
        %v2154 = vpop.f32.mrb[0].mxu0
        %v2155 = vadd.f32 %v2006, %v2154
        %v2156 = vpop.f32.mrb[0].mxu0
        %v2157 = vpop.f32.mrb[0].mxu0
        %v2158 = vadd.f32 %v2006, %v2157
        %v2159 = vpop.f32.mrb[0].mxu0
        %2160 = vmatprep.mubr.bf16.mxu0 0
        %2161 = vmatmul.mubr.bf16.gmra.mrb[0].mxu0 %v1578
        %v2162 = vpop.f32.mrb[0].mxu0
        %v2163 = vadd.f32 %v2006, %v2162
        %v2164 = vpop.f32.mrb[0].mxu0
        %v2165 = vpop.f32.mrb[0].mxu0
        %v2166 = vadd.f32 %v2006, %v2165
        %v2167 = vpop.f32.mrb[0].mxu0
        %2168 = vmatprep.mubr.bf16.mxu0 0
        %2169 = vmatmul.mubr.bf16.gmra.mrb[0].mxu0 %v1579
        %v2170 = vpop.f32.mrb[0].mxu0
        %v2171 = vadd.f32 %v2006, %v2170
        %v2172 = vpop.f32.mrb[0].mxu0
        %v2173 = vpop.f32.mrb[0].mxu0
        %v2174 = vadd.f32 %v2006, %v2173
        %v2175 = vpop.f32.mrb[0].mxu0
        %2176 = vmatprep.mubr.bf16.mxu0 0
        %2177 = vmatmul.mubr.bf16.gmra.mrb[0].mxu0 %v1580
        %v2178 = vpop.f32.mrb[0].mxu0
        %v2179 = vadd.f32 %v2006, %v2178
        %v2180 = vpop.f32.mrb[0].mxu0
        %v2181 = vpop.f32.mrb[0].mxu0
        %v2182 = vadd.f32 %v2006, %v2181
        %v2183 = vpop.f32.mrb[0].mxu0
        %2184 = vmatprep.mubr.bf16.mxu0 0
        %2185 = vmatmul.mubr.bf16.gmra.mrb[0].mxu0 %v1581
        %v2186 = vpop.f32.mrb[0].mxu0
        %v2187 = vadd.f32 %v2006, %v2186
        %v2188 = vpop.f32.mrb[0].mxu0
        %v2189 = vpop.f32.mrb[0].mxu0
        %v2190 = vadd.f32 %v2006, %v2189
        %v2191 = vpop.f32.mrb[0].mxu0
        %2192 = vmatprep.mubr.bf16.mxu0 0
        %2193 = vmatmul.mubr.bf16.gmra.mrb[0].mxu0 %v1582
        %v2194 = vpop.f32.mrb[0].mxu0
        %v2195 = vadd.f32 %v2006, %v2194
        %v2196 = vpop.f32.mrb[0].mxu0
        %v2197 = vpop.f32.mrb[0].mxu0
        %v2198 = vadd.f32 %v2006, %v2197
        %v2199 = vpop.f32.mrb[0].mxu0
        %2200 = vmatprep.mubr.bf16.mxu0 0
        %2201 = vmatmul.mubr.bf16.gmra.mrb[0].mxu0 %v1583
        %v2202 = vpop.f32.mrb[0].mxu0
        %v2203 = vadd.f32 %v2006, %v2202
        %v2204 = vpop.f32.mrb[0].mxu0
        %v2205 = vpop.f32.mrb[0].mxu0
        %v2206 = vadd.f32 %v2006, %v2205
        %v2207 = vpop.f32.mrb[0].mxu0
        %2208 = vmatprep.mubr.bf16.mxu0 0
        %2209 = vmatmul.mubr.bf16.gmra.mrb[0].mxu0 %v1584
        %v2210 = vpop.f32.mrb[0].mxu0
        %v2211 = vadd.f32 %v2006, %v2210
        %v2212 = vpop.f32.mrb[0].mxu0
        %v2213 = vpop.f32.mrb[0].mxu0
        %v2214 = vadd.f32 %v2006, %v2213
        %v2215 = vpop.f32.mrb[0].mxu0
        %2216 = vdwg.mxu0
        %v2217 = vpack.c.bf16 %v1694, %v1691
        %v2218 = vpack.c.bf16 %v1702, %v1699
        %v2219 = vpack.c.bf16 %v1710, %v1707
        %v2220 = vpack.c.bf16 %v1718, %v1715
        %v2221 = vpack.c.bf16 %v1726, %v1723
        %v2222 = vpack.c.bf16 %v1734, %v1731
        %v2223 = vpack.c.bf16 %v1742, %v1739
        %v2224 = vpack.c.bf16 %v1750, %v1747
        %v2225 = vpack.c.bf16 %v1862, %v1859
        %v2226 = vpack.c.bf16 %v1870, %v1867
        %v2227 = vpack.c.bf16 %v1878, %v1875
        %v2228 = vpack.c.bf16 %v1886, %v1883
        %v2229 = vpack.c.bf16 %v1894, %v1891
        %v2230 = vpack.c.bf16 %v1902, %v1899
        %v2231 = vpack.c.bf16 %v1910, %v1907
        %v2232 = vpack.c.bf16 %v1918, %v1915
        %v2233 = vpack.c.bf16 %v1926, %v1923
        %v2234 = vpack.c.bf16 %v1934, %v1931
        %v2235 = vpack.c.bf16 %v1942, %v1939
        %v2236 = vpack.c.bf16 %v1950, %v1947
        %v2237 = vpack.c.bf16 %v1958, %v1955
        %v2238 = vpack.c.bf16 %v1966, %v1963
        %v2239 = vpack.c.bf16 %v1974, %v1971
        %v2240 = vpack.c.bf16 %v1982, %v1979
        %2241 = vmatprep.subr.bf16.mxu0 0
        %2242 = vmatpush1.bf16.xpose.msra.mxu0 %v2225
        %2243 = vmatprep.subr.bf16.mxu0 0
        %2244 = vmatpush1.bf16.xpose.msra.mxu0 %v2226
        %2245 = vmatprep.subr.bf16.mxu0 0
        %2246 = vmatpush1.bf16.xpose.msra.mxu0 0
        %2247 = vmatprep.subr.bf16.mxu0 0
        %2248 = vmatpush1.bf16.xpose.msra.mxu0 0
        %2249 = vmatprep.subr.bf16.mxu0 0
        %2250 = vmatpush1.bf16.xpose.msra.mxu0 0
        %2251 = vmatprep.subr.bf16.mxu0 0
        %2252 = vmatpush1.bf16.xpose.msra.mxu0 0
        %2253 = vmatprep.subr.bf16.mxu0 0
        %2254 = vmatpush1.bf16.xpose.msra.mxu0 0
        %2255 = vmatprep.subr.bf16.mxu0 0
        %2256 = vmatpush1.bf16.xpose.msra.mxu0 0
        %2257 = vmatprep.subr.bf16.mxu0 0
        %2258 = vmatpush1.bf16.xpose.msra.mxu0 0
        %2259 = vmatprep.subr.bf16.mxu0 0
        %2260 = vmatpush1.bf16.xpose.msra.mxu0 0
        %2261 = vmatprep.subr.bf16.mxu0 0
        %2262 = vmatpush1.bf16.xpose.msra.mxu0 0
        %2263 = vmatprep.subr.bf16.mxu0 0
        %2264 = vmatpush1.bf16.xpose.msra.mxu0 0
        %2265 = vmatprep.subr.bf16.mxu0 0
        %2266 = vmatpush1.bf16.xpose.msra.mxu0 0
        %2267 = vmatprep.subr.bf16.mxu0 0
        %2268 = vmatpush1.bf16.xpose.msra.mxu0 0
        %2269 = vmatprep.subr.bf16.mxu0 0
        %2270 = vmatpush1.bf16.xpose.msra.mxu0 0
        %2271 = vmatprep.subr.bf16.mxu0 0
        %2272 = vmatpush1.bf16.xpose.msra.mxu0 0
        %2273 = vmatprep.mubr.bf16.mxu0 0
        %2274 = vmatmul.mubr.bf16.gmra.mrb[0].mxu0 %v2217
        %v2275 = vpop.f32.mrb[0].mxu0
        %v2276 = vadd.f32 0.0, %v2275
        %v2277 = vpop.f32.mrb[0].mxu0
        %v2278 = vpop.f32.mrb[0].mxu0
        %v2279 = vadd.f32 0.0, %v2278
        %v2280 = vpop.f32.mrb[0].mxu0
        %2281 = vdwg.mxu0
        %2282 = vmatprep.subr.bf16.mxu0 0
        %2283 = vmatpush1.bf16.xpose.msra.mxu0 %v2227
        %2284 = vmatprep.subr.bf16.mxu0 0
        %2285 = vmatpush1.bf16.xpose.msra.mxu0 %v2228
        %2286 = vmatprep.subr.bf16.mxu0 0
        %2287 = vmatpush1.bf16.xpose.msra.mxu0 0
        %2288 = vmatprep.subr.bf16.mxu0 0
        %2289 = vmatpush1.bf16.xpose.msra.mxu0 0
        %2290 = vmatprep.subr.bf16.mxu0 0
        %2291 = vmatpush1.bf16.xpose.msra.mxu0 0
        %2292 = vmatprep.subr.bf16.mxu0 0
        %2293 = vmatpush1.bf16.xpose.msra.mxu0 0
        %2294 = vmatprep.subr.bf16.mxu0 0
        %2295 = vmatpush1.bf16.xpose.msra.mxu0 0
        %2296 = vmatprep.subr.bf16.mxu0 0
        %2297 = vmatpush1.bf16.xpose.msra.mxu0 0
        %2298 = vmatprep.subr.bf16.mxu0 0
        %2299 = vmatpush1.bf16.xpose.msra.mxu0 0
        %2300 = vmatprep.subr.bf16.mxu0 0
        %2301 = vmatpush1.bf16.xpose.msra.mxu0 0
        %2302 = vmatprep.subr.bf16.mxu0 0
        %2303 = vmatpush1.bf16.xpose.msra.mxu0 0
        %2304 = vmatprep.subr.bf16.mxu0 0
        %2305 = vmatpush1.bf16.xpose.msra.mxu0 0
        %2306 = vmatprep.subr.bf16.mxu0 0
        %2307 = vmatpush1.bf16.xpose.msra.mxu0 0
        %2308 = vmatprep.subr.bf16.mxu0 0
        %2309 = vmatpush1.bf16.xpose.msra.mxu0 0
        %2310 = vmatprep.subr.bf16.mxu0 0
        %2311 = vmatpush1.bf16.xpose.msra.mxu0 0
        %2312 = vmatprep.subr.bf16.mxu0 0
        %2313 = vmatpush1.bf16.xpose.msra.mxu0 0
        %2314 = vmatprep.mubr.bf16.mxu0 0
        %2315 = vmatmul.mubr.bf16.gmra.mrb[0].mxu0 %v2218
        %v2316 = vpop.f32.mrb[0].mxu0
        %v2317 = vadd.f32 0.0, %v2316
        %v2318 = vpop.f32.mrb[0].mxu0
        %v2319 = vpop.f32.mrb[0].mxu0
        %v2320 = vadd.f32 0.0, %v2319
        %v2321 = vpop.f32.mrb[0].mxu0
        %2322 = vdwg.mxu0
        %2323 = vmatprep.subr.bf16.mxu0 0
        %2324 = vmatpush1.bf16.xpose.msra.mxu0 %v2229
        %2325 = vmatprep.subr.bf16.mxu0 0
        %2326 = vmatpush1.bf16.xpose.msra.mxu0 %v2230
        %2327 = vmatprep.subr.bf16.mxu0 0
        %2328 = vmatpush1.bf16.xpose.msra.mxu0 0
        %2329 = vmatprep.subr.bf16.mxu0 0
        %2330 = vmatpush1.bf16.xpose.msra.mxu0 0
        %2331 = vmatprep.subr.bf16.mxu0 0
        %2332 = vmatpush1.bf16.xpose.msra.mxu0 0
        %2333 = vmatprep.subr.bf16.mxu0 0
        %2334 = vmatpush1.bf16.xpose.msra.mxu0 0
        %2335 = vmatprep.subr.bf16.mxu0 0
        %2336 = vmatpush1.bf16.xpose.msra.mxu0 0
        %2337 = vmatprep.subr.bf16.mxu0 0
        %2338 = vmatpush1.bf16.xpose.msra.mxu0 0
        %2339 = vmatprep.subr.bf16.mxu0 0
        %2340 = vmatpush1.bf16.xpose.msra.mxu0 0
        %2341 = vmatprep.subr.bf16.mxu0 0
        %2342 = vmatpush1.bf16.xpose.msra.mxu0 0
        %2343 = vmatprep.subr.bf16.mxu0 0
        %2344 = vmatpush1.bf16.xpose.msra.mxu0 0
        %2345 = vmatprep.subr.bf16.mxu0 0
        %2346 = vmatpush1.bf16.xpose.msra.mxu0 0
        %2347 = vmatprep.subr.bf16.mxu0 0
        %2348 = vmatpush1.bf16.xpose.msra.mxu0 0
        %2349 = vmatprep.subr.bf16.mxu0 0
        %2350 = vmatpush1.bf16.xpose.msra.mxu0 0
        %2351 = vmatprep.subr.bf16.mxu0 0
        %2352 = vmatpush1.bf16.xpose.msra.mxu0 0
        %2353 = vmatprep.subr.bf16.mxu0 0
        %2354 = vmatpush1.bf16.xpose.msra.mxu0 0
        %2355 = vmatprep.mubr.bf16.mxu0 0
        %2356 = vmatmul.mubr.bf16.gmra.mrb[0].mxu0 %v2219
        %v2357 = vpop.f32.mrb[0].mxu0
        %v2358 = vadd.f32 0.0, %v2357
        %v2359 = vpop.f32.mrb[0].mxu0
        %v2360 = vpop.f32.mrb[0].mxu0
        %v2361 = vadd.f32 0.0, %v2360
        %v2362 = vpop.f32.mrb[0].mxu0
        %2363 = vdwg.mxu0
        %2364 = vmatprep.subr.bf16.mxu0 0
        %2365 = vmatpush1.bf16.xpose.msra.mxu0 %v2231
        %2366 = vmatprep.subr.bf16.mxu0 0
        %2367 = vmatpush1.bf16.xpose.msra.mxu0 %v2232
        %2368 = vmatprep.subr.bf16.mxu0 0
        %2369 = vmatpush1.bf16.xpose.msra.mxu0 0
        %2370 = vmatprep.subr.bf16.mxu0 0
        %2371 = vmatpush1.bf16.xpose.msra.mxu0 0
        %2372 = vmatprep.subr.bf16.mxu0 0
        %2373 = vmatpush1.bf16.xpose.msra.mxu0 0
        %2374 = vmatprep.subr.bf16.mxu0 0
        %2375 = vmatpush1.bf16.xpose.msra.mxu0 0
        %2376 = vmatprep.subr.bf16.mxu0 0
        %2377 = vmatpush1.bf16.xpose.msra.mxu0 0
        %2378 = vmatprep.subr.bf16.mxu0 0
        %2379 = vmatpush1.bf16.xpose.msra.mxu0 0
        %2380 = vmatprep.subr.bf16.mxu0 0
        %2381 = vmatpush1.bf16.xpose.msra.mxu0 0
        %2382 = vmatprep.subr.bf16.mxu0 0
        %2383 = vmatpush1.bf16.xpose.msra.mxu0 0
        %2384 = vmatprep.subr.bf16.mxu0 0
        %2385 = vmatpush1.bf16.xpose.msra.mxu0 0
        %2386 = vmatprep.subr.bf16.mxu0 0
        %2387 = vmatpush1.bf16.xpose.msra.mxu0 0
        %2388 = vmatprep.subr.bf16.mxu0 0
        %2389 = vmatpush1.bf16.xpose.msra.mxu0 0
        %2390 = vmatprep.subr.bf16.mxu0 0
        %2391 = vmatpush1.bf16.xpose.msra.mxu0 0
        %2392 = vmatprep.subr.bf16.mxu0 0
        %2393 = vmatpush1.bf16.xpose.msra.mxu0 0
        %2394 = vmatprep.subr.bf16.mxu0 0
        %2395 = vmatpush1.bf16.xpose.msra.mxu0 0
        %2396 = vmatprep.mubr.bf16.mxu0 0
        %2397 = vmatmul.mubr.bf16.gmra.mrb[0].mxu0 %v2220
        %v2398 = vpop.f32.mrb[0].mxu0
        %v2399 = vadd.f32 0.0, %v2398
        %v2400 = vpop.f32.mrb[0].mxu0
        %v2401 = vpop.f32.mrb[0].mxu0
        %v2402 = vadd.f32 0.0, %v2401
        %v2403 = vpop.f32.mrb[0].mxu0
        %2404 = vdwg.mxu0
        %2405 = vmatprep.subr.bf16.mxu0 0
        %2406 = vmatpush1.bf16.xpose.msra.mxu0 %v2233
        %2407 = vmatprep.subr.bf16.mxu0 0
        %2408 = vmatpush1.bf16.xpose.msra.mxu0 %v2234
        %2409 = vmatprep.subr.bf16.mxu0 0
        %2410 = vmatpush1.bf16.xpose.msra.mxu0 0
        %2411 = vmatprep.subr.bf16.mxu0 0
        %2412 = vmatpush1.bf16.xpose.msra.mxu0 0
        %2413 = vmatprep.subr.bf16.mxu0 0
        %2414 = vmatpush1.bf16.xpose.msra.mxu0 0
        %2415 = vmatprep.subr.bf16.mxu0 0
        %2416 = vmatpush1.bf16.xpose.msra.mxu0 0
        %2417 = vmatprep.subr.bf16.mxu0 0
        %2418 = vmatpush1.bf16.xpose.msra.mxu0 0
        %2419 = vmatprep.subr.bf16.mxu0 0
        %2420 = vmatpush1.bf16.xpose.msra.mxu0 0
        %2421 = vmatprep.subr.bf16.mxu0 0
        %2422 = vmatpush1.bf16.xpose.msra.mxu0 0
        %2423 = vmatprep.subr.bf16.mxu0 0
        %2424 = vmatpush1.bf16.xpose.msra.mxu0 0
        %2425 = vmatprep.subr.bf16.mxu0 0
        %2426 = vmatpush1.bf16.xpose.msra.mxu0 0
        %2427 = vmatprep.subr.bf16.mxu0 0
        %2428 = vmatpush1.bf16.xpose.msra.mxu0 0
        %2429 = vmatprep.subr.bf16.mxu0 0
        %2430 = vmatpush1.bf16.xpose.msra.mxu0 0
        %2431 = vmatprep.subr.bf16.mxu0 0
        %2432 = vmatpush1.bf16.xpose.msra.mxu0 0
        %2433 = vmatprep.subr.bf16.mxu0 0
        %2434 = vmatpush1.bf16.xpose.msra.mxu0 0
        %2435 = vmatprep.subr.bf16.mxu0 0
        %2436 = vmatpush1.bf16.xpose.msra.mxu0 0
        %2437 = vmatprep.mubr.bf16.mxu0 0
        %2438 = vmatmul.mubr.bf16.gmra.mrb[0].mxu0 %v2221
        %v2439 = vpop.f32.mrb[0].mxu0
        %v2440 = vadd.f32 0.0, %v2439
        %v2441 = vpop.f32.mrb[0].mxu0
        %v2442 = vpop.f32.mrb[0].mxu0
        %v2443 = vadd.f32 0.0, %v2442
        %v2444 = vpop.f32.mrb[0].mxu0
        %2445 = vdwg.mxu0
        %2446 = vmatprep.subr.bf16.mxu0 0
        %2447 = vmatpush1.bf16.xpose.msra.mxu0 %v2235
        %2448 = vmatprep.subr.bf16.mxu0 0
        %2449 = vmatpush1.bf16.xpose.msra.mxu0 %v2236
        %2450 = vmatprep.subr.bf16.mxu0 0
        %2451 = vmatpush1.bf16.xpose.msra.mxu0 0
        %2452 = vmatprep.subr.bf16.mxu0 0
        %2453 = vmatpush1.bf16.xpose.msra.mxu0 0
        %2454 = vmatprep.subr.bf16.mxu0 0
        %2455 = vmatpush1.bf16.xpose.msra.mxu0 0
        %2456 = vmatprep.subr.bf16.mxu0 0
        %2457 = vmatpush1.bf16.xpose.msra.mxu0 0
        %2458 = vmatprep.subr.bf16.mxu0 0
        %2459 = vmatpush1.bf16.xpose.msra.mxu0 0
        %2460 = vmatprep.subr.bf16.mxu0 0
        %2461 = vmatpush1.bf16.xpose.msra.mxu0 0
        %2462 = vmatprep.subr.bf16.mxu0 0
        %2463 = vmatpush1.bf16.xpose.msra.mxu0 0
        %2464 = vmatprep.subr.bf16.mxu0 0
        %2465 = vmatpush1.bf16.xpose.msra.mxu0 0
        %2466 = vmatprep.subr.bf16.mxu0 0
        %2467 = vmatpush1.bf16.xpose.msra.mxu0 0
        %2468 = vmatprep.subr.bf16.mxu0 0
        %2469 = vmatpush1.bf16.xpose.msra.mxu0 0
        %2470 = vmatprep.subr.bf16.mxu0 0
        %2471 = vmatpush1.bf16.xpose.msra.mxu0 0
        %2472 = vmatprep.subr.bf16.mxu0 0
        %2473 = vmatpush1.bf16.xpose.msra.mxu0 0
        %2474 = vmatprep.subr.bf16.mxu0 0
        %2475 = vmatpush1.bf16.xpose.msra.mxu0 0
        %2476 = vmatprep.subr.bf16.mxu0 0
        %2477 = vmatpush1.bf16.xpose.msra.mxu0 0
        %2478 = vmatprep.mubr.bf16.mxu0 0
        %2479 = vmatmul.mubr.bf16.gmra.mrb[0].mxu0 %v2222
        %v2480 = vpop.f32.mrb[0].mxu0
        %v2481 = vadd.f32 0.0, %v2480
        %v2482 = vpop.f32.mrb[0].mxu0
        %v2483 = vpop.f32.mrb[0].mxu0
        %v2484 = vadd.f32 0.0, %v2483
        %v2485 = vpop.f32.mrb[0].mxu0
        %2486 = vdwg.mxu0
        %2487 = vmatprep.subr.bf16.mxu0 0
        %2488 = vmatpush1.bf16.xpose.msra.mxu0 %v2237
        %2489 = vmatprep.subr.bf16.mxu0 0
        %2490 = vmatpush1.bf16.xpose.msra.mxu0 %v2238
        %2491 = vmatprep.subr.bf16.mxu0 0
        %2492 = vmatpush1.bf16.xpose.msra.mxu0 0
        %2493 = vmatprep.subr.bf16.mxu0 0
        %2494 = vmatpush1.bf16.xpose.msra.mxu0 0
        %2495 = vmatprep.subr.bf16.mxu0 0
        %2496 = vmatpush1.bf16.xpose.msra.mxu0 0
        %2497 = vmatprep.subr.bf16.mxu0 0
        %2498 = vmatpush1.bf16.xpose.msra.mxu0 0
        %2499 = vmatprep.subr.bf16.mxu0 0
        %2500 = vmatpush1.bf16.xpose.msra.mxu0 0
        %2501 = vmatprep.subr.bf16.mxu0 0
        %2502 = vmatpush1.bf16.xpose.msra.mxu0 0
        %2503 = vmatprep.subr.bf16.mxu0 0
        %2504 = vmatpush1.bf16.xpose.msra.mxu0 0
        %2505 = vmatprep.subr.bf16.mxu0 0
        %2506 = vmatpush1.bf16.xpose.msra.mxu0 0
        %2507 = vmatprep.subr.bf16.mxu0 0
        %2508 = vmatpush1.bf16.xpose.msra.mxu0 0
        %2509 = vmatprep.subr.bf16.mxu0 0
        %2510 = vmatpush1.bf16.xpose.msra.mxu0 0
        %2511 = vmatprep.subr.bf16.mxu0 0
        %2512 = vmatpush1.bf16.xpose.msra.mxu0 0
        %2513 = vmatprep.subr.bf16.mxu0 0
        %2514 = vmatpush1.bf16.xpose.msra.mxu0 0
        %2515 = vmatprep.subr.bf16.mxu0 0
        %2516 = vmatpush1.bf16.xpose.msra.mxu0 0
        %2517 = vmatprep.subr.bf16.mxu0 0
        %2518 = vmatpush1.bf16.xpose.msra.mxu0 0
        %2519 = vmatprep.mubr.bf16.mxu0 0
        %2520 = vmatmul.mubr.bf16.gmra.mrb[0].mxu0 %v2223
        %v2521 = vpop.f32.mrb[0].mxu0
        %v2522 = vadd.f32 0.0, %v2521
        %v2523 = vpop.f32.mrb[0].mxu0
        %v2524 = vpop.f32.mrb[0].mxu0
        %v2525 = vadd.f32 0.0, %v2524
        %v2526 = vpop.f32.mrb[0].mxu0
        %2527 = vdwg.mxu0
        %2528 = vmatprep.subr.bf16.mxu0 0
        %2529 = vmatpush1.bf16.xpose.msra.mxu0 %v2239
        %2530 = vmatprep.subr.bf16.mxu0 0
        %2531 = vmatpush1.bf16.xpose.msra.mxu0 %v2240
        %2532 = vmatprep.subr.bf16.mxu0 0
        %2533 = vmatpush1.bf16.xpose.msra.mxu0 0
        %2534 = vmatprep.subr.bf16.mxu0 0
        %2535 = vmatpush1.bf16.xpose.msra.mxu0 0
        %2536 = vmatprep.subr.bf16.mxu0 0
        %2537 = vmatpush1.bf16.xpose.msra.mxu0 0
        %2538 = vmatprep.subr.bf16.mxu0 0
        %2539 = vmatpush1.bf16.xpose.msra.mxu0 0
        %2540 = vmatprep.subr.bf16.mxu0 0
        %2541 = vmatpush1.bf16.xpose.msra.mxu0 0
        %2542 = vmatprep.subr.bf16.mxu0 0
        %2543 = vmatpush1.bf16.xpose.msra.mxu0 0
        %2544 = vmatprep.subr.bf16.mxu0 0
        %2545 = vmatpush1.bf16.xpose.msra.mxu0 0
        %2546 = vmatprep.subr.bf16.mxu0 0
        %2547 = vmatpush1.bf16.xpose.msra.mxu0 0
        %2548 = vmatprep.subr.bf16.mxu0 0
        %2549 = vmatpush1.bf16.xpose.msra.mxu0 0
        %2550 = vmatprep.subr.bf16.mxu0 0
        %2551 = vmatpush1.bf16.xpose.msra.mxu0 0
        %2552 = vmatprep.subr.bf16.mxu0 0
        %2553 = vmatpush1.bf16.xpose.msra.mxu0 0
        %2554 = vmatprep.subr.bf16.mxu0 0
        %2555 = vmatpush1.bf16.xpose.msra.mxu0 0
        %2556 = vmatprep.subr.bf16.mxu0 0
        %2557 = vmatpush1.bf16.xpose.msra.mxu0 0
        %2558 = vmatprep.subr.bf16.mxu0 0
        %2559 = vmatpush1.bf16.xpose.msra.mxu0 0
        %2560 = vmatprep.mubr.bf16.mxu0 0
        %2561 = vmatmul.mubr.bf16.gmra.mrb[0].mxu0 %v2224
        %v2562 = vpop.f32.mrb[0].mxu0
        %v2563 = vadd.f32 0.0, %v2562
        %v2564 = vpop.f32.mrb[0].mxu0
        %v2565 = vpop.f32.mrb[0].mxu0
        %v2566 = vadd.f32 0.0, %v2565
        %v2567 = vpop.f32.mrb[0].mxu0
        %2568 = vdwg.mxu0
        %vm2569 = vcmask 261120
        %v2570 = vsel %vm2569, %v2276, -inf
        %2571 = vmax.xlane.f32.xlu0 %v2570
        %v2572 = vpop.xlane.xlu0 %2571
        %v2573 = vsel %vm2569, %v2279, -inf
        %2574 = vmax.xlane.f32.xlu0 %v2573
        %v2575 = vpop.xlane.xlu0 %2574
        %v2576 = vsel %vm2569, %v2317, -inf
        %2577 = vmax.xlane.f32.xlu0 %v2576
        %v2578 = vpop.xlane.xlu0 %2577
        %v2579 = vsel %vm2569, %v2320, -inf
        %2580 = vmax.xlane.f32.xlu0 %v2579
        %v2581 = vpop.xlane.xlu0 %2580
        %v2582 = vsel %vm2569, %v2358, -inf
        %2583 = vmax.xlane.f32.xlu0 %v2582
        %v2584 = vpop.xlane.xlu0 %2583
        %v2585 = vsel %vm2569, %v2361, -inf
        %2586 = vmax.xlane.f32.xlu0 %v2585
        %v2587 = vpop.xlane.xlu0 %2586
        %v2588 = vsel %vm2569, %v2399, -inf
        %2589 = vmax.xlane.f32.xlu0 %v2588
        %v2590 = vpop.xlane.xlu0 %2589
        %v2591 = vsel %vm2569, %v2402, -inf
        %2592 = vmax.xlane.f32.xlu0 %v2591
        %v2593 = vpop.xlane.xlu0 %2592
        %v2594 = vsel %vm2569, %v2440, -inf
        %2595 = vmax.xlane.f32.xlu0 %v2594
        %v2596 = vpop.xlane.xlu0 %2595
        %v2597 = vsel %vm2569, %v2443, -inf
        %2598 = vmax.xlane.f32.xlu0 %v2597
        %v2599 = vpop.xlane.xlu0 %2598
        %v2600 = vsel %vm2569, %v2481, -inf
        %2601 = vmax.xlane.f32.xlu0 %v2600
        %v2602 = vpop.xlane.xlu0 %2601
        %v2603 = vsel %vm2569, %v2484, -inf
        %2604 = vmax.xlane.f32.xlu0 %v2603
        %v2605 = vpop.xlane.xlu0 %2604
        %v2606 = vsel %vm2569, %v2522, -inf
        %2607 = vmax.xlane.f32.xlu0 %v2606
        %v2608 = vpop.xlane.xlu0 %2607
        %v2609 = vsel %vm2569, %v2525, -inf
        %2610 = vmax.xlane.f32.xlu0 %v2609
        %v2611 = vpop.xlane.xlu0 %2610
        %v2612 = vsel %vm2569, %v2563, -inf
        %2613 = vmax.xlane.f32.xlu0 %v2612
        %v2614 = vpop.xlane.xlu0 %2613
        %v2615 = vsel %vm2569, %v2566, -inf
        %2616 = vmax.xlane.f32.xlu0 %v2615
        %v2617 = vpop.xlane.xlu0 %2616
        %v2618 = vsub.f32 %v2276, %v2572
        %v2619 = vsub.f32 %v2279, %v2575
        %v2620 = vsub.f32 %v2317, %v2578
        %v2621 = vsub.f32 %v2320, %v2581
        %v2622 = vsub.f32 %v2358, %v2584
        %v2623 = vsub.f32 %v2361, %v2587
        %v2624 = vsub.f32 %v2399, %v2590
        %v2625 = vsub.f32 %v2402, %v2593
        %v2626 = vsub.f32 %v2440, %v2596
        %v2627 = vsub.f32 %v2443, %v2599
        %v2628 = vsub.f32 %v2481, %v2602
        %v2629 = vsub.f32 %v2484, %v2605
        %v2630 = vsub.f32 %v2522, %v2608
        %v2631 = vsub.f32 %v2525, %v2611
        %v2632 = vsub.f32 %v2563, %v2614
        %v2633 = vsub.f32 %v2566, %v2617
        %v2634 = vmul.f32 %v2618, 1.442695
        %v2635 = vpow.pop %v2634
        %v2636 = vmul.f32 %v2619, 1.442695
        %v2637 = vpow.pop %v2636
        %v2638 = vmul.f32 %v2620, 1.442695
        %v2639 = vpow.pop %v2638
        %v2640 = vmul.f32 %v2621, 1.442695
        %v2641 = vpow.pop %v2640
        %v2642 = vmul.f32 %v2622, 1.442695
        %v2643 = vpow.pop %v2642
        %v2644 = vmul.f32 %v2623, 1.442695
        %v2645 = vpow.pop %v2644
        %v2646 = vmul.f32 %v2624, 1.442695
        %v2647 = vpow.pop %v2646
        %v2648 = vmul.f32 %v2625, 1.442695
        %v2649 = vpow.pop %v2648
        %v2650 = vmul.f32 %v2626, 1.442695
        %v2651 = vpow.pop %v2650
        %v2652 = vmul.f32 %v2627, 1.442695
        %v2653 = vpow.pop %v2652
        %v2654 = vmul.f32 %v2628, 1.442695
        %v2655 = vpow.pop %v2654
        %v2656 = vmul.f32 %v2629, 1.442695
        %v2657 = vpow.pop %v2656
        %v2658 = vmul.f32 %v2630, 1.442695
        %v2659 = vpow.pop %v2658
        %v2660 = vmul.f32 %v2631, 1.442695
        %v2661 = vpow.pop %v2660
        %v2662 = vmul.f32 %v2632, 1.442695
        %v2663 = vpow.pop %v2662
        %v2664 = vmul.f32 %v2633, 1.442695
        %v2665 = vpow.pop %v2664
        %v2666 = vsel %vm2569, %v2635, 0.0
        %2667 = vadd.xlane.f32.xlu0 %v2666
        %v2668 = vpop.xlane.xlu0 %2667
        %v2669 = vsel %vm2569, %v2637, 0.0
        %2670 = vadd.xlane.f32.xlu0 %v2669
        %v2671 = vpop.xlane.xlu0 %2670
        %v2672 = vsel %vm2569, %v2639, 0.0
        %2673 = vadd.xlane.f32.xlu0 %v2672
        %v2674 = vpop.xlane.xlu0 %2673
        %v2675 = vsel %vm2569, %v2641, 0.0
        %2676 = vadd.xlane.f32.xlu0 %v2675
        %v2677 = vpop.xlane.xlu0 %2676
        %v2678 = vsel %vm2569, %v2643, 0.0
        %2679 = vadd.xlane.f32.xlu0 %v2678
        %v2680 = vpop.xlane.xlu0 %2679
        %v2681 = vsel %vm2569, %v2645, 0.0
        %2682 = vadd.xlane.f32.xlu0 %v2681
        %v2683 = vpop.xlane.xlu0 %2682
        %v2684 = vsel %vm2569, %v2647, 0.0
        %2685 = vadd.xlane.f32.xlu0 %v2684
        %v2686 = vpop.xlane.xlu0 %2685
        %v2687 = vsel %vm2569, %v2649, 0.0
        %2688 = vadd.xlane.f32.xlu0 %v2687
        %v2689 = vpop.xlane.xlu0 %2688
        %v2690 = vsel %vm2569, %v2651, 0.0
        %2691 = vadd.xlane.f32.xlu0 %v2690
        %v2692 = vpop.xlane.xlu0 %2691
        %v2693 = vsel %vm2569, %v2653, 0.0
        %2694 = vadd.xlane.f32.xlu0 %v2693
        %v2695 = vpop.xlane.xlu0 %2694
        %v2696 = vsel %vm2569, %v2655, 0.0
        %2697 = vadd.xlane.f32.xlu0 %v2696
        %v2698 = vpop.xlane.xlu0 %2697
        %v2699 = vsel %vm2569, %v2657, 0.0
        %2700 = vadd.xlane.f32.xlu0 %v2699
        %v2701 = vpop.xlane.xlu0 %2700
        %v2702 = vsel %vm2569, %v2659, 0.0
        %2703 = vadd.xlane.f32.xlu0 %v2702
        %v2704 = vpop.xlane.xlu0 %2703
        %v2705 = vsel %vm2569, %v2661, 0.0
        %2706 = vadd.xlane.f32.xlu0 %v2705
        %v2707 = vpop.xlane.xlu0 %2706
        %v2708 = vsel %vm2569, %v2663, 0.0
        %2709 = vadd.xlane.f32.xlu0 %v2708
        %v2710 = vpop.xlane.xlu0 %2709
        %v2711 = vsel %vm2569, %v2665, 0.0
        %2712 = vadd.xlane.f32.xlu0 %v2711
        %v2713 = vpop.xlane.xlu0 %2712
        %v2714 = vrcp.pop %v2668
        %v2715 = vrcp.pop %v2671
        %v2716 = vrcp.pop %v2674
        %v2717 = vrcp.pop %v2677
        %v2718 = vrcp.pop %v2680
        %v2719 = vrcp.pop %v2683
        %v2720 = vrcp.pop %v2686
        %v2721 = vrcp.pop %v2689
        %v2722 = vrcp.pop %v2692
        %v2723 = vrcp.pop %v2695
        %v2724 = vrcp.pop %v2698
        %v2725 = vrcp.pop %v2701
        %v2726 = vrcp.pop %v2704
        %v2727 = vrcp.pop %v2707
        %v2728 = vrcp.pop %v2710
        %v2729 = vrcp.pop %v2713
        %v2730 = vmul.f32 %v2635, %v2714
        %v2731 = vmul.f32 %v2637, %v2715
        %v2732 = vmul.f32 %v2639, %v2716
        %v2733 = vmul.f32 %v2641, %v2717
        %v2734 = vmul.f32 %v2643, %v2718
        %v2735 = vmul.f32 %v2645, %v2719
        %v2736 = vmul.f32 %v2647, %v2720
        %v2737 = vmul.f32 %v2649, %v2721
        %v2738 = vmul.f32 %v2651, %v2722
        %v2739 = vmul.f32 %v2653, %v2723
        %v2740 = vmul.f32 %v2655, %v2724
        %v2741 = vmul.f32 %v2657, %v2725
        %v2742 = vmul.f32 %v2659, %v2726
        %v2743 = vmul.f32 %v2661, %v2727
        %v2744 = vmul.f32 %v2663, %v2728
        %v2745 = vmul.f32 %v2665, %v2729
        %v2746 = vpack.c.bf16 %v2731, %v2730
        %v2747 = vpack.c.bf16 %v2733, %v2732
        %v2748 = vpack.c.bf16 %v2735, %v2734
        %v2749 = vpack.c.bf16 %v2737, %v2736
        %v2750 = vpack.c.bf16 %v2739, %v2738
        %v2751 = vpack.c.bf16 %v2741, %v2740
        %v2752 = vpack.c.bf16 %v2743, %v2742
        %v2753 = vpack.c.bf16 %v2745, %v2744
        %v2754 = vpack.c.bf16 %v2094, %v2091
        %v2755 = vpack.c.bf16 %v2102, %v2099
        %v2756 = vpack.c.bf16 %v2110, %v2107
        %v2757 = vpack.c.bf16 %v2118, %v2115
        %v2758 = vpack.c.bf16 %v2126, %v2123
        %v2759 = vpack.c.bf16 %v2134, %v2131
        %v2760 = vpack.c.bf16 %v2142, %v2139
        %v2761 = vpack.c.bf16 %v2150, %v2147
        %v2762 = vpack.c.bf16 %v2158, %v2155
        %v2763 = vpack.c.bf16 %v2166, %v2163
        %v2764 = vpack.c.bf16 %v2174, %v2171
        %v2765 = vpack.c.bf16 %v2182, %v2179
        %v2766 = vpack.c.bf16 %v2190, %v2187
        %v2767 = vpack.c.bf16 %v2198, %v2195
        %v2768 = vpack.c.bf16 %v2206, %v2203
        %v2769 = vpack.c.bf16 %v2214, %v2211
        %v2771 = vsel %vm2569, %v2746, 0
        %2773 = vmatprep.subr.bf16.mxu0 0
        %2774 = vmatpush1.bf16.msra.mxu0 %v2754
        %2775 = vmatprep.subr.bf16.mxu0 0
        %2776 = vmatpush1.bf16.msra.mxu0 %v2755
        %2777 = vmatprep.subr.bf16.mxu0 0
        %2778 = vmatpush1.bf16.msra.mxu0 0
        %2779 = vmatprep.subr.bf16.mxu0 0
        %2780 = vmatpush1.bf16.msra.mxu0 0
        %2781 = vmatprep.subr.bf16.mxu0 0
        %2782 = vmatpush1.bf16.msra.mxu0 0
        %2783 = vmatprep.subr.bf16.mxu0 0
        %2784 = vmatpush1.bf16.msra.mxu0 0
        %2785 = vmatprep.subr.bf16.mxu0 0
        %2786 = vmatpush1.bf16.msra.mxu0 0
        %2787 = vmatprep.subr.bf16.mxu0 0
        %2788 = vmatpush1.bf16.msra.mxu0 0
        %2789 = vmatprep.subr.bf16.mxu0 0
        %2790 = vmatpush1.bf16.msra.mxu0 0
        %2791 = vmatprep.subr.bf16.mxu0 0
        %2792 = vmatpush1.bf16.msra.mxu0 0
        %2793 = vmatprep.subr.bf16.mxu0 0
        %2794 = vmatpush1.bf16.msra.mxu0 0
        %2795 = vmatprep.subr.bf16.mxu0 0
        %2796 = vmatpush1.bf16.msra.mxu0 0
        %2797 = vmatprep.subr.bf16.mxu0 0
        %2798 = vmatpush1.bf16.msra.mxu0 0
        %2799 = vmatprep.subr.bf16.mxu0 0
        %2800 = vmatpush1.bf16.msra.mxu0 0
        %2801 = vmatprep.subr.bf16.mxu0 0
        %2802 = vmatpush1.bf16.msra.mxu0 0
        %2803 = vmatprep.subr.bf16.mxu0 0
        %2804 = vmatpush1.bf16.msra.mxu0 0
        %2805 = vmatprep.mubr.bf16.mxu0 0
        %2806 = vmatmul.mubr.bf16.gmra.mrb[0].mxu0 %v2771
        %v2807 = vpop.f32.mrb[0].mxu0
        %v2808 = vadd.f32 0.0, %v2807
        %v2809 = vpop.f32.mrb[0].mxu0
        %v2810 = vpop.f32.mrb[0].mxu0
        %v2811 = vadd.f32 0.0, %v2810
        %v2812 = vpop.f32.mrb[0].mxu0
        %2813 = vdwg.mxu0
        %v2815 = vsel %vm2569, %v2747, 0
        %2817 = vmatprep.subr.bf16.mxu0 0
        %2818 = vmatpush1.bf16.msra.mxu0 %v2756
        %2819 = vmatprep.subr.bf16.mxu0 0
        %2820 = vmatpush1.bf16.msra.mxu0 %v2757
        %2821 = vmatprep.subr.bf16.mxu0 0
        %2822 = vmatpush1.bf16.msra.mxu0 0
        %2823 = vmatprep.subr.bf16.mxu0 0
        %2824 = vmatpush1.bf16.msra.mxu0 0
        %2825 = vmatprep.subr.bf16.mxu0 0
        %2826 = vmatpush1.bf16.msra.mxu0 0
        %2827 = vmatprep.subr.bf16.mxu0 0
        %2828 = vmatpush1.bf16.msra.mxu0 0
        %2829 = vmatprep.subr.bf16.mxu0 0
        %2830 = vmatpush1.bf16.msra.mxu0 0
        %2831 = vmatprep.subr.bf16.mxu0 0
        %2832 = vmatpush1.bf16.msra.mxu0 0
        %2833 = vmatprep.subr.bf16.mxu0 0
        %2834 = vmatpush1.bf16.msra.mxu0 0
        %2835 = vmatprep.subr.bf16.mxu0 0
        %2836 = vmatpush1.bf16.msra.mxu0 0
        %2837 = vmatprep.subr.bf16.mxu0 0
        %2838 = vmatpush1.bf16.msra.mxu0 0
        %2839 = vmatprep.subr.bf16.mxu0 0
        %2840 = vmatpush1.bf16.msra.mxu0 0
        %2841 = vmatprep.subr.bf16.mxu0 0
        %2842 = vmatpush1.bf16.msra.mxu0 0
        %2843 = vmatprep.subr.bf16.mxu0 0
        %2844 = vmatpush1.bf16.msra.mxu0 0
        %2845 = vmatprep.subr.bf16.mxu0 0
        %2846 = vmatpush1.bf16.msra.mxu0 0
        %2847 = vmatprep.subr.bf16.mxu0 0
        %2848 = vmatpush1.bf16.msra.mxu0 0
        %2849 = vmatprep.mubr.bf16.mxu0 0
        %2850 = vmatmul.mubr.bf16.gmra.mrb[0].mxu0 %v2815
        %v2851 = vpop.f32.mrb[0].mxu0
        %v2852 = vadd.f32 0.0, %v2851
        %v2853 = vpop.f32.mrb[0].mxu0
        %v2854 = vpop.f32.mrb[0].mxu0
        %v2855 = vadd.f32 0.0, %v2854
        %v2856 = vpop.f32.mrb[0].mxu0
        %2857 = vdwg.mxu0
        %v2859 = vsel %vm2569, %v2748, 0
        %2861 = vmatprep.subr.bf16.mxu0 0
        %2862 = vmatpush1.bf16.msra.mxu0 %v2758
        %2863 = vmatprep.subr.bf16.mxu0 0
        %2864 = vmatpush1.bf16.msra.mxu0 %v2759
        %2865 = vmatprep.subr.bf16.mxu0 0
        %2866 = vmatpush1.bf16.msra.mxu0 0
        %2867 = vmatprep.subr.bf16.mxu0 0
        %2868 = vmatpush1.bf16.msra.mxu0 0
        %2869 = vmatprep.subr.bf16.mxu0 0
        %2870 = vmatpush1.bf16.msra.mxu0 0
        %2871 = vmatprep.subr.bf16.mxu0 0
        %2872 = vmatpush1.bf16.msra.mxu0 0
        %2873 = vmatprep.subr.bf16.mxu0 0
        %2874 = vmatpush1.bf16.msra.mxu0 0
        %2875 = vmatprep.subr.bf16.mxu0 0
        %2876 = vmatpush1.bf16.msra.mxu0 0
        %2877 = vmatprep.subr.bf16.mxu0 0
        %2878 = vmatpush1.bf16.msra.mxu0 0
        %2879 = vmatprep.subr.bf16.mxu0 0
        %2880 = vmatpush1.bf16.msra.mxu0 0
        %2881 = vmatprep.subr.bf16.mxu0 0
        %2882 = vmatpush1.bf16.msra.mxu0 0
        %2883 = vmatprep.subr.bf16.mxu0 0
        %2884 = vmatpush1.bf16.msra.mxu0 0
        %2885 = vmatprep.subr.bf16.mxu0 0
        %2886 = vmatpush1.bf16.msra.mxu0 0
        %2887 = vmatprep.subr.bf16.mxu0 0
        %2888 = vmatpush1.bf16.msra.mxu0 0
        %2889 = vmatprep.subr.bf16.mxu0 0
        %2890 = vmatpush1.bf16.msra.mxu0 0
        %2891 = vmatprep.subr.bf16.mxu0 0
        %2892 = vmatpush1.bf16.msra.mxu0 0
        %2893 = vmatprep.mubr.bf16.mxu0 0
        %2894 = vmatmul.mubr.bf16.gmra.mrb[0].mxu0 %v2859
        %v2895 = vpop.f32.mrb[0].mxu0
        %v2896 = vadd.f32 0.0, %v2895
        %v2897 = vpop.f32.mrb[0].mxu0
        %v2898 = vpop.f32.mrb[0].mxu0
        %v2899 = vadd.f32 0.0, %v2898
        %v2900 = vpop.f32.mrb[0].mxu0
        %2901 = vdwg.mxu0
        %v2903 = vsel %vm2569, %v2749, 0
        %2905 = vmatprep.subr.bf16.mxu0 0
        %2906 = vmatpush1.bf16.msra.mxu0 %v2760
        %2907 = vmatprep.subr.bf16.mxu0 0
        %2908 = vmatpush1.bf16.msra.mxu0 %v2761
        %2909 = vmatprep.subr.bf16.mxu0 0
        %2910 = vmatpush1.bf16.msra.mxu0 0
        %2911 = vmatprep.subr.bf16.mxu0 0
        %2912 = vmatpush1.bf16.msra.mxu0 0
        %2913 = vmatprep.subr.bf16.mxu0 0
        %2914 = vmatpush1.bf16.msra.mxu0 0
        %2915 = vmatprep.subr.bf16.mxu0 0
        %2916 = vmatpush1.bf16.msra.mxu0 0
        %2917 = vmatprep.subr.bf16.mxu0 0
        %2918 = vmatpush1.bf16.msra.mxu0 0
        %2919 = vmatprep.subr.bf16.mxu0 0
        %2920 = vmatpush1.bf16.msra.mxu0 0
        %2921 = vmatprep.subr.bf16.mxu0 0
        %2922 = vmatpush1.bf16.msra.mxu0 0
        %2923 = vmatprep.subr.bf16.mxu0 0
        %2924 = vmatpush1.bf16.msra.mxu0 0
        %2925 = vmatprep.subr.bf16.mxu0 0
        %2926 = vmatpush1.bf16.msra.mxu0 0
        %2927 = vmatprep.subr.bf16.mxu0 0
        %2928 = vmatpush1.bf16.msra.mxu0 0
        %2929 = vmatprep.subr.bf16.mxu0 0
        %2930 = vmatpush1.bf16.msra.mxu0 0
        %2931 = vmatprep.subr.bf16.mxu0 0
        %2932 = vmatpush1.bf16.msra.mxu0 0
        %2933 = vmatprep.subr.bf16.mxu0 0
        %2934 = vmatpush1.bf16.msra.mxu0 0
        %2935 = vmatprep.subr.bf16.mxu0 0
        %2936 = vmatpush1.bf16.msra.mxu0 0
        %2937 = vmatprep.mubr.bf16.mxu0 0
        %2938 = vmatmul.mubr.bf16.gmra.mrb[0].mxu0 %v2903
        %v2939 = vpop.f32.mrb[0].mxu0
        %v2940 = vadd.f32 0.0, %v2939
        %v2941 = vpop.f32.mrb[0].mxu0
        %v2942 = vpop.f32.mrb[0].mxu0
        %v2943 = vadd.f32 0.0, %v2942
        %v2944 = vpop.f32.mrb[0].mxu0
        %2945 = vdwg.mxu0
        %v2947 = vsel %vm2569, %v2750, 0
        %2949 = vmatprep.subr.bf16.mxu0 0
        %2950 = vmatpush1.bf16.msra.mxu0 %v2762
        %2951 = vmatprep.subr.bf16.mxu0 0
        %2952 = vmatpush1.bf16.msra.mxu0 %v2763
        %2953 = vmatprep.subr.bf16.mxu0 0
        %2954 = vmatpush1.bf16.msra.mxu0 0
        %2955 = vmatprep.subr.bf16.mxu0 0
        %2956 = vmatpush1.bf16.msra.mxu0 0
        %2957 = vmatprep.subr.bf16.mxu0 0
        %2958 = vmatpush1.bf16.msra.mxu0 0
        %2959 = vmatprep.subr.bf16.mxu0 0
        %2960 = vmatpush1.bf16.msra.mxu0 0
        %2961 = vmatprep.subr.bf16.mxu0 0
        %2962 = vmatpush1.bf16.msra.mxu0 0
        %2963 = vmatprep.subr.bf16.mxu0 0
        %2964 = vmatpush1.bf16.msra.mxu0 0
        %2965 = vmatprep.subr.bf16.mxu0 0
        %2966 = vmatpush1.bf16.msra.mxu0 0
        %2967 = vmatprep.subr.bf16.mxu0 0
        %2968 = vmatpush1.bf16.msra.mxu0 0
        %2969 = vmatprep.subr.bf16.mxu0 0
        %2970 = vmatpush1.bf16.msra.mxu0 0
        %2971 = vmatprep.subr.bf16.mxu0 0
        %2972 = vmatpush1.bf16.msra.mxu0 0
        %2973 = vmatprep.subr.bf16.mxu0 0
        %2974 = vmatpush1.bf16.msra.mxu0 0
        %2975 = vmatprep.subr.bf16.mxu0 0
        %2976 = vmatpush1.bf16.msra.mxu0 0
        %2977 = vmatprep.subr.bf16.mxu0 0
        %2978 = vmatpush1.bf16.msra.mxu0 0
        %2979 = vmatprep.subr.bf16.mxu0 0
        %2980 = vmatpush1.bf16.msra.mxu0 0
        %2981 = vmatprep.mubr.bf16.mxu0 0
        %2982 = vmatmul.mubr.bf16.gmra.mrb[0].mxu0 %v2947
        %v2983 = vpop.f32.mrb[0].mxu0
        %v2984 = vadd.f32 0.0, %v2983
        %v2985 = vpop.f32.mrb[0].mxu0
        %v2986 = vpop.f32.mrb[0].mxu0
        %v2987 = vadd.f32 0.0, %v2986
        %v2988 = vpop.f32.mrb[0].mxu0
        %2989 = vdwg.mxu0
        %v2991 = vsel %vm2569, %v2751, 0
        %2993 = vmatprep.subr.bf16.mxu0 0
        %2994 = vmatpush1.bf16.msra.mxu0 %v2764
        %2995 = vmatprep.subr.bf16.mxu0 0
        %2996 = vmatpush1.bf16.msra.mxu0 %v2765
        %2997 = vmatprep.subr.bf16.mxu0 0
        %2998 = vmatpush1.bf16.msra.mxu0 0
        %2999 = vmatprep.subr.bf16.mxu0 0
        %3000 = vmatpush1.bf16.msra.mxu0 0
        %3001 = vmatprep.subr.bf16.mxu0 0
        %3002 = vmatpush1.bf16.msra.mxu0 0
        %3003 = vmatprep.subr.bf16.mxu0 0
        %3004 = vmatpush1.bf16.msra.mxu0 0
        %3005 = vmatprep.subr.bf16.mxu0 0
        %3006 = vmatpush1.bf16.msra.mxu0 0
        %3007 = vmatprep.subr.bf16.mxu0 0
        %3008 = vmatpush1.bf16.msra.mxu0 0
        %3009 = vmatprep.subr.bf16.mxu0 0
        %3010 = vmatpush1.bf16.msra.mxu0 0
        %3011 = vmatprep.subr.bf16.mxu0 0
        %3012 = vmatpush1.bf16.msra.mxu0 0
        %3013 = vmatprep.subr.bf16.mxu0 0
        %3014 = vmatpush1.bf16.msra.mxu0 0
        %3015 = vmatprep.subr.bf16.mxu0 0
        %3016 = vmatpush1.bf16.msra.mxu0 0
        %3017 = vmatprep.subr.bf16.mxu0 0
        %3018 = vmatpush1.bf16.msra.mxu0 0
        %3019 = vmatprep.subr.bf16.mxu0 0
        %3020 = vmatpush1.bf16.msra.mxu0 0
        %3021 = vmatprep.subr.bf16.mxu0 0
        %3022 = vmatpush1.bf16.msra.mxu0 0
        %3023 = vmatprep.subr.bf16.mxu0 0
        %3024 = vmatpush1.bf16.msra.mxu0 0
        %3025 = vmatprep.mubr.bf16.mxu0 0
        %3026 = vmatmul.mubr.bf16.gmra.mrb[0].mxu0 %v2991
        %v3027 = vpop.f32.mrb[0].mxu0
        %v3028 = vadd.f32 0.0, %v3027
        %v3029 = vpop.f32.mrb[0].mxu0
        %v3030 = vpop.f32.mrb[0].mxu0
        %v3031 = vadd.f32 0.0, %v3030
        %v3032 = vpop.f32.mrb[0].mxu0
        %3033 = vdwg.mxu0
        %v3035 = vsel %vm2569, %v2752, 0
        %3037 = vmatprep.subr.bf16.mxu0 0
        %3038 = vmatpush1.bf16.msra.mxu0 %v2766
        %3039 = vmatprep.subr.bf16.mxu0 0
        %3040 = vmatpush1.bf16.msra.mxu0 %v2767
        %3041 = vmatprep.subr.bf16.mxu0 0
        %3042 = vmatpush1.bf16.msra.mxu0 0
        %3043 = vmatprep.subr.bf16.mxu0 0
        %3044 = vmatpush1.bf16.msra.mxu0 0
        %3045 = vmatprep.subr.bf16.mxu0 0
        %3046 = vmatpush1.bf16.msra.mxu0 0
        %3047 = vmatprep.subr.bf16.mxu0 0
        %3048 = vmatpush1.bf16.msra.mxu0 0
        %3049 = vmatprep.subr.bf16.mxu0 0
        %3050 = vmatpush1.bf16.msra.mxu0 0
        %3051 = vmatprep.subr.bf16.mxu0 0
        %3052 = vmatpush1.bf16.msra.mxu0 0
        %3053 = vmatprep.subr.bf16.mxu0 0
        %3054 = vmatpush1.bf16.msra.mxu0 0
        %3055 = vmatprep.subr.bf16.mxu0 0
        %3056 = vmatpush1.bf16.msra.mxu0 0
        %3057 = vmatprep.subr.bf16.mxu0 0
        %3058 = vmatpush1.bf16.msra.mxu0 0
        %3059 = vmatprep.subr.bf16.mxu0 0
        %3060 = vmatpush1.bf16.msra.mxu0 0
        %3061 = vmatprep.subr.bf16.mxu0 0
        %3062 = vmatpush1.bf16.msra.mxu0 0
        %3063 = vmatprep.subr.bf16.mxu0 0
        %3064 = vmatpush1.bf16.msra.mxu0 0
        %3065 = vmatprep.subr.bf16.mxu0 0
        %3066 = vmatpush1.bf16.msra.mxu0 0
        %3067 = vmatprep.subr.bf16.mxu0 0
        %3068 = vmatpush1.bf16.msra.mxu0 0
        %3069 = vmatprep.mubr.bf16.mxu0 0
        %3070 = vmatmul.mubr.bf16.gmra.mrb[0].mxu0 %v3035
        %v3071 = vpop.f32.mrb[0].mxu0
        %v3072 = vadd.f32 0.0, %v3071
        %v3073 = vpop.f32.mrb[0].mxu0
        %v3074 = vpop.f32.mrb[0].mxu0
        %v3075 = vadd.f32 0.0, %v3074
        %v3076 = vpop.f32.mrb[0].mxu0
        %3077 = vdwg.mxu0
        %v3079 = vsel %vm2569, %v2753, 0
        %3081 = vmatprep.subr.bf16.mxu0 0
        %3082 = vmatpush1.bf16.msra.mxu0 %v2768
        %3083 = vmatprep.subr.bf16.mxu0 0
        %3084 = vmatpush1.bf16.msra.mxu0 %v2769
        %3085 = vmatprep.subr.bf16.mxu0 0
        %3086 = vmatpush1.bf16.msra.mxu0 0
        %3087 = vmatprep.subr.bf16.mxu0 0
        %3088 = vmatpush1.bf16.msra.mxu0 0
        %3089 = vmatprep.subr.bf16.mxu0 0
        %3090 = vmatpush1.bf16.msra.mxu0 0
        %3091 = vmatprep.subr.bf16.mxu0 0
        %3092 = vmatpush1.bf16.msra.mxu0 0
        %3093 = vmatprep.subr.bf16.mxu0 0
        %3094 = vmatpush1.bf16.msra.mxu0 0
        %3095 = vmatprep.subr.bf16.mxu0 0
        %3096 = vmatpush1.bf16.msra.mxu0 0
        %3097 = vmatprep.subr.bf16.mxu0 0
        %3098 = vmatpush1.bf16.msra.mxu0 0
        %3099 = vmatprep.subr.bf16.mxu0 0
        %3100 = vmatpush1.bf16.msra.mxu0 0
        %3101 = vmatprep.subr.bf16.mxu0 0
        %3102 = vmatpush1.bf16.msra.mxu0 0
        %3103 = vmatprep.subr.bf16.mxu0 0
        %3104 = vmatpush1.bf16.msra.mxu0 0
        %3105 = vmatprep.subr.bf16.mxu0 0
        %3106 = vmatpush1.bf16.msra.mxu0 0
        %3107 = vmatprep.subr.bf16.mxu0 0
        %3108 = vmatpush1.bf16.msra.mxu0 0
        %3109 = vmatprep.subr.bf16.mxu0 0
        %3110 = vmatpush1.bf16.msra.mxu0 0
        %3111 = vmatprep.subr.bf16.mxu0 0
        %3112 = vmatpush1.bf16.msra.mxu0 0
        %3113 = vmatprep.mubr.bf16.mxu0 0
        %3114 = vmatmul.mubr.bf16.gmra.mrb[0].mxu0 %v3079
        %v3115 = vpop.f32.mrb[0].mxu0
        %v3116 = vadd.f32 0.0, %v3115
        %v3117 = vpop.f32.mrb[0].mxu0
        %v3118 = vpop.f32.mrb[0].mxu0
        %v3119 = vadd.f32 0.0, %v3118
        %v3120 = vpop.f32.mrb[0].mxu0
        %3121 = vdwg.mxu0
        %v3122 = vpack.c.bf16 %v2811, %v2808
        %v3123 = vpack.c.bf16 %v2855, %v2852
        %v3124 = vpack.c.bf16 %v2899, %v2896
        %v3125 = vpack.c.bf16 %v2943, %v2940
        %v3126 = vpack.c.bf16 %v2987, %v2984
        %v3127 = vpack.c.bf16 %v3031, %v3028
        %v3128 = vpack.c.bf16 %v3075, %v3072
        %v3129 = vpack.c.bf16 %v3119, %v3116
        %v3130 = vld [vmem:[%s12] sm:$0xf]
        %v3131 = vld [vmem:[%s12 + $0x4] sm:$0xf]
        %v3132 = vld [vmem:[%s12 + $0x8] sm:$0xf]
        %v3133 = vld [vmem:[%s12 + $0xc] sm:$0xf]
        %v3134 = vld [vmem:[%s12 + $0x10] sm:$0xf]
        %v3135 = vld [vmem:[%s12 + $0x14] sm:$0xf]
        %v3136 = vld [vmem:[%s12 + $0x18] sm:$0xf]
        %v3137 = vld [vmem:[%s12 + $0x1c] sm:$0xf]
        %v3138 = vld [vmem:[%s12 + $0x20] sm:$0xf]
        %v3139 = vld [vmem:[%s12 + $0x24] sm:$0xf]
        %v3140 = vld [vmem:[%s12 + $0x28] sm:$0xf]
        %v3141 = vld [vmem:[%s12 + $0x2c] sm:$0xf]
        %v3142 = vld [vmem:[%s12 + $0x30] sm:$0xf]
        %v3143 = vld [vmem:[%s12 + $0x34] sm:$0xf]
        %v3144 = vld [vmem:[%s12 + $0x38] sm:$0xf]
        %v3145 = vld [vmem:[%s12 + $0x3c] sm:$0xf]
        %v3146 = vld [vmem:[#allocation16] sm:$0x1]
        %v3148 = vlaneseq
        %v3149 = vshrl.u32 %v3148, 7
        %v3150 = vsub.s32 0, %v3149
        %v3151 = vrot.slane %v3146, %v3150
        %v3169 = vunpack.c.l.b16 %v3130
        %v3170 = vunpack.c.l.b16 %v3131
        %v3171 = vunpack.c.l.b16 %v3132
        %v3172 = vunpack.c.l.b16 %v3133
        %v3173 = vunpack.c.l.b16 %v3134
        %v3174 = vunpack.c.l.b16 %v3135
        %v3175 = vunpack.c.l.b16 %v3136
        %v3176 = vunpack.c.l.b16 %v3137
        %v3177 = vunpack.c.l.b16 %v3138
        %v3178 = vunpack.c.l.b16 %v3139
        %v3179 = vunpack.c.l.b16 %v3140
        %v3180 = vunpack.c.l.b16 %v3141
        %v3181 = vunpack.c.l.b16 %v3142
        %v3182 = vunpack.c.l.b16 %v3143
        %v3183 = vunpack.c.l.b16 %v3144
        %v3184 = vunpack.c.l.b16 %v3145
        %v3185 = vpack.c.b16 %v3170, %v3169
        %v3186 = vpack.c.b16 %v3172, %v3171
        %v3187 = vpack.c.b16 %v3174, %v3173
        %v3188 = vpack.c.b16 %v3176, %v3175
        %v3189 = vpack.c.b16 %v3178, %v3177
        %v3190 = vpack.c.b16 %v3180, %v3179
        %v3191 = vpack.c.b16 %v3182, %v3181
        %v3192 = vpack.c.b16 %v3184, %v3183
        %3201 = vmatprep.subr.bf16.mxu0 0
        %3202 = vmatpush1.bf16.msra.mxu0 %v3185
        %3203 = vmatprep.subr.bf16.mxu0 0
        %3204 = vmatpush1.bf16.msra.mxu0 %v3186
        %3205 = vmatprep.subr.bf16.mxu0 0
        %3206 = vmatpush1.bf16.msra.mxu0 %v3187
        %3207 = vmatprep.subr.bf16.mxu0 0
        %3208 = vmatpush1.bf16.msra.mxu0 %v3188
        %3209 = vmatprep.subr.bf16.mxu0 0
        %3210 = vmatpush1.bf16.msra.mxu0 %v3189
        %3211 = vmatprep.subr.bf16.mxu0 0
        %3212 = vmatpush1.bf16.msra.mxu0 %v3190
        %3213 = vmatprep.subr.bf16.mxu0 0
        %3214 = vmatpush1.bf16.msra.mxu0 %v3191
        %3215 = vmatprep.subr.bf16.mxu0 0
        %3216 = vmatpush1.bf16.msra.mxu0 %v3192
        %3217 = vmatprep.subr.bf16.mxu0 0
        %3218 = vmatpush1.bf16.msra.mxu0 0
        %3219 = vmatprep.subr.bf16.mxu0 0
        %3220 = vmatpush1.bf16.msra.mxu0 0
        %3221 = vmatprep.subr.bf16.mxu0 0
        %3222 = vmatpush1.bf16.msra.mxu0 0
        %3223 = vmatprep.subr.bf16.mxu0 0
        %3224 = vmatpush1.bf16.msra.mxu0 0
        %3225 = vmatprep.subr.bf16.mxu0 0
        %3226 = vmatpush1.bf16.msra.mxu0 0
        %3227 = vmatprep.subr.bf16.mxu0 0
        %3228 = vmatpush1.bf16.msra.mxu0 0
        %3229 = vmatprep.subr.bf16.mxu0 0
        %3230 = vmatpush1.bf16.msra.mxu0 0
        %3231 = vmatprep.subr.bf16.mxu0 0
        %3232 = vmatpush1.bf16.msra.mxu0 0
        %3233 = vmatprep.mubr.bf16.mxu0 0
        %3234 = vmatmul.mubr.bf16.gmra.mrb[0].mxu0 %v3122
        %v3235 = vpop.f32.mrb[0].mxu0
        %v3236 = vadd.f32 %v3151, %v3235
        %v3237 = vpop.f32.mrb[0].mxu0
        %v3238 = vpop.f32.mrb[0].mxu0
        %v3239 = vadd.f32 %v3151, %v3238
        %v3240 = vpop.f32.mrb[0].mxu0
        %3241 = vmatprep.mubr.bf16.mxu0 0
        %3242 = vmatmul.mubr.bf16.gmra.mrb[0].mxu0 %v3123
        %v3243 = vpop.f32.mrb[0].mxu0
        %v3244 = vadd.f32 %v3151, %v3243
        %v3245 = vpop.f32.mrb[0].mxu0
        %v3246 = vpop.f32.mrb[0].mxu0
        %v3247 = vadd.f32 %v3151, %v3246
        %v3248 = vpop.f32.mrb[0].mxu0
        %3249 = vmatprep.mubr.bf16.mxu0 0
        %3250 = vmatmul.mubr.bf16.gmra.mrb[0].mxu0 %v3124
        %v3251 = vpop.f32.mrb[0].mxu0
        %v3252 = vadd.f32 %v3151, %v3251
        %v3253 = vpop.f32.mrb[0].mxu0
        %v3254 = vpop.f32.mrb[0].mxu0
        %v3255 = vadd.f32 %v3151, %v3254
        %v3256 = vpop.f32.mrb[0].mxu0
        %3257 = vmatprep.mubr.bf16.mxu0 0
        %3258 = vmatmul.mubr.bf16.gmra.mrb[0].mxu0 %v3125
        %v3259 = vpop.f32.mrb[0].mxu0
        %v3260 = vadd.f32 %v3151, %v3259
        %v3261 = vpop.f32.mrb[0].mxu0
        %v3262 = vpop.f32.mrb[0].mxu0
        %v3263 = vadd.f32 %v3151, %v3262
        %v3264 = vpop.f32.mrb[0].mxu0
        %3265 = vmatprep.mubr.bf16.mxu0 0
        %3266 = vmatmul.mubr.bf16.gmra.mrb[0].mxu0 %v3126
        %v3267 = vpop.f32.mrb[0].mxu0
        %v3268 = vadd.f32 %v3151, %v3267
        %v3269 = vpop.f32.mrb[0].mxu0
        %v3270 = vpop.f32.mrb[0].mxu0
        %v3271 = vadd.f32 %v3151, %v3270
        %v3272 = vpop.f32.mrb[0].mxu0
        %3273 = vmatprep.mubr.bf16.mxu0 0
        %3274 = vmatmul.mubr.bf16.gmra.mrb[0].mxu0 %v3127
        %v3275 = vpop.f32.mrb[0].mxu0
        %v3276 = vadd.f32 %v3151, %v3275
        %v3277 = vpop.f32.mrb[0].mxu0
        %v3278 = vpop.f32.mrb[0].mxu0
        %v3279 = vadd.f32 %v3151, %v3278
        %v3280 = vpop.f32.mrb[0].mxu0
        %3281 = vmatprep.mubr.bf16.mxu0 0
        %3282 = vmatmul.mubr.bf16.gmra.mrb[0].mxu0 %v3128
        %v3283 = vpop.f32.mrb[0].mxu0
        %v3284 = vadd.f32 %v3151, %v3283
        %v3285 = vpop.f32.mrb[0].mxu0
        %v3286 = vpop.f32.mrb[0].mxu0
        %v3287 = vadd.f32 %v3151, %v3286
        %v3288 = vpop.f32.mrb[0].mxu0
        %3289 = vmatprep.mubr.bf16.mxu0 0
        %3290 = vmatmul.mubr.bf16.gmra.mrb[0].mxu0 %v3129
        %v3291 = vpop.f32.mrb[0].mxu0
        %v3292 = vadd.f32 %v3151, %v3291
        %v3293 = vpop.f32.mrb[0].mxu0
        %v3294 = vpop.f32.mrb[0].mxu0
        %v3295 = vadd.f32 %v3151, %v3294
        %v3296 = vpop.f32.mrb[0].mxu0
        %3297 = vdwg.mxu0
        %v3298 = vadd.f32 %v860, %v3236
        %v3299 = vadd.f32 %v861, %v3239
        %v3300 = vadd.f32 %v862, %v3244
        %v3301 = vadd.f32 %v863, %v3247
        %v3302 = vadd.f32 %v864, %v3252
        %v3303 = vadd.f32 %v865, %v3255
        %v3304 = vadd.f32 %v866, %v3260
        %v3305 = vadd.f32 %v867, %v3263
        %v3306 = vadd.f32 %v868, %v3268
        %v3307 = vadd.f32 %v869, %v3271
        %v3308 = vadd.f32 %v870, %v3276
        %v3309 = vadd.f32 %v871, %v3279
        %v3310 = vadd.f32 %v872, %v3284
        %v3311 = vadd.f32 %v873, %v3287
        %v3312 = vadd.f32 %v874, %v3292
        %v3313 = vadd.f32 %v875, %v3295
        %v3314 = vld [vmem:[#allocation17] sm:$0x1]
        %v3315 = vld [vmem:[#allocation19] sm:$0x1]
        %3316 = vadd.xlane.f32.xlu0 %v3298
        %v3317 = vpop.xlane.xlu0 %3316
        %3318 = vadd.xlane.f32.xlu0 %v3299
        %v3319 = vpop.xlane.xlu0 %3318
        %3320 = vadd.xlane.f32.xlu0 %v3300
        %v3321 = vpop.xlane.xlu0 %3320
        %3322 = vadd.xlane.f32.xlu0 %v3301
        %v3323 = vpop.xlane.xlu0 %3322
        %3324 = vadd.xlane.f32.xlu0 %v3302
        %v3325 = vpop.xlane.xlu0 %3324
        %3326 = vadd.xlane.f32.xlu0 %v3303
        %v3327 = vpop.xlane.xlu0 %3326
        %3328 = vadd.xlane.f32.xlu0 %v3304
        %v3329 = vpop.xlane.xlu0 %3328
        %3330 = vadd.xlane.f32.xlu0 %v3305
        %v3331 = vpop.xlane.xlu0 %3330
        %3332 = vadd.xlane.f32.xlu0 %v3306
        %v3333 = vpop.xlane.xlu0 %3332
        %3334 = vadd.xlane.f32.xlu0 %v3307
        %v3335 = vpop.xlane.xlu0 %3334
        %3336 = vadd.xlane.f32.xlu0 %v3308
        %v3337 = vpop.xlane.xlu0 %3336
        %3338 = vadd.xlane.f32.xlu0 %v3309
        %v3339 = vpop.xlane.xlu0 %3338
        %3340 = vadd.xlane.f32.xlu0 %v3310
        %v3341 = vpop.xlane.xlu0 %3340
        %3342 = vadd.xlane.f32.xlu0 %v3311
        %v3343 = vpop.xlane.xlu0 %3342
        %3344 = vadd.xlane.f32.xlu0 %v3312
        %v3345 = vpop.xlane.xlu0 %3344
        %3346 = vadd.xlane.f32.xlu0 %v3313
        %v3347 = vpop.xlane.xlu0 %3346
        %v3348 = vmul.f32 %v3317, %v942
        %v3349 = vmul.f32 %v3319, %v942
        %v3350 = vmul.f32 %v3321, %v942
        %v3351 = vmul.f32 %v3323, %v942
        %v3352 = vmul.f32 %v3325, %v942
        %v3353 = vmul.f32 %v3327, %v942
        %v3354 = vmul.f32 %v3329, %v942
        %v3355 = vmul.f32 %v3331, %v942
        %v3356 = vmul.f32 %v3333, %v942
        %v3357 = vmul.f32 %v3335, %v942
        %v3358 = vmul.f32 %v3337, %v942
        %v3359 = vmul.f32 %v3339, %v942
        %v3360 = vmul.f32 %v3341, %v942
        %v3361 = vmul.f32 %v3343, %v942
        %v3362 = vmul.f32 %v3345, %v942
        %v3363 = vmul.f32 %v3347, %v942
        %v3364 = vsub.f32 %v3298, %v3348
        %v3365 = vsub.f32 %v3299, %v3349
        %v3366 = vsub.f32 %v3300, %v3350
        %v3367 = vsub.f32 %v3301, %v3351
        %v3368 = vsub.f32 %v3302, %v3352
        %v3369 = vsub.f32 %v3303, %v3353
        %v3370 = vsub.f32 %v3304, %v3354
        %v3371 = vsub.f32 %v3305, %v3355
        %v3372 = vsub.f32 %v3306, %v3356
        %v3373 = vsub.f32 %v3307, %v3357
        %v3374 = vsub.f32 %v3308, %v3358
        %v3375 = vsub.f32 %v3309, %v3359
        %v3376 = vsub.f32 %v3310, %v3360
        %v3377 = vsub.f32 %v3311, %v3361
        %v3378 = vsub.f32 %v3312, %v3362
        %v3379 = vsub.f32 %v3313, %v3363
        %v3380 = vmul.f32 %v3364, %v3364
        %v3381 = vmul.f32 %v3365, %v3365
        %v3382 = vmul.f32 %v3366, %v3366
        %v3383 = vmul.f32 %v3367, %v3367
        %v3384 = vmul.f32 %v3368, %v3368
        %v3385 = vmul.f32 %v3369, %v3369
        %v3386 = vmul.f32 %v3370, %v3370
        %v3387 = vmul.f32 %v3371, %v3371
        %v3388 = vmul.f32 %v3372, %v3372
        %v3389 = vmul.f32 %v3373, %v3373
        %v3390 = vmul.f32 %v3374, %v3374
        %v3391 = vmul.f32 %v3375, %v3375
        %v3392 = vmul.f32 %v3376, %v3376
        %v3393 = vmul.f32 %v3377, %v3377
        %v3394 = vmul.f32 %v3378, %v3378
        %v3395 = vmul.f32 %v3379, %v3379
        %3396 = vadd.xlane.f32.xlu0 %v3380
        %v3397 = vpop.xlane.xlu0 %3396
        %3398 = vadd.xlane.f32.xlu0 %v3381
        %v3399 = vpop.xlane.xlu0 %3398
        %3400 = vadd.xlane.f32.xlu0 %v3382
        %v3401 = vpop.xlane.xlu0 %3400
        %3402 = vadd.xlane.f32.xlu0 %v3383
        %v3403 = vpop.xlane.xlu0 %3402
        %3404 = vadd.xlane.f32.xlu0 %v3384
        %v3405 = vpop.xlane.xlu0 %3404
        %3406 = vadd.xlane.f32.xlu0 %v3385
        %v3407 = vpop.xlane.xlu0 %3406
        %3408 = vadd.xlane.f32.xlu0 %v3386
        %v3409 = vpop.xlane.xlu0 %3408
        %3410 = vadd.xlane.f32.xlu0 %v3387
        %v3411 = vpop.xlane.xlu0 %3410
        %3412 = vadd.xlane.f32.xlu0 %v3388
        %v3413 = vpop.xlane.xlu0 %3412
        %3414 = vadd.xlane.f32.xlu0 %v3389
        %v3415 = vpop.xlane.xlu0 %3414
        %3416 = vadd.xlane.f32.xlu0 %v3390
        %v3417 = vpop.xlane.xlu0 %3416
        %3418 = vadd.xlane.f32.xlu0 %v3391
        %v3419 = vpop.xlane.xlu0 %3418
        %3420 = vadd.xlane.f32.xlu0 %v3392
        %v3421 = vpop.xlane.xlu0 %3420
        %3422 = vadd.xlane.f32.xlu0 %v3393
        %v3423 = vpop.xlane.xlu0 %3422
        %3424 = vadd.xlane.f32.xlu0 %v3394
        %v3425 = vpop.xlane.xlu0 %3424
        %3426 = vadd.xlane.f32.xlu0 %v3395
        %v3427 = vpop.xlane.xlu0 %3426
        %v3428 = vmul.f32 %v3397, %v942
        %v3429 = vmul.f32 %v3399, %v942
        %v3430 = vmul.f32 %v3401, %v942
        %v3431 = vmul.f32 %v3403, %v942
        %v3432 = vmul.f32 %v3405, %v942
        %v3433 = vmul.f32 %v3407, %v942
        %v3434 = vmul.f32 %v3409, %v942
        %v3435 = vmul.f32 %v3411, %v942
        %v3436 = vmul.f32 %v3413, %v942
        %v3437 = vmul.f32 %v3415, %v942
        %v3438 = vmul.f32 %v3417, %v942
        %v3439 = vmul.f32 %v3419, %v942
        %v3440 = vmul.f32 %v3421, %v942
        %v3441 = vmul.f32 %v3423, %v942
        %v3442 = vmul.f32 %v3425, %v942
        %v3443 = vmul.f32 %v3427, %v942
        %v3444 = vadd.f32 %v3428, 1e-05
        %v3445 = vadd.f32 %v3429, 1e-05
        %v3446 = vadd.f32 %v3430, 1e-05
        %v3447 = vadd.f32 %v3431, 1e-05
        %v3448 = vadd.f32 %v3432, 1e-05
        %v3449 = vadd.f32 %v3433, 1e-05
        %v3450 = vadd.f32 %v3434, 1e-05
        %v3451 = vadd.f32 %v3435, 1e-05
        %v3452 = vadd.f32 %v3436, 1e-05
        %v3453 = vadd.f32 %v3437, 1e-05
        %v3454 = vadd.f32 %v3438, 1e-05
        %v3455 = vadd.f32 %v3439, 1e-05
        %v3456 = vadd.f32 %v3440, 1e-05
        %v3457 = vadd.f32 %v3441, 1e-05
        %v3458 = vadd.f32 %v3442, 1e-05
        %v3459 = vadd.f32 %v3443, 1e-05
        %v3460 = vrsqrt.pop %v3444
        %v3461 = vrsqrt.pop %v3445
        %v3462 = vrsqrt.pop %v3446
        %v3463 = vrsqrt.pop %v3447
        %v3464 = vrsqrt.pop %v3448
        %v3465 = vrsqrt.pop %v3449
        %v3466 = vrsqrt.pop %v3450
        %v3467 = vrsqrt.pop %v3451
        %v3468 = vrsqrt.pop %v3452
        %v3469 = vrsqrt.pop %v3453
        %v3470 = vrsqrt.pop %v3454
        %v3471 = vrsqrt.pop %v3455
        %v3472 = vrsqrt.pop %v3456
        %v3473 = vrsqrt.pop %v3457
        %v3474 = vrsqrt.pop %v3458
        %v3475 = vrsqrt.pop %v3459
        %v3476 = vmul.f32 %v3364, %v3460
        %v3477 = vmul.f32 %v3365, %v3461
        %v3478 = vmul.f32 %v3366, %v3462
        %v3479 = vmul.f32 %v3367, %v3463
        %v3480 = vmul.f32 %v3368, %v3464
        %v3481 = vmul.f32 %v3369, %v3465
        %v3482 = vmul.f32 %v3370, %v3466
        %v3483 = vmul.f32 %v3371, %v3467
        %v3484 = vmul.f32 %v3372, %v3468
        %v3485 = vmul.f32 %v3373, %v3469
        %v3486 = vmul.f32 %v3374, %v3470
        %v3487 = vmul.f32 %v3375, %v3471
        %v3488 = vmul.f32 %v3376, %v3472
        %v3489 = vmul.f32 %v3377, %v3473
        %v3490 = vmul.f32 %v3378, %v3474
        %v3491 = vmul.f32 %v3379, %v3475
        %v3493 = vlaneseq
        %v3494 = vshrl.u32 %v3493, 7
        %v3495 = vsub.s32 0, %v3494
        %v3496 = vrot.slane %v3314, %v3495
        %v3498 = vmul.f32 %v3476, %v3496
        %v3499 = vmul.f32 %v3477, %v3496
        %v3500 = vmul.f32 %v3478, %v3496
        %v3501 = vmul.f32 %v3479, %v3496
        %v3502 = vmul.f32 %v3480, %v3496
        %v3503 = vmul.f32 %v3481, %v3496
        %v3504 = vmul.f32 %v3482, %v3496
        %v3505 = vmul.f32 %v3483, %v3496
        %v3506 = vmul.f32 %v3484, %v3496
        %v3507 = vmul.f32 %v3485, %v3496
        %v3508 = vmul.f32 %v3486, %v3496
        %v3509 = vmul.f32 %v3487, %v3496
        %v3510 = vmul.f32 %v3488, %v3496
        %v3511 = vmul.f32 %v3489, %v3496
        %v3512 = vmul.f32 %v3490, %v3496
        %v3513 = vmul.f32 %v3491, %v3496
        %v3515 = vlaneseq
        %v3516 = vshrl.u32 %v3515, 7
        %v3517 = vsub.s32 0, %v3516
        %v3518 = vrot.slane %v3315, %v3517
        %v3520 = vadd.f32 %v3498, %v3518
        %v3521 = vadd.f32 %v3499, %v3518
        %v3522 = vadd.f32 %v3500, %v3518
        %v3523 = vadd.f32 %v3501, %v3518
        %v3524 = vadd.f32 %v3502, %v3518
        %v3525 = vadd.f32 %v3503, %v3518
        %v3526 = vadd.f32 %v3504, %v3518
        %v3527 = vadd.f32 %v3505, %v3518
        %v3528 = vadd.f32 %v3506, %v3518
        %v3529 = vadd.f32 %v3507, %v3518
        %v3530 = vadd.f32 %v3508, %v3518
        %v3531 = vadd.f32 %v3509, %v3518
        %v3532 = vadd.f32 %v3510, %v3518
        %v3533 = vadd.f32 %v3511, %v3518
        %v3534 = vadd.f32 %v3512, %v3518
        %v3535 = vadd.f32 %v3513, %v3518
        %v3536 = vpack.c.bf16 %v3521, %v3520
        %v3537 = vpack.c.bf16 %v3523, %v3522
        %v3538 = vpack.c.bf16 %v3525, %v3524
        %v3539 = vpack.c.bf16 %v3527, %v3526
        %v3540 = vpack.c.bf16 %v3529, %v3528
        %v3541 = vpack.c.bf16 %v3531, %v3530
        %v3542 = vpack.c.bf16 %v3533, %v3532
        %v3543 = vpack.c.bf16 %v3535, %v3534
        %v3544 = vld [vmem:[#allocation20] sm:$0xff]
        %v3545 = vld [vmem:[#allocation20 + $0x8] sm:$0xff]
        %v3546 = vld [vmem:[#allocation20 + $0x10] sm:$0xff]
        %v3547 = vld [vmem:[#allocation20 + $0x18] sm:$0xff]
        %v3548 = vld [vmem:[#allocation20 + $0x20] sm:$0xff]
        %v3549 = vld [vmem:[#allocation20 + $0x28] sm:$0xff]
        %v3550 = vld [vmem:[#allocation20 + $0x30] sm:$0xff]
        %v3551 = vld [vmem:[#allocation20 + $0x38] sm:$0xff]
        %v3552 = vld [vmem:[#allocation20 + $0x40] sm:$0xff]
        %v3553 = vld [vmem:[#allocation20 + $0x48] sm:$0xff]
        %v3554 = vld [vmem:[#allocation20 + $0x50] sm:$0xff]
        %v3555 = vld [vmem:[#allocation20 + $0x58] sm:$0xff]
        %v3556 = vld [vmem:[#allocation20 + $0x60] sm:$0xff]
        %v3557 = vld [vmem:[#allocation20 + $0x68] sm:$0xff]
        %v3558 = vld [vmem:[#allocation20 + $0x70] sm:$0xff]
        %v3559 = vld [vmem:[#allocation20 + $0x78] sm:$0xff]
        %v3560 = vld [vmem:[#allocation20 + $0x80] sm:$0xff]
        %v3561 = vld [vmem:[#allocation20 + $0x88] sm:$0xff]
        %v3562 = vld [vmem:[#allocation20 + $0x90] sm:$0xff]
        %v3563 = vld [vmem:[#allocation20 + $0x98] sm:$0xff]
        %v3564 = vld [vmem:[#allocation20 + $0xa0] sm:$0xff]
        %v3565 = vld [vmem:[#allocation20 + $0xa8] sm:$0xff]
        %v3566 = vld [vmem:[#allocation20 + $0xb0] sm:$0xff]
        %v3567 = vld [vmem:[#allocation20 + $0xb8] sm:$0xff]
        %v3568 = vld [vmem:[#allocation20 + $0xc0] sm:$0xff]
        %v3569 = vld [vmem:[#allocation20 + $0xc8] sm:$0xff]
        %v3570 = vld [vmem:[#allocation20 + $0xd0] sm:$0xff]
        %v3571 = vld [vmem:[#allocation20 + $0xd8] sm:$0xff]
        %v3572 = vld [vmem:[#allocation20 + $0xe0] sm:$0xff]
        %v3573 = vld [vmem:[#allocation20 + $0xe8] sm:$0xff]
        %v3574 = vld [vmem:[#allocation20 + $0xf0] sm:$0xff]
        %v3575 = vld [vmem:[#allocation20 + $0xf8] sm:$0xff]
        %v3576 = vld [vmem:[#allocation22] sm:$0xf]
        %v3578 = vlaneseq
        %v3579 = vshrl.u32 %v3578, 7
        %v3580 = vsub.s32 0, %v3579
        %v3581 = vrot.slane %v3576, %v3580
        %v3582 = vlaneseq
        %v3583 = vshrl.u32 %v3582, 7
        %v3584 = vsub.s32 1, %v3583
        %v3585 = vrot.slane %v3576, %v3584
        %v3586 = vlaneseq
        %v3587 = vshrl.u32 %v3586, 7
        %v3588 = vsub.s32 2, %v3587
        %v3589 = vrot.slane %v3576, %v3588
        %v3590 = vlaneseq
        %v3591 = vshrl.u32 %v3590, 7
        %v3592 = vsub.s32 3, %v3591
        %v3593 = vrot.slane %v3576, %v3592
        %v3630 = vunpack.c.l.b16 %v3544
        %v3631 = vunpack.c.h.b16 %v3544
        %v3632 = vunpack.c.l.b16 %v3545
        %v3633 = vunpack.c.h.b16 %v3545
        %v3634 = vunpack.c.l.b16 %v3546
        %v3635 = vunpack.c.h.b16 %v3546
        %v3636 = vunpack.c.l.b16 %v3547
        %v3637 = vunpack.c.h.b16 %v3547
        %v3638 = vunpack.c.l.b16 %v3548
        %v3639 = vunpack.c.h.b16 %v3548
        %v3640 = vunpack.c.l.b16 %v3549
        %v3641 = vunpack.c.h.b16 %v3549
        %v3642 = vunpack.c.l.b16 %v3550
        %v3643 = vunpack.c.h.b16 %v3550
        %v3644 = vunpack.c.l.b16 %v3551
        %v3645 = vunpack.c.h.b16 %v3551
        %v3646 = vunpack.c.l.b16 %v3552
        %v3647 = vunpack.c.h.b16 %v3552
        %v3648 = vunpack.c.l.b16 %v3553
        %v3649 = vunpack.c.h.b16 %v3553
        %v3650 = vunpack.c.l.b16 %v3554
        %v3651 = vunpack.c.h.b16 %v3554
        %v3652 = vunpack.c.l.b16 %v3555
        %v3653 = vunpack.c.h.b16 %v3555
        %v3654 = vunpack.c.l.b16 %v3556
        %v3655 = vunpack.c.h.b16 %v3556
        %v3656 = vunpack.c.l.b16 %v3557
        %v3657 = vunpack.c.h.b16 %v3557
        %v3658 = vunpack.c.l.b16 %v3558
        %v3659 = vunpack.c.h.b16 %v3558
        %v3660 = vunpack.c.l.b16 %v3559
        %v3661 = vunpack.c.h.b16 %v3559
        %v3662 = vunpack.c.l.b16 %v3560
        %v3663 = vunpack.c.h.b16 %v3560
        %v3664 = vunpack.c.l.b16 %v3561
        %v3665 = vunpack.c.h.b16 %v3561
        %v3666 = vunpack.c.l.b16 %v3562
        %v3667 = vunpack.c.h.b16 %v3562
        %v3668 = vunpack.c.l.b16 %v3563
        %v3669 = vunpack.c.h.b16 %v3563
        %v3670 = vunpack.c.l.b16 %v3564
        %v3671 = vunpack.c.h.b16 %v3564
        %v3672 = vunpack.c.l.b16 %v3565
        %v3673 = vunpack.c.h.b16 %v3565
        %v3674 = vunpack.c.l.b16 %v3566
        %v3675 = vunpack.c.h.b16 %v3566
        %v3676 = vunpack.c.l.b16 %v3567
        %v3677 = vunpack.c.h.b16 %v3567
        %v3678 = vunpack.c.l.b16 %v3568
        %v3679 = vunpack.c.h.b16 %v3568
        %v3680 = vunpack.c.l.b16 %v3569
        %v3681 = vunpack.c.h.b16 %v3569
        %v3682 = vunpack.c.l.b16 %v3570
        %v3683 = vunpack.c.h.b16 %v3570
        %v3684 = vunpack.c.l.b16 %v3571
        %v3685 = vunpack.c.h.b16 %v3571
        %v3686 = vunpack.c.l.b16 %v3572
        %v3687 = vunpack.c.h.b16 %v3572
        %v3688 = vunpack.c.l.b16 %v3573
        %v3689 = vunpack.c.h.b16 %v3573
        %v3690 = vunpack.c.l.b16 %v3574
        %v3691 = vunpack.c.h.b16 %v3574
        %v3692 = vunpack.c.l.b16 %v3575
        %v3693 = vunpack.c.h.b16 %v3575
        %v3694 = vpack.c.b16 %v3634, %v3630
        %v3695 = vpack.c.b16 %v3635, %v3631
        %v3696 = vpack.c.b16 %v3636, %v3632
        %v3697 = vpack.c.b16 %v3637, %v3633
        %v3698 = vpack.c.b16 %v3642, %v3638
        %v3699 = vpack.c.b16 %v3643, %v3639
        %v3700 = vpack.c.b16 %v3644, %v3640
        %v3701 = vpack.c.b16 %v3645, %v3641
        %v3702 = vpack.c.b16 %v3650, %v3646
        %v3703 = vpack.c.b16 %v3651, %v3647
        %v3704 = vpack.c.b16 %v3652, %v3648
        %v3705 = vpack.c.b16 %v3653, %v3649
        %v3706 = vpack.c.b16 %v3658, %v3654
        %v3707 = vpack.c.b16 %v3659, %v3655
        %v3708 = vpack.c.b16 %v3660, %v3656
        %v3709 = vpack.c.b16 %v3661, %v3657
        %v3710 = vpack.c.b16 %v3666, %v3662
        %v3711 = vpack.c.b16 %v3667, %v3663
        %v3712 = vpack.c.b16 %v3668, %v3664
        %v3713 = vpack.c.b16 %v3669, %v3665
        %v3714 = vpack.c.b16 %v3674, %v3670
        %v3715 = vpack.c.b16 %v3675, %v3671
        %v3716 = vpack.c.b16 %v3676, %v3672
        %v3717 = vpack.c.b16 %v3677, %v3673
        %v3718 = vpack.c.b16 %v3682, %v3678
        %v3719 = vpack.c.b16 %v3683, %v3679
        %v3720 = vpack.c.b16 %v3684, %v3680
        %v3721 = vpack.c.b16 %v3685, %v3681
        %v3722 = vpack.c.b16 %v3690, %v3686
        %v3723 = vpack.c.b16 %v3691, %v3687
        %v3724 = vpack.c.b16 %v3692, %v3688
        %v3725 = vpack.c.b16 %v3693, %v3689
        %3758 = vmatprep.subr.bf16.mxu0 %v3695
        %3759 = vmatpush1.bf16.msra.mxu0 %v3694
        %3760 = vmatprep.subr.bf16.mxu0 %v3699
        %3761 = vmatpush1.bf16.msra.mxu0 %v3698
        %3762 = vmatprep.subr.bf16.mxu0 %v3703
        %3763 = vmatpush1.bf16.msra.mxu0 %v3702
        %3764 = vmatprep.subr.bf16.mxu0 %v3707
        %3765 = vmatpush1.bf16.msra.mxu0 %v3706
        %3766 = vmatprep.subr.bf16.mxu0 %v3711
        %3767 = vmatpush1.bf16.msra.mxu0 %v3710
        %3768 = vmatprep.subr.bf16.mxu0 %v3715
        %3769 = vmatpush1.bf16.msra.mxu0 %v3714
        %3770 = vmatprep.subr.bf16.mxu0 %v3719
        %3771 = vmatpush1.bf16.msra.mxu0 %v3718
        %3772 = vmatprep.subr.bf16.mxu0 %v3723
        %3773 = vmatpush1.bf16.msra.mxu0 %v3722
        %3774 = vmatprep.subr.bf16.mxu0 0
        %3775 = vmatpush1.bf16.msra.mxu0 0
        %3776 = vmatprep.subr.bf16.mxu0 0
        %3777 = vmatpush1.bf16.msra.mxu0 0
        %3778 = vmatprep.subr.bf16.mxu0 0
        %3779 = vmatpush1.bf16.msra.mxu0 0
        %3780 = vmatprep.subr.bf16.mxu0 0
        %3781 = vmatpush1.bf16.msra.mxu0 0
        %3782 = vmatprep.subr.bf16.mxu0 0
        %3783 = vmatpush1.bf16.msra.mxu0 0
        %3784 = vmatprep.subr.bf16.mxu0 0
        %3785 = vmatpush1.bf16.msra.mxu0 0
        %3786 = vmatprep.subr.bf16.mxu0 0
        %3787 = vmatpush1.bf16.msra.mxu0 0
        %3788 = vmatprep.subr.bf16.mxu0 0
        %3789 = vmatpush1.bf16.msra.mxu0 0
        %3790 = vmatprep.mubr.bf16.mxu0 0
        %3791 = vmatmul.mubr.bf16.gmra.mrb[0].mxu0 %v3536
        %v3792 = vpop.f32.mrb[0].mxu0
        %v3793 = vadd.f32 %v3581, %v3792
        %v3794 = vpop.f32.mrb[0].mxu0
        %v3795 = vadd.f32 %v3585, %v3794
        %v3796 = vpop.f32.mrb[0].mxu0
        %v3797 = vadd.f32 %v3581, %v3796
        %v3798 = vpop.f32.mrb[0].mxu0
        %v3799 = vadd.f32 %v3585, %v3798
        %3800 = vmatprep.mubr.bf16.mxu0 0
        %3801 = vmatmul.mubr.bf16.gmra.mrb[0].mxu0 %v3537
        %v3802 = vpop.f32.mrb[0].mxu0
        %v3803 = vadd.f32 %v3581, %v3802
        %v3804 = vpop.f32.mrb[0].mxu0
        %v3805 = vadd.f32 %v3585, %v3804
        %v3806 = vpop.f32.mrb[0].mxu0
        %v3807 = vadd.f32 %v3581, %v3806
        %v3808 = vpop.f32.mrb[0].mxu0
        %v3809 = vadd.f32 %v3585, %v3808
        %3810 = vmatprep.mubr.bf16.mxu0 0
        %3811 = vmatmul.mubr.bf16.gmra.mrb[0].mxu0 %v3538
        %v3812 = vpop.f32.mrb[0].mxu0
        %v3813 = vadd.f32 %v3581, %v3812
        %v3814 = vpop.f32.mrb[0].mxu0
        %v3815 = vadd.f32 %v3585, %v3814
        %v3816 = vpop.f32.mrb[0].mxu0
        %v3817 = vadd.f32 %v3581, %v3816
        %v3818 = vpop.f32.mrb[0].mxu0
        %v3819 = vadd.f32 %v3585, %v3818
        %3820 = vmatprep.mubr.bf16.mxu0 0
        %3821 = vmatmul.mubr.bf16.gmra.mrb[0].mxu0 %v3539
        %v3822 = vpop.f32.mrb[0].mxu0
        %v3823 = vadd.f32 %v3581, %v3822
        %v3824 = vpop.f32.mrb[0].mxu0
        %v3825 = vadd.f32 %v3585, %v3824
        %v3826 = vpop.f32.mrb[0].mxu0
        %v3827 = vadd.f32 %v3581, %v3826
        %v3828 = vpop.f32.mrb[0].mxu0
        %v3829 = vadd.f32 %v3585, %v3828
        %3830 = vmatprep.mubr.bf16.mxu0 0
        %3831 = vmatmul.mubr.bf16.gmra.mrb[0].mxu0 %v3540
        %v3832 = vpop.f32.mrb[0].mxu0
        %v3833 = vadd.f32 %v3581, %v3832
        %v3834 = vpop.f32.mrb[0].mxu0
        %v3835 = vadd.f32 %v3585, %v3834
        %v3836 = vpop.f32.mrb[0].mxu0
        %v3837 = vadd.f32 %v3581, %v3836
        %v3838 = vpop.f32.mrb[0].mxu0
        %v3839 = vadd.f32 %v3585, %v3838
        %3840 = vmatprep.mubr.bf16.mxu0 0
        %3841 = vmatmul.mubr.bf16.gmra.mrb[0].mxu0 %v3541
        %v3842 = vpop.f32.mrb[0].mxu0
        %v3843 = vadd.f32 %v3581, %v3842
        %v3844 = vpop.f32.mrb[0].mxu0
        %v3845 = vadd.f32 %v3585, %v3844
        %v3846 = vpop.f32.mrb[0].mxu0
        %v3847 = vadd.f32 %v3581, %v3846
        %v3848 = vpop.f32.mrb[0].mxu0
        %v3849 = vadd.f32 %v3585, %v3848
        %3850 = vmatprep.mubr.bf16.mxu0 0
        %3851 = vmatmul.mubr.bf16.gmra.mrb[0].mxu0 %v3542
        %v3852 = vpop.f32.mrb[0].mxu0
        %v3853 = vadd.f32 %v3581, %v3852
        %v3854 = vpop.f32.mrb[0].mxu0
        %v3855 = vadd.f32 %v3585, %v3854
        %v3856 = vpop.f32.mrb[0].mxu0
        %v3857 = vadd.f32 %v3581, %v3856
        %v3858 = vpop.f32.mrb[0].mxu0
        %v3859 = vadd.f32 %v3585, %v3858
        %3860 = vmatprep.mubr.bf16.mxu0 0
        %3861 = vmatmul.mubr.bf16.gmra.mrb[0].mxu0 %v3543
        %v3862 = vpop.f32.mrb[0].mxu0
        %v3863 = vadd.f32 %v3581, %v3862
        %v3864 = vpop.f32.mrb[0].mxu0
        %v3865 = vadd.f32 %v3585, %v3864
        %v3866 = vpop.f32.mrb[0].mxu0
        %v3867 = vadd.f32 %v3581, %v3866
        %v3868 = vpop.f32.mrb[0].mxu0
        %v3869 = vadd.f32 %v3585, %v3868
        %3870 = vdwg.mxu0
        %3871 = vmatprep.subr.bf16.mxu0 %v3697
        %3872 = vmatpush1.bf16.msra.mxu0 %v3696
        %3873 = vmatprep.subr.bf16.mxu0 %v3701
        %3874 = vmatpush1.bf16.msra.mxu0 %v3700
        %3875 = vmatprep.subr.bf16.mxu0 %v3705
        %3876 = vmatpush1.bf16.msra.mxu0 %v3704
        %3877 = vmatprep.subr.bf16.mxu0 %v3709
        %3878 = vmatpush1.bf16.msra.mxu0 %v3708
        %3879 = vmatprep.subr.bf16.mxu0 %v3713
        %3880 = vmatpush1.bf16.msra.mxu0 %v3712
        %3881 = vmatprep.subr.bf16.mxu0 %v3717
        %3882 = vmatpush1.bf16.msra.mxu0 %v3716
        %3883 = vmatprep.subr.bf16.mxu0 %v3721
        %3884 = vmatpush1.bf16.msra.mxu0 %v3720
        %3885 = vmatprep.subr.bf16.mxu0 %v3725
        %3886 = vmatpush1.bf16.msra.mxu0 %v3724
        %3887 = vmatprep.subr.bf16.mxu0 0
        %3888 = vmatpush1.bf16.msra.mxu0 0
        %3889 = vmatprep.subr.bf16.mxu0 0
        %3890 = vmatpush1.bf16.msra.mxu0 0
        %3891 = vmatprep.subr.bf16.mxu0 0
        %3892 = vmatpush1.bf16.msra.mxu0 0
        %3893 = vmatprep.subr.bf16.mxu0 0
        %3894 = vmatpush1.bf16.msra.mxu0 0
        %3895 = vmatprep.subr.bf16.mxu0 0
        %3896 = vmatpush1.bf16.msra.mxu0 0
        %3897 = vmatprep.subr.bf16.mxu0 0
        %3898 = vmatpush1.bf16.msra.mxu0 0
        %3899 = vmatprep.subr.bf16.mxu0 0
        %3900 = vmatpush1.bf16.msra.mxu0 0
        %3901 = vmatprep.subr.bf16.mxu0 0
        %3902 = vmatpush1.bf16.msra.mxu0 0
        %3903 = vmatprep.mubr.bf16.mxu0 0
        %3904 = vmatmul.mubr.bf16.gmra.mrb[0].mxu0 %v3536
        %v3905 = vpop.f32.mrb[0].mxu0
        %v3906 = vadd.f32 %v3589, %v3905
        %v3907 = vpop.f32.mrb[0].mxu0
        %v3908 = vadd.f32 %v3593, %v3907
        %v3909 = vpop.f32.mrb[0].mxu0
        %v3910 = vadd.f32 %v3589, %v3909
        %v3911 = vpop.f32.mrb[0].mxu0
        %v3912 = vadd.f32 %v3593, %v3911
        %3913 = vmatprep.mubr.bf16.mxu0 0
        %3914 = vmatmul.mubr.bf16.gmra.mrb[0].mxu0 %v3537
        %v3915 = vpop.f32.mrb[0].mxu0
        %v3916 = vadd.f32 %v3589, %v3915
        %v3917 = vpop.f32.mrb[0].mxu0
        %v3918 = vadd.f32 %v3593, %v3917
        %v3919 = vpop.f32.mrb[0].mxu0
        %v3920 = vadd.f32 %v3589, %v3919
        %v3921 = vpop.f32.mrb[0].mxu0
        %v3922 = vadd.f32 %v3593, %v3921
        %3923 = vmatprep.mubr.bf16.mxu0 0
        %3924 = vmatmul.mubr.bf16.gmra.mrb[0].mxu0 %v3538
        %v3925 = vpop.f32.mrb[0].mxu0
        %v3926 = vadd.f32 %v3589, %v3925
        %v3927 = vpop.f32.mrb[0].mxu0
        %v3928 = vadd.f32 %v3593, %v3927
        %v3929 = vpop.f32.mrb[0].mxu0
        %v3930 = vadd.f32 %v3589, %v3929
        %v3931 = vpop.f32.mrb[0].mxu0
        %v3932 = vadd.f32 %v3593, %v3931
        %3933 = vmatprep.mubr.bf16.mxu0 0
        %3934 = vmatmul.mubr.bf16.gmra.mrb[0].mxu0 %v3539
        %v3935 = vpop.f32.mrb[0].mxu0
        %v3936 = vadd.f32 %v3589, %v3935
        %v3937 = vpop.f32.mrb[0].mxu0
        %v3938 = vadd.f32 %v3593, %v3937
        %v3939 = vpop.f32.mrb[0].mxu0
        %v3940 = vadd.f32 %v3589, %v3939
        %v3941 = vpop.f32.mrb[0].mxu0
        %v3942 = vadd.f32 %v3593, %v3941
        %3943 = vmatprep.mubr.bf16.mxu0 0
        %3944 = vmatmul.mubr.bf16.gmra.mrb[0].mxu0 %v3540
        %v3945 = vpop.f32.mrb[0].mxu0
        %v3946 = vadd.f32 %v3589, %v3945
        %v3947 = vpop.f32.mrb[0].mxu0
        %v3948 = vadd.f32 %v3593, %v3947
        %v3949 = vpop.f32.mrb[0].mxu0
        %v3950 = vadd.f32 %v3589, %v3949
        %v3951 = vpop.f32.mrb[0].mxu0
        %v3952 = vadd.f32 %v3593, %v3951
        %3953 = vmatprep.mubr.bf16.mxu0 0
        %3954 = vmatmul.mubr.bf16.gmra.mrb[0].mxu0 %v3541
        %v3955 = vpop.f32.mrb[0].mxu0
        %v3956 = vadd.f32 %v3589, %v3955
        %v3957 = vpop.f32.mrb[0].mxu0
        %v3958 = vadd.f32 %v3593, %v3957
        %v3959 = vpop.f32.mrb[0].mxu0
        %v3960 = vadd.f32 %v3589, %v3959
        %v3961 = vpop.f32.mrb[0].mxu0
        %v3962 = vadd.f32 %v3593, %v3961
        %3963 = vmatprep.mubr.bf16.mxu0 0
        %3964 = vmatmul.mubr.bf16.gmra.mrb[0].mxu0 %v3542
        %v3965 = vpop.f32.mrb[0].mxu0
        %v3966 = vadd.f32 %v3589, %v3965
        %v3967 = vpop.f32.mrb[0].mxu0
        %v3968 = vadd.f32 %v3593, %v3967
        %v3969 = vpop.f32.mrb[0].mxu0
        %v3970 = vadd.f32 %v3589, %v3969
        %v3971 = vpop.f32.mrb[0].mxu0
        %v3972 = vadd.f32 %v3593, %v3971
        %3973 = vmatprep.mubr.bf16.mxu0 0
        %3974 = vmatmul.mubr.bf16.gmra.mrb[0].mxu0 %v3543
        %v3975 = vpop.f32.mrb[0].mxu0
        %v3976 = vadd.f32 %v3589, %v3975
        %v3977 = vpop.f32.mrb[0].mxu0
        %v3978 = vadd.f32 %v3593, %v3977
        %v3979 = vpop.f32.mrb[0].mxu0
        %v3980 = vadd.f32 %v3589, %v3979
        %v3981 = vpop.f32.mrb[0].mxu0
        %v3982 = vadd.f32 %v3593, %v3981
        %3983 = vdwg.mxu0
        %v3984 = vmul.f32 %v3793, 0.5
        %v3985 = vmul.f32 %v3795, 0.5
        %v3986 = vmul.f32 %v3906, 0.5
        %v3987 = vmul.f32 %v3908, 0.5
        %v3988 = vmul.f32 %v3797, 0.5
        %v3989 = vmul.f32 %v3799, 0.5
        %v3990 = vmul.f32 %v3910, 0.5
        %v3991 = vmul.f32 %v3912, 0.5
        %v3992 = vmul.f32 %v3803, 0.5
        %v3993 = vmul.f32 %v3805, 0.5
        %v3994 = vmul.f32 %v3916, 0.5
        %v3995 = vmul.f32 %v3918, 0.5
        %v3996 = vmul.f32 %v3807, 0.5
        %v3997 = vmul.f32 %v3809, 0.5
        %v3998 = vmul.f32 %v3920, 0.5
        %v3999 = vmul.f32 %v3922, 0.5
        %v4000 = vmul.f32 %v3813, 0.5
        %v4001 = vmul.f32 %v3815, 0.5
        %v4002 = vmul.f32 %v3926, 0.5
        %v4003 = vmul.f32 %v3928, 0.5
        %v4004 = vmul.f32 %v3817, 0.5
        %v4005 = vmul.f32 %v3819, 0.5
        %v4006 = vmul.f32 %v3930, 0.5
        %v4007 = vmul.f32 %v3932, 0.5
        %v4008 = vmul.f32 %v3823, 0.5
        %v4009 = vmul.f32 %v3825, 0.5
        %v4010 = vmul.f32 %v3936, 0.5
        %v4011 = vmul.f32 %v3938, 0.5
        %v4012 = vmul.f32 %v3827, 0.5
        %v4013 = vmul.f32 %v3829, 0.5
        %v4014 = vmul.f32 %v3940, 0.5
        %v4015 = vmul.f32 %v3942, 0.5
        %v4016 = vmul.f32 %v3833, 0.5
        %v4017 = vmul.f32 %v3835, 0.5
        %v4018 = vmul.f32 %v3946, 0.5
        %v4019 = vmul.f32 %v3948, 0.5
        %v4020 = vmul.f32 %v3837, 0.5
        %v4021 = vmul.f32 %v3839, 0.5
        %v4022 = vmul.f32 %v3950, 0.5
        %v4023 = vmul.f32 %v3952, 0.5
        %v4024 = vmul.f32 %v3843, 0.5
        %v4025 = vmul.f32 %v3845, 0.5
        %v4026 = vmul.f32 %v3956, 0.5
        %v4027 = vmul.f32 %v3958, 0.5
        %v4028 = vmul.f32 %v3847, 0.5
        %v4029 = vmul.f32 %v3849, 0.5
        %v4030 = vmul.f32 %v3960, 0.5
        %v4031 = vmul.f32 %v3962, 0.5
        %v4032 = vmul.f32 %v3853, 0.5
        %v4033 = vmul.f32 %v3855, 0.5
        %v4034 = vmul.f32 %v3966, 0.5
        %v4035 = vmul.f32 %v3968, 0.5
        %v4036 = vmul.f32 %v3857, 0.5
        %v4037 = vmul.f32 %v3859, 0.5
        %v4038 = vmul.f32 %v3970, 0.5
        %v4039 = vmul.f32 %v3972, 0.5
        %v4040 = vmul.f32 %v3863, 0.5
        %v4041 = vmul.f32 %v3865, 0.5
        %v4042 = vmul.f32 %v3976, 0.5
        %v4043 = vmul.f32 %v3978, 0.5
        %v4044 = vmul.f32 %v3867, 0.5
        %v4045 = vmul.f32 %v3869, 0.5
        %v4046 = vmul.f32 %v3980, 0.5
        %v4047 = vmul.f32 %v3982, 0.5
        %v4048 = vmul.f32 %v3793, 0.70710677
        %v4049 = vmul.f32 %v3795, 0.70710677
        %v4050 = vmul.f32 %v3906, 0.70710677
        %v4051 = vmul.f32 %v3908, 0.70710677
        %v4052 = vmul.f32 %v3797, 0.70710677
        %v4053 = vmul.f32 %v3799, 0.70710677
        %v4054 = vmul.f32 %v3910, 0.70710677
        %v4055 = vmul.f32 %v3912, 0.70710677
        %v4056 = vmul.f32 %v3803, 0.70710677
        %v4057 = vmul.f32 %v3805, 0.70710677
        %v4058 = vmul.f32 %v3916, 0.70710677
        %v4059 = vmul.f32 %v3918, 0.70710677
        %v4060 = vmul.f32 %v3807, 0.70710677
        %v4061 = vmul.f32 %v3809, 0.70710677
        %v4062 = vmul.f32 %v3920, 0.70710677
        %v4063 = vmul.f32 %v3922, 0.70710677
        %v4064 = vmul.f32 %v3813, 0.70710677
        %v4065 = vmul.f32 %v3815, 0.70710677
        %v4066 = vmul.f32 %v3926, 0.70710677
        %v4067 = vmul.f32 %v3928, 0.70710677
        %v4068 = vmul.f32 %v3817, 0.70710677
        %v4069 = vmul.f32 %v3819, 0.70710677
        %v4070 = vmul.f32 %v3930, 0.70710677
        %v4071 = vmul.f32 %v3932, 0.70710677
        %v4072 = vmul.f32 %v3823, 0.70710677
        %v4073 = vmul.f32 %v3825, 0.70710677
        %v4074 = vmul.f32 %v3936, 0.70710677
        %v4075 = vmul.f32 %v3938, 0.70710677
        %v4076 = vmul.f32 %v3827, 0.70710677
        %v4077 = vmul.f32 %v3829, 0.70710677
        %v4078 = vmul.f32 %v3940, 0.70710677
        %v4079 = vmul.f32 %v3942, 0.70710677
        %v4080 = vmul.f32 %v3833, 0.70710677
        %v4081 = vmul.f32 %v3835, 0.70710677
        %v4082 = vmul.f32 %v3946, 0.70710677
        %v4083 = vmul.f32 %v3948, 0.70710677
        %v4084 = vmul.f32 %v3837, 0.70710677
        %v4085 = vmul.f32 %v3839, 0.70710677
        %v4086 = vmul.f32 %v3950, 0.70710677
        %v4087 = vmul.f32 %v3952, 0.70710677
        %v4088 = vmul.f32 %v3843, 0.70710677
        %v4089 = vmul.f32 %v3845, 0.70710677
        %v4090 = vmul.f32 %v3956, 0.70710677
        %v4091 = vmul.f32 %v3958, 0.70710677
        %v4092 = vmul.f32 %v3847, 0.70710677
        %v4093 = vmul.f32 %v3849, 0.70710677
        %v4094 = vmul.f32 %v3960, 0.70710677
        %v4095 = vmul.f32 %v3962, 0.70710677
        %v4096 = vmul.f32 %v3853, 0.70710677
        %v4097 = vmul.f32 %v3855, 0.70710677
        %v4098 = vmul.f32 %v3966, 0.70710677
        %v4099 = vmul.f32 %v3968, 0.70710677
        %v4100 = vmul.f32 %v3857, 0.70710677
        %v4101 = vmul.f32 %v3859, 0.70710677
        %v4102 = vmul.f32 %v3970, 0.70710677
        %v4103 = vmul.f32 %v3972, 0.70710677
        %v4104 = vmul.f32 %v3863, 0.70710677
        %v4105 = vmul.f32 %v3865, 0.70710677
        %v4106 = vmul.f32 %v3976, 0.70710677
        %v4107 = vmul.f32 %v3978, 0.70710677
        %v4108 = vmul.f32 %v3867, 0.70710677
        %v4109 = vmul.f32 %v3869, 0.70710677
        %v4110 = vmul.f32 %v3980, 0.70710677
        %v4111 = vmul.f32 %v3982, 0.70710677
        %v4112 = verf.f32.pop %v4048
        %v4113 = verf.f32.pop %v4049
        %v4114 = verf.f32.pop %v4050
        %v4115 = verf.f32.pop %v4051
        %v4116 = verf.f32.pop %v4052
        %v4117 = verf.f32.pop %v4053
        %v4118 = verf.f32.pop %v4054
        %v4119 = verf.f32.pop %v4055
        %v4120 = verf.f32.pop %v4056
        %v4121 = verf.f32.pop %v4057
        %v4122 = verf.f32.pop %v4058
        %v4123 = verf.f32.pop %v4059
        %v4124 = verf.f32.pop %v4060
        %v4125 = verf.f32.pop %v4061
        %v4126 = verf.f32.pop %v4062
        %v4127 = verf.f32.pop %v4063
        %v4128 = verf.f32.pop %v4064
        %v4129 = verf.f32.pop %v4065
        %v4130 = verf.f32.pop %v4066
        %v4131 = verf.f32.pop %v4067
        %v4132 = verf.f32.pop %v4068
        %v4133 = verf.f32.pop %v4069
        %v4134 = verf.f32.pop %v4070
        %v4135 = verf.f32.pop %v4071
        %v4136 = verf.f32.pop %v4072
        %v4137 = verf.f32.pop %v4073
        %v4138 = verf.f32.pop %v4074
        %v4139 = verf.f32.pop %v4075
        %v4140 = verf.f32.pop %v4076
        %v4141 = verf.f32.pop %v4077
        %v4142 = verf.f32.pop %v4078
        %v4143 = verf.f32.pop %v4079
        %v4144 = verf.f32.pop %v4080
        %v4145 = verf.f32.pop %v4081
        %v4146 = verf.f32.pop %v4082
        %v4147 = verf.f32.pop %v4083
        %v4148 = verf.f32.pop %v4084
        %v4149 = verf.f32.pop %v4085
        %v4150 = verf.f32.pop %v4086
        %v4151 = verf.f32.pop %v4087
        %v4152 = verf.f32.pop %v4088
        %v4153 = verf.f32.pop %v4089
        %v4154 = verf.f32.pop %v4090
        %v4155 = verf.f32.pop %v4091
        %v4156 = verf.f32.pop %v4092
        %v4157 = verf.f32.pop %v4093
        %v4158 = verf.f32.pop %v4094
        %v4159 = verf.f32.pop %v4095
        %v4160 = verf.f32.pop %v4096
        %v4161 = verf.f32.pop %v4097
        %v4162 = verf.f32.pop %v4098
        %v4163 = verf.f32.pop %v4099
        %v4164 = verf.f32.pop %v4100
        %v4165 = verf.f32.pop %v4101
        %v4166 = verf.f32.pop %v4102
        %v4167 = verf.f32.pop %v4103
        %v4168 = verf.f32.pop %v4104
        %v4169 = verf.f32.pop %v4105
        %v4170 = verf.f32.pop %v4106
        %v4171 = verf.f32.pop %v4107
        %v4172 = verf.f32.pop %v4108
        %v4173 = verf.f32.pop %v4109
        %v4174 = verf.f32.pop %v4110
        %v4175 = verf.f32.pop %v4111
        %v4176 = vadd.f32 %v4112, 1.0
        %v4177 = vadd.f32 %v4113, 1.0
        %v4178 = vadd.f32 %v4114, 1.0
        %v4179 = vadd.f32 %v4115, 1.0
        %v4180 = vadd.f32 %v4116, 1.0
        %v4181 = vadd.f32 %v4117, 1.0
        %v4182 = vadd.f32 %v4118, 1.0
        %v4183 = vadd.f32 %v4119, 1.0
        %v4184 = vadd.f32 %v4120, 1.0
        %v4185 = vadd.f32 %v4121, 1.0
        %v4186 = vadd.f32 %v4122, 1.0
        %v4187 = vadd.f32 %v4123, 1.0
        %v4188 = vadd.f32 %v4124, 1.0
        %v4189 = vadd.f32 %v4125, 1.0
        %v4190 = vadd.f32 %v4126, 1.0
        %v4191 = vadd.f32 %v4127, 1.0
        %v4192 = vadd.f32 %v4128, 1.0
        %v4193 = vadd.f32 %v4129, 1.0
        %v4194 = vadd.f32 %v4130, 1.0
        %v4195 = vadd.f32 %v4131, 1.0
        %v4196 = vadd.f32 %v4132, 1.0
        %v4197 = vadd.f32 %v4133, 1.0
        %v4198 = vadd.f32 %v4134, 1.0
        %v4199 = vadd.f32 %v4135, 1.0
        %v4200 = vadd.f32 %v4136, 1.0
        %v4201 = vadd.f32 %v4137, 1.0
        %v4202 = vadd.f32 %v4138, 1.0
        %v4203 = vadd.f32 %v4139, 1.0
        %v4204 = vadd.f32 %v4140, 1.0
        %v4205 = vadd.f32 %v4141, 1.0
        %v4206 = vadd.f32 %v4142, 1.0
        %v4207 = vadd.f32 %v4143, 1.0
        %v4208 = vadd.f32 %v4144, 1.0
        %v4209 = vadd.f32 %v4145, 1.0
        %v4210 = vadd.f32 %v4146, 1.0
        %v4211 = vadd.f32 %v4147, 1.0
        %v4212 = vadd.f32 %v4148, 1.0
        %v4213 = vadd.f32 %v4149, 1.0
        %v4214 = vadd.f32 %v4150, 1.0
        %v4215 = vadd.f32 %v4151, 1.0
        %v4216 = vadd.f32 %v4152, 1.0
        %v4217 = vadd.f32 %v4153, 1.0
        %v4218 = vadd.f32 %v4154, 1.0
        %v4219 = vadd.f32 %v4155, 1.0
        %v4220 = vadd.f32 %v4156, 1.0
        %v4221 = vadd.f32 %v4157, 1.0
        %v4222 = vadd.f32 %v4158, 1.0
        %v4223 = vadd.f32 %v4159, 1.0
        %v4224 = vadd.f32 %v4160, 1.0
        %v4225 = vadd.f32 %v4161, 1.0
        %v4226 = vadd.f32 %v4162, 1.0
        %v4227 = vadd.f32 %v4163, 1.0
        %v4228 = vadd.f32 %v4164, 1.0
        %v4229 = vadd.f32 %v4165, 1.0
        %v4230 = vadd.f32 %v4166, 1.0
        %v4231 = vadd.f32 %v4167, 1.0
        %v4232 = vadd.f32 %v4168, 1.0
        %v4233 = vadd.f32 %v4169, 1.0
        %v4234 = vadd.f32 %v4170, 1.0
        %v4235 = vadd.f32 %v4171, 1.0
        %v4236 = vadd.f32 %v4172, 1.0
        %v4237 = vadd.f32 %v4173, 1.0
        %v4238 = vadd.f32 %v4174, 1.0
        %v4239 = vadd.f32 %v4175, 1.0
        %v4240 = vmul.f32 %v3984, %v4176
        %v4241 = vmul.f32 %v3985, %v4177
        %v4242 = vmul.f32 %v3986, %v4178
        %v4243 = vmul.f32 %v3987, %v4179
        %v4244 = vmul.f32 %v3988, %v4180
        %v4245 = vmul.f32 %v3989, %v4181
        %v4246 = vmul.f32 %v3990, %v4182
        %v4247 = vmul.f32 %v3991, %v4183
        %v4248 = vmul.f32 %v3992, %v4184
        %v4249 = vmul.f32 %v3993, %v4185
        %v4250 = vmul.f32 %v3994, %v4186
        %v4251 = vmul.f32 %v3995, %v4187
        %v4252 = vmul.f32 %v3996, %v4188
        %v4253 = vmul.f32 %v3997, %v4189
        %v4254 = vmul.f32 %v3998, %v4190
        %v4255 = vmul.f32 %v3999, %v4191
        %v4256 = vmul.f32 %v4000, %v4192
        %v4257 = vmul.f32 %v4001, %v4193
        %v4258 = vmul.f32 %v4002, %v4194
        %v4259 = vmul.f32 %v4003, %v4195
        %v4260 = vmul.f32 %v4004, %v4196
        %v4261 = vmul.f32 %v4005, %v4197
        %v4262 = vmul.f32 %v4006, %v4198
        %v4263 = vmul.f32 %v4007, %v4199
        %v4264 = vmul.f32 %v4008, %v4200
        %v4265 = vmul.f32 %v4009, %v4201
        %v4266 = vmul.f32 %v4010, %v4202
        %v4267 = vmul.f32 %v4011, %v4203
        %v4268 = vmul.f32 %v4012, %v4204
        %v4269 = vmul.f32 %v4013, %v4205
        %v4270 = vmul.f32 %v4014, %v4206
        %v4271 = vmul.f32 %v4015, %v4207
        %v4272 = vmul.f32 %v4016, %v4208
        %v4273 = vmul.f32 %v4017, %v4209
        %v4274 = vmul.f32 %v4018, %v4210
        %v4275 = vmul.f32 %v4019, %v4211
        %v4276 = vmul.f32 %v4020, %v4212
        %v4277 = vmul.f32 %v4021, %v4213
        %v4278 = vmul.f32 %v4022, %v4214
        %v4279 = vmul.f32 %v4023, %v4215
        %v4280 = vmul.f32 %v4024, %v4216
        %v4281 = vmul.f32 %v4025, %v4217
        %v4282 = vmul.f32 %v4026, %v4218
        %v4283 = vmul.f32 %v4027, %v4219
        %v4284 = vmul.f32 %v4028, %v4220
        %v4285 = vmul.f32 %v4029, %v4221
        %v4286 = vmul.f32 %v4030, %v4222
        %v4287 = vmul.f32 %v4031, %v4223
        %v4288 = vmul.f32 %v4032, %v4224
        %v4289 = vmul.f32 %v4033, %v4225
        %v4290 = vmul.f32 %v4034, %v4226
        %v4291 = vmul.f32 %v4035, %v4227
        %v4292 = vmul.f32 %v4036, %v4228
        %v4293 = vmul.f32 %v4037, %v4229
        %v4294 = vmul.f32 %v4038, %v4230
        %v4295 = vmul.f32 %v4039, %v4231
        %v4296 = vmul.f32 %v4040, %v4232
        %v4297 = vmul.f32 %v4041, %v4233
        %v4298 = vmul.f32 %v4042, %v4234
        %v4299 = vmul.f32 %v4043, %v4235
        %v4300 = vmul.f32 %v4044, %v4236
        %v4301 = vmul.f32 %v4045, %v4237
        %v4302 = vmul.f32 %v4046, %v4238
        %v4303 = vmul.f32 %v4047, %v4239
        %v4304 = vpack.c.bf16 %v4244, %v4240
        %v4305 = vpack.c.bf16 %v4245, %v4241
        %v4306 = vpack.c.bf16 %v4246, %v4242
        %v4307 = vpack.c.bf16 %v4247, %v4243
        %v4308 = vpack.c.bf16 %v4252, %v4248
        %v4309 = vpack.c.bf16 %v4253, %v4249
        %v4310 = vpack.c.bf16 %v4254, %v4250
        %v4311 = vpack.c.bf16 %v4255, %v4251
        %v4312 = vpack.c.bf16 %v4260, %v4256
        %v4313 = vpack.c.bf16 %v4261, %v4257
        %v4314 = vpack.c.bf16 %v4262, %v4258
        %v4315 = vpack.c.bf16 %v4263, %v4259
        %v4316 = vpack.c.bf16 %v4268, %v4264
        %v4317 = vpack.c.bf16 %v4269, %v4265
        %v4318 = vpack.c.bf16 %v4270, %v4266
        %v4319 = vpack.c.bf16 %v4271, %v4267
        %v4320 = vpack.c.bf16 %v4276, %v4272
        %v4321 = vpack.c.bf16 %v4277, %v4273
        %v4322 = vpack.c.bf16 %v4278, %v4274
        %v4323 = vpack.c.bf16 %v4279, %v4275
        %v4324 = vpack.c.bf16 %v4284, %v4280
        %v4325 = vpack.c.bf16 %v4285, %v4281
        %v4326 = vpack.c.bf16 %v4286, %v4282
        %v4327 = vpack.c.bf16 %v4287, %v4283
        %v4328 = vpack.c.bf16 %v4292, %v4288
        %v4329 = vpack.c.bf16 %v4293, %v4289
        %v4330 = vpack.c.bf16 %v4294, %v4290
        %v4331 = vpack.c.bf16 %v4295, %v4291
        %v4332 = vpack.c.bf16 %v4300, %v4296
        %v4333 = vpack.c.bf16 %v4301, %v4297
        %v4334 = vpack.c.bf16 %v4302, %v4298
        %v4335 = vpack.c.bf16 %v4303, %v4299
        %v4336 = vld [vmem:[#allocation23] sm:$0xf]
        %v4337 = vld [vmem:[#allocation23 + $0x4] sm:$0xf]
        %v4338 = vld [vmem:[#allocation23 + $0x8] sm:$0xf]
        %v4339 = vld [vmem:[#allocation23 + $0xc] sm:$0xf]
        %v4340 = vld [vmem:[#allocation23 + $0x10] sm:$0xf]
        %v4341 = vld [vmem:[#allocation23 + $0x14] sm:$0xf]
        %v4342 = vld [vmem:[#allocation23 + $0x18] sm:$0xf]
        %v4343 = vld [vmem:[#allocation23 + $0x1c] sm:$0xf]
        %v4344 = vld [vmem:[#allocation23 + $0x20] sm:$0xf]
        %v4345 = vld [vmem:[#allocation23 + $0x24] sm:$0xf]
        %v4346 = vld [vmem:[#allocation23 + $0x28] sm:$0xf]
        %v4347 = vld [vmem:[#allocation23 + $0x2c] sm:$0xf]
        %v4348 = vld [vmem:[#allocation23 + $0x30] sm:$0xf]
        %v4349 = vld [vmem:[#allocation23 + $0x34] sm:$0xf]
        %v4350 = vld [vmem:[#allocation23 + $0x38] sm:$0xf]
        %v4351 = vld [vmem:[#allocation23 + $0x3c] sm:$0xf]
        %v4352 = vld [vmem:[#allocation23 + $0x40] sm:$0xf]
        %v4353 = vld [vmem:[#allocation23 + $0x44] sm:$0xf]
        %v4354 = vld [vmem:[#allocation23 + $0x48] sm:$0xf]
        %v4355 = vld [vmem:[#allocation23 + $0x4c] sm:$0xf]
        %v4356 = vld [vmem:[#allocation23 + $0x50] sm:$0xf]
        %v4357 = vld [vmem:[#allocation23 + $0x54] sm:$0xf]
        %v4358 = vld [vmem:[#allocation23 + $0x58] sm:$0xf]
        %v4359 = vld [vmem:[#allocation23 + $0x5c] sm:$0xf]
        %v4360 = vld [vmem:[#allocation23 + $0x60] sm:$0xf]
        %v4361 = vld [vmem:[#allocation23 + $0x64] sm:$0xf]
        %v4362 = vld [vmem:[#allocation23 + $0x68] sm:$0xf]
        %v4363 = vld [vmem:[#allocation23 + $0x6c] sm:$0xf]
        %v4364 = vld [vmem:[#allocation23 + $0x70] sm:$0xf]
        %v4365 = vld [vmem:[#allocation23 + $0x74] sm:$0xf]
        %v4366 = vld [vmem:[#allocation23 + $0x78] sm:$0xf]
        %v4367 = vld [vmem:[#allocation23 + $0x7c] sm:$0xf]
        %v4368 = vld [vmem:[#allocation23 + $0x80] sm:$0xf]
        %v4369 = vld [vmem:[#allocation23 + $0x84] sm:$0xf]
        %v4370 = vld [vmem:[#allocation23 + $0x88] sm:$0xf]
        %v4371 = vld [vmem:[#allocation23 + $0x8c] sm:$0xf]
        %v4372 = vld [vmem:[#allocation23 + $0x90] sm:$0xf]
        %v4373 = vld [vmem:[#allocation23 + $0x94] sm:$0xf]
        %v4374 = vld [vmem:[#allocation23 + $0x98] sm:$0xf]
        %v4375 = vld [vmem:[#allocation23 + $0x9c] sm:$0xf]
        %v4376 = vld [vmem:[#allocation23 + $0xa0] sm:$0xf]
        %v4377 = vld [vmem:[#allocation23 + $0xa4] sm:$0xf]
        %v4378 = vld [vmem:[#allocation23 + $0xa8] sm:$0xf]
        %v4379 = vld [vmem:[#allocation23 + $0xac] sm:$0xf]
        %v4380 = vld [vmem:[#allocation23 + $0xb0] sm:$0xf]
        %v4381 = vld [vmem:[#allocation23 + $0xb4] sm:$0xf]
        %v4382 = vld [vmem:[#allocation23 + $0xb8] sm:$0xf]
        %v4383 = vld [vmem:[#allocation23 + $0xbc] sm:$0xf]
        %v4384 = vld [vmem:[#allocation23 + $0xc0] sm:$0xf]
        %v4385 = vld [vmem:[#allocation23 + $0xc4] sm:$0xf]
        %v4386 = vld [vmem:[#allocation23 + $0xc8] sm:$0xf]
        %v4387 = vld [vmem:[#allocation23 + $0xcc] sm:$0xf]
        %v4388 = vld [vmem:[#allocation23 + $0xd0] sm:$0xf]
        %v4389 = vld [vmem:[#allocation23 + $0xd4] sm:$0xf]
        %v4390 = vld [vmem:[#allocation23 + $0xd8] sm:$0xf]
        %v4391 = vld [vmem:[#allocation23 + $0xdc] sm:$0xf]
        %v4392 = vld [vmem:[#allocation23 + $0xe0] sm:$0xf]
        %v4393 = vld [vmem:[#allocation23 + $0xe4] sm:$0xf]
        %v4394 = vld [vmem:[#allocation23 + $0xe8] sm:$0xf]
        %v4395 = vld [vmem:[#allocation23 + $0xec] sm:$0xf]
        %v4396 = vld [vmem:[#allocation23 + $0xf0] sm:$0xf]
        %v4397 = vld [vmem:[#allocation23 + $0xf4] sm:$0xf]
        %v4398 = vld [vmem:[#allocation23 + $0xf8] sm:$0xf]
        %v4399 = vld [vmem:[#allocation23 + $0xfc] sm:$0xf]
        %v4400 = vld [vmem:[#allocation25] sm:$0x1]
        %v4402 = vlaneseq
        %v4403 = vshrl.u32 %v4402, 7
        %v4404 = vsub.s32 0, %v4403
        %v4405 = vrot.slane %v4400, %v4404
        %v4471 = vunpack.c.l.b16 %v4336
        %v4472 = vunpack.c.l.b16 %v4337
        %v4473 = vunpack.c.l.b16 %v4338
        %v4474 = vunpack.c.l.b16 %v4339
        %v4475 = vunpack.c.l.b16 %v4340
        %v4476 = vunpack.c.l.b16 %v4341
        %v4477 = vunpack.c.l.b16 %v4342
        %v4478 = vunpack.c.l.b16 %v4343
        %v4479 = vunpack.c.l.b16 %v4344
        %v4480 = vunpack.c.l.b16 %v4345
        %v4481 = vunpack.c.l.b16 %v4346
        %v4482 = vunpack.c.l.b16 %v4347
        %v4483 = vunpack.c.l.b16 %v4348
        %v4484 = vunpack.c.l.b16 %v4349
        %v4485 = vunpack.c.l.b16 %v4350
        %v4486 = vunpack.c.l.b16 %v4351
        %v4487 = vunpack.c.l.b16 %v4352
        %v4488 = vunpack.c.l.b16 %v4353
        %v4489 = vunpack.c.l.b16 %v4354
        %v4490 = vunpack.c.l.b16 %v4355
        %v4491 = vunpack.c.l.b16 %v4356
        %v4492 = vunpack.c.l.b16 %v4357
        %v4493 = vunpack.c.l.b16 %v4358
        %v4494 = vunpack.c.l.b16 %v4359
        %v4495 = vunpack.c.l.b16 %v4360
        %v4496 = vunpack.c.l.b16 %v4361
        %v4497 = vunpack.c.l.b16 %v4362
        %v4498 = vunpack.c.l.b16 %v4363
        %v4499 = vunpack.c.l.b16 %v4364
        %v4500 = vunpack.c.l.b16 %v4365
        %v4501 = vunpack.c.l.b16 %v4366
        %v4502 = vunpack.c.l.b16 %v4367
        %v4503 = vunpack.c.l.b16 %v4368
        %v4504 = vunpack.c.l.b16 %v4369
        %v4505 = vunpack.c.l.b16 %v4370
        %v4506 = vunpack.c.l.b16 %v4371
        %v4507 = vunpack.c.l.b16 %v4372
        %v4508 = vunpack.c.l.b16 %v4373
        %v4509 = vunpack.c.l.b16 %v4374
        %v4510 = vunpack.c.l.b16 %v4375
        %v4511 = vunpack.c.l.b16 %v4376
        %v4512 = vunpack.c.l.b16 %v4377
        %v4513 = vunpack.c.l.b16 %v4378
        %v4514 = vunpack.c.l.b16 %v4379
        %v4515 = vunpack.c.l.b16 %v4380
        %v4516 = vunpack.c.l.b16 %v4381
        %v4517 = vunpack.c.l.b16 %v4382
        %v4518 = vunpack.c.l.b16 %v4383
        %v4519 = vunpack.c.l.b16 %v4384
        %v4520 = vunpack.c.l.b16 %v4385
        %v4521 = vunpack.c.l.b16 %v4386
        %v4522 = vunpack.c.l.b16 %v4387
        %v4523 = vunpack.c.l.b16 %v4388
        %v4524 = vunpack.c.l.b16 %v4389
        %v4525 = vunpack.c.l.b16 %v4390
        %v4526 = vunpack.c.l.b16 %v4391
        %v4527 = vunpack.c.l.b16 %v4392
        %v4528 = vunpack.c.l.b16 %v4393
        %v4529 = vunpack.c.l.b16 %v4394
        %v4530 = vunpack.c.l.b16 %v4395
        %v4531 = vunpack.c.l.b16 %v4396
        %v4532 = vunpack.c.l.b16 %v4397
        %v4533 = vunpack.c.l.b16 %v4398
        %v4534 = vunpack.c.l.b16 %v4399
        %v4535 = vpack.c.b16 %v4472, %v4471
        %v4536 = vpack.c.b16 %v4474, %v4473
        %v4537 = vpack.c.b16 %v4476, %v4475
        %v4538 = vpack.c.b16 %v4478, %v4477
        %v4539 = vpack.c.b16 %v4480, %v4479
        %v4540 = vpack.c.b16 %v4482, %v4481
        %v4541 = vpack.c.b16 %v4484, %v4483
        %v4542 = vpack.c.b16 %v4486, %v4485
        %v4543 = vpack.c.b16 %v4488, %v4487
        %v4544 = vpack.c.b16 %v4490, %v4489
        %v4545 = vpack.c.b16 %v4492, %v4491
        %v4546 = vpack.c.b16 %v4494, %v4493
        %v4547 = vpack.c.b16 %v4496, %v4495
        %v4548 = vpack.c.b16 %v4498, %v4497
        %v4549 = vpack.c.b16 %v4500, %v4499
        %v4550 = vpack.c.b16 %v4502, %v4501
        %v4551 = vpack.c.b16 %v4504, %v4503
        %v4552 = vpack.c.b16 %v4506, %v4505
        %v4553 = vpack.c.b16 %v4508, %v4507
        %v4554 = vpack.c.b16 %v4510, %v4509
        %v4555 = vpack.c.b16 %v4512, %v4511
        %v4556 = vpack.c.b16 %v4514, %v4513
        %v4557 = vpack.c.b16 %v4516, %v4515
        %v4558 = vpack.c.b16 %v4518, %v4517
        %v4559 = vpack.c.b16 %v4520, %v4519
        %v4560 = vpack.c.b16 %v4522, %v4521
        %v4561 = vpack.c.b16 %v4524, %v4523
        %v4562 = vpack.c.b16 %v4526, %v4525
        %v4563 = vpack.c.b16 %v4528, %v4527
        %v4564 = vpack.c.b16 %v4530, %v4529
        %v4565 = vpack.c.b16 %v4532, %v4531
        %v4566 = vpack.c.b16 %v4534, %v4533
        %4599 = vmatprep.subr.bf16.mxu0 0
        %4600 = vmatpush1.bf16.msra.mxu0 %v4535
        %4601 = vmatprep.subr.bf16.mxu0 0
        %4602 = vmatpush1.bf16.msra.mxu0 %v4536
        %4603 = vmatprep.subr.bf16.mxu0 0
        %4604 = vmatpush1.bf16.msra.mxu0 %v4537
        %4605 = vmatprep.subr.bf16.mxu0 0
        %4606 = vmatpush1.bf16.msra.mxu0 %v4538
        %4607 = vmatprep.subr.bf16.mxu0 0
        %4608 = vmatpush1.bf16.msra.mxu0 %v4539
        %4609 = vmatprep.subr.bf16.mxu0 0
        %4610 = vmatpush1.bf16.msra.mxu0 %v4540
        %4611 = vmatprep.subr.bf16.mxu0 0
        %4612 = vmatpush1.bf16.msra.mxu0 %v4541
        %4613 = vmatprep.subr.bf16.mxu0 0
        %4614 = vmatpush1.bf16.msra.mxu0 %v4542
        %4615 = vmatprep.subr.bf16.mxu0 0
        %4616 = vmatpush1.bf16.msra.mxu0 %v4543
        %4617 = vmatprep.subr.bf16.mxu0 0
        %4618 = vmatpush1.bf16.msra.mxu0 %v4544
        %4619 = vmatprep.subr.bf16.mxu0 0
        %4620 = vmatpush1.bf16.msra.mxu0 %v4545
        %4621 = vmatprep.subr.bf16.mxu0 0
        %4622 = vmatpush1.bf16.msra.mxu0 %v4546
        %4623 = vmatprep.subr.bf16.mxu0 0
        %4624 = vmatpush1.bf16.msra.mxu0 %v4547
        %4625 = vmatprep.subr.bf16.mxu0 0
        %4626 = vmatpush1.bf16.msra.mxu0 %v4548
        %4627 = vmatprep.subr.bf16.mxu0 0
        %4628 = vmatpush1.bf16.msra.mxu0 %v4549
        %4629 = vmatprep.subr.bf16.mxu0 0
        %4630 = vmatpush1.bf16.msra.mxu0 %v4550
        %4631 = vmatprep.mubr.bf16.mxu0 %v4305
        %4632 = vmatmul.mubr.bf16.gmra.mrb[0].mxu0 %v4304
        %v4633 = vpop.f32.mrb[0].mxu0
        %v4634 = vadd.f32 %v4405, %v4633
        %v4635 = vpop.f32.mrb[0].mxu0
        %v4636 = vpop.f32.mrb[0].mxu0
        %v4637 = vadd.f32 %v4405, %v4636
        %v4638 = vpop.f32.mrb[0].mxu0
        %4639 = vmatprep.mubr.bf16.mxu0 %v4309
        %4640 = vmatmul.mubr.bf16.gmra.mrb[0].mxu0 %v4308
        %v4641 = vpop.f32.mrb[0].mxu0
        %v4642 = vadd.f32 %v4405, %v4641
        %v4643 = vpop.f32.mrb[0].mxu0
        %v4644 = vpop.f32.mrb[0].mxu0
        %v4645 = vadd.f32 %v4405, %v4644
        %v4646 = vpop.f32.mrb[0].mxu0
        %4647 = vmatprep.mubr.bf16.mxu0 %v4313
        %4648 = vmatmul.mubr.bf16.gmra.mrb[0].mxu0 %v4312
        %v4649 = vpop.f32.mrb[0].mxu0
        %v4650 = vadd.f32 %v4405, %v4649
        %v4651 = vpop.f32.mrb[0].mxu0
        %v4652 = vpop.f32.mrb[0].mxu0
        %v4653 = vadd.f32 %v4405, %v4652
        %v4654 = vpop.f32.mrb[0].mxu0
        %4655 = vmatprep.mubr.bf16.mxu0 %v4317
        %4656 = vmatmul.mubr.bf16.gmra.mrb[0].mxu0 %v4316
        %v4657 = vpop.f32.mrb[0].mxu0
        %v4658 = vadd.f32 %v4405, %v4657
        %v4659 = vpop.f32.mrb[0].mxu0
        %v4660 = vpop.f32.mrb[0].mxu0
        %v4661 = vadd.f32 %v4405, %v4660
        %v4662 = vpop.f32.mrb[0].mxu0
        %4663 = vmatprep.mubr.bf16.mxu0 %v4321
        %4664 = vmatmul.mubr.bf16.gmra.mrb[0].mxu0 %v4320
        %v4665 = vpop.f32.mrb[0].mxu0
        %v4666 = vadd.f32 %v4405, %v4665
        %v4667 = vpop.f32.mrb[0].mxu0
        %v4668 = vpop.f32.mrb[0].mxu0
        %v4669 = vadd.f32 %v4405, %v4668
        %v4670 = vpop.f32.mrb[0].mxu0
        %4671 = vmatprep.mubr.bf16.mxu0 %v4325
        %4672 = vmatmul.mubr.bf16.gmra.mrb[0].mxu0 %v4324
        %v4673 = vpop.f32.mrb[0].mxu0
        %v4674 = vadd.f32 %v4405, %v4673
        %v4675 = vpop.f32.mrb[0].mxu0
        %v4676 = vpop.f32.mrb[0].mxu0
        %v4677 = vadd.f32 %v4405, %v4676
        %v4678 = vpop.f32.mrb[0].mxu0
        %4679 = vmatprep.mubr.bf16.mxu0 %v4329
        %4680 = vmatmul.mubr.bf16.gmra.mrb[0].mxu0 %v4328
        %v4681 = vpop.f32.mrb[0].mxu0
        %v4682 = vadd.f32 %v4405, %v4681
        %v4683 = vpop.f32.mrb[0].mxu0
        %v4684 = vpop.f32.mrb[0].mxu0
        %v4685 = vadd.f32 %v4405, %v4684
        %v4686 = vpop.f32.mrb[0].mxu0
        %4687 = vmatprep.mubr.bf16.mxu0 %v4333
        %4688 = vmatmul.mubr.bf16.gmra.mrb[0].mxu0 %v4332
        %v4689 = vpop.f32.mrb[0].mxu0
        %v4690 = vadd.f32 %v4405, %v4689
        %v4691 = vpop.f32.mrb[0].mxu0
        %v4692 = vpop.f32.mrb[0].mxu0
        %v4693 = vadd.f32 %v4405, %v4692
        %v4694 = vpop.f32.mrb[0].mxu0
        %4695 = vdwg.mxu0
        %4696 = vmatprep.subr.bf16.mxu0 0
        %4697 = vmatpush1.bf16.msra.mxu0 %v4551
        %4698 = vmatprep.subr.bf16.mxu0 0
        %4699 = vmatpush1.bf16.msra.mxu0 %v4552
        %4700 = vmatprep.subr.bf16.mxu0 0
        %4701 = vmatpush1.bf16.msra.mxu0 %v4553
        %4702 = vmatprep.subr.bf16.mxu0 0
        %4703 = vmatpush1.bf16.msra.mxu0 %v4554
        %4704 = vmatprep.subr.bf16.mxu0 0
        %4705 = vmatpush1.bf16.msra.mxu0 %v4555
        %4706 = vmatprep.subr.bf16.mxu0 0
        %4707 = vmatpush1.bf16.msra.mxu0 %v4556
        %4708 = vmatprep.subr.bf16.mxu0 0
        %4709 = vmatpush1.bf16.msra.mxu0 %v4557
        %4710 = vmatprep.subr.bf16.mxu0 0
        %4711 = vmatpush1.bf16.msra.mxu0 %v4558
        %4712 = vmatprep.subr.bf16.mxu0 0
        %4713 = vmatpush1.bf16.msra.mxu0 %v4559
        %4714 = vmatprep.subr.bf16.mxu0 0
        %4715 = vmatpush1.bf16.msra.mxu0 %v4560
        %4716 = vmatprep.subr.bf16.mxu0 0
        %4717 = vmatpush1.bf16.msra.mxu0 %v4561
        %4718 = vmatprep.subr.bf16.mxu0 0
        %4719 = vmatpush1.bf16.msra.mxu0 %v4562
        %4720 = vmatprep.subr.bf16.mxu0 0
        %4721 = vmatpush1.bf16.msra.mxu0 %v4563
        %4722 = vmatprep.subr.bf16.mxu0 0
        %4723 = vmatpush1.bf16.msra.mxu0 %v4564
        %4724 = vmatprep.subr.bf16.mxu0 0
        %4725 = vmatpush1.bf16.msra.mxu0 %v4565
        %4726 = vmatprep.subr.bf16.mxu0 0
        %4727 = vmatpush1.bf16.msra.mxu0 %v4566
        %4728 = vmatprep.mubr.bf16.mxu0 %v4307
        %4729 = vmatmul.mubr.bf16.gmra.mrb[0].mxu0 %v4306
        %v4730 = vpop.f32.mrb[0].mxu0
        %v4731 = vadd.f32 %v4634, %v4730
        %v4732 = vpop.f32.mrb[0].mxu0
        %v4733 = vpop.f32.mrb[0].mxu0
        %v4734 = vadd.f32 %v4637, %v4733
        %v4735 = vpop.f32.mrb[0].mxu0
        %4736 = vmatprep.mubr.bf16.mxu0 %v4311
        %4737 = vmatmul.mubr.bf16.gmra.mrb[0].mxu0 %v4310
        %v4738 = vpop.f32.mrb[0].mxu0
        %v4739 = vadd.f32 %v4642, %v4738
        %v4740 = vpop.f32.mrb[0].mxu0
        %v4741 = vpop.f32.mrb[0].mxu0
        %v4742 = vadd.f32 %v4645, %v4741
        %v4743 = vpop.f32.mrb[0].mxu0
        %4744 = vmatprep.mubr.bf16.mxu0 %v4315
        %4745 = vmatmul.mubr.bf16.gmra.mrb[0].mxu0 %v4314
        %v4746 = vpop.f32.mrb[0].mxu0
        %v4747 = vadd.f32 %v4650, %v4746
        %v4748 = vpop.f32.mrb[0].mxu0
        %v4749 = vpop.f32.mrb[0].mxu0
        %v4750 = vadd.f32 %v4653, %v4749
        %v4751 = vpop.f32.mrb[0].mxu0
        %4752 = vmatprep.mubr.bf16.mxu0 %v4319
        %4753 = vmatmul.mubr.bf16.gmra.mrb[0].mxu0 %v4318
        %v4754 = vpop.f32.mrb[0].mxu0
        %v4755 = vadd.f32 %v4658, %v4754
        %v4756 = vpop.f32.mrb[0].mxu0
        %v4757 = vpop.f32.mrb[0].mxu0
        %v4758 = vadd.f32 %v4661, %v4757
        %v4759 = vpop.f32.mrb[0].mxu0
        %4760 = vmatprep.mubr.bf16.mxu0 %v4323
        %4761 = vmatmul.mubr.bf16.gmra.mrb[0].mxu0 %v4322
        %v4762 = vpop.f32.mrb[0].mxu0
        %v4763 = vadd.f32 %v4666, %v4762
        %v4764 = vpop.f32.mrb[0].mxu0
        %v4765 = vpop.f32.mrb[0].mxu0
        %v4766 = vadd.f32 %v4669, %v4765
        %v4767 = vpop.f32.mrb[0].mxu0
        %4768 = vmatprep.mubr.bf16.mxu0 %v4327
        %4769 = vmatmul.mubr.bf16.gmra.mrb[0].mxu0 %v4326
        %v4770 = vpop.f32.mrb[0].mxu0
        %v4771 = vadd.f32 %v4674, %v4770
        %v4772 = vpop.f32.mrb[0].mxu0
        %v4773 = vpop.f32.mrb[0].mxu0
        %v4774 = vadd.f32 %v4677, %v4773
        %v4775 = vpop.f32.mrb[0].mxu0
        %4776 = vmatprep.mubr.bf16.mxu0 %v4331
        %4777 = vmatmul.mubr.bf16.gmra.mrb[0].mxu0 %v4330
        %v4778 = vpop.f32.mrb[0].mxu0
        %v4779 = vadd.f32 %v4682, %v4778
        %v4780 = vpop.f32.mrb[0].mxu0
        %v4781 = vpop.f32.mrb[0].mxu0
        %v4782 = vadd.f32 %v4685, %v4781
        %v4783 = vpop.f32.mrb[0].mxu0
        %4784 = vmatprep.mubr.bf16.mxu0 %v4335
        %4785 = vmatmul.mubr.bf16.gmra.mrb[0].mxu0 %v4334
        %v4786 = vpop.f32.mrb[0].mxu0
        %v4787 = vadd.f32 %v4690, %v4786
        %v4788 = vpop.f32.mrb[0].mxu0
        %v4789 = vpop.f32.mrb[0].mxu0
        %v4790 = vadd.f32 %v4693, %v4789
        %v4791 = vpop.f32.mrb[0].mxu0
        %4792 = vdwg.mxu0
        %v4793 = vadd.f32 %v3298, %v4731
        %v4794 = vadd.f32 %v3299, %v4734
        %v4795 = vadd.f32 %v3300, %v4739
        %v4796 = vadd.f32 %v3301, %v4742
        %v4797 = vadd.f32 %v3302, %v4747
        %v4798 = vadd.f32 %v3303, %v4750
        %v4799 = vadd.f32 %v3304, %v4755
        %v4800 = vadd.f32 %v3305, %v4758
        %v4801 = vadd.f32 %v3306, %v4763
        %v4802 = vadd.f32 %v3307, %v4766
        %v4803 = vadd.f32 %v3308, %v4771
        %v4804 = vadd.f32 %v3309, %v4774
        %v4805 = vadd.f32 %v3310, %v4779
        %v4806 = vadd.f32 %v3311, %v4782
        %v4807 = vadd.f32 %v3312, %v4787
        %v4808 = vadd.f32 %v3313, %v4790
        %4809 = vst [vmem:[%s855] sm:$0xff] %v4793
        %4810 = vst [vmem:[%s855 + $0x8] sm:$0xff] %v4794
        %4811 = vst [vmem:[%s855 + $0x10] sm:$0xff] %v4795
        %4812 = vst [vmem:[%s855 + $0x18] sm:$0xff] %v4796
        %4813 = vst [vmem:[%s855 + $0x20] sm:$0xff] %v4797
        %4814 = vst [vmem:[%s855 + $0x28] sm:$0xff] %v4798
        %4815 = vst [vmem:[%s855 + $0x30] sm:$0xff] %v4799
        %4816 = vst [vmem:[%s855 + $0x38] sm:$0xff] %v4800
        %4817 = vst [vmem:[%s855 + $0x40] sm:$0xff] %v4801
        %4818 = vst [vmem:[%s855 + $0x48] sm:$0xff] %v4802
        %4819 = vst [vmem:[%s855 + $0x50] sm:$0xff] %v4803
        %4820 = vst [vmem:[%s855 + $0x58] sm:$0xff] %v4804
        %4821 = vst [vmem:[%s855 + $0x60] sm:$0xff] %v4805
        %4822 = vst [vmem:[%s855 + $0x68] sm:$0xff] %v4806
        %4823 = vst [vmem:[%s855 + $0x70] sm:$0xff] %v4807
        %4824 = vst [vmem:[%s855 + $0x78] sm:$0xff] %v4808
        %s4825 = sand.u32 %s484, 1
        %s4826 = scalar_lea.sflag [#allocation4], %s4825
        %s4827 = sand.u32 %s484, 1
        %s4828 = smul.addr %s4827, 128
        %s4829 = scalar_lea.vmem [#allocation26], %s4828
        // Predicated region
        $region161: #{cross_attention_block.1} parent=99 // pred_check
          %p4830 = pneg %p494
        $region162: #{cross_attention_block.1} parent=99 // pred_check_branch
          %4832 = sbr.rel (%p4830) target = $region164
        $region163: #{cross_attention_block.1} parent=99 // pred_region
          %s4833 = smul.u32 8, %s46
          %s4835 = ssub.s32 2048, 2048
          %4836 = vsyncadd %s4826, %s4835
          %s4837 = smul.addr %s4833, 2
          %s4838 = smul.addr %s4837, 128
          %s4839 = scalar_lea.hbm %s20, %s4838
          %s4840 = sshll.u32 %s4829, 4
          %s4841 = int_to_ptr.vmem [resolvable:$true] %s4840
          %4846 = dma.vmem_to_hbm [thread:$0]  %s4841, 2048, %s4839, %s4826, 128, 128, 8
        $region164: #{cross_attention_block.1} parent=99 // pred_fallthru
          _
      $region100: #{cross_attention_block.1} parent=5 // pred_fallthru
        _
      %p4847 = scmp.le.s32.totalorder 2, %s41
      // Predicated region
      $region165: #{cross_attention_block.1} parent=5 // pred_check
        %p4848 = pneg %p4847
      $region166: #{cross_attention_block.1} parent=5 // pred_check_branch
        %4850 = sbr.rel (%p4848) target = $region168
      $region167: #{cross_attention_block.1} parent=5 // pred_region
        %s4851 = ssub.s32 %s41, 2
        // Predicated region
        $region169: #{cross_attention_block.1} parent=167 // pred_check
          %p4852 = pneg %p500
        $region170: #{cross_attention_block.1} parent=167 // pred_check_branch
          %4854 = sbr.rel (%p4852) target = $region172
        $region171: #{cross_attention_block.1} parent=167 // pred_region
          %s4855 = sand.u32 %s485, 1
          %s4856 = scalar_lea.sflag [#allocation4], %s4855
          %s4857 = sand.u32 %s485, 1
          %s4858 = smul.addr %s4857, 128
          %s4859 = scalar_lea.vmem [#allocation26], %s4858
          %4860 = dma.done %s4856, 2048
        $region172: #{cross_attention_block.1} parent=167 // pred_fallthru
          _
      $region168: #{cross_attention_block.1} parent=5 // pred_fallthru
        _
    $region6: #{cross_attention_block.1} parent=1 // loop_footer
      %s45 = sadd.s32 1, %s41
    $region7: #{cross_attention_block.1} parent=1 // loop_footer_branch
      %40 = sbr.rel target = $region3
    $region8: #{cross_attention_block.1} parent=1 // loop_exit
      _
    %4861 = vsyncpa [#allocation3], 1
    %s4862 = scalar_lea.sflag [#allocation3], 1
    %4863 = vsyncpa %s4862, 1
    %4864 = vsyncpa [#allocation6], 1
    %s4865 = scalar_lea.sflag [#allocation6], 1
    %4866 = vsyncpa %s4865, 1
    %4867 = vsyncpa [#allocation9], 1
    %4868 = vsyncpa [#allocation12], 1
    %4869 = vsyncpa [#allocation15], 1
    %4870 = vsyncpa [#allocation18], 1
    %4871 = vsyncpa [#allocation21], 1
    %4872 = vsyncpa [#allocation24], 1
    %4873 = vsyncpa [#allocation4], 1
    %s4874 = scalar_lea.sflag [#allocation4], 1
    %4875 = vsyncpa %s4874, 1

</llo_original>
